<compile_context>
chip_gen: v7x
topology: tpu7x:2x2x1
jax: 0.10.0
libtpu: 0.0.40
codegen_flags: <defaults>
</compile_context>

<pallas_src>
import math
import numpy as np
import jax
import jax.numpy as jnp
from jax.experimental import pallas as pl
from jax.experimental.pallas import tpu as pltpu

# ---- hyper-parameters consistent with Decoders.__init__ ----
VOCAB = 50
H = 4
D_MODEL = 32
D_FF = 64
N_LAYER = 2
B = 2
S = 8
S_ENC = 8
D_K = D_MODEL // H
M = B * S
EPS = 1e-6
SQRT_D = math.sqrt(D_MODEL)
INV_SQRT_DK = 1.0 / math.sqrt(D_K)
NEG_INF = -1e9


# ----------------------------- fused Pallas kernel -----------------------------
def _decoders_fused_kernel(emb_ref, pe_ref, bias_ref,
                           ln_g_ref, ln_b_ref,
                           wqkv_ref, bqkv_ref, wo_ref, bo_ref,
                           w1_ref, b1_ref, w2_ref, b2_ref,
                           o_ref, ctx_ref):
    inv_nm1 = 1.0 / (D_MODEL - 1)

    def layernorm(x, idx):
        # torch: a2 * (x - mean) / (std + eps) + b2 ; std is unbiased (N-1)
        g = ln_g_ref[idx:idx + 1, :]           # (1, D)
        bt = ln_b_ref[idx:idx + 1, :]          # (1, D)
        mean = jnp.mean(x, axis=-1, keepdims=True)
        var = jnp.sum((x - mean) ** 2, axis=-1, keepdims=True) * inv_nm1
        std = jnp.sqrt(var)
        return g * (x - mean) * pl.reciprocal(std + EPS, approx=True) + bt

    def mha(x, a_idx, mask_idx):
        # fused QKV projection: (M, D) @ (D, 3D) -> (M, 3D)
        qkv = (jnp.dot(x, wqkv_ref[a_idx], preferred_element_type=jnp.float32)
               + bqkv_ref[a_idx])
        # unrolled scaled-dot-product attention over all (batch, head) pairs
        for b in range(B):
            bias = bias_ref[mask_idx * B + b]                    # (S, S) additive 0/-1e9
            r0, r1 = b * S, (b + 1) * S
            for h in range(H):
                c0, c1 = h * D_K, (h + 1) * D_K
                q = qkv[r0:r1, c0:c1]                            # (S, d_k)
                k = qkv[r0:r1, D_MODEL + c0:D_MODEL + c1]        # (S, d_k)
                v = qkv[r0:r1, 2 * D_MODEL + c0:2 * D_MODEL + c1]
                s = jax.lax.dot_general(
                    q, k, (((1,), (1,)), ((), ())),
                    preferred_element_type=jnp.float32)          # (S, S)
                s = s * INV_SQRT_DK + bias
                s = s - jnp.max(s, axis=-1, keepdims=True)
                e = jnp.exp(s)
                p = e * pl.reciprocal(jnp.sum(e, axis=-1, keepdims=True),
                                      approx=True)
                # TODO(synk): attention dropout treated as identity.
                ctx_ref[r0:r1, c0:c1] = jnp.dot(
                    p, v, preferred_element_type=jnp.float32)
        ctx = ctx_ref[...]                                       # (M, D) merged heads
        return (jnp.dot(ctx, wo_ref[a_idx], preferred_element_type=jnp.float32)
                + bo_ref[a_idx])

    def ffn(x, l):
        h1 = jnp.dot(x, w1_ref[l], preferred_element_type=jnp.float32) + b1_ref[l]
        h1 = jnp.maximum(h1, 0.0)
        return jnp.dot(h1, w2_ref[l], preferred_element_type=jnp.float32) + b2_ref[l]

    # Embeddings * sqrt(d_model) + positional encoding (dropout = identity)
    x = emb_ref[...] * SQRT_D + pe_ref[...]
    for l in range(N_LAYER):
        x = mha(layernorm(x, 3 * l), 2 * l, 0) + x          # decoder_attn (tgt mask)
        x = mha(layernorm(x, 3 * l + 1), 2 * l + 1, 1) + x  # "encoder"_attn (src mask)
        x = ffn(layernorm(x, 3 * l + 2), l) + x             # feed-forward
    o_ref[...] = layernorm(x, 3 * N_LAYER)                  # final LayerNorm


def _pallas_forward(emb_x, pe_b, bias_all, packed):
    return pl.pallas_call(
        _decoders_fused_kernel,
        out_shape=jax.ShapeDtypeStruct((M, D_MODEL), jnp.float32),
        scratch_shapes=[pltpu.VMEM((M, D_MODEL), jnp.float32)],  # merged-head ctx
    )(emb_x, pe_b, bias_all,
      packed["ln_g"], packed["ln_b"],
      packed["wqkv"], packed["bqkv"], packed["wo"], packed["bo"],
      packed["w1"], packed["b1"], packed["w2"], packed["b2"])


@jax.jit
def decoders_forward(src, encoder_out, src_mask, tgt_mask, packed, pe):
    # `encoder_out` is accepted for signature fidelity but (as in the reference
    # module) never used by any layer.
    del encoder_out
    emb_x = jnp.take(packed["emb"], src.reshape(-1), axis=0)           # (M, D)
    pe_b = jnp.broadcast_to(pe[:S][None], (B, S, D_MODEL)).reshape(M, D_MODEL)
    # additive-bias form of masked_fill (no fully-masked rows in these masks)
    tgt_bias = jnp.where(tgt_mask == 0.0, NEG_INF, 0.0).astype(jnp.float32)
    src_bias = jnp.where(src_mask == 0.0, NEG_INF, 0.0).astype(jnp.float32)
    bias_all = jnp.concatenate([tgt_bias, src_bias], axis=0)           # (2*B, S, S)
    out = _pallas_forward(emb_x, pe_b, bias_all, packed)
    return out.reshape(B, S, D_MODEL)


# ----------------------------- parameters -----------------------------
def init_params(key):
    keys = iter(jax.random.split(key, 128))

    def w(shape, scale=0.05):
        return jax.random.normal(next(keys), shape, jnp.float32) * scale

    def attn_params():
        return {
            "wq": w((D_MODEL, D_MODEL)), "bq": w((1, D_MODEL), 0.02),
            "wk": w((D_MODEL, D_MODEL)), "bk": w((1, D_MODEL), 0.02),
            "wv": w((D_MODEL, D_MODEL)), "bv": w((1, D_MODEL), 0.02),
            "wo": w((D_MODEL, D_MODEL)), "bo": w((1, D_MODEL), 0.02),
        }

    def ln_params():
        return 1.0 + w((1, D_MODEL), 0.05), w((1, D_MODEL), 0.05)

    layers = []
    for _ in range(N_LAYER):
        n1_g, n1_b = ln_params()
        n2_g, n2_b = ln_params()
        n3_g, n3_b = ln_params()
        layers.append({
            "dec": attn_params(),
            "enc": attn_params(),
            "ff": {"w1": w((D_MODEL, D_FF)), "b1": w((1, D_FF), 0.02),
                   "w2": w((D_FF, D_MODEL)), "b2": w((1, D_MODEL), 0.02)},
            "n1_g": n1_g, "n1_b": n1_b,
            "n2_g": n2_g, "n2_b": n2_b,
            "n3_g": n3_g, "n3_b": n3_b,
        })
    norm_g, norm_b = ln_params()
    return {"emb": w((VOCAB, D_MODEL), 0.1), "layers": layers,
            "norm_g": norm_g, "norm_b": norm_b}


def pack_params(params):
    """Stack per-layer weights along a leading axis; fuse Q/K/V weights."""
    def cat_qkv(p):
        return (jnp.concatenate([p["wq"], p["wk"], p["wv"]], axis=1),   # (D, 3D)
                jnp.concatenate([p["bq"], p["bk"], p["bv"]], axis=1))   # (1, 3D)

    ln_g, ln_b = [], []
    wqkv, bqkv, wo, bo = [], [], [], []
    w1, b1, w2, b2 = [], [], [], []
    for lp in params["layers"]:
        ln_g += [lp["n1_g"], lp["n2_g"], lp["n3_g"]]
        ln_b += [lp["n1_b"], lp["n2_b"], lp["n3_b"]]
        for blk in ("dec", "enc"):                       # index 2*l (dec), 2*l+1 (enc)
            wcat, bcat = cat_qkv(lp[blk])
            wqkv.append(wcat); bqkv.append(bcat)
            wo.append(lp[blk]["wo"]); bo.append(lp[blk]["bo"])
        w1.append(lp["ff"]["w1"]); b1.append(lp["ff"]["b1"])
        w2.append(lp["ff"]["w2"]); b2.append(lp["ff"]["b2"])
    ln_g.append(params["norm_g"]); ln_b.append(params["norm_b"])
    return {
        "emb": params["emb"],
        "ln_g": jnp.concatenate(ln_g, axis=0),           # (3*N_LAYER+1, D)
        "ln_b": jnp.concatenate(ln_b, axis=0),
        "wqkv": jnp.stack(wqkv),                         # (2*N_LAYER, D, 3D)
        "bqkv": jnp.stack(bqkv),                         # (2*N_LAYER, 1, 3D)
        "wo": jnp.stack(wo),                             # (2*N_LAYER, D, D)
        "bo": jnp.stack(bo),                             # (2*N_LAYER, 1, D)
        "w1": jnp.stack(w1), "b1": jnp.stack(b1),        # (N_LAYER, D, D_FF), (N_LAYER, 1, D_FF)
        "w2": jnp.stack(w2), "b2": jnp.stack(b2),        # (N_LAYER, D_FF, D), (N_LAYER, 1, D)
    }


def make_pe(max_len, d_model):
    pos = np.arange(max_len, dtype=np.float32)[:, None]
    div = np.exp(np.arange(0, d_model, 2, dtype=np.float32) * -(math.log(10000.0) / d_model))
    pe = np.zeros((max_len, d_model), dtype=np.float32)
    pe[:, 0::2] = np.sin(pos * div)
    pe[:, 1::2] = np.cos(pos * div)
    return jnp.asarray(pe)


# ----------------------------- pure-JAX reference -----------------------------
def _ref_ln(x, g, b):
    mean = x.mean(-1, keepdims=True)
    std = jnp.sqrt(((x - mean) ** 2).sum(-1, keepdims=True) / (x.shape[-1] - 1))
    return g * (x - mean) / (std + EPS) + b


def _ref_mha(x, p, mask):
    def lin(t, wt, bb):
        return t @ wt + bb

    def split(t):
        return t.reshape(B, S, H, D_K).transpose(0, 2, 1, 3)

    q = split(lin(x, p["wq"], p["bq"]))
    k = split(lin(x, p["wk"], p["bk"]))
    v = split(lin(x, p["wv"], p["bv"]))
    s = jnp.einsum("bhqd,bhkd->bhqk", q, k) / math.sqrt(D_K)
    s = jnp.where(mask[:, None] == 0.0, NEG_INF, s)
    pa = jax.nn.softmax(s, axis=-1)
    ctx = jnp.einsum("bhqk,bhkd->bhqd", pa, v).transpose(0, 2, 1, 3).reshape(B, S, D_MODEL)
    return lin(ctx, p["wo"], p["bo"])


def ref_forward(src, src_mask, tgt_mask, params, pe):
    x = jnp.take(params["emb"], src, axis=0) * SQRT_D + pe[:S][None]
    for lp in params["layers"]:
        x = _ref_mha(_ref_ln(x, lp["n1_g"], lp["n1_b"]), lp["dec"], tgt_mask) + x
        x = _ref_mha(_ref_ln(x, lp["n2_g"], lp["n2_b"]), lp["enc"], src_mask) + x
        xn = _ref_ln(x, lp["n3_g"], lp["n3_b"])
        x = jnp.maximum(xn @ lp["ff"]["w1"] + lp["ff"]["b1"], 0.0) @ lp["ff"]["w2"] + lp["ff"]["b2"] + x
    return _ref_ln(x, params["norm_g"], params["norm_b"])


# ----------------------------- main -----------------------------
if __name__ == "__main__":
    key = jax.random.PRNGKey(0)
    kp, ks, ke = jax.random.split(key, 3)
    params = init_params(kp)
    packed = pack_params(params)
    pe = make_pe(5000, D_MODEL)

    src = jax.random.randint(ks, (B, S), 0, VOCAB, dtype=jnp.int32)
    encoder_out = jax.random.normal(ke, (B, S_ENC, D_MODEL), jnp.float32)

    # tgt_mask: causal; src_mask: all-ones with two padded key positions in batch 1
    tgt_mask = jnp.broadcast_to(jnp.tril(jnp.ones((S, S), jnp.float32)), (B, S, S))
    src_mask = jnp.ones((B, S, S), jnp.float32).at[1, :, S - 2:].set(0.0)

    out = decoders_forward(src, encoder_out, src_mask, tgt_mask, packed, pe)
    out = jax.block_until_ready(out)

    ref = ref_forward(src, src_mask, tgt_mask, params, pe)
    np.testing.assert_allclose(np.asarray(out), np.asarray(ref), rtol=2e-2, atol=2e-2)
    assert out.shape == (B, S, D_MODEL)
    assert bool(jnp.all(jnp.isfinite(out)))
    print("KERNEL_OK")
</pallas_src>

<mosaic_0001>
module attributes {stable_mosaic.version = 11 : i64} {
  func.func @_decoders_fused_kernel(%arg0: memref<16x32xf32, #tpu.memory_space<vmem>>, %arg1: memref<16x32xf32, #tpu.memory_space<vmem>>, %arg2: memref<4x8x8xf32, #tpu.memory_space<vmem>>, %arg3: memref<7x32xf32, #tpu.memory_space<vmem>>, %arg4: memref<7x32xf32, #tpu.memory_space<vmem>>, %arg5: memref<4x32x96xf32, #tpu.memory_space<vmem>>, %arg6: memref<4x1x96xf32, #tpu.memory_space<vmem>>, %arg7: memref<4x32x32xf32, #tpu.memory_space<vmem>>, %arg8: memref<4x1x32xf32, #tpu.memory_space<vmem>>, %arg9: memref<2x32x64xf32, #tpu.memory_space<vmem>>, %arg10: memref<2x1x64xf32, #tpu.memory_space<vmem>>, %arg11: memref<2x64x32xf32, #tpu.memory_space<vmem>>, %arg12: memref<2x1x32xf32, #tpu.memory_space<vmem>>, %arg13: memref<16x32xf32, #tpu.memory_space<vmem>>, %arg14: memref<16x32xf32, #tpu.memory_space<vmem>>) attributes {dimension_semantics = [], scalar_prefetch = 0 : i64, scratch_operands = 1 : i64, tpu.core_type = #tpu.core_type<tc>} {
    %c0 = arith.constant 0 : index
    %c0_0 = arith.constant 0 : index
    %0 = vector.load %arg0[%c0, %c0_0] : memref<16x32xf32, #tpu.memory_space<vmem>>, vector<16x32xf32>
    %cst = arith.constant 5.65685415 : f32
    %1 = vector.broadcast %cst : f32 to vector<16x32xf32>
    %2 = arith.mulf %0, %1 : vector<16x32xf32>
    %c0_1 = arith.constant 0 : index
    %c0_2 = arith.constant 0 : index
    %3 = vector.load %arg1[%c0_1, %c0_2] : memref<16x32xf32, #tpu.memory_space<vmem>>, vector<16x32xf32>
    %4 = arith.addf %2, %3 : vector<16x32xf32>
    %c0_3 = arith.constant 0 : index
    %c0_4 = arith.constant 0 : index
    %5 = vector.load %arg3[%c0_3, %c0_4] : memref<7x32xf32, #tpu.memory_space<vmem>>, vector<1x32xf32>
    %c0_5 = arith.constant 0 : index
    %c0_6 = arith.constant 0 : index
    %6 = vector.load %arg4[%c0_5, %c0_6] : memref<7x32xf32, #tpu.memory_space<vmem>>, vector<1x32xf32>
    %cst_7 = arith.constant dense<0.000000e+00> : vector<16xf32>
    %7 = vector.multi_reduction <add>, %4, %cst_7 [1] : vector<16x32xf32> to vector<16xf32>
    %8 = vector.shape_cast %7 : vector<16xf32> to vector<16x1xf32>
    %cst_8 = arith.constant 3.200000e+01 : f32
    %9 = vector.broadcast %cst_8 : f32 to vector<16x1xf32>
    %10 = arith.divf %8, %9 : vector<16x1xf32>
    %11 = vector.broadcast %10 : vector<16x1xf32> to vector<16x32xf32>
    %12 = arith.subf %4, %11 : vector<16x32xf32>
    %13 = arith.mulf %12, %12 : vector<16x32xf32>
    %cst_9 = arith.constant dense<0.000000e+00> : vector<16xf32>
    %14 = vector.multi_reduction <add>, %13, %cst_9 [1] : vector<16x32xf32> to vector<16xf32>
    %15 = vector.shape_cast %14 : vector<16xf32> to vector<16x1xf32>
    %cst_10 = arith.constant 0.0322580636 : f32
    %16 = vector.broadcast %cst_10 : f32 to vector<16x1xf32>
    %17 = arith.mulf %15, %16 : vector<16x1xf32>
    %18 = math.sqrt %17 : vector<16x1xf32>
    %19 = vector.broadcast %10 : vector<16x1xf32> to vector<16x32xf32>
    %20 = arith.subf %4, %19 : vector<16x32xf32>
    %21 = vector.broadcast %5 : vector<1x32xf32> to vector<16x32xf32>
    %22 = arith.mulf %21, %20 : vector<16x32xf32>
    %cst_11 = arith.constant 9.99999997E-7 : f32
    %23 = vector.broadcast %cst_11 : f32 to vector<16x1xf32>
    %24 = arith.addf %18, %23 : vector<16x1xf32>
    %25 = tpu.reciprocal %24 {approx = true} : vector<16x1xf32> -> vector<16x1xf32>
    %26 = vector.broadcast %25 : vector<16x1xf32> to vector<16x32xf32>
    %27 = arith.mulf %22, %26 : vector<16x32xf32>
    %28 = vector.broadcast %6 : vector<1x32xf32> to vector<16x32xf32>
    %29 = arith.addf %27, %28 : vector<16x32xf32>
    %c0_12 = arith.constant 0 : index
    %c0_13 = arith.constant 0 : index
    %c0_14 = arith.constant 0 : index
    %30 = vector.load %arg5[%c0_12, %c0_13, %c0_14] : memref<4x32x96xf32, #tpu.memory_space<vmem>>, vector<1x32x96xf32>
    %31 = vector.shape_cast %30 : vector<1x32x96xf32> to vector<32x96xf32>
    %cst_15 = arith.constant dense<0.000000e+00> : vector<16x96xf32>
    %32 = tpu.matmul %29, %31, %cst_15 {dimension_numbers = #tpu.dot_dimension_numbers<[1], [0], [0], [1], [0, 0, 1, 1], [], []>} : vector<16x32xf32>, vector<32x96xf32>, vector<16x96xf32> -> vector<16x96xf32>
    %c0_16 = arith.constant 0 : index
    %c0_17 = arith.constant 0 : index
    %c0_18 = arith.constant 0 : index
    %33 = vector.load %arg6[%c0_16, %c0_17, %c0_18] : memref<4x1x96xf32, #tpu.memory_space<vmem>>, vector<1x1x96xf32>
    %34 = vector.shape_cast %33 : vector<1x1x96xf32> to vector<1x96xf32>
    %35 = vector.broadcast %34 : vector<1x96xf32> to vector<16x96xf32>
    %36 = arith.addf %32, %35 : vector<16x96xf32>
    %c0_19 = arith.constant 0 : index
    %c0_20 = arith.constant 0 : index
    %c0_21 = arith.constant 0 : index
    %37 = vector.load %arg2[%c0_19, %c0_20, %c0_21] : memref<4x8x8xf32, #tpu.memory_space<vmem>>, vector<1x8x8xf32>
    %38 = vector.shape_cast %37 : vector<1x8x8xf32> to vector<8x8xf32>
    %39 = vector.extract_strided_slice %36 {offsets = [0, 0], sizes = [8, 8], strides = [1, 1]} : vector<16x96xf32> to vector<8x8xf32>
    %40 = vector.extract_strided_slice %36 {offsets = [0, 32], sizes = [8, 8], strides = [1, 1]} : vector<16x96xf32> to vector<8x8xf32>
    %41 = vector.extract_strided_slice %36 {offsets = [0, 64], sizes = [8, 8], strides = [1, 1]} : vector<16x96xf32> to vector<8x8xf32>
    %cst_22 = arith.constant dense<0.000000e+00> : vector<8x8xf32>
    %42 = tpu.matmul %39, %40, %cst_22 {dimension_numbers = #tpu.dot_dimension_numbers<[1], [1], [0], [0], [0, 0, 1, 0], [], []>} : vector<8x8xf32>, vector<8x8xf32>, vector<8x8xf32> -> vector<8x8xf32>
    %cst_23 = arith.constant 0.353553385 : f32
    %43 = vector.broadcast %cst_23 : f32 to vector<8x8xf32>
    %44 = arith.mulf %42, %43 : vector<8x8xf32>
    %45 = arith.addf %44, %38 : vector<8x8xf32>
    %cst_24 = arith.constant dense<0xFF800000> : vector<8xf32>
    %46 = vector.multi_reduction <maximumf>, %45, %cst_24 [1] : vector<8x8xf32> to vector<8xf32>
    %47 = vector.shape_cast %46 : vector<8xf32> to vector<8x1xf32>
    %48 = vector.broadcast %47 : vector<8x1xf32> to vector<8x8xf32>
    %49 = arith.subf %45, %48 : vector<8x8xf32>
    %50 = math.exp %49 : vector<8x8xf32>
    %cst_25 = arith.constant dense<0.000000e+00> : vector<8xf32>
    %51 = vector.multi_reduction <add>, %50, %cst_25 [1] : vector<8x8xf32> to vector<8xf32>
    %52 = vector.shape_cast %51 : vector<8xf32> to vector<8x1xf32>
    %53 = tpu.reciprocal %52 {approx = true} : vector<8x1xf32> -> vector<8x1xf32>
    %54 = vector.broadcast %53 : vector<8x1xf32> to vector<8x8xf32>
    %55 = arith.mulf %50, %54 : vector<8x8xf32>
    %cst_26 = arith.constant dense<0.000000e+00> : vector<8x8xf32>
    %56 = tpu.matmul %55, %41, %cst_26 {dimension_numbers = #tpu.dot_dimension_numbers<[1], [0], [0], [1], [0, 0, 1, 1], [], []>} : vector<8x8xf32>, vector<8x8xf32>, vector<8x8xf32> -> vector<8x8xf32>
    %c0_27 = arith.constant 0 : index
    %c0_28 = arith.constant 0 : index
    %57 = vector.load %arg14[%c0_27, %c0_28] : memref<16x32xf32, #tpu.memory_space<vmem>>, vector<8x8xf32>
    tpu.vector_store %arg14[%c0_27, %c0_28], %56 {strides = array<i32>} : memref<16x32xf32, #tpu.memory_space<vmem>>, vector<8x8xf32>,
    %58 = vector.extract_strided_slice %36 {offsets = [0, 8], sizes = [8, 8], strides = [1, 1]} : vector<16x96xf32> to vector<8x8xf32>
    %59 = vector.extract_strided_slice %36 {offsets = [0, 40], sizes = [8, 8], strides = [1, 1]} : vector<16x96xf32> to vector<8x8xf32>
    %60 = vector.extract_strided_slice %36 {offsets = [0, 72], sizes = [8, 8], strides = [1, 1]} : vector<16x96xf32> to vector<8x8xf32>
    %cst_29 = arith.constant dense<0.000000e+00> : vector<8x8xf32>
    %61 = tpu.matmul %58, %59, %cst_29 {dimension_numbers = #tpu.dot_dimension_numbers<[1], [1], [0], [0], [0, 0, 1, 0], [], []>} : vector<8x8xf32>, vector<8x8xf32>, vector<8x8xf32> -> vector<8x8xf32>
    %cst_30 = arith.constant 0.353553385 : f32
    %62 = vector.broadcast %cst_30 : f32 to vector<8x8xf32>
    %63 = arith.mulf %61, %62 : vector<8x8xf32>
    %64 = arith.addf %63, %38 : vector<8x8xf32>
    %cst_31 = arith.constant dense<0xFF800000> : vector<8xf32>
    %65 = vector.multi_reduction <maximumf>, %64, %cst_31 [1] : vector<8x8xf32> to vector<8xf32>
    %66 = vector.shape_cast %65 : vector<8xf32> to vector<8x1xf32>
    %67 = vector.broadcast %66 : vector<8x1xf32> to vector<8x8xf32>
    %68 = arith.subf %64, %67 : vector<8x8xf32>
    %69 = math.exp %68 : vector<8x8xf32>
    %cst_32 = arith.constant dense<0.000000e+00> : vector<8xf32>
    %70 = vector.multi_reduction <add>, %69, %cst_32 [1] : vector<8x8xf32> to vector<8xf32>
    %71 = vector.shape_cast %70 : vector<8xf32> to vector<8x1xf32>
    %72 = tpu.reciprocal %71 {approx = true} : vector<8x1xf32> -> vector<8x1xf32>
    %73 = vector.broadcast %72 : vector<8x1xf32> to vector<8x8xf32>
    %74 = arith.mulf %69, %73 : vector<8x8xf32>
    %cst_33 = arith.constant dense<0.000000e+00> : vector<8x8xf32>
    %75 = tpu.matmul %74, %60, %cst_33 {dimension_numbers = #tpu.dot_dimension_numbers<[1], [0], [0], [1], [0, 0, 1, 1], [], []>} : vector<8x8xf32>, vector<8x8xf32>, vector<8x8xf32> -> vector<8x8xf32>
    %c0_34 = arith.constant 0 : index
    %c8 = arith.constant 8 : index
    %76 = vector.load %arg14[%c0_34, %c8] : memref<16x32xf32, #tpu.memory_space<vmem>>, vector<8x8xf32>
    tpu.vector_store %arg14[%c0_34, %c8], %75 {strides = array<i32>} : memref<16x32xf32, #tpu.memory_space<vmem>>, vector<8x8xf32>,
    %77 = vector.extract_strided_slice %36 {offsets = [0, 16], sizes = [8, 8], strides = [1, 1]} : vector<16x96xf32> to vector<8x8xf32>
    %78 = vector.extract_strided_slice %36 {offsets = [0, 48], sizes = [8, 8], strides = [1, 1]} : vector<16x96xf32> to vector<8x8xf32>
    %79 = vector.extract_strided_slice %36 {offsets = [0, 80], sizes = [8, 8], strides = [1, 1]} : vector<16x96xf32> to vector<8x8xf32>
    %cst_35 = arith.constant dense<0.000000e+00> : vector<8x8xf32>
    %80 = tpu.matmul %77, %78, %cst_35 {dimension_numbers = #tpu.dot_dimension_numbers<[1], [1], [0], [0], [0, 0, 1, 0], [], []>} : vector<8x8xf32>, vector<8x8xf32>, vector<8x8xf32> -> vector<8x8xf32>
    %cst_36 = arith.constant 0.353553385 : f32
    %81 = vector.broadcast %cst_36 : f32 to vector<8x8xf32>
    %82 = arith.mulf %80, %81 : vector<8x8xf32>
    %83 = arith.addf %82, %38 : vector<8x8xf32>
    %cst_37 = arith.constant dense<0xFF800000> : vector<8xf32>
    %84 = vector.multi_reduction <maximumf>, %83, %cst_37 [1] : vector<8x8xf32> to vector<8xf32>
    %85 = vector.shape_cast %84 : vector<8xf32> to vector<8x1xf32>
    %86 = vector.broadcast %85 : vector<8x1xf32> to vector<8x8xf32>
    %87 = arith.subf %83, %86 : vector<8x8xf32>
    %88 = math.exp %87 : vector<8x8xf32>
    %cst_38 = arith.constant dense<0.000000e+00> : vector<8xf32>
    %89 = vector.multi_reduction <add>, %88, %cst_38 [1] : vector<8x8xf32> to vector<8xf32>
    %90 = vector.shape_cast %89 : vector<8xf32> to vector<8x1xf32>
    %91 = tpu.reciprocal %90 {approx = true} : vector<8x1xf32> -> vector<8x1xf32>
    %92 = vector.broadcast %91 : vector<8x1xf32> to vector<8x8xf32>
    %93 = arith.mulf %88, %92 : vector<8x8xf32>
    %cst_39 = arith.constant dense<0.000000e+00> : vector<8x8xf32>
    %94 = tpu.matmul %93, %79, %cst_39 {dimension_numbers = #tpu.dot_dimension_numbers<[1], [0], [0], [1], [0, 0, 1, 1], [], []>} : vector<8x8xf32>, vector<8x8xf32>, vector<8x8xf32> -> vector<8x8xf32>
    %c0_40 = arith.constant 0 : index
    %c16 = arith.constant 16 : index
    %95 = vector.load %arg14[%c0_40, %c16] : memref<16x32xf32, #tpu.memory_space<vmem>>, vector<8x8xf32>
    tpu.vector_store %arg14[%c0_40, %c16], %94 {strides = array<i32>} : memref<16x32xf32, #tpu.memory_space<vmem>>, vector<8x8xf32>,
    %96 = vector.extract_strided_slice %36 {offsets = [0, 24], sizes = [8, 8], strides = [1, 1]} : vector<16x96xf32> to vector<8x8xf32>
    %97 = vector.extract_strided_slice %36 {offsets = [0, 56], sizes = [8, 8], strides = [1, 1]} : vector<16x96xf32> to vector<8x8xf32>
    %98 = vector.extract_strided_slice %36 {offsets = [0, 88], sizes = [8, 8], strides = [1, 1]} : vector<16x96xf32> to vector<8x8xf32>
    %cst_41 = arith.constant dense<0.000000e+00> : vector<8x8xf32>
    %99 = tpu.matmul %96, %97, %cst_41 {dimension_numbers = #tpu.dot_dimension_numbers<[1], [1], [0], [0], [0, 0, 1, 0], [], []>} : vector<8x8xf32>, vector<8x8xf32>, vector<8x8xf32> -> vector<8x8xf32>
    %cst_42 = arith.constant 0.353553385 : f32
    %100 = vector.broadcast %cst_42 : f32 to vector<8x8xf32>
    %101 = arith.mulf %99, %100 : vector<8x8xf32>
    %102 = arith.addf %101, %38 : vector<8x8xf32>
    %cst_43 = arith.constant dense<0xFF800000> : vector<8xf32>
    %103 = vector.multi_reduction <maximumf>, %102, %cst_43 [1] : vector<8x8xf32> to vector<8xf32>
    %104 = vector.shape_cast %103 : vector<8xf32> to vector<8x1xf32>
    %105 = vector.broadcast %104 : vector<8x1xf32> to vector<8x8xf32>
    %106 = arith.subf %102, %105 : vector<8x8xf32>
    %107 = math.exp %106 : vector<8x8xf32>
    %cst_44 = arith.constant dense<0.000000e+00> : vector<8xf32>
    %108 = vector.multi_reduction <add>, %107, %cst_44 [1] : vector<8x8xf32> to vector<8xf32>
    %109 = vector.shape_cast %108 : vector<8xf32> to vector<8x1xf32>
    %110 = tpu.reciprocal %109 {approx = true} : vector<8x1xf32> -> vector<8x1xf32>
    %111 = vector.broadcast %110 : vector<8x1xf32> to vector<8x8xf32>
    %112 = arith.mulf %107, %111 : vector<8x8xf32>
    %cst_45 = arith.constant dense<0.000000e+00> : vector<8x8xf32>
    %113 = tpu.matmul %112, %98, %cst_45 {dimension_numbers = #tpu.dot_dimension_numbers<[1], [0], [0], [1], [0, 0, 1, 1], [], []>} : vector<8x8xf32>, vector<8x8xf32>, vector<8x8xf32> -> vector<8x8xf32>
    %c0_46 = arith.constant 0 : index
    %c24 = arith.constant 24 : index
    %114 = vector.load %arg14[%c0_46, %c24] : memref<16x32xf32, #tpu.memory_space<vmem>>, vector<8x8xf32>
    tpu.vector_store %arg14[%c0_46, %c24], %113 {strides = array<i32>} : memref<16x32xf32, #tpu.memory_space<vmem>>, vector<8x8xf32>,
    %c1 = arith.constant 1 : index
    %c0_47 = arith.constant 0 : index
    %c0_48 = arith.constant 0 : index
    %115 = vector.load %arg2[%c1, %c0_47, %c0_48] : memref<4x8x8xf32, #tpu.memory_space<vmem>>, vector<1x8x8xf32>
    %116 = vector.shape_cast %115 : vector<1x8x8xf32> to vector<8x8xf32>
    %117 = vector.extract_strided_slice %36 {offsets = [8, 0], sizes = [8, 8], strides = [1, 1]} : vector<16x96xf32> to vector<8x8xf32>
    %118 = vector.extract_strided_slice %36 {offsets = [8, 32], sizes = [8, 8], strides = [1, 1]} : vector<16x96xf32> to vector<8x8xf32>
    %119 = vector.extract_strided_slice %36 {offsets = [8, 64], sizes = [8, 8], strides = [1, 1]} : vector<16x96xf32> to vector<8x8xf32>
    %cst_49 = arith.constant dense<0.000000e+00> : vector<8x8xf32>
    %120 = tpu.matmul %117, %118, %cst_49 {dimension_numbers = #tpu.dot_dimension_numbers<[1], [1], [0], [0], [0, 0, 1, 0], [], []>} : vector<8x8xf32>, vector<8x8xf32>, vector<8x8xf32> -> vector<8x8xf32>
    %cst_50 = arith.constant 0.353553385 : f32
    %121 = vector.broadcast %cst_50 : f32 to vector<8x8xf32>
    %122 = arith.mulf %120, %121 : vector<8x8xf32>
    %123 = arith.addf %122, %116 : vector<8x8xf32>
    %cst_51 = arith.constant dense<0xFF800000> : vector<8xf32>
    %124 = vector.multi_reduction <maximumf>, %123, %cst_51 [1] : vector<8x8xf32> to vector<8xf32>
    %125 = vector.shape_cast %124 : vector<8xf32> to vector<8x1xf32>
    %126 = vector.broadcast %125 : vector<8x1xf32> to vector<8x8xf32>
    %127 = arith.subf %123, %126 : vector<8x8xf32>
    %128 = math.exp %127 : vector<8x8xf32>
    %cst_52 = arith.constant dense<0.000000e+00> : vector<8xf32>
    %129 = vector.multi_reduction <add>, %128, %cst_52 [1] : vector<8x8xf32> to vector<8xf32>
    %130 = vector.shape_cast %129 : vector<8xf32> to vector<8x1xf32>
    %131 = tpu.reciprocal %130 {approx = true} : vector<8x1xf32> -> vector<8x1xf32>
    %132 = vector.broadcast %131 : vector<8x1xf32> to vector<8x8xf32>
    %133 = arith.mulf %128, %132 : vector<8x8xf32>
    %cst_53 = arith.constant dense<0.000000e+00> : vector<8x8xf32>
    %134 = tpu.matmul %133, %119, %cst_53 {dimension_numbers = #tpu.dot_dimension_numbers<[1], [0], [0], [1], [0, 0, 1, 1], [], []>} : vector<8x8xf32>, vector<8x8xf32>, vector<8x8xf32> -> vector<8x8xf32>
    %c8_54 = arith.constant 8 : index
    %c0_55 = arith.constant 0 : index
    %135 = vector.load %arg14[%c8_54, %c0_55] : memref<16x32xf32, #tpu.memory_space<vmem>>, vector<8x8xf32>
    tpu.vector_store %arg14[%c8_54, %c0_55], %134 {strides = array<i32>} : memref<16x32xf32, #tpu.memory_space<vmem>>, vector<8x8xf32>,
    %136 = vector.extract_strided_slice %36 {offsets = [8, 8], sizes = [8, 8], strides = [1, 1]} : vector<16x96xf32> to vector<8x8xf32>
    %137 = vector.extract_strided_slice %36 {offsets = [8, 40], sizes = [8, 8], strides = [1, 1]} : vector<16x96xf32> to vector<8x8xf32>
    %138 = vector.extract_strided_slice %36 {offsets = [8, 72], sizes = [8, 8], strides = [1, 1]} : vector<16x96xf32> to vector<8x8xf32>
    %cst_56 = arith.constant dense<0.000000e+00> : vector<8x8xf32>
    %139 = tpu.matmul %136, %137, %cst_56 {dimension_numbers = #tpu.dot_dimension_numbers<[1], [1], [0], [0], [0, 0, 1, 0], [], []>} : vector<8x8xf32>, vector<8x8xf32>, vector<8x8xf32> -> vector<8x8xf32>
    %cst_57 = arith.constant 0.353553385 : f32
    %140 = vector.broadcast %cst_57 : f32 to vector<8x8xf32>
    %141 = arith.mulf %139, %140 : vector<8x8xf32>
    %142 = arith.addf %141, %116 : vector<8x8xf32>
    %cst_58 = arith.constant dense<0xFF800000> : vector<8xf32>
    %143 = vector.multi_reduction <maximumf>, %142, %cst_58 [1] : vector<8x8xf32> to vector<8xf32>
    %144 = vector.shape_cast %143 : vector<8xf32> to vector<8x1xf32>
    %145 = vector.broadcast %144 : vector<8x1xf32> to vector<8x8xf32>
    %146 = arith.subf %142, %145 : vector<8x8xf32>
    %147 = math.exp %146 : vector<8x8xf32>
    %cst_59 = arith.constant dense<0.000000e+00> : vector<8xf32>
    %148 = vector.multi_reduction <add>, %147, %cst_59 [1] : vector<8x8xf32> to vector<8xf32>
    %149 = vector.shape_cast %148 : vector<8xf32> to vector<8x1xf32>
    %150 = tpu.reciprocal %149 {approx = true} : vector<8x1xf32> -> vector<8x1xf32>
    %151 = vector.broadcast %150 : vector<8x1xf32> to vector<8x8xf32>
    %152 = arith.mulf %147, %151 : vector<8x8xf32>
    %cst_60 = arith.constant dense<0.000000e+00> : vector<8x8xf32>
    %153 = tpu.matmul %152, %138, %cst_60 {dimension_numbers = #tpu.dot_dimension_numbers<[1], [0], [0], [1], [0, 0, 1, 1], [], []>} : vector<8x8xf32>, vector<8x8xf32>, vector<8x8xf32> -> vector<8x8xf32>
    %c8_61 = arith.constant 8 : index
    %c8_62 = arith.constant 8 : index
    %154 = vector.load %arg14[%c8_61, %c8_62] : memref<16x32xf32, #tpu.memory_space<vmem>>, vector<8x8xf32>
    tpu.vector_store %arg14[%c8_61, %c8_62], %153 {strides = array<i32>} : memref<16x32xf32, #tpu.memory_space<vmem>>, vector<8x8xf32>,
    %155 = vector.extract_strided_slice %36 {offsets = [8, 16], sizes = [8, 8], strides = [1, 1]} : vector<16x96xf32> to vector<8x8xf32>
    %156 = vector.extract_strided_slice %36 {offsets = [8, 48], sizes = [8, 8], strides = [1, 1]} : vector<16x96xf32> to vector<8x8xf32>
    %157 = vector.extract_strided_slice %36 {offsets = [8, 80], sizes = [8, 8], strides = [1, 1]} : vector<16x96xf32> to vector<8x8xf32>
    %cst_63 = arith.constant dense<0.000000e+00> : vector<8x8xf32>
    %158 = tpu.matmul %155, %156, %cst_63 {dimension_numbers = #tpu.dot_dimension_numbers<[1], [1], [0], [0], [0, 0, 1, 0], [], []>} : vector<8x8xf32>, vector<8x8xf32>, vector<8x8xf32> -> vector<8x8xf32>
    %cst_64 = arith.constant 0.353553385 : f32
    %159 = vector.broadcast %cst_64 : f32 to vector<8x8xf32>
    %160 = arith.mulf %158, %159 : vector<8x8xf32>
    %161 = arith.addf %160, %116 : vector<8x8xf32>
    %cst_65 = arith.constant dense<0xFF800000> : vector<8xf32>
    %162 = vector.multi_reduction <maximumf>, %161, %cst_65 [1] : vector<8x8xf32> to vector<8xf32>
    %163 = vector.shape_cast %162 : vector<8xf32> to vector<8x1xf32>
    %164 = vector.broadcast %163 : vector<8x1xf32> to vector<8x8xf32>
    %165 = arith.subf %161, %164 : vector<8x8xf32>
    %166 = math.exp %165 : vector<8x8xf32>
    %cst_66 = arith.constant dense<0.000000e+00> : vector<8xf32>
    %167 = vector.multi_reduction <add>, %166, %cst_66 [1] : vector<8x8xf32> to vector<8xf32>
    %168 = vector.shape_cast %167 : vector<8xf32> to vector<8x1xf32>
    %169 = tpu.reciprocal %168 {approx = true} : vector<8x1xf32> -> vector<8x1xf32>
    %170 = vector.broadcast %169 : vector<8x1xf32> to vector<8x8xf32>
    %171 = arith.mulf %166, %170 : vector<8x8xf32>
    %cst_67 = arith.constant dense<0.000000e+00> : vector<8x8xf32>
    %172 = tpu.matmul %171, %157, %cst_67 {dimension_numbers = #tpu.dot_dimension_numbers<[1], [0], [0], [1], [0, 0, 1, 1], [], []>} : vector<8x8xf32>, vector<8x8xf32>, vector<8x8xf32> -> vector<8x8xf32>
    %c8_68 = arith.constant 8 : index
    %c16_69 = arith.constant 16 : index
    %173 = vector.load %arg14[%c8_68, %c16_69] : memref<16x32xf32, #tpu.memory_space<vmem>>, vector<8x8xf32>
    tpu.vector_store %arg14[%c8_68, %c16_69], %172 {strides = array<i32>} : memref<16x32xf32, #tpu.memory_space<vmem>>, vector<8x8xf32>,
    %174 = vector.extract_strided_slice %36 {offsets = [8, 24], sizes = [8, 8], strides = [1, 1]} : vector<16x96xf32> to vector<8x8xf32>
    %175 = vector.extract_strided_slice %36 {offsets = [8, 56], sizes = [8, 8], strides = [1, 1]} : vector<16x96xf32> to vector<8x8xf32>
    %176 = vector.extract_strided_slice %36 {offsets = [8, 88], sizes = [8, 8], strides = [1, 1]} : vector<16x96xf32> to vector<8x8xf32>
    %cst_70 = arith.constant dense<0.000000e+00> : vector<8x8xf32>
    %177 = tpu.matmul %174, %175, %cst_70 {dimension_numbers = #tpu.dot_dimension_numbers<[1], [1], [0], [0], [0, 0, 1, 0], [], []>} : vector<8x8xf32>, vector<8x8xf32>, vector<8x8xf32> -> vector<8x8xf32>
    %cst_71 = arith.constant 0.353553385 : f32
    %178 = vector.broadcast %cst_71 : f32 to vector<8x8xf32>
    %179 = arith.mulf %177, %178 : vector<8x8xf32>
    %180 = arith.addf %179, %116 : vector<8x8xf32>
    %cst_72 = arith.constant dense<0xFF800000> : vector<8xf32>
    %181 = vector.multi_reduction <maximumf>, %180, %cst_72 [1] : vector<8x8xf32> to vector<8xf32>
    %182 = vector.shape_cast %181 : vector<8xf32> to vector<8x1xf32>
    %183 = vector.broadcast %182 : vector<8x1xf32> to vector<8x8xf32>
    %184 = arith.subf %180, %183 : vector<8x8xf32>
    %185 = math.exp %184 : vector<8x8xf32>
    %cst_73 = arith.constant dense<0.000000e+00> : vector<8xf32>
    %186 = vector.multi_reduction <add>, %185, %cst_73 [1] : vector<8x8xf32> to vector<8xf32>
    %187 = vector.shape_cast %186 : vector<8xf32> to vector<8x1xf32>
    %188 = tpu.reciprocal %187 {approx = true} : vector<8x1xf32> -> vector<8x1xf32>
    %189 = vector.broadcast %188 : vector<8x1xf32> to vector<8x8xf32>
    %190 = arith.mulf %185, %189 : vector<8x8xf32>
    %cst_74 = arith.constant dense<0.000000e+00> : vector<8x8xf32>
    %191 = tpu.matmul %190, %176, %cst_74 {dimension_numbers = #tpu.dot_dimension_numbers<[1], [0], [0], [1], [0, 0, 1, 1], [], []>} : vector<8x8xf32>, vector<8x8xf32>, vector<8x8xf32> -> vector<8x8xf32>
    %c8_75 = arith.constant 8 : index
    %c24_76 = arith.constant 24 : index
    %192 = vector.load %arg14[%c8_75, %c24_76] : memref<16x32xf32, #tpu.memory_space<vmem>>, vector<8x8xf32>
    tpu.vector_store %arg14[%c8_75, %c24_76], %191 {strides = array<i32>} : memref<16x32xf32, #tpu.memory_space<vmem>>, vector<8x8xf32>,
    %c0_77 = arith.constant 0 : index
    %c0_78 = arith.constant 0 : index
    %193 = vector.load %arg14[%c0_77, %c0_78] : memref<16x32xf32, #tpu.memory_space<vmem>>, vector<16x32xf32>
    %c0_79 = arith.constant 0 : index
    %c0_80 = arith.constant 0 : index
    %c0_81 = arith.constant 0 : index
    %194 = vector.load %arg7[%c0_79, %c0_80, %c0_81] : memref<4x32x32xf32, #tpu.memory_space<vmem>>, vector<1x32x32xf32>
    %195 = vector.shape_cast %194 : vector<1x32x32xf32> to vector<32x32xf32>
    %cst_82 = arith.constant dense<0.000000e+00> : vector<16x32xf32>
    %196 = tpu.matmul %193, %195, %cst_82 {dimension_numbers = #tpu.dot_dimension_numbers<[1], [0], [0], [1], [0, 0, 1, 1], [], []>} : vector<16x32xf32>, vector<32x32xf32>, vector<16x32xf32> -> vector<16x32xf32>
    %c0_83 = arith.constant 0 : index
    %c0_84 = arith.constant 0 : index
    %c0_85 = arith.constant 0 : index
    %197 = vector.load %arg8[%c0_83, %c0_84, %c0_85] : memref<4x1x32xf32, #tpu.memory_space<vmem>>, vector<1x1x32xf32>
    %198 = vector.shape_cast %197 : vector<1x1x32xf32> to vector<1x32xf32>
    %199 = vector.broadcast %198 : vector<1x32xf32> to vector<16x32xf32>
    %200 = arith.addf %196, %199 : vector<16x32xf32>
    %201 = arith.addf %200, %4 : vector<16x32xf32>
    %c1_86 = arith.constant 1 : index
    %c0_87 = arith.constant 0 : index
    %202 = vector.load %arg3[%c1_86, %c0_87] : memref<7x32xf32, #tpu.memory_space<vmem>>, vector<1x32xf32>
    %c1_88 = arith.constant 1 : index
    %c0_89 = arith.constant 0 : index
    %203 = vector.load %arg4[%c1_88, %c0_89] : memref<7x32xf32, #tpu.memory_space<vmem>>, vector<1x32xf32>
    %cst_90 = arith.constant dense<0.000000e+00> : vector<16xf32>
    %204 = vector.multi_reduction <add>, %201, %cst_90 [1] : vector<16x32xf32> to vector<16xf32>
    %205 = vector.shape_cast %204 : vector<16xf32> to vector<16x1xf32>
    %cst_91 = arith.constant 3.200000e+01 : f32
    %206 = vector.broadcast %cst_91 : f32 to vector<16x1xf32>
    %207 = arith.divf %205, %206 : vector<16x1xf32>
    %208 = vector.broadcast %207 : vector<16x1xf32> to vector<16x32xf32>
    %209 = arith.subf %201, %208 : vector<16x32xf32>
    %210 = arith.mulf %209, %209 : vector<16x32xf32>
    %cst_92 = arith.constant dense<0.000000e+00> : vector<16xf32>
    %211 = vector.multi_reduction <add>, %210, %cst_92 [1] : vector<16x32xf32> to vector<16xf32>
    %212 = vector.shape_cast %211 : vector<16xf32> to vector<16x1xf32>
    %cst_93 = arith.constant 0.0322580636 : f32
    %213 = vector.broadcast %cst_93 : f32 to vector<16x1xf32>
    %214 = arith.mulf %212, %213 : vector<16x1xf32>
    %215 = math.sqrt %214 : vector<16x1xf32>
    %216 = vector.broadcast %207 : vector<16x1xf32> to vector<16x32xf32>
    %217 = arith.subf %201, %216 : vector<16x32xf32>
    %218 = vector.broadcast %202 : vector<1x32xf32> to vector<16x32xf32>
    %219 = arith.mulf %218, %217 : vector<16x32xf32>
    %cst_94 = arith.constant 9.99999997E-7 : f32
    %220 = vector.broadcast %cst_94 : f32 to vector<16x1xf32>
    %221 = arith.addf %215, %220 : vector<16x1xf32>
    %222 = tpu.reciprocal %221 {approx = true} : vector<16x1xf32> -> vector<16x1xf32>
    %223 = vector.broadcast %222 : vector<16x1xf32> to vector<16x32xf32>
    %224 = arith.mulf %219, %223 : vector<16x32xf32>
    %225 = vector.broadcast %203 : vector<1x32xf32> to vector<16x32xf32>
    %226 = arith.addf %224, %225 : vector<16x32xf32>
    %c1_95 = arith.constant 1 : index
    %c0_96 = arith.constant 0 : index
    %c0_97 = arith.constant 0 : index
    %227 = vector.load %arg5[%c1_95, %c0_96, %c0_97] : memref<4x32x96xf32, #tpu.memory_space<vmem>>, vector<1x32x96xf32>
    %228 = vector.shape_cast %227 : vector<1x32x96xf32> to vector<32x96xf32>
    %cst_98 = arith.constant dense<0.000000e+00> : vector<16x96xf32>
    %229 = tpu.matmul %226, %228, %cst_98 {dimension_numbers = #tpu.dot_dimension_numbers<[1], [0], [0], [1], [0, 0, 1, 1], [], []>} : vector<16x32xf32>, vector<32x96xf32>, vector<16x96xf32> -> vector<16x96xf32>
    %c1_99 = arith.constant 1 : index
    %c0_100 = arith.constant 0 : index
    %c0_101 = arith.constant 0 : index
    %230 = vector.load %arg6[%c1_99, %c0_100, %c0_101] : memref<4x1x96xf32, #tpu.memory_space<vmem>>, vector<1x1x96xf32>
    %231 = vector.shape_cast %230 : vector<1x1x96xf32> to vector<1x96xf32>
    %232 = vector.broadcast %231 : vector<1x96xf32> to vector<16x96xf32>
    %233 = arith.addf %229, %232 : vector<16x96xf32>
    %c2 = arith.constant 2 : index
    %c0_102 = arith.constant 0 : index
    %c0_103 = arith.constant 0 : index
    %234 = vector.load %arg2[%c2, %c0_102, %c0_103] : memref<4x8x8xf32, #tpu.memory_space<vmem>>, vector<1x8x8xf32>
    %235 = vector.shape_cast %234 : vector<1x8x8xf32> to vector<8x8xf32>
    %236 = vector.extract_strided_slice %233 {offsets = [0, 0], sizes = [8, 8], strides = [1, 1]} : vector<16x96xf32> to vector<8x8xf32>
    %237 = vector.extract_strided_slice %233 {offsets = [0, 32], sizes = [8, 8], strides = [1, 1]} : vector<16x96xf32> to vector<8x8xf32>
    %238 = vector.extract_strided_slice %233 {offsets = [0, 64], sizes = [8, 8], strides = [1, 1]} : vector<16x96xf32> to vector<8x8xf32>
    %cst_104 = arith.constant dense<0.000000e+00> : vector<8x8xf32>
    %239 = tpu.matmul %236, %237, %cst_104 {dimension_numbers = #tpu.dot_dimension_numbers<[1], [1], [0], [0], [0, 0, 1, 0], [], []>} : vector<8x8xf32>, vector<8x8xf32>, vector<8x8xf32> -> vector<8x8xf32>
    %cst_105 = arith.constant 0.353553385 : f32
    %240 = vector.broadcast %cst_105 : f32 to vector<8x8xf32>
    %241 = arith.mulf %239, %240 : vector<8x8xf32>
    %242 = arith.addf %241, %235 : vector<8x8xf32>
    %cst_106 = arith.constant dense<0xFF800000> : vector<8xf32>
    %243 = vector.multi_reduction <maximumf>, %242, %cst_106 [1] : vector<8x8xf32> to vector<8xf32>
    %244 = vector.shape_cast %243 : vector<8xf32> to vector<8x1xf32>
    %245 = vector.broadcast %244 : vector<8x1xf32> to vector<8x8xf32>
    %246 = arith.subf %242, %245 : vector<8x8xf32>
    %247 = math.exp %246 : vector<8x8xf32>
    %cst_107 = arith.constant dense<0.000000e+00> : vector<8xf32>
    %248 = vector.multi_reduction <add>, %247, %cst_107 [1] : vector<8x8xf32> to vector<8xf32>
    %249 = vector.shape_cast %248 : vector<8xf32> to vector<8x1xf32>
    %250 = tpu.reciprocal %249 {approx = true} : vector<8x1xf32> -> vector<8x1xf32>
    %251 = vector.broadcast %250 : vector<8x1xf32> to vector<8x8xf32>
    %252 = arith.mulf %247, %251 : vector<8x8xf32>
    %cst_108 = arith.constant dense<0.000000e+00> : vector<8x8xf32>
    %253 = tpu.matmul %252, %238, %cst_108 {dimension_numbers = #tpu.dot_dimension_numbers<[1], [0], [0], [1], [0, 0, 1, 1], [], []>} : vector<8x8xf32>, vector<8x8xf32>, vector<8x8xf32> -> vector<8x8xf32>
    %c0_109 = arith.constant 0 : index
    %c0_110 = arith.constant 0 : index
    %254 = vector.load %arg14[%c0_109, %c0_110] : memref<16x32xf32, #tpu.memory_space<vmem>>, vector<8x8xf32>
    tpu.vector_store %arg14[%c0_109, %c0_110], %253 {strides = array<i32>} : memref<16x32xf32, #tpu.memory_space<vmem>>, vector<8x8xf32>,
    %255 = vector.extract_strided_slice %233 {offsets = [0, 8], sizes = [8, 8], strides = [1, 1]} : vector<16x96xf32> to vector<8x8xf32>
    %256 = vector.extract_strided_slice %233 {offsets = [0, 40], sizes = [8, 8], strides = [1, 1]} : vector<16x96xf32> to vector<8x8xf32>
    %257 = vector.extract_strided_slice %233 {offsets = [0, 72], sizes = [8, 8], strides = [1, 1]} : vector<16x96xf32> to vector<8x8xf32>
    %cst_111 = arith.constant dense<0.000000e+00> : vector<8x8xf32>
    %258 = tpu.matmul %255, %256, %cst_111 {dimension_numbers = #tpu.dot_dimension_numbers<[1], [1], [0], [0], [0, 0, 1, 0], [], []>} : vector<8x8xf32>, vector<8x8xf32>, vector<8x8xf32> -> vector<8x8xf32>
    %cst_112 = arith.constant 0.353553385 : f32
    %259 = vector.broadcast %cst_112 : f32 to vector<8x8xf32>
    %260 = arith.mulf %258, %259 : vector<8x8xf32>
    %261 = arith.addf %260, %235 : vector<8x8xf32>
    %cst_113 = arith.constant dense<0xFF800000> : vector<8xf32>
    %262 = vector.multi_reduction <maximumf>, %261, %cst_113 [1] : vector<8x8xf32> to vector<8xf32>
    %263 = vector.shape_cast %262 : vector<8xf32> to vector<8x1xf32>
    %264 = vector.broadcast %263 : vector<8x1xf32> to vector<8x8xf32>
    %265 = arith.subf %261, %264 : vector<8x8xf32>
    %266 = math.exp %265 : vector<8x8xf32>
    %cst_114 = arith.constant dense<0.000000e+00> : vector<8xf32>
    %267 = vector.multi_reduction <add>, %266, %cst_114 [1] : vector<8x8xf32> to vector<8xf32>
    %268 = vector.shape_cast %267 : vector<8xf32> to vector<8x1xf32>
    %269 = tpu.reciprocal %268 {approx = true} : vector<8x1xf32> -> vector<8x1xf32>
    %270 = vector.broadcast %269 : vector<8x1xf32> to vector<8x8xf32>
    %271 = arith.mulf %266, %270 : vector<8x8xf32>
    %cst_115 = arith.constant dense<0.000000e+00> : vector<8x8xf32>
    %272 = tpu.matmul %271, %257, %cst_115 {dimension_numbers = #tpu.dot_dimension_numbers<[1], [0], [0], [1], [0, 0, 1, 1], [], []>} : vector<8x8xf32>, vector<8x8xf32>, vector<8x8xf32> -> vector<8x8xf32>
    %c0_116 = arith.constant 0 : index
    %c8_117 = arith.constant 8 : index
    %273 = vector.load %arg14[%c0_116, %c8_117] : memref<16x32xf32, #tpu.memory_space<vmem>>, vector<8x8xf32>
    tpu.vector_store %arg14[%c0_116, %c8_117], %272 {strides = array<i32>} : memref<16x32xf32, #tpu.memory_space<vmem>>, vector<8x8xf32>,
    %274 = vector.extract_strided_slice %233 {offsets = [0, 16], sizes = [8, 8], strides = [1, 1]} : vector<16x96xf32> to vector<8x8xf32>
    %275 = vector.extract_strided_slice %233 {offsets = [0, 48], sizes = [8, 8], strides = [1, 1]} : vector<16x96xf32> to vector<8x8xf32>
    %276 = vector.extract_strided_slice %233 {offsets = [0, 80], sizes = [8, 8], strides = [1, 1]} : vector<16x96xf32> to vector<8x8xf32>
    %cst_118 = arith.constant dense<0.000000e+00> : vector<8x8xf32>
    %277 = tpu.matmul %274, %275, %cst_118 {dimension_numbers = #tpu.dot_dimension_numbers<[1], [1], [0], [0], [0, 0, 1, 0], [], []>} : vector<8x8xf32>, vector<8x8xf32>, vector<8x8xf32> -> vector<8x8xf32>
    %cst_119 = arith.constant 0.353553385 : f32
    %278 = vector.broadcast %cst_119 : f32 to vector<8x8xf32>
    %279 = arith.mulf %277, %278 : vector<8x8xf32>
    %280 = arith.addf %279, %235 : vector<8x8xf32>
    %cst_120 = arith.constant dense<0xFF800000> : vector<8xf32>
    %281 = vector.multi_reduction <maximumf>, %280, %cst_120 [1] : vector<8x8xf32> to vector<8xf32>
    %282 = vector.shape_cast %281 : vector<8xf32> to vector<8x1xf32>
    %283 = vector.broadcast %282 : vector<8x1xf32> to vector<8x8xf32>
    %284 = arith.subf %280, %283 : vector<8x8xf32>
    %285 = math.exp %284 : vector<8x8xf32>
    %cst_121 = arith.constant dense<0.000000e+00> : vector<8xf32>
    %286 = vector.multi_reduction <add>, %285, %cst_121 [1] : vector<8x8xf32> to vector<8xf32>
    %287 = vector.shape_cast %286 : vector<8xf32> to vector<8x1xf32>
    %288 = tpu.reciprocal %287 {approx = true} : vector<8x1xf32> -> vector<8x1xf32>
    %289 = vector.broadcast %288 : vector<8x1xf32> to vector<8x8xf32>
    %290 = arith.mulf %285, %289 : vector<8x8xf32>
    %cst_122 = arith.constant dense<0.000000e+00> : vector<8x8xf32>
    %291 = tpu.matmul %290, %276, %cst_122 {dimension_numbers = #tpu.dot_dimension_numbers<[1], [0], [0], [1], [0, 0, 1, 1], [], []>} : vector<8x8xf32>, vector<8x8xf32>, vector<8x8xf32> -> vector<8x8xf32>
    %c0_123 = arith.constant 0 : index
    %c16_124 = arith.constant 16 : index
    %292 = vector.load %arg14[%c0_123, %c16_124] : memref<16x32xf32, #tpu.memory_space<vmem>>, vector<8x8xf32>
    tpu.vector_store %arg14[%c0_123, %c16_124], %291 {strides = array<i32>} : memref<16x32xf32, #tpu.memory_space<vmem>>, vector<8x8xf32>,
    %293 = vector.extract_strided_slice %233 {offsets = [0, 24], sizes = [8, 8], strides = [1, 1]} : vector<16x96xf32> to vector<8x8xf32>
    %294 = vector.extract_strided_slice %233 {offsets = [0, 56], sizes = [8, 8], strides = [1, 1]} : vector<16x96xf32> to vector<8x8xf32>
    %295 = vector.extract_strided_slice %233 {offsets = [0, 88], sizes = [8, 8], strides = [1, 1]} : vector<16x96xf32> to vector<8x8xf32>
    %cst_125 = arith.constant dense<0.000000e+00> : vector<8x8xf32>
    %296 = tpu.matmul %293, %294, %cst_125 {dimension_numbers = #tpu.dot_dimension_numbers<[1], [1], [0], [0], [0, 0, 1, 0], [], []>} : vector<8x8xf32>, vector<8x8xf32>, vector<8x8xf32> -> vector<8x8xf32>
    %cst_126 = arith.constant 0.353553385 : f32
    %297 = vector.broadcast %cst_126 : f32 to vector<8x8xf32>
    %298 = arith.mulf %296, %297 : vector<8x8xf32>
    %299 = arith.addf %298, %235 : vector<8x8xf32>
    %cst_127 = arith.constant dense<0xFF800000> : vector<8xf32>
    %300 = vector.multi_reduction <maximumf>, %299, %cst_127 [1] : vector<8x8xf32> to vector<8xf32>
    %301 = vector.shape_cast %300 : vector<8xf32> to vector<8x1xf32>
    %302 = vector.broadcast %301 : vector<8x1xf32> to vector<8x8xf32>
    %303 = arith.subf %299, %302 : vector<8x8xf32>
    %304 = math.exp %303 : vector<8x8xf32>
    %cst_128 = arith.constant dense<0.000000e+00> : vector<8xf32>
    %305 = vector.multi_reduction <add>, %304, %cst_128 [1] : vector<8x8xf32> to vector<8xf32>
    %306 = vector.shape_cast %305 : vector<8xf32> to vector<8x1xf32>
    %307 = tpu.reciprocal %306 {approx = true} : vector<8x1xf32> -> vector<8x1xf32>
    %308 = vector.broadcast %307 : vector<8x1xf32> to vector<8x8xf32>
    %309 = arith.mulf %304, %308 : vector<8x8xf32>
    %cst_129 = arith.constant dense<0.000000e+00> : vector<8x8xf32>
    %310 = tpu.matmul %309, %295, %cst_129 {dimension_numbers = #tpu.dot_dimension_numbers<[1], [0], [0], [1], [0, 0, 1, 1], [], []>} : vector<8x8xf32>, vector<8x8xf32>, vector<8x8xf32> -> vector<8x8xf32>
    %c0_130 = arith.constant 0 : index
    %c24_131 = arith.constant 24 : index
    %311 = vector.load %arg14[%c0_130, %c24_131] : memref<16x32xf32, #tpu.memory_space<vmem>>, vector<8x8xf32>
    tpu.vector_store %arg14[%c0_130, %c24_131], %310 {strides = array<i32>} : memref<16x32xf32, #tpu.memory_space<vmem>>, vector<8x8xf32>,
    %c3 = arith.constant 3 : index
    %c0_132 = arith.constant 0 : index
    %c0_133 = arith.constant 0 : index
    %312 = vector.load %arg2[%c3, %c0_132, %c0_133] : memref<4x8x8xf32, #tpu.memory_space<vmem>>, vector<1x8x8xf32>
    %313 = vector.shape_cast %312 : vector<1x8x8xf32> to vector<8x8xf32>
    %314 = vector.extract_strided_slice %233 {offsets = [8, 0], sizes = [8, 8], strides = [1, 1]} : vector<16x96xf32> to vector<8x8xf32>
    %315 = vector.extract_strided_slice %233 {offsets = [8, 32], sizes = [8, 8], strides = [1, 1]} : vector<16x96xf32> to vector<8x8xf32>
    %316 = vector.extract_strided_slice %233 {offsets = [8, 64], sizes = [8, 8], strides = [1, 1]} : vector<16x96xf32> to vector<8x8xf32>
    %cst_134 = arith.constant dense<0.000000e+00> : vector<8x8xf32>
    %317 = tpu.matmul %314, %315, %cst_134 {dimension_numbers = #tpu.dot_dimension_numbers<[1], [1], [0], [0], [0, 0, 1, 0], [], []>} : vector<8x8xf32>, vector<8x8xf32>, vector<8x8xf32> -> vector<8x8xf32>
    %cst_135 = arith.constant 0.353553385 : f32
    %318 = vector.broadcast %cst_135 : f32 to vector<8x8xf32>
    %319 = arith.mulf %317, %318 : vector<8x8xf32>
    %320 = arith.addf %319, %313 : vector<8x8xf32>
    %cst_136 = arith.constant dense<0xFF800000> : vector<8xf32>
    %321 = vector.multi_reduction <maximumf>, %320, %cst_136 [1] : vector<8x8xf32> to vector<8xf32>
    %322 = vector.shape_cast %321 : vector<8xf32> to vector<8x1xf32>
    %323 = vector.broadcast %322 : vector<8x1xf32> to vector<8x8xf32>
    %324 = arith.subf %320, %323 : vector<8x8xf32>
    %325 = math.exp %324 : vector<8x8xf32>
    %cst_137 = arith.constant dense<0.000000e+00> : vector<8xf32>
    %326 = vector.multi_reduction <add>, %325, %cst_137 [1] : vector<8x8xf32> to vector<8xf32>
    %327 = vector.shape_cast %326 : vector<8xf32> to vector<8x1xf32>
    %328 = tpu.reciprocal %327 {approx = true} : vector<8x1xf32> -> vector<8x1xf32>
    %329 = vector.broadcast %328 : vector<8x1xf32> to vector<8x8xf32>
    %330 = arith.mulf %325, %329 : vector<8x8xf32>
    %cst_138 = arith.constant dense<0.000000e+00> : vector<8x8xf32>
    %331 = tpu.matmul %330, %316, %cst_138 {dimension_numbers = #tpu.dot_dimension_numbers<[1], [0], [0], [1], [0, 0, 1, 1], [], []>} : vector<8x8xf32>, vector<8x8xf32>, vector<8x8xf32> -> vector<8x8xf32>
    %c8_139 = arith.constant 8 : index
    %c0_140 = arith.constant 0 : index
    %332 = vector.load %arg14[%c8_139, %c0_140] : memref<16x32xf32, #tpu.memory_space<vmem>>, vector<8x8xf32>
    tpu.vector_store %arg14[%c8_139, %c0_140], %331 {strides = array<i32>} : memref<16x32xf32, #tpu.memory_space<vmem>>, vector<8x8xf32>,
    %333 = vector.extract_strided_slice %233 {offsets = [8, 8], sizes = [8, 8], strides = [1, 1]} : vector<16x96xf32> to vector<8x8xf32>
    %334 = vector.extract_strided_slice %233 {offsets = [8, 40], sizes = [8, 8], strides = [1, 1]} : vector<16x96xf32> to vector<8x8xf32>
    %335 = vector.extract_strided_slice %233 {offsets = [8, 72], sizes = [8, 8], strides = [1, 1]} : vector<16x96xf32> to vector<8x8xf32>
    %cst_141 = arith.constant dense<0.000000e+00> : vector<8x8xf32>
    %336 = tpu.matmul %333, %334, %cst_141 {dimension_numbers = #tpu.dot_dimension_numbers<[1], [1], [0], [0], [0, 0, 1, 0], [], []>} : vector<8x8xf32>, vector<8x8xf32>, vector<8x8xf32> -> vector<8x8xf32>
    %cst_142 = arith.constant 0.353553385 : f32
    %337 = vector.broadcast %cst_142 : f32 to vector<8x8xf32>
    %338 = arith.mulf %336, %337 : vector<8x8xf32>
    %339 = arith.addf %338, %313 : vector<8x8xf32>
    %cst_143 = arith.constant dense<0xFF800000> : vector<8xf32>
    %340 = vector.multi_reduction <maximumf>, %339, %cst_143 [1] : vector<8x8xf32> to vector<8xf32>
    %341 = vector.shape_cast %340 : vector<8xf32> to vector<8x1xf32>
    %342 = vector.broadcast %341 : vector<8x1xf32> to vector<8x8xf32>
    %343 = arith.subf %339, %342 : vector<8x8xf32>
    %344 = math.exp %343 : vector<8x8xf32>
    %cst_144 = arith.constant dense<0.000000e+00> : vector<8xf32>
    %345 = vector.multi_reduction <add>, %344, %cst_144 [1] : vector<8x8xf32> to vector<8xf32>
    %346 = vector.shape_cast %345 : vector<8xf32> to vector<8x1xf32>
    %347 = tpu.reciprocal %346 {approx = true} : vector<8x1xf32> -> vector<8x1xf32>
    %348 = vector.broadcast %347 : vector<8x1xf32> to vector<8x8xf32>
    %349 = arith.mulf %344, %348 : vector<8x8xf32>
    %cst_145 = arith.constant dense<0.000000e+00> : vector<8x8xf32>
    %350 = tpu.matmul %349, %335, %cst_145 {dimension_numbers = #tpu.dot_dimension_numbers<[1], [0], [0], [1], [0, 0, 1, 1], [], []>} : vector<8x8xf32>, vector<8x8xf32>, vector<8x8xf32> -> vector<8x8xf32>
    %c8_146 = arith.constant 8 : index
    %c8_147 = arith.constant 8 : index
    %351 = vector.load %arg14[%c8_146, %c8_147] : memref<16x32xf32, #tpu.memory_space<vmem>>, vector<8x8xf32>
    tpu.vector_store %arg14[%c8_146, %c8_147], %350 {strides = array<i32>} : memref<16x32xf32, #tpu.memory_space<vmem>>, vector<8x8xf32>,
    %352 = vector.extract_strided_slice %233 {offsets = [8, 16], sizes = [8, 8], strides = [1, 1]} : vector<16x96xf32> to vector<8x8xf32>
    %353 = vector.extract_strided_slice %233 {offsets = [8, 48], sizes = [8, 8], strides = [1, 1]} : vector<16x96xf32> to vector<8x8xf32>
    %354 = vector.extract_strided_slice %233 {offsets = [8, 80], sizes = [8, 8], strides = [1, 1]} : vector<16x96xf32> to vector<8x8xf32>
    %cst_148 = arith.constant dense<0.000000e+00> : vector<8x8xf32>
    %355 = tpu.matmul %352, %353, %cst_148 {dimension_numbers = #tpu.dot_dimension_numbers<[1], [1], [0], [0], [0, 0, 1, 0], [], []>} : vector<8x8xf32>, vector<8x8xf32>, vector<8x8xf32> -> vector<8x8xf32>
    %cst_149 = arith.constant 0.353553385 : f32
    %356 = vector.broadcast %cst_149 : f32 to vector<8x8xf32>
    %357 = arith.mulf %355, %356 : vector<8x8xf32>
    %358 = arith.addf %357, %313 : vector<8x8xf32>
    %cst_150 = arith.constant dense<0xFF800000> : vector<8xf32>
    %359 = vector.multi_reduction <maximumf>, %358, %cst_150 [1] : vector<8x8xf32> to vector<8xf32>
    %360 = vector.shape_cast %359 : vector<8xf32> to vector<8x1xf32>
    %361 = vector.broadcast %360 : vector<8x1xf32> to vector<8x8xf32>
    %362 = arith.subf %358, %361 : vector<8x8xf32>
    %363 = math.exp %362 : vector<8x8xf32>
    %cst_151 = arith.constant dense<0.000000e+00> : vector<8xf32>
    %364 = vector.multi_reduction <add>, %363, %cst_151 [1] : vector<8x8xf32> to vector<8xf32>
    %365 = vector.shape_cast %364 : vector<8xf32> to vector<8x1xf32>
    %366 = tpu.reciprocal %365 {approx = true} : vector<8x1xf32> -> vector<8x1xf32>
    %367 = vector.broadcast %366 : vector<8x1xf32> to vector<8x8xf32>
    %368 = arith.mulf %363, %367 : vector<8x8xf32>
    %cst_152 = arith.constant dense<0.000000e+00> : vector<8x8xf32>
    %369 = tpu.matmul %368, %354, %cst_152 {dimension_numbers = #tpu.dot_dimension_numbers<[1], [0], [0], [1], [0, 0, 1, 1], [], []>} : vector<8x8xf32>, vector<8x8xf32>, vector<8x8xf32> -> vector<8x8xf32>
    %c8_153 = arith.constant 8 : index
    %c16_154 = arith.constant 16 : index
    %370 = vector.load %arg14[%c8_153, %c16_154] : memref<16x32xf32, #tpu.memory_space<vmem>>, vector<8x8xf32>
    tpu.vector_store %arg14[%c8_153, %c16_154], %369 {strides = array<i32>} : memref<16x32xf32, #tpu.memory_space<vmem>>, vector<8x8xf32>,
    %371 = vector.extract_strided_slice %233 {offsets = [8, 24], sizes = [8, 8], strides = [1, 1]} : vector<16x96xf32> to vector<8x8xf32>
    %372 = vector.extract_strided_slice %233 {offsets = [8, 56], sizes = [8, 8], strides = [1, 1]} : vector<16x96xf32> to vector<8x8xf32>
    %373 = vector.extract_strided_slice %233 {offsets = [8, 88], sizes = [8, 8], strides = [1, 1]} : vector<16x96xf32> to vector<8x8xf32>
    %cst_155 = arith.constant dense<0.000000e+00> : vector<8x8xf32>
    %374 = tpu.matmul %371, %372, %cst_155 {dimension_numbers = #tpu.dot_dimension_numbers<[1], [1], [0], [0], [0, 0, 1, 0], [], []>} : vector<8x8xf32>, vector<8x8xf32>, vector<8x8xf32> -> vector<8x8xf32>
    %cst_156 = arith.constant 0.353553385 : f32
    %375 = vector.broadcast %cst_156 : f32 to vector<8x8xf32>
    %376 = arith.mulf %374, %375 : vector<8x8xf32>
    %377 = arith.addf %376, %313 : vector<8x8xf32>
    %cst_157 = arith.constant dense<0xFF800000> : vector<8xf32>
    %378 = vector.multi_reduction <maximumf>, %377, %cst_157 [1] : vector<8x8xf32> to vector<8xf32>
    %379 = vector.shape_cast %378 : vector<8xf32> to vector<8x1xf32>
    %380 = vector.broadcast %379 : vector<8x1xf32> to vector<8x8xf32>
    %381 = arith.subf %377, %380 : vector<8x8xf32>
    %382 = math.exp %381 : vector<8x8xf32>
    %cst_158 = arith.constant dense<0.000000e+00> : vector<8xf32>
    %383 = vector.multi_reduction <add>, %382, %cst_158 [1] : vector<8x8xf32> to vector<8xf32>
    %384 = vector.shape_cast %383 : vector<8xf32> to vector<8x1xf32>
    %385 = tpu.reciprocal %384 {approx = true} : vector<8x1xf32> -> vector<8x1xf32>
    %386 = vector.broadcast %385 : vector<8x1xf32> to vector<8x8xf32>
    %387 = arith.mulf %382, %386 : vector<8x8xf32>
    %cst_159 = arith.constant dense<0.000000e+00> : vector<8x8xf32>
    %388 = tpu.matmul %387, %373, %cst_159 {dimension_numbers = #tpu.dot_dimension_numbers<[1], [0], [0], [1], [0, 0, 1, 1], [], []>} : vector<8x8xf32>, vector<8x8xf32>, vector<8x8xf32> -> vector<8x8xf32>
    %c8_160 = arith.constant 8 : index
    %c24_161 = arith.constant 24 : index
    %389 = vector.load %arg14[%c8_160, %c24_161] : memref<16x32xf32, #tpu.memory_space<vmem>>, vector<8x8xf32>
    tpu.vector_store %arg14[%c8_160, %c24_161], %388 {strides = array<i32>} : memref<16x32xf32, #tpu.memory_space<vmem>>, vector<8x8xf32>,
    %c0_162 = arith.constant 0 : index
    %c0_163 = arith.constant 0 : index
    %390 = vector.load %arg14[%c0_162, %c0_163] : memref<16x32xf32, #tpu.memory_space<vmem>>, vector<16x32xf32>
    %c1_164 = arith.constant 1 : index
    %c0_165 = arith.constant 0 : index
    %c0_166 = arith.constant 0 : index
    %391 = vector.load %arg7[%c1_164, %c0_165, %c0_166] : memref<4x32x32xf32, #tpu.memory_space<vmem>>, vector<1x32x32xf32>
    %392 = vector.shape_cast %391 : vector<1x32x32xf32> to vector<32x32xf32>
    %cst_167 = arith.constant dense<0.000000e+00> : vector<16x32xf32>
    %393 = tpu.matmul %390, %392, %cst_167 {dimension_numbers = #tpu.dot_dimension_numbers<[1], [0], [0], [1], [0, 0, 1, 1], [], []>} : vector<16x32xf32>, vector<32x32xf32>, vector<16x32xf32> -> vector<16x32xf32>
    %c1_168 = arith.constant 1 : index
    %c0_169 = arith.constant 0 : index
    %c0_170 = arith.constant 0 : index
    %394 = vector.load %arg8[%c1_168, %c0_169, %c0_170] : memref<4x1x32xf32, #tpu.memory_space<vmem>>, vector<1x1x32xf32>
    %395 = vector.shape_cast %394 : vector<1x1x32xf32> to vector<1x32xf32>
    %396 = vector.broadcast %395 : vector<1x32xf32> to vector<16x32xf32>
    %397 = arith.addf %393, %396 : vector<16x32xf32>
    %398 = arith.addf %397, %201 : vector<16x32xf32>
    %c2_171 = arith.constant 2 : index
    %c0_172 = arith.constant 0 : index
    %399 = vector.load %arg3[%c2_171, %c0_172] : memref<7x32xf32, #tpu.memory_space<vmem>>, vector<1x32xf32>
    %c2_173 = arith.constant 2 : index
    %c0_174 = arith.constant 0 : index
    %400 = vector.load %arg4[%c2_173, %c0_174] : memref<7x32xf32, #tpu.memory_space<vmem>>, vector<1x32xf32>
    %cst_175 = arith.constant dense<0.000000e+00> : vector<16xf32>
    %401 = vector.multi_reduction <add>, %398, %cst_175 [1] : vector<16x32xf32> to vector<16xf32>
    %402 = vector.shape_cast %401 : vector<16xf32> to vector<16x1xf32>
    %cst_176 = arith.constant 3.200000e+01 : f32
    %403 = vector.broadcast %cst_176 : f32 to vector<16x1xf32>
    %404 = arith.divf %402, %403 : vector<16x1xf32>
    %405 = vector.broadcast %404 : vector<16x1xf32> to vector<16x32xf32>
    %406 = arith.subf %398, %405 : vector<16x32xf32>
    %407 = arith.mulf %406, %406 : vector<16x32xf32>
    %cst_177 = arith.constant dense<0.000000e+00> : vector<16xf32>
    %408 = vector.multi_reduction <add>, %407, %cst_177 [1] : vector<16x32xf32> to vector<16xf32>
    %409 = vector.shape_cast %408 : vector<16xf32> to vector<16x1xf32>
    %cst_178 = arith.constant 0.0322580636 : f32
    %410 = vector.broadcast %cst_178 : f32 to vector<16x1xf32>
    %411 = arith.mulf %409, %410 : vector<16x1xf32>
    %412 = math.sqrt %411 : vector<16x1xf32>
    %413 = vector.broadcast %404 : vector<16x1xf32> to vector<16x32xf32>
    %414 = arith.subf %398, %413 : vector<16x32xf32>
    %415 = vector.broadcast %399 : vector<1x32xf32> to vector<16x32xf32>
    %416 = arith.mulf %415, %414 : vector<16x32xf32>
    %cst_179 = arith.constant 9.99999997E-7 : f32
    %417 = vector.broadcast %cst_179 : f32 to vector<16x1xf32>
    %418 = arith.addf %412, %417 : vector<16x1xf32>
    %419 = tpu.reciprocal %418 {approx = true} : vector<16x1xf32> -> vector<16x1xf32>
    %420 = vector.broadcast %419 : vector<16x1xf32> to vector<16x32xf32>
    %421 = arith.mulf %416, %420 : vector<16x32xf32>
    %422 = vector.broadcast %400 : vector<1x32xf32> to vector<16x32xf32>
    %423 = arith.addf %421, %422 : vector<16x32xf32>
    %c0_180 = arith.constant 0 : index
    %c0_181 = arith.constant 0 : index
    %c0_182 = arith.constant 0 : index
    %424 = vector.load %arg9[%c0_180, %c0_181, %c0_182] : memref<2x32x64xf32, #tpu.memory_space<vmem>>, vector<1x32x64xf32>
    %425 = vector.shape_cast %424 : vector<1x32x64xf32> to vector<32x64xf32>
    %cst_183 = arith.constant dense<0.000000e+00> : vector<16x64xf32>
    %426 = tpu.matmul %423, %425, %cst_183 {dimension_numbers = #tpu.dot_dimension_numbers<[1], [0], [0], [1], [0, 0, 1, 1], [], []>} : vector<16x32xf32>, vector<32x64xf32>, vector<16x64xf32> -> vector<16x64xf32>
    %c0_184 = arith.constant 0 : index
    %c0_185 = arith.constant 0 : index
    %c0_186 = arith.constant 0 : index
    %427 = vector.load %arg10[%c0_184, %c0_185, %c0_186] : memref<2x1x64xf32, #tpu.memory_space<vmem>>, vector<1x1x64xf32>
    %428 = vector.shape_cast %427 : vector<1x1x64xf32> to vector<1x64xf32>
    %429 = vector.broadcast %428 : vector<1x64xf32> to vector<16x64xf32>
    %430 = arith.addf %426, %429 : vector<16x64xf32>
    %cst_187 = arith.constant 0.000000e+00 : f32
    %431 = vector.broadcast %cst_187 : f32 to vector<16x64xf32>
    %432 = arith.maximumf %430, %431 : vector<16x64xf32>
    %c0_188 = arith.constant 0 : index
    %c0_189 = arith.constant 0 : index
    %c0_190 = arith.constant 0 : index
    %433 = vector.load %arg11[%c0_188, %c0_189, %c0_190] : memref<2x64x32xf32, #tpu.memory_space<vmem>>, vector<1x64x32xf32>
    %434 = vector.shape_cast %433 : vector<1x64x32xf32> to vector<64x32xf32>
    %cst_191 = arith.constant dense<0.000000e+00> : vector<16x32xf32>
    %435 = tpu.matmul %432, %434, %cst_191 {dimension_numbers = #tpu.dot_dimension_numbers<[1], [0], [0], [1], [0, 0, 1, 1], [], []>} : vector<16x64xf32>, vector<64x32xf32>, vector<16x32xf32> -> vector<16x32xf32>
    %c0_192 = arith.constant 0 : index
    %c0_193 = arith.constant 0 : index
    %c0_194 = arith.constant 0 : index
    %436 = vector.load %arg12[%c0_192, %c0_193, %c0_194] : memref<2x1x32xf32, #tpu.memory_space<vmem>>, vector<1x1x32xf32>
    %437 = vector.shape_cast %436 : vector<1x1x32xf32> to vector<1x32xf32>
    %438 = vector.broadcast %437 : vector<1x32xf32> to vector<16x32xf32>
    %439 = arith.addf %435, %438 : vector<16x32xf32>
    %440 = arith.addf %439, %398 : vector<16x32xf32>
    %c3_195 = arith.constant 3 : index
    %c0_196 = arith.constant 0 : index
    %441 = vector.load %arg3[%c3_195, %c0_196] : memref<7x32xf32, #tpu.memory_space<vmem>>, vector<1x32xf32>
    %c3_197 = arith.constant 3 : index
    %c0_198 = arith.constant 0 : index
    %442 = vector.load %arg4[%c3_197, %c0_198] : memref<7x32xf32, #tpu.memory_space<vmem>>, vector<1x32xf32>
    %cst_199 = arith.constant dense<0.000000e+00> : vector<16xf32>
    %443 = vector.multi_reduction <add>, %440, %cst_199 [1] : vector<16x32xf32> to vector<16xf32>
    %444 = vector.shape_cast %443 : vector<16xf32> to vector<16x1xf32>
    %cst_200 = arith.constant 3.200000e+01 : f32
    %445 = vector.broadcast %cst_200 : f32 to vector<16x1xf32>
    %446 = arith.divf %444, %445 : vector<16x1xf32>
    %447 = vector.broadcast %446 : vector<16x1xf32> to vector<16x32xf32>
    %448 = arith.subf %440, %447 : vector<16x32xf32>
    %449 = arith.mulf %448, %448 : vector<16x32xf32>
    %cst_201 = arith.constant dense<0.000000e+00> : vector<16xf32>
    %450 = vector.multi_reduction <add>, %449, %cst_201 [1] : vector<16x32xf32> to vector<16xf32>
    %451 = vector.shape_cast %450 : vector<16xf32> to vector<16x1xf32>
    %cst_202 = arith.constant 0.0322580636 : f32
    %452 = vector.broadcast %cst_202 : f32 to vector<16x1xf32>
    %453 = arith.mulf %451, %452 : vector<16x1xf32>
    %454 = math.sqrt %453 : vector<16x1xf32>
    %455 = vector.broadcast %446 : vector<16x1xf32> to vector<16x32xf32>
    %456 = arith.subf %440, %455 : vector<16x32xf32>
    %457 = vector.broadcast %441 : vector<1x32xf32> to vector<16x32xf32>
    %458 = arith.mulf %457, %456 : vector<16x32xf32>
    %cst_203 = arith.constant 9.99999997E-7 : f32
    %459 = vector.broadcast %cst_203 : f32 to vector<16x1xf32>
    %460 = arith.addf %454, %459 : vector<16x1xf32>
    %461 = tpu.reciprocal %460 {approx = true} : vector<16x1xf32> -> vector<16x1xf32>
    %462 = vector.broadcast %461 : vector<16x1xf32> to vector<16x32xf32>
    %463 = arith.mulf %458, %462 : vector<16x32xf32>
    %464 = vector.broadcast %442 : vector<1x32xf32> to vector<16x32xf32>
    %465 = arith.addf %463, %464 : vector<16x32xf32>
    %c2_204 = arith.constant 2 : index
    %c0_205 = arith.constant 0 : index
    %c0_206 = arith.constant 0 : index
    %466 = vector.load %arg5[%c2_204, %c0_205, %c0_206] : memref<4x32x96xf32, #tpu.memory_space<vmem>>, vector<1x32x96xf32>
    %467 = vector.shape_cast %466 : vector<1x32x96xf32> to vector<32x96xf32>
    %cst_207 = arith.constant dense<0.000000e+00> : vector<16x96xf32>
    %468 = tpu.matmul %465, %467, %cst_207 {dimension_numbers = #tpu.dot_dimension_numbers<[1], [0], [0], [1], [0, 0, 1, 1], [], []>} : vector<16x32xf32>, vector<32x96xf32>, vector<16x96xf32> -> vector<16x96xf32>
    %c2_208 = arith.constant 2 : index
    %c0_209 = arith.constant 0 : index
    %c0_210 = arith.constant 0 : index
    %469 = vector.load %arg6[%c2_208, %c0_209, %c0_210] : memref<4x1x96xf32, #tpu.memory_space<vmem>>, vector<1x1x96xf32>
    %470 = vector.shape_cast %469 : vector<1x1x96xf32> to vector<1x96xf32>
    %471 = vector.broadcast %470 : vector<1x96xf32> to vector<16x96xf32>
    %472 = arith.addf %468, %471 : vector<16x96xf32>
    %c0_211 = arith.constant 0 : index
    %c0_212 = arith.constant 0 : index
    %c0_213 = arith.constant 0 : index
    %473 = vector.load %arg2[%c0_211, %c0_212, %c0_213] : memref<4x8x8xf32, #tpu.memory_space<vmem>>, vector<1x8x8xf32>
    %474 = vector.shape_cast %473 : vector<1x8x8xf32> to vector<8x8xf32>
    %475 = vector.extract_strided_slice %472 {offsets = [0, 0], sizes = [8, 8], strides = [1, 1]} : vector<16x96xf32> to vector<8x8xf32>
    %476 = vector.extract_strided_slice %472 {offsets = [0, 32], sizes = [8, 8], strides = [1, 1]} : vector<16x96xf32> to vector<8x8xf32>
    %477 = vector.extract_strided_slice %472 {offsets = [0, 64], sizes = [8, 8], strides = [1, 1]} : vector<16x96xf32> to vector<8x8xf32>
    %cst_214 = arith.constant dense<0.000000e+00> : vector<8x8xf32>
    %478 = tpu.matmul %475, %476, %cst_214 {dimension_numbers = #tpu.dot_dimension_numbers<[1], [1], [0], [0], [0, 0, 1, 0], [], []>} : vector<8x8xf32>, vector<8x8xf32>, vector<8x8xf32> -> vector<8x8xf32>
    %cst_215 = arith.constant 0.353553385 : f32
    %479 = vector.broadcast %cst_215 : f32 to vector<8x8xf32>
    %480 = arith.mulf %478, %479 : vector<8x8xf32>
    %481 = arith.addf %480, %474 : vector<8x8xf32>
    %cst_216 = arith.constant dense<0xFF800000> : vector<8xf32>
    %482 = vector.multi_reduction <maximumf>, %481, %cst_216 [1] : vector<8x8xf32> to vector<8xf32>
    %483 = vector.shape_cast %482 : vector<8xf32> to vector<8x1xf32>
    %484 = vector.broadcast %483 : vector<8x1xf32> to vector<8x8xf32>
    %485 = arith.subf %481, %484 : vector<8x8xf32>
    %486 = math.exp %485 : vector<8x8xf32>
    %cst_217 = arith.constant dense<0.000000e+00> : vector<8xf32>
    %487 = vector.multi_reduction <add>, %486, %cst_217 [1] : vector<8x8xf32> to vector<8xf32>
    %488 = vector.shape_cast %487 : vector<8xf32> to vector<8x1xf32>
    %489 = tpu.reciprocal %488 {approx = true} : vector<8x1xf32> -> vector<8x1xf32>
    %490 = vector.broadcast %489 : vector<8x1xf32> to vector<8x8xf32>
    %491 = arith.mulf %486, %490 : vector<8x8xf32>
    %cst_218 = arith.constant dense<0.000000e+00> : vector<8x8xf32>
    %492 = tpu.matmul %491, %477, %cst_218 {dimension_numbers = #tpu.dot_dimension_numbers<[1], [0], [0], [1], [0, 0, 1, 1], [], []>} : vector<8x8xf32>, vector<8x8xf32>, vector<8x8xf32> -> vector<8x8xf32>
    %c0_219 = arith.constant 0 : index
    %c0_220 = arith.constant 0 : index
    %493 = vector.load %arg14[%c0_219, %c0_220] : memref<16x32xf32, #tpu.memory_space<vmem>>, vector<8x8xf32>
    tpu.vector_store %arg14[%c0_219, %c0_220], %492 {strides = array<i32>} : memref<16x32xf32, #tpu.memory_space<vmem>>, vector<8x8xf32>,
    %494 = vector.extract_strided_slice %472 {offsets = [0, 8], sizes = [8, 8], strides = [1, 1]} : vector<16x96xf32> to vector<8x8xf32>
    %495 = vector.extract_strided_slice %472 {offsets = [0, 40], sizes = [8, 8], strides = [1, 1]} : vector<16x96xf32> to vector<8x8xf32>
    %496 = vector.extract_strided_slice %472 {offsets = [0, 72], sizes = [8, 8], strides = [1, 1]} : vector<16x96xf32> to vector<8x8xf32>
    %cst_221 = arith.constant dense<0.000000e+00> : vector<8x8xf32>
    %497 = tpu.matmul %494, %495, %cst_221 {dimension_numbers = #tpu.dot_dimension_numbers<[1], [1], [0], [0], [0, 0, 1, 0], [], []>} : vector<8x8xf32>, vector<8x8xf32>, vector<8x8xf32> -> vector<8x8xf32>
    %cst_222 = arith.constant 0.353553385 : f32
    %498 = vector.broadcast %cst_222 : f32 to vector<8x8xf32>
    %499 = arith.mulf %497, %498 : vector<8x8xf32>
    %500 = arith.addf %499, %474 : vector<8x8xf32>
    %cst_223 = arith.constant dense<0xFF800000> : vector<8xf32>
    %501 = vector.multi_reduction <maximumf>, %500, %cst_223 [1] : vector<8x8xf32> to vector<8xf32>
    %502 = vector.shape_cast %501 : vector<8xf32> to vector<8x1xf32>
    %503 = vector.broadcast %502 : vector<8x1xf32> to vector<8x8xf32>
    %504 = arith.subf %500, %503 : vector<8x8xf32>
    %505 = math.exp %504 : vector<8x8xf32>
    %cst_224 = arith.constant dense<0.000000e+00> : vector<8xf32>
    %506 = vector.multi_reduction <add>, %505, %cst_224 [1] : vector<8x8xf32> to vector<8xf32>
    %507 = vector.shape_cast %506 : vector<8xf32> to vector<8x1xf32>
    %508 = tpu.reciprocal %507 {approx = true} : vector<8x1xf32> -> vector<8x1xf32>
    %509 = vector.broadcast %508 : vector<8x1xf32> to vector<8x8xf32>
    %510 = arith.mulf %505, %509 : vector<8x8xf32>
    %cst_225 = arith.constant dense<0.000000e+00> : vector<8x8xf32>
    %511 = tpu.matmul %510, %496, %cst_225 {dimension_numbers = #tpu.dot_dimension_numbers<[1], [0], [0], [1], [0, 0, 1, 1], [], []>} : vector<8x8xf32>, vector<8x8xf32>, vector<8x8xf32> -> vector<8x8xf32>
    %c0_226 = arith.constant 0 : index
    %c8_227 = arith.constant 8 : index
    %512 = vector.load %arg14[%c0_226, %c8_227] : memref<16x32xf32, #tpu.memory_space<vmem>>, vector<8x8xf32>
    tpu.vector_store %arg14[%c0_226, %c8_227], %511 {strides = array<i32>} : memref<16x32xf32, #tpu.memory_space<vmem>>, vector<8x8xf32>,
    %513 = vector.extract_strided_slice %472 {offsets = [0, 16], sizes = [8, 8], strides = [1, 1]} : vector<16x96xf32> to vector<8x8xf32>
    %514 = vector.extract_strided_slice %472 {offsets = [0, 48], sizes = [8, 8], strides = [1, 1]} : vector<16x96xf32> to vector<8x8xf32>
    %515 = vector.extract_strided_slice %472 {offsets = [0, 80], sizes = [8, 8], strides = [1, 1]} : vector<16x96xf32> to vector<8x8xf32>
    %cst_228 = arith.constant dense<0.000000e+00> : vector<8x8xf32>
    %516 = tpu.matmul %513, %514, %cst_228 {dimension_numbers = #tpu.dot_dimension_numbers<[1], [1], [0], [0], [0, 0, 1, 0], [], []>} : vector<8x8xf32>, vector<8x8xf32>, vector<8x8xf32> -> vector<8x8xf32>
    %cst_229 = arith.constant 0.353553385 : f32
    %517 = vector.broadcast %cst_229 : f32 to vector<8x8xf32>
    %518 = arith.mulf %516, %517 : vector<8x8xf32>
    %519 = arith.addf %518, %474 : vector<8x8xf32>
    %cst_230 = arith.constant dense<0xFF800000> : vector<8xf32>
    %520 = vector.multi_reduction <maximumf>, %519, %cst_230 [1] : vector<8x8xf32> to vector<8xf32>
    %521 = vector.shape_cast %520 : vector<8xf32> to vector<8x1xf32>
    %522 = vector.broadcast %521 : vector<8x1xf32> to vector<8x8xf32>
    %523 = arith.subf %519, %522 : vector<8x8xf32>
    %524 = math.exp %523 : vector<8x8xf32>
    %cst_231 = arith.constant dense<0.000000e+00> : vector<8xf32>
    %525 = vector.multi_reduction <add>, %524, %cst_231 [1] : vector<8x8xf32> to vector<8xf32>
    %526 = vector.shape_cast %525 : vector<8xf32> to vector<8x1xf32>
    %527 = tpu.reciprocal %526 {approx = true} : vector<8x1xf32> -> vector<8x1xf32>
    %528 = vector.broadcast %527 : vector<8x1xf32> to vector<8x8xf32>
    %529 = arith.mulf %524, %528 : vector<8x8xf32>
    %cst_232 = arith.constant dense<0.000000e+00> : vector<8x8xf32>
    %530 = tpu.matmul %529, %515, %cst_232 {dimension_numbers = #tpu.dot_dimension_numbers<[1], [0], [0], [1], [0, 0, 1, 1], [], []>} : vector<8x8xf32>, vector<8x8xf32>, vector<8x8xf32> -> vector<8x8xf32>
    %c0_233 = arith.constant 0 : index
    %c16_234 = arith.constant 16 : index
    %531 = vector.load %arg14[%c0_233, %c16_234] : memref<16x32xf32, #tpu.memory_space<vmem>>, vector<8x8xf32>
    tpu.vector_store %arg14[%c0_233, %c16_234], %530 {strides = array<i32>} : memref<16x32xf32, #tpu.memory_space<vmem>>, vector<8x8xf32>,
    %532 = vector.extract_strided_slice %472 {offsets = [0, 24], sizes = [8, 8], strides = [1, 1]} : vector<16x96xf32> to vector<8x8xf32>
    %533 = vector.extract_strided_slice %472 {offsets = [0, 56], sizes = [8, 8], strides = [1, 1]} : vector<16x96xf32> to vector<8x8xf32>
    %534 = vector.extract_strided_slice %472 {offsets = [0, 88], sizes = [8, 8], strides = [1, 1]} : vector<16x96xf32> to vector<8x8xf32>
    %cst_235 = arith.constant dense<0.000000e+00> : vector<8x8xf32>
    %535 = tpu.matmul %532, %533, %cst_235 {dimension_numbers = #tpu.dot_dimension_numbers<[1], [1], [0], [0], [0, 0, 1, 0], [], []>} : vector<8x8xf32>, vector<8x8xf32>, vector<8x8xf32> -> vector<8x8xf32>
    %cst_236 = arith.constant 0.353553385 : f32
    %536 = vector.broadcast %cst_236 : f32 to vector<8x8xf32>
    %537 = arith.mulf %535, %536 : vector<8x8xf32>
    %538 = arith.addf %537, %474 : vector<8x8xf32>
    %cst_237 = arith.constant dense<0xFF800000> : vector<8xf32>
    %539 = vector.multi_reduction <maximumf>, %538, %cst_237 [1] : vector<8x8xf32> to vector<8xf32>
    %540 = vector.shape_cast %539 : vector<8xf32> to vector<8x1xf32>
    %541 = vector.broadcast %540 : vector<8x1xf32> to vector<8x8xf32>
    %542 = arith.subf %538, %541 : vector<8x8xf32>
    %543 = math.exp %542 : vector<8x8xf32>
    %cst_238 = arith.constant dense<0.000000e+00> : vector<8xf32>
    %544 = vector.multi_reduction <add>, %543, %cst_238 [1] : vector<8x8xf32> to vector<8xf32>
    %545 = vector.shape_cast %544 : vector<8xf32> to vector<8x1xf32>
    %546 = tpu.reciprocal %545 {approx = true} : vector<8x1xf32> -> vector<8x1xf32>
    %547 = vector.broadcast %546 : vector<8x1xf32> to vector<8x8xf32>
    %548 = arith.mulf %543, %547 : vector<8x8xf32>
    %cst_239 = arith.constant dense<0.000000e+00> : vector<8x8xf32>
    %549 = tpu.matmul %548, %534, %cst_239 {dimension_numbers = #tpu.dot_dimension_numbers<[1], [0], [0], [1], [0, 0, 1, 1], [], []>} : vector<8x8xf32>, vector<8x8xf32>, vector<8x8xf32> -> vector<8x8xf32>
    %c0_240 = arith.constant 0 : index
    %c24_241 = arith.constant 24 : index
    %550 = vector.load %arg14[%c0_240, %c24_241] : memref<16x32xf32, #tpu.memory_space<vmem>>, vector<8x8xf32>
    tpu.vector_store %arg14[%c0_240, %c24_241], %549 {strides = array<i32>} : memref<16x32xf32, #tpu.memory_space<vmem>>, vector<8x8xf32>,
    %c1_242 = arith.constant 1 : index
    %c0_243 = arith.constant 0 : index
    %c0_244 = arith.constant 0 : index
    %551 = vector.load %arg2[%c1_242, %c0_243, %c0_244] : memref<4x8x8xf32, #tpu.memory_space<vmem>>, vector<1x8x8xf32>
    %552 = vector.shape_cast %551 : vector<1x8x8xf32> to vector<8x8xf32>
    %553 = vector.extract_strided_slice %472 {offsets = [8, 0], sizes = [8, 8], strides = [1, 1]} : vector<16x96xf32> to vector<8x8xf32>
    %554 = vector.extract_strided_slice %472 {offsets = [8, 32], sizes = [8, 8], strides = [1, 1]} : vector<16x96xf32> to vector<8x8xf32>
    %555 = vector.extract_strided_slice %472 {offsets = [8, 64], sizes = [8, 8], strides = [1, 1]} : vector<16x96xf32> to vector<8x8xf32>
    %cst_245 = arith.constant dense<0.000000e+00> : vector<8x8xf32>
    %556 = tpu.matmul %553, %554, %cst_245 {dimension_numbers = #tpu.dot_dimension_numbers<[1], [1], [0], [0], [0, 0, 1, 0], [], []>} : vector<8x8xf32>, vector<8x8xf32>, vector<8x8xf32> -> vector<8x8xf32>
    %cst_246 = arith.constant 0.353553385 : f32
    %557 = vector.broadcast %cst_246 : f32 to vector<8x8xf32>
    %558 = arith.mulf %556, %557 : vector<8x8xf32>
    %559 = arith.addf %558, %552 : vector<8x8xf32>
    %cst_247 = arith.constant dense<0xFF800000> : vector<8xf32>
    %560 = vector.multi_reduction <maximumf>, %559, %cst_247 [1] : vector<8x8xf32> to vector<8xf32>
    %561 = vector.shape_cast %560 : vector<8xf32> to vector<8x1xf32>
    %562 = vector.broadcast %561 : vector<8x1xf32> to vector<8x8xf32>
    %563 = arith.subf %559, %562 : vector<8x8xf32>
    %564 = math.exp %563 : vector<8x8xf32>
    %cst_248 = arith.constant dense<0.000000e+00> : vector<8xf32>
    %565 = vector.multi_reduction <add>, %564, %cst_248 [1] : vector<8x8xf32> to vector<8xf32>
    %566 = vector.shape_cast %565 : vector<8xf32> to vector<8x1xf32>
    %567 = tpu.reciprocal %566 {approx = true} : vector<8x1xf32> -> vector<8x1xf32>
    %568 = vector.broadcast %567 : vector<8x1xf32> to vector<8x8xf32>
    %569 = arith.mulf %564, %568 : vector<8x8xf32>
    %cst_249 = arith.constant dense<0.000000e+00> : vector<8x8xf32>
    %570 = tpu.matmul %569, %555, %cst_249 {dimension_numbers = #tpu.dot_dimension_numbers<[1], [0], [0], [1], [0, 0, 1, 1], [], []>} : vector<8x8xf32>, vector<8x8xf32>, vector<8x8xf32> -> vector<8x8xf32>
    %c8_250 = arith.constant 8 : index
    %c0_251 = arith.constant 0 : index
    %571 = vector.load %arg14[%c8_250, %c0_251] : memref<16x32xf32, #tpu.memory_space<vmem>>, vector<8x8xf32>
    tpu.vector_store %arg14[%c8_250, %c0_251], %570 {strides = array<i32>} : memref<16x32xf32, #tpu.memory_space<vmem>>, vector<8x8xf32>,
    %572 = vector.extract_strided_slice %472 {offsets = [8, 8], sizes = [8, 8], strides = [1, 1]} : vector<16x96xf32> to vector<8x8xf32>
    %573 = vector.extract_strided_slice %472 {offsets = [8, 40], sizes = [8, 8], strides = [1, 1]} : vector<16x96xf32> to vector<8x8xf32>
    %574 = vector.extract_strided_slice %472 {offsets = [8, 72], sizes = [8, 8], strides = [1, 1]} : vector<16x96xf32> to vector<8x8xf32>
    %cst_252 = arith.constant dense<0.000000e+00> : vector<8x8xf32>
    %575 = tpu.matmul %572, %573, %cst_252 {dimension_numbers = #tpu.dot_dimension_numbers<[1], [1], [0], [0], [0, 0, 1, 0], [], []>} : vector<8x8xf32>, vector<8x8xf32>, vector<8x8xf32> -> vector<8x8xf32>
    %cst_253 = arith.constant 0.353553385 : f32
    %576 = vector.broadcast %cst_253 : f32 to vector<8x8xf32>
    %577 = arith.mulf %575, %576 : vector<8x8xf32>
    %578 = arith.addf %577, %552 : vector<8x8xf32>
    %cst_254 = arith.constant dense<0xFF800000> : vector<8xf32>
    %579 = vector.multi_reduction <maximumf>, %578, %cst_254 [1] : vector<8x8xf32> to vector<8xf32>
    %580 = vector.shape_cast %579 : vector<8xf32> to vector<8x1xf32>
    %581 = vector.broadcast %580 : vector<8x1xf32> to vector<8x8xf32>
    %582 = arith.subf %578, %581 : vector<8x8xf32>
    %583 = math.exp %582 : vector<8x8xf32>
    %cst_255 = arith.constant dense<0.000000e+00> : vector<8xf32>
    %584 = vector.multi_reduction <add>, %583, %cst_255 [1] : vector<8x8xf32> to vector<8xf32>
    %585 = vector.shape_cast %584 : vector<8xf32> to vector<8x1xf32>
    %586 = tpu.reciprocal %585 {approx = true} : vector<8x1xf32> -> vector<8x1xf32>
    %587 = vector.broadcast %586 : vector<8x1xf32> to vector<8x8xf32>
    %588 = arith.mulf %583, %587 : vector<8x8xf32>
    %cst_256 = arith.constant dense<0.000000e+00> : vector<8x8xf32>
    %589 = tpu.matmul %588, %574, %cst_256 {dimension_numbers = #tpu.dot_dimension_numbers<[1], [0], [0], [1], [0, 0, 1, 1], [], []>} : vector<8x8xf32>, vector<8x8xf32>, vector<8x8xf32> -> vector<8x8xf32>
    %c8_257 = arith.constant 8 : index
    %c8_258 = arith.constant 8 : index
    %590 = vector.load %arg14[%c8_257, %c8_258] : memref<16x32xf32, #tpu.memory_space<vmem>>, vector<8x8xf32>
    tpu.vector_store %arg14[%c8_257, %c8_258], %589 {strides = array<i32>} : memref<16x32xf32, #tpu.memory_space<vmem>>, vector<8x8xf32>,
    %591 = vector.extract_strided_slice %472 {offsets = [8, 16], sizes = [8, 8], strides = [1, 1]} : vector<16x96xf32> to vector<8x8xf32>
    %592 = vector.extract_strided_slice %472 {offsets = [8, 48], sizes = [8, 8], strides = [1, 1]} : vector<16x96xf32> to vector<8x8xf32>
    %593 = vector.extract_strided_slice %472 {offsets = [8, 80], sizes = [8, 8], strides = [1, 1]} : vector<16x96xf32> to vector<8x8xf32>
    %cst_259 = arith.constant dense<0.000000e+00> : vector<8x8xf32>
    %594 = tpu.matmul %591, %592, %cst_259 {dimension_numbers = #tpu.dot_dimension_numbers<[1], [1], [0], [0], [0, 0, 1, 0], [], []>} : vector<8x8xf32>, vector<8x8xf32>, vector<8x8xf32> -> vector<8x8xf32>
    %cst_260 = arith.constant 0.353553385 : f32
    %595 = vector.broadcast %cst_260 : f32 to vector<8x8xf32>
    %596 = arith.mulf %594, %595 : vector<8x8xf32>
    %597 = arith.addf %596, %552 : vector<8x8xf32>
    %cst_261 = arith.constant dense<0xFF800000> : vector<8xf32>
    %598 = vector.multi_reduction <maximumf>, %597, %cst_261 [1] : vector<8x8xf32> to vector<8xf32>
    %599 = vector.shape_cast %598 : vector<8xf32> to vector<8x1xf32>
    %600 = vector.broadcast %599 : vector<8x1xf32> to vector<8x8xf32>
    %601 = arith.subf %597, %600 : vector<8x8xf32>
    %602 = math.exp %601 : vector<8x8xf32>
    %cst_262 = arith.constant dense<0.000000e+00> : vector<8xf32>
    %603 = vector.multi_reduction <add>, %602, %cst_262 [1] : vector<8x8xf32> to vector<8xf32>
    %604 = vector.shape_cast %603 : vector<8xf32> to vector<8x1xf32>
    %605 = tpu.reciprocal %604 {approx = true} : vector<8x1xf32> -> vector<8x1xf32>
    %606 = vector.broadcast %605 : vector<8x1xf32> to vector<8x8xf32>
    %607 = arith.mulf %602, %606 : vector<8x8xf32>
    %cst_263 = arith.constant dense<0.000000e+00> : vector<8x8xf32>
    %608 = tpu.matmul %607, %593, %cst_263 {dimension_numbers = #tpu.dot_dimension_numbers<[1], [0], [0], [1], [0, 0, 1, 1], [], []>} : vector<8x8xf32>, vector<8x8xf32>, vector<8x8xf32> -> vector<8x8xf32>
    %c8_264 = arith.constant 8 : index
    %c16_265 = arith.constant 16 : index
    %609 = vector.load %arg14[%c8_264, %c16_265] : memref<16x32xf32, #tpu.memory_space<vmem>>, vector<8x8xf32>
    tpu.vector_store %arg14[%c8_264, %c16_265], %608 {strides = array<i32>} : memref<16x32xf32, #tpu.memory_space<vmem>>, vector<8x8xf32>,
    %610 = vector.extract_strided_slice %472 {offsets = [8, 24], sizes = [8, 8], strides = [1, 1]} : vector<16x96xf32> to vector<8x8xf32>
    %611 = vector.extract_strided_slice %472 {offsets = [8, 56], sizes = [8, 8], strides = [1, 1]} : vector<16x96xf32> to vector<8x8xf32>
    %612 = vector.extract_strided_slice %472 {offsets = [8, 88], sizes = [8, 8], strides = [1, 1]} : vector<16x96xf32> to vector<8x8xf32>
    %cst_266 = arith.constant dense<0.000000e+00> : vector<8x8xf32>
    %613 = tpu.matmul %610, %611, %cst_266 {dimension_numbers = #tpu.dot_dimension_numbers<[1], [1], [0], [0], [0, 0, 1, 0], [], []>} : vector<8x8xf32>, vector<8x8xf32>, vector<8x8xf32> -> vector<8x8xf32>
    %cst_267 = arith.constant 0.353553385 : f32
    %614 = vector.broadcast %cst_267 : f32 to vector<8x8xf32>
    %615 = arith.mulf %613, %614 : vector<8x8xf32>
    %616 = arith.addf %615, %552 : vector<8x8xf32>
    %cst_268 = arith.constant dense<0xFF800000> : vector<8xf32>
    %617 = vector.multi_reduction <maximumf>, %616, %cst_268 [1] : vector<8x8xf32> to vector<8xf32>
    %618 = vector.shape_cast %617 : vector<8xf32> to vector<8x1xf32>
    %619 = vector.broadcast %618 : vector<8x1xf32> to vector<8x8xf32>
    %620 = arith.subf %616, %619 : vector<8x8xf32>
    %621 = math.exp %620 : vector<8x8xf32>
    %cst_269 = arith.constant dense<0.000000e+00> : vector<8xf32>
    %622 = vector.multi_reduction <add>, %621, %cst_269 [1] : vector<8x8xf32> to vector<8xf32>
    %623 = vector.shape_cast %622 : vector<8xf32> to vector<8x1xf32>
    %624 = tpu.reciprocal %623 {approx = true} : vector<8x1xf32> -> vector<8x1xf32>
    %625 = vector.broadcast %624 : vector<8x1xf32> to vector<8x8xf32>
    %626 = arith.mulf %621, %625 : vector<8x8xf32>
    %cst_270 = arith.constant dense<0.000000e+00> : vector<8x8xf32>
    %627 = tpu.matmul %626, %612, %cst_270 {dimension_numbers = #tpu.dot_dimension_numbers<[1], [0], [0], [1], [0, 0, 1, 1], [], []>} : vector<8x8xf32>, vector<8x8xf32>, vector<8x8xf32> -> vector<8x8xf32>
    %c8_271 = arith.constant 8 : index
    %c24_272 = arith.constant 24 : index
    %628 = vector.load %arg14[%c8_271, %c24_272] : memref<16x32xf32, #tpu.memory_space<vmem>>, vector<8x8xf32>
    tpu.vector_store %arg14[%c8_271, %c24_272], %627 {strides = array<i32>} : memref<16x32xf32, #tpu.memory_space<vmem>>, vector<8x8xf32>,
    %c0_273 = arith.constant 0 : index
    %c0_274 = arith.constant 0 : index
    %629 = vector.load %arg14[%c0_273, %c0_274] : memref<16x32xf32, #tpu.memory_space<vmem>>, vector<16x32xf32>
    %c2_275 = arith.constant 2 : index
    %c0_276 = arith.constant 0 : index
    %c0_277 = arith.constant 0 : index
    %630 = vector.load %arg7[%c2_275, %c0_276, %c0_277] : memref<4x32x32xf32, #tpu.memory_space<vmem>>, vector<1x32x32xf32>
    %631 = vector.shape_cast %630 : vector<1x32x32xf32> to vector<32x32xf32>
    %cst_278 = arith.constant dense<0.000000e+00> : vector<16x32xf32>
    %632 = tpu.matmul %629, %631, %cst_278 {dimension_numbers = #tpu.dot_dimension_numbers<[1], [0], [0], [1], [0, 0, 1, 1], [], []>} : vector<16x32xf32>, vector<32x32xf32>, vector<16x32xf32> -> vector<16x32xf32>
    %c2_279 = arith.constant 2 : index
    %c0_280 = arith.constant 0 : index
    %c0_281 = arith.constant 0 : index
    %633 = vector.load %arg8[%c2_279, %c0_280, %c0_281] : memref<4x1x32xf32, #tpu.memory_space<vmem>>, vector<1x1x32xf32>
    %634 = vector.shape_cast %633 : vector<1x1x32xf32> to vector<1x32xf32>
    %635 = vector.broadcast %634 : vector<1x32xf32> to vector<16x32xf32>
    %636 = arith.addf %632, %635 : vector<16x32xf32>
    %637 = arith.addf %636, %440 : vector<16x32xf32>
    %c4 = arith.constant 4 : index
    %c0_282 = arith.constant 0 : index
    %638 = vector.load %arg3[%c4, %c0_282] : memref<7x32xf32, #tpu.memory_space<vmem>>, vector<1x32xf32>
    %c4_283 = arith.constant 4 : index
    %c0_284 = arith.constant 0 : index
    %639 = vector.load %arg4[%c4_283, %c0_284] : memref<7x32xf32, #tpu.memory_space<vmem>>, vector<1x32xf32>
    %cst_285 = arith.constant dense<0.000000e+00> : vector<16xf32>
    %640 = vector.multi_reduction <add>, %637, %cst_285 [1] : vector<16x32xf32> to vector<16xf32>
    %641 = vector.shape_cast %640 : vector<16xf32> to vector<16x1xf32>
    %cst_286 = arith.constant 3.200000e+01 : f32
    %642 = vector.broadcast %cst_286 : f32 to vector<16x1xf32>
    %643 = arith.divf %641, %642 : vector<16x1xf32>
    %644 = vector.broadcast %643 : vector<16x1xf32> to vector<16x32xf32>
    %645 = arith.subf %637, %644 : vector<16x32xf32>
    %646 = arith.mulf %645, %645 : vector<16x32xf32>
    %cst_287 = arith.constant dense<0.000000e+00> : vector<16xf32>
    %647 = vector.multi_reduction <add>, %646, %cst_287 [1] : vector<16x32xf32> to vector<16xf32>
    %648 = vector.shape_cast %647 : vector<16xf32> to vector<16x1xf32>
    %cst_288 = arith.constant 0.0322580636 : f32
    %649 = vector.broadcast %cst_288 : f32 to vector<16x1xf32>
    %650 = arith.mulf %648, %649 : vector<16x1xf32>
    %651 = math.sqrt %650 : vector<16x1xf32>
    %652 = vector.broadcast %643 : vector<16x1xf32> to vector<16x32xf32>
    %653 = arith.subf %637, %652 : vector<16x32xf32>
    %654 = vector.broadcast %638 : vector<1x32xf32> to vector<16x32xf32>
    %655 = arith.mulf %654, %653 : vector<16x32xf32>
    %cst_289 = arith.constant 9.99999997E-7 : f32
    %656 = vector.broadcast %cst_289 : f32 to vector<16x1xf32>
    %657 = arith.addf %651, %656 : vector<16x1xf32>
    %658 = tpu.reciprocal %657 {approx = true} : vector<16x1xf32> -> vector<16x1xf32>
    %659 = vector.broadcast %658 : vector<16x1xf32> to vector<16x32xf32>
    %660 = arith.mulf %655, %659 : vector<16x32xf32>
    %661 = vector.broadcast %639 : vector<1x32xf32> to vector<16x32xf32>
    %662 = arith.addf %660, %661 : vector<16x32xf32>
    %c3_290 = arith.constant 3 : index
    %c0_291 = arith.constant 0 : index
    %c0_292 = arith.constant 0 : index
    %663 = vector.load %arg5[%c3_290, %c0_291, %c0_292] : memref<4x32x96xf32, #tpu.memory_space<vmem>>, vector<1x32x96xf32>
    %664 = vector.shape_cast %663 : vector<1x32x96xf32> to vector<32x96xf32>
    %cst_293 = arith.constant dense<0.000000e+00> : vector<16x96xf32>
    %665 = tpu.matmul %662, %664, %cst_293 {dimension_numbers = #tpu.dot_dimension_numbers<[1], [0], [0], [1], [0, 0, 1, 1], [], []>} : vector<16x32xf32>, vector<32x96xf32>, vector<16x96xf32> -> vector<16x96xf32>
    %c3_294 = arith.constant 3 : index
    %c0_295 = arith.constant 0 : index
    %c0_296 = arith.constant 0 : index
    %666 = vector.load %arg6[%c3_294, %c0_295, %c0_296] : memref<4x1x96xf32, #tpu.memory_space<vmem>>, vector<1x1x96xf32>
    %667 = vector.shape_cast %666 : vector<1x1x96xf32> to vector<1x96xf32>
    %668 = vector.broadcast %667 : vector<1x96xf32> to vector<16x96xf32>
    %669 = arith.addf %665, %668 : vector<16x96xf32>
    %c2_297 = arith.constant 2 : index
    %c0_298 = arith.constant 0 : index
    %c0_299 = arith.constant 0 : index
    %670 = vector.load %arg2[%c2_297, %c0_298, %c0_299] : memref<4x8x8xf32, #tpu.memory_space<vmem>>, vector<1x8x8xf32>
    %671 = vector.shape_cast %670 : vector<1x8x8xf32> to vector<8x8xf32>
    %672 = vector.extract_strided_slice %669 {offsets = [0, 0], sizes = [8, 8], strides = [1, 1]} : vector<16x96xf32> to vector<8x8xf32>
    %673 = vector.extract_strided_slice %669 {offsets = [0, 32], sizes = [8, 8], strides = [1, 1]} : vector<16x96xf32> to vector<8x8xf32>
    %674 = vector.extract_strided_slice %669 {offsets = [0, 64], sizes = [8, 8], strides = [1, 1]} : vector<16x96xf32> to vector<8x8xf32>
    %cst_300 = arith.constant dense<0.000000e+00> : vector<8x8xf32>
    %675 = tpu.matmul %672, %673, %cst_300 {dimension_numbers = #tpu.dot_dimension_numbers<[1], [1], [0], [0], [0, 0, 1, 0], [], []>} : vector<8x8xf32>, vector<8x8xf32>, vector<8x8xf32> -> vector<8x8xf32>
    %cst_301 = arith.constant 0.353553385 : f32
    %676 = vector.broadcast %cst_301 : f32 to vector<8x8xf32>
    %677 = arith.mulf %675, %676 : vector<8x8xf32>
    %678 = arith.addf %677, %671 : vector<8x8xf32>
    %cst_302 = arith.constant dense<0xFF800000> : vector<8xf32>
    %679 = vector.multi_reduction <maximumf>, %678, %cst_302 [1] : vector<8x8xf32> to vector<8xf32>
    %680 = vector.shape_cast %679 : vector<8xf32> to vector<8x1xf32>
    %681 = vector.broadcast %680 : vector<8x1xf32> to vector<8x8xf32>
    %682 = arith.subf %678, %681 : vector<8x8xf32>
    %683 = math.exp %682 : vector<8x8xf32>
    %cst_303 = arith.constant dense<0.000000e+00> : vector<8xf32>
    %684 = vector.multi_reduction <add>, %683, %cst_303 [1] : vector<8x8xf32> to vector<8xf32>
    %685 = vector.shape_cast %684 : vector<8xf32> to vector<8x1xf32>
    %686 = tpu.reciprocal %685 {approx = true} : vector<8x1xf32> -> vector<8x1xf32>
    %687 = vector.broadcast %686 : vector<8x1xf32> to vector<8x8xf32>
    %688 = arith.mulf %683, %687 : vector<8x8xf32>
    %cst_304 = arith.constant dense<0.000000e+00> : vector<8x8xf32>
    %689 = tpu.matmul %688, %674, %cst_304 {dimension_numbers = #tpu.dot_dimension_numbers<[1], [0], [0], [1], [0, 0, 1, 1], [], []>} : vector<8x8xf32>, vector<8x8xf32>, vector<8x8xf32> -> vector<8x8xf32>
    %c0_305 = arith.constant 0 : index
    %c0_306 = arith.constant 0 : index
    %690 = vector.load %arg14[%c0_305, %c0_306] : memref<16x32xf32, #tpu.memory_space<vmem>>, vector<8x8xf32>
    tpu.vector_store %arg14[%c0_305, %c0_306], %689 {strides = array<i32>} : memref<16x32xf32, #tpu.memory_space<vmem>>, vector<8x8xf32>,
    %691 = vector.extract_strided_slice %669 {offsets = [0, 8], sizes = [8, 8], strides = [1, 1]} : vector<16x96xf32> to vector<8x8xf32>
    %692 = vector.extract_strided_slice %669 {offsets = [0, 40], sizes = [8, 8], strides = [1, 1]} : vector<16x96xf32> to vector<8x8xf32>
    %693 = vector.extract_strided_slice %669 {offsets = [0, 72], sizes = [8, 8], strides = [1, 1]} : vector<16x96xf32> to vector<8x8xf32>
    %cst_307 = arith.constant dense<0.000000e+00> : vector<8x8xf32>
    %694 = tpu.matmul %691, %692, %cst_307 {dimension_numbers = #tpu.dot_dimension_numbers<[1], [1], [0], [0], [0, 0, 1, 0], [], []>} : vector<8x8xf32>, vector<8x8xf32>, vector<8x8xf32> -> vector<8x8xf32>
    %cst_308 = arith.constant 0.353553385 : f32
    %695 = vector.broadcast %cst_308 : f32 to vector<8x8xf32>
    %696 = arith.mulf %694, %695 : vector<8x8xf32>
    %697 = arith.addf %696, %671 : vector<8x8xf32>
    %cst_309 = arith.constant dense<0xFF800000> : vector<8xf32>
    %698 = vector.multi_reduction <maximumf>, %697, %cst_309 [1] : vector<8x8xf32> to vector<8xf32>
    %699 = vector.shape_cast %698 : vector<8xf32> to vector<8x1xf32>
    %700 = vector.broadcast %699 : vector<8x1xf32> to vector<8x8xf32>
    %701 = arith.subf %697, %700 : vector<8x8xf32>
    %702 = math.exp %701 : vector<8x8xf32>
    %cst_310 = arith.constant dense<0.000000e+00> : vector<8xf32>
    %703 = vector.multi_reduction <add>, %702, %cst_310 [1] : vector<8x8xf32> to vector<8xf32>
    %704 = vector.shape_cast %703 : vector<8xf32> to vector<8x1xf32>
    %705 = tpu.reciprocal %704 {approx = true} : vector<8x1xf32> -> vector<8x1xf32>
    %706 = vector.broadcast %705 : vector<8x1xf32> to vector<8x8xf32>
    %707 = arith.mulf %702, %706 : vector<8x8xf32>
    %cst_311 = arith.constant dense<0.000000e+00> : vector<8x8xf32>
    %708 = tpu.matmul %707, %693, %cst_311 {dimension_numbers = #tpu.dot_dimension_numbers<[1], [0], [0], [1], [0, 0, 1, 1], [], []>} : vector<8x8xf32>, vector<8x8xf32>, vector<8x8xf32> -> vector<8x8xf32>
    %c0_312 = arith.constant 0 : index
    %c8_313 = arith.constant 8 : index
    %709 = vector.load %arg14[%c0_312, %c8_313] : memref<16x32xf32, #tpu.memory_space<vmem>>, vector<8x8xf32>
    tpu.vector_store %arg14[%c0_312, %c8_313], %708 {strides = array<i32>} : memref<16x32xf32, #tpu.memory_space<vmem>>, vector<8x8xf32>,
    %710 = vector.extract_strided_slice %669 {offsets = [0, 16], sizes = [8, 8], strides = [1, 1]} : vector<16x96xf32> to vector<8x8xf32>
    %711 = vector.extract_strided_slice %669 {offsets = [0, 48], sizes = [8, 8], strides = [1, 1]} : vector<16x96xf32> to vector<8x8xf32>
    %712 = vector.extract_strided_slice %669 {offsets = [0, 80], sizes = [8, 8], strides = [1, 1]} : vector<16x96xf32> to vector<8x8xf32>
    %cst_314 = arith.constant dense<0.000000e+00> : vector<8x8xf32>
    %713 = tpu.matmul %710, %711, %cst_314 {dimension_numbers = #tpu.dot_dimension_numbers<[1], [1], [0], [0], [0, 0, 1, 0], [], []>} : vector<8x8xf32>, vector<8x8xf32>, vector<8x8xf32> -> vector<8x8xf32>
    %cst_315 = arith.constant 0.353553385 : f32
    %714 = vector.broadcast %cst_315 : f32 to vector<8x8xf32>
    %715 = arith.mulf %713, %714 : vector<8x8xf32>
    %716 = arith.addf %715, %671 : vector<8x8xf32>
    %cst_316 = arith.constant dense<0xFF800000> : vector<8xf32>
    %717 = vector.multi_reduction <maximumf>, %716, %cst_316 [1] : vector<8x8xf32> to vector<8xf32>
    %718 = vector.shape_cast %717 : vector<8xf32> to vector<8x1xf32>
    %719 = vector.broadcast %718 : vector<8x1xf32> to vector<8x8xf32>
    %720 = arith.subf %716, %719 : vector<8x8xf32>
    %721 = math.exp %720 : vector<8x8xf32>
    %cst_317 = arith.constant dense<0.000000e+00> : vector<8xf32>
    %722 = vector.multi_reduction <add>, %721, %cst_317 [1] : vector<8x8xf32> to vector<8xf32>
    %723 = vector.shape_cast %722 : vector<8xf32> to vector<8x1xf32>
    %724 = tpu.reciprocal %723 {approx = true} : vector<8x1xf32> -> vector<8x1xf32>
    %725 = vector.broadcast %724 : vector<8x1xf32> to vector<8x8xf32>
    %726 = arith.mulf %721, %725 : vector<8x8xf32>
    %cst_318 = arith.constant dense<0.000000e+00> : vector<8x8xf32>
    %727 = tpu.matmul %726, %712, %cst_318 {dimension_numbers = #tpu.dot_dimension_numbers<[1], [0], [0], [1], [0, 0, 1, 1], [], []>} : vector<8x8xf32>, vector<8x8xf32>, vector<8x8xf32> -> vector<8x8xf32>
    %c0_319 = arith.constant 0 : index
    %c16_320 = arith.constant 16 : index
    %728 = vector.load %arg14[%c0_319, %c16_320] : memref<16x32xf32, #tpu.memory_space<vmem>>, vector<8x8xf32>
    tpu.vector_store %arg14[%c0_319, %c16_320], %727 {strides = array<i32>} : memref<16x32xf32, #tpu.memory_space<vmem>>, vector<8x8xf32>,
    %729 = vector.extract_strided_slice %669 {offsets = [0, 24], sizes = [8, 8], strides = [1, 1]} : vector<16x96xf32> to vector<8x8xf32>
    %730 = vector.extract_strided_slice %669 {offsets = [0, 56], sizes = [8, 8], strides = [1, 1]} : vector<16x96xf32> to vector<8x8xf32>
    %731 = vector.extract_strided_slice %669 {offsets = [0, 88], sizes = [8, 8], strides = [1, 1]} : vector<16x96xf32> to vector<8x8xf32>
    %cst_321 = arith.constant dense<0.000000e+00> : vector<8x8xf32>
    %732 = tpu.matmul %729, %730, %cst_321 {dimension_numbers = #tpu.dot_dimension_numbers<[1], [1], [0], [0], [0, 0, 1, 0], [], []>} : vector<8x8xf32>, vector<8x8xf32>, vector<8x8xf32> -> vector<8x8xf32>
    %cst_322 = arith.constant 0.353553385 : f32
    %733 = vector.broadcast %cst_322 : f32 to vector<8x8xf32>
    %734 = arith.mulf %732, %733 : vector<8x8xf32>
    %735 = arith.addf %734, %671 : vector<8x8xf32>
    %cst_323 = arith.constant dense<0xFF800000> : vector<8xf32>
    %736 = vector.multi_reduction <maximumf>, %735, %cst_323 [1] : vector<8x8xf32> to vector<8xf32>
    %737 = vector.shape_cast %736 : vector<8xf32> to vector<8x1xf32>
    %738 = vector.broadcast %737 : vector<8x1xf32> to vector<8x8xf32>
    %739 = arith.subf %735, %738 : vector<8x8xf32>
    %740 = math.exp %739 : vector<8x8xf32>
    %cst_324 = arith.constant dense<0.000000e+00> : vector<8xf32>
    %741 = vector.multi_reduction <add>, %740, %cst_324 [1] : vector<8x8xf32> to vector<8xf32>
    %742 = vector.shape_cast %741 : vector<8xf32> to vector<8x1xf32>
    %743 = tpu.reciprocal %742 {approx = true} : vector<8x1xf32> -> vector<8x1xf32>
    %744 = vector.broadcast %743 : vector<8x1xf32> to vector<8x8xf32>
    %745 = arith.mulf %740, %744 : vector<8x8xf32>
    %cst_325 = arith.constant dense<0.000000e+00> : vector<8x8xf32>
    %746 = tpu.matmul %745, %731, %cst_325 {dimension_numbers = #tpu.dot_dimension_numbers<[1], [0], [0], [1], [0, 0, 1, 1], [], []>} : vector<8x8xf32>, vector<8x8xf32>, vector<8x8xf32> -> vector<8x8xf32>
    %c0_326 = arith.constant 0 : index
    %c24_327 = arith.constant 24 : index
    %747 = vector.load %arg14[%c0_326, %c24_327] : memref<16x32xf32, #tpu.memory_space<vmem>>, vector<8x8xf32>
    tpu.vector_store %arg14[%c0_326, %c24_327], %746 {strides = array<i32>} : memref<16x32xf32, #tpu.memory_space<vmem>>, vector<8x8xf32>,
    %c3_328 = arith.constant 3 : index
    %c0_329 = arith.constant 0 : index
    %c0_330 = arith.constant 0 : index
    %748 = vector.load %arg2[%c3_328, %c0_329, %c0_330] : memref<4x8x8xf32, #tpu.memory_space<vmem>>, vector<1x8x8xf32>
    %749 = vector.shape_cast %748 : vector<1x8x8xf32> to vector<8x8xf32>
    %750 = vector.extract_strided_slice %669 {offsets = [8, 0], sizes = [8, 8], strides = [1, 1]} : vector<16x96xf32> to vector<8x8xf32>
    %751 = vector.extract_strided_slice %669 {offsets = [8, 32], sizes = [8, 8], strides = [1, 1]} : vector<16x96xf32> to vector<8x8xf32>
    %752 = vector.extract_strided_slice %669 {offsets = [8, 64], sizes = [8, 8], strides = [1, 1]} : vector<16x96xf32> to vector<8x8xf32>
    %cst_331 = arith.constant dense<0.000000e+00> : vector<8x8xf32>
    %753 = tpu.matmul %750, %751, %cst_331 {dimension_numbers = #tpu.dot_dimension_numbers<[1], [1], [0], [0], [0, 0, 1, 0], [], []>} : vector<8x8xf32>, vector<8x8xf32>, vector<8x8xf32> -> vector<8x8xf32>
    %cst_332 = arith.constant 0.353553385 : f32
    %754 = vector.broadcast %cst_332 : f32 to vector<8x8xf32>
    %755 = arith.mulf %753, %754 : vector<8x8xf32>
    %756 = arith.addf %755, %749 : vector<8x8xf32>
    %cst_333 = arith.constant dense<0xFF800000> : vector<8xf32>
    %757 = vector.multi_reduction <maximumf>, %756, %cst_333 [1] : vector<8x8xf32> to vector<8xf32>
    %758 = vector.shape_cast %757 : vector<8xf32> to vector<8x1xf32>
    %759 = vector.broadcast %758 : vector<8x1xf32> to vector<8x8xf32>
    %760 = arith.subf %756, %759 : vector<8x8xf32>
    %761 = math.exp %760 : vector<8x8xf32>
    %cst_334 = arith.constant dense<0.000000e+00> : vector<8xf32>
    %762 = vector.multi_reduction <add>, %761, %cst_334 [1] : vector<8x8xf32> to vector<8xf32>
    %763 = vector.shape_cast %762 : vector<8xf32> to vector<8x1xf32>
    %764 = tpu.reciprocal %763 {approx = true} : vector<8x1xf32> -> vector<8x1xf32>
    %765 = vector.broadcast %764 : vector<8x1xf32> to vector<8x8xf32>
    %766 = arith.mulf %761, %765 : vector<8x8xf32>
    %cst_335 = arith.constant dense<0.000000e+00> : vector<8x8xf32>
    %767 = tpu.matmul %766, %752, %cst_335 {dimension_numbers = #tpu.dot_dimension_numbers<[1], [0], [0], [1], [0, 0, 1, 1], [], []>} : vector<8x8xf32>, vector<8x8xf32>, vector<8x8xf32> -> vector<8x8xf32>
    %c8_336 = arith.constant 8 : index
    %c0_337 = arith.constant 0 : index
    %768 = vector.load %arg14[%c8_336, %c0_337] : memref<16x32xf32, #tpu.memory_space<vmem>>, vector<8x8xf32>
    tpu.vector_store %arg14[%c8_336, %c0_337], %767 {strides = array<i32>} : memref<16x32xf32, #tpu.memory_space<vmem>>, vector<8x8xf32>,
    %769 = vector.extract_strided_slice %669 {offsets = [8, 8], sizes = [8, 8], strides = [1, 1]} : vector<16x96xf32> to vector<8x8xf32>
    %770 = vector.extract_strided_slice %669 {offsets = [8, 40], sizes = [8, 8], strides = [1, 1]} : vector<16x96xf32> to vector<8x8xf32>
    %771 = vector.extract_strided_slice %669 {offsets = [8, 72], sizes = [8, 8], strides = [1, 1]} : vector<16x96xf32> to vector<8x8xf32>
    %cst_338 = arith.constant dense<0.000000e+00> : vector<8x8xf32>
    %772 = tpu.matmul %769, %770, %cst_338 {dimension_numbers = #tpu.dot_dimension_numbers<[1], [1], [0], [0], [0, 0, 1, 0], [], []>} : vector<8x8xf32>, vector<8x8xf32>, vector<8x8xf32> -> vector<8x8xf32>
    %cst_339 = arith.constant 0.353553385 : f32
    %773 = vector.broadcast %cst_339 : f32 to vector<8x8xf32>
    %774 = arith.mulf %772, %773 : vector<8x8xf32>
    %775 = arith.addf %774, %749 : vector<8x8xf32>
    %cst_340 = arith.constant dense<0xFF800000> : vector<8xf32>
    %776 = vector.multi_reduction <maximumf>, %775, %cst_340 [1] : vector<8x8xf32> to vector<8xf32>
    %777 = vector.shape_cast %776 : vector<8xf32> to vector<8x1xf32>
    %778 = vector.broadcast %777 : vector<8x1xf32> to vector<8x8xf32>
    %779 = arith.subf %775, %778 : vector<8x8xf32>
    %780 = math.exp %779 : vector<8x8xf32>
    %cst_341 = arith.constant dense<0.000000e+00> : vector<8xf32>
    %781 = vector.multi_reduction <add>, %780, %cst_341 [1] : vector<8x8xf32> to vector<8xf32>
    %782 = vector.shape_cast %781 : vector<8xf32> to vector<8x1xf32>
    %783 = tpu.reciprocal %782 {approx = true} : vector<8x1xf32> -> vector<8x1xf32>
    %784 = vector.broadcast %783 : vector<8x1xf32> to vector<8x8xf32>
    %785 = arith.mulf %780, %784 : vector<8x8xf32>
    %cst_342 = arith.constant dense<0.000000e+00> : vector<8x8xf32>
    %786 = tpu.matmul %785, %771, %cst_342 {dimension_numbers = #tpu.dot_dimension_numbers<[1], [0], [0], [1], [0, 0, 1, 1], [], []>} : vector<8x8xf32>, vector<8x8xf32>, vector<8x8xf32> -> vector<8x8xf32>
    %c8_343 = arith.constant 8 : index
    %c8_344 = arith.constant 8 : index
    %787 = vector.load %arg14[%c8_343, %c8_344] : memref<16x32xf32, #tpu.memory_space<vmem>>, vector<8x8xf32>
    tpu.vector_store %arg14[%c8_343, %c8_344], %786 {strides = array<i32>} : memref<16x32xf32, #tpu.memory_space<vmem>>, vector<8x8xf32>,
    %788 = vector.extract_strided_slice %669 {offsets = [8, 16], sizes = [8, 8], strides = [1, 1]} : vector<16x96xf32> to vector<8x8xf32>
    %789 = vector.extract_strided_slice %669 {offsets = [8, 48], sizes = [8, 8], strides = [1, 1]} : vector<16x96xf32> to vector<8x8xf32>
    %790 = vector.extract_strided_slice %669 {offsets = [8, 80], sizes = [8, 8], strides = [1, 1]} : vector<16x96xf32> to vector<8x8xf32>
    %cst_345 = arith.constant dense<0.000000e+00> : vector<8x8xf32>
    %791 = tpu.matmul %788, %789, %cst_345 {dimension_numbers = #tpu.dot_dimension_numbers<[1], [1], [0], [0], [0, 0, 1, 0], [], []>} : vector<8x8xf32>, vector<8x8xf32>, vector<8x8xf32> -> vector<8x8xf32>
    %cst_346 = arith.constant 0.353553385 : f32
    %792 = vector.broadcast %cst_346 : f32 to vector<8x8xf32>
    %793 = arith.mulf %791, %792 : vector<8x8xf32>
    %794 = arith.addf %793, %749 : vector<8x8xf32>
    %cst_347 = arith.constant dense<0xFF800000> : vector<8xf32>
    %795 = vector.multi_reduction <maximumf>, %794, %cst_347 [1] : vector<8x8xf32> to vector<8xf32>
    %796 = vector.shape_cast %795 : vector<8xf32> to vector<8x1xf32>
    %797 = vector.broadcast %796 : vector<8x1xf32> to vector<8x8xf32>
    %798 = arith.subf %794, %797 : vector<8x8xf32>
    %799 = math.exp %798 : vector<8x8xf32>
    %cst_348 = arith.constant dense<0.000000e+00> : vector<8xf32>
    %800 = vector.multi_reduction <add>, %799, %cst_348 [1] : vector<8x8xf32> to vector<8xf32>
    %801 = vector.shape_cast %800 : vector<8xf32> to vector<8x1xf32>
    %802 = tpu.reciprocal %801 {approx = true} : vector<8x1xf32> -> vector<8x1xf32>
    %803 = vector.broadcast %802 : vector<8x1xf32> to vector<8x8xf32>
    %804 = arith.mulf %799, %803 : vector<8x8xf32>
    %cst_349 = arith.constant dense<0.000000e+00> : vector<8x8xf32>
    %805 = tpu.matmul %804, %790, %cst_349 {dimension_numbers = #tpu.dot_dimension_numbers<[1], [0], [0], [1], [0, 0, 1, 1], [], []>} : vector<8x8xf32>, vector<8x8xf32>, vector<8x8xf32> -> vector<8x8xf32>
    %c8_350 = arith.constant 8 : index
    %c16_351 = arith.constant 16 : index
    %806 = vector.load %arg14[%c8_350, %c16_351] : memref<16x32xf32, #tpu.memory_space<vmem>>, vector<8x8xf32>
    tpu.vector_store %arg14[%c8_350, %c16_351], %805 {strides = array<i32>} : memref<16x32xf32, #tpu.memory_space<vmem>>, vector<8x8xf32>,
    %807 = vector.extract_strided_slice %669 {offsets = [8, 24], sizes = [8, 8], strides = [1, 1]} : vector<16x96xf32> to vector<8x8xf32>
    %808 = vector.extract_strided_slice %669 {offsets = [8, 56], sizes = [8, 8], strides = [1, 1]} : vector<16x96xf32> to vector<8x8xf32>
    %809 = vector.extract_strided_slice %669 {offsets = [8, 88], sizes = [8, 8], strides = [1, 1]} : vector<16x96xf32> to vector<8x8xf32>
    %cst_352 = arith.constant dense<0.000000e+00> : vector<8x8xf32>
    %810 = tpu.matmul %807, %808, %cst_352 {dimension_numbers = #tpu.dot_dimension_numbers<[1], [1], [0], [0], [0, 0, 1, 0], [], []>} : vector<8x8xf32>, vector<8x8xf32>, vector<8x8xf32> -> vector<8x8xf32>
    %cst_353 = arith.constant 0.353553385 : f32
    %811 = vector.broadcast %cst_353 : f32 to vector<8x8xf32>
    %812 = arith.mulf %810, %811 : vector<8x8xf32>
    %813 = arith.addf %812, %749 : vector<8x8xf32>
    %cst_354 = arith.constant dense<0xFF800000> : vector<8xf32>
    %814 = vector.multi_reduction <maximumf>, %813, %cst_354 [1] : vector<8x8xf32> to vector<8xf32>
    %815 = vector.shape_cast %814 : vector<8xf32> to vector<8x1xf32>
    %816 = vector.broadcast %815 : vector<8x1xf32> to vector<8x8xf32>
    %817 = arith.subf %813, %816 : vector<8x8xf32>
    %818 = math.exp %817 : vector<8x8xf32>
    %cst_355 = arith.constant dense<0.000000e+00> : vector<8xf32>
    %819 = vector.multi_reduction <add>, %818, %cst_355 [1] : vector<8x8xf32> to vector<8xf32>
    %820 = vector.shape_cast %819 : vector<8xf32> to vector<8x1xf32>
    %821 = tpu.reciprocal %820 {approx = true} : vector<8x1xf32> -> vector<8x1xf32>
    %822 = vector.broadcast %821 : vector<8x1xf32> to vector<8x8xf32>
    %823 = arith.mulf %818, %822 : vector<8x8xf32>
    %cst_356 = arith.constant dense<0.000000e+00> : vector<8x8xf32>
    %824 = tpu.matmul %823, %809, %cst_356 {dimension_numbers = #tpu.dot_dimension_numbers<[1], [0], [0], [1], [0, 0, 1, 1], [], []>} : vector<8x8xf32>, vector<8x8xf32>, vector<8x8xf32> -> vector<8x8xf32>
    %c8_357 = arith.constant 8 : index
    %c24_358 = arith.constant 24 : index
    %825 = vector.load %arg14[%c8_357, %c24_358] : memref<16x32xf32, #tpu.memory_space<vmem>>, vector<8x8xf32>
    tpu.vector_store %arg14[%c8_357, %c24_358], %824 {strides = array<i32>} : memref<16x32xf32, #tpu.memory_space<vmem>>, vector<8x8xf32>,
    %c0_359 = arith.constant 0 : index
    %c0_360 = arith.constant 0 : index
    %826 = vector.load %arg14[%c0_359, %c0_360] : memref<16x32xf32, #tpu.memory_space<vmem>>, vector<16x32xf32>
    %c3_361 = arith.constant 3 : index
    %c0_362 = arith.constant 0 : index
    %c0_363 = arith.constant 0 : index
    %827 = vector.load %arg7[%c3_361, %c0_362, %c0_363] : memref<4x32x32xf32, #tpu.memory_space<vmem>>, vector<1x32x32xf32>
    %828 = vector.shape_cast %827 : vector<1x32x32xf32> to vector<32x32xf32>
    %cst_364 = arith.constant dense<0.000000e+00> : vector<16x32xf32>
    %829 = tpu.matmul %826, %828, %cst_364 {dimension_numbers = #tpu.dot_dimension_numbers<[1], [0], [0], [1], [0, 0, 1, 1], [], []>} : vector<16x32xf32>, vector<32x32xf32>, vector<16x32xf32> -> vector<16x32xf32>
    %c3_365 = arith.constant 3 : index
    %c0_366 = arith.constant 0 : index
    %c0_367 = arith.constant 0 : index
    %830 = vector.load %arg8[%c3_365, %c0_366, %c0_367] : memref<4x1x32xf32, #tpu.memory_space<vmem>>, vector<1x1x32xf32>
    %831 = vector.shape_cast %830 : vector<1x1x32xf32> to vector<1x32xf32>
    %832 = vector.broadcast %831 : vector<1x32xf32> to vector<16x32xf32>
    %833 = arith.addf %829, %832 : vector<16x32xf32>
    %834 = arith.addf %833, %637 : vector<16x32xf32>
    %c5 = arith.constant 5 : index
    %c0_368 = arith.constant 0 : index
    %835 = vector.load %arg3[%c5, %c0_368] : memref<7x32xf32, #tpu.memory_space<vmem>>, vector<1x32xf32>
    %c5_369 = arith.constant 5 : index
    %c0_370 = arith.constant 0 : index
    %836 = vector.load %arg4[%c5_369, %c0_370] : memref<7x32xf32, #tpu.memory_space<vmem>>, vector<1x32xf32>
    %cst_371 = arith.constant dense<0.000000e+00> : vector<16xf32>
    %837 = vector.multi_reduction <add>, %834, %cst_371 [1] : vector<16x32xf32> to vector<16xf32>
    %838 = vector.shape_cast %837 : vector<16xf32> to vector<16x1xf32>
    %cst_372 = arith.constant 3.200000e+01 : f32
    %839 = vector.broadcast %cst_372 : f32 to vector<16x1xf32>
    %840 = arith.divf %838, %839 : vector<16x1xf32>
    %841 = vector.broadcast %840 : vector<16x1xf32> to vector<16x32xf32>
    %842 = arith.subf %834, %841 : vector<16x32xf32>
    %843 = arith.mulf %842, %842 : vector<16x32xf32>
    %cst_373 = arith.constant dense<0.000000e+00> : vector<16xf32>
    %844 = vector.multi_reduction <add>, %843, %cst_373 [1] : vector<16x32xf32> to vector<16xf32>
    %845 = vector.shape_cast %844 : vector<16xf32> to vector<16x1xf32>
    %cst_374 = arith.constant 0.0322580636 : f32
    %846 = vector.broadcast %cst_374 : f32 to vector<16x1xf32>
    %847 = arith.mulf %845, %846 : vector<16x1xf32>
    %848 = math.sqrt %847 : vector<16x1xf32>
    %849 = vector.broadcast %840 : vector<16x1xf32> to vector<16x32xf32>
    %850 = arith.subf %834, %849 : vector<16x32xf32>
    %851 = vector.broadcast %835 : vector<1x32xf32> to vector<16x32xf32>
    %852 = arith.mulf %851, %850 : vector<16x32xf32>
    %cst_375 = arith.constant 9.99999997E-7 : f32
    %853 = vector.broadcast %cst_375 : f32 to vector<16x1xf32>
    %854 = arith.addf %848, %853 : vector<16x1xf32>
    %855 = tpu.reciprocal %854 {approx = true} : vector<16x1xf32> -> vector<16x1xf32>
    %856 = vector.broadcast %855 : vector<16x1xf32> to vector<16x32xf32>
    %857 = arith.mulf %852, %856 : vector<16x32xf32>
    %858 = vector.broadcast %836 : vector<1x32xf32> to vector<16x32xf32>
    %859 = arith.addf %857, %858 : vector<16x32xf32>
    %c1_376 = arith.constant 1 : index
    %c0_377 = arith.constant 0 : index
    %c0_378 = arith.constant 0 : index
    %860 = vector.load %arg9[%c1_376, %c0_377, %c0_378] : memref<2x32x64xf32, #tpu.memory_space<vmem>>, vector<1x32x64xf32>
    %861 = vector.shape_cast %860 : vector<1x32x64xf32> to vector<32x64xf32>
    %cst_379 = arith.constant dense<0.000000e+00> : vector<16x64xf32>
    %862 = tpu.matmul %859, %861, %cst_379 {dimension_numbers = #tpu.dot_dimension_numbers<[1], [0], [0], [1], [0, 0, 1, 1], [], []>} : vector<16x32xf32>, vector<32x64xf32>, vector<16x64xf32> -> vector<16x64xf32>
    %c1_380 = arith.constant 1 : index
    %c0_381 = arith.constant 0 : index
    %c0_382 = arith.constant 0 : index
    %863 = vector.load %arg10[%c1_380, %c0_381, %c0_382] : memref<2x1x64xf32, #tpu.memory_space<vmem>>, vector<1x1x64xf32>
    %864 = vector.shape_cast %863 : vector<1x1x64xf32> to vector<1x64xf32>
    %865 = vector.broadcast %864 : vector<1x64xf32> to vector<16x64xf32>
    %866 = arith.addf %862, %865 : vector<16x64xf32>
    %cst_383 = arith.constant 0.000000e+00 : f32
    %867 = vector.broadcast %cst_383 : f32 to vector<16x64xf32>
    %868 = arith.maximumf %866, %867 : vector<16x64xf32>
    %c1_384 = arith.constant 1 : index
    %c0_385 = arith.constant 0 : index
    %c0_386 = arith.constant 0 : index
    %869 = vector.load %arg11[%c1_384, %c0_385, %c0_386] : memref<2x64x32xf32, #tpu.memory_space<vmem>>, vector<1x64x32xf32>
    %870 = vector.shape_cast %869 : vector<1x64x32xf32> to vector<64x32xf32>
    %cst_387 = arith.constant dense<0.000000e+00> : vector<16x32xf32>
    %871 = tpu.matmul %868, %870, %cst_387 {dimension_numbers = #tpu.dot_dimension_numbers<[1], [0], [0], [1], [0, 0, 1, 1], [], []>} : vector<16x64xf32>, vector<64x32xf32>, vector<16x32xf32> -> vector<16x32xf32>
    %c1_388 = arith.constant 1 : index
    %c0_389 = arith.constant 0 : index
    %c0_390 = arith.constant 0 : index
    %872 = vector.load %arg12[%c1_388, %c0_389, %c0_390] : memref<2x1x32xf32, #tpu.memory_space<vmem>>, vector<1x1x32xf32>
    %873 = vector.shape_cast %872 : vector<1x1x32xf32> to vector<1x32xf32>
    %874 = vector.broadcast %873 : vector<1x32xf32> to vector<16x32xf32>
    %875 = arith.addf %871, %874 : vector<16x32xf32>
    %876 = arith.addf %875, %834 : vector<16x32xf32>
    %c6 = arith.constant 6 : index
    %c0_391 = arith.constant 0 : index
    %877 = vector.load %arg3[%c6, %c0_391] : memref<7x32xf32, #tpu.memory_space<vmem>>, vector<1x32xf32>
    %c6_392 = arith.constant 6 : index
    %c0_393 = arith.constant 0 : index
    %878 = vector.load %arg4[%c6_392, %c0_393] : memref<7x32xf32, #tpu.memory_space<vmem>>, vector<1x32xf32>
    %cst_394 = arith.constant dense<0.000000e+00> : vector<16xf32>
    %879 = vector.multi_reduction <add>, %876, %cst_394 [1] : vector<16x32xf32> to vector<16xf32>
    %880 = vector.shape_cast %879 : vector<16xf32> to vector<16x1xf32>
    %cst_395 = arith.constant 3.200000e+01 : f32
    %881 = vector.broadcast %cst_395 : f32 to vector<16x1xf32>
    %882 = arith.divf %880, %881 : vector<16x1xf32>
    %883 = vector.broadcast %882 : vector<16x1xf32> to vector<16x32xf32>
    %884 = arith.subf %876, %883 : vector<16x32xf32>
    %885 = arith.mulf %884, %884 : vector<16x32xf32>
    %cst_396 = arith.constant dense<0.000000e+00> : vector<16xf32>
    %886 = vector.multi_reduction <add>, %885, %cst_396 [1] : vector<16x32xf32> to vector<16xf32>
    %887 = vector.shape_cast %886 : vector<16xf32> to vector<16x1xf32>
    %cst_397 = arith.constant 0.0322580636 : f32
    %888 = vector.broadcast %cst_397 : f32 to vector<16x1xf32>
    %889 = arith.mulf %887, %888 : vector<16x1xf32>
    %890 = math.sqrt %889 : vector<16x1xf32>
    %891 = vector.broadcast %882 : vector<16x1xf32> to vector<16x32xf32>
    %892 = arith.subf %876, %891 : vector<16x32xf32>
    %893 = vector.broadcast %877 : vector<1x32xf32> to vector<16x32xf32>
    %894 = arith.mulf %893, %892 : vector<16x32xf32>
    %cst_398 = arith.constant 9.99999997E-7 : f32
    %895 = vector.broadcast %cst_398 : f32 to vector<16x1xf32>
    %896 = arith.addf %890, %895 : vector<16x1xf32>
    %897 = tpu.reciprocal %896 {approx = true} : vector<16x1xf32> -> vector<16x1xf32>
    %898 = vector.broadcast %897 : vector<16x1xf32> to vector<16x32xf32>
    %899 = arith.mulf %894, %898 : vector<16x32xf32>
    %900 = vector.broadcast %878 : vector<1x32xf32> to vector<16x32xf32>
    %901 = arith.addf %899, %900 : vector<16x32xf32>
    %c0_399 = arith.constant 0 : index
    %c0_400 = arith.constant 0 : index
    %902 = vector.load %arg13[%c0_399, %c0_400] : memref<16x32xf32, #tpu.memory_space<vmem>>, vector<16x32xf32>
    tpu.vector_store %arg13[%c0_399, %c0_400], %901 {strides = array<i32>} : memref<16x32xf32, #tpu.memory_space<vmem>>, vector<16x32xf32>,
    return
  }
}

</mosaic_0001>

<llo_original>
// kernel: decoders_forward.1
$region0: #{decoders_forward.1}
  #allocation0 [shape = 'u32[]', space=smem, size = 0x4, offset = 0x4, fixed_abs, tag = 'smem constant byte address 0x4 - core index']
  #allocation1 [shape = 'u32[144,128]{1,0:T(1,128)}', space=vmem, size = 0x12000, scoped, tag = 'internal scratch']
  #allocation2 [shape = 'f32[16,32]{1,0:T(8,128)}', space=vmem, size = 0x2000, scoped, tag = 'scratch operand']
  %s0 = inlined_call_operand.vmem [shape: f32[16,32], index: 0, kind: input, shape index: {}]
  %s1 = inlined_call_operand.vmem [shape: f32[16,32], index: 1, kind: input, shape index: {}]
  %s2 = inlined_call_operand.vmem [shape: f32[4,8,8], index: 2, kind: input, shape index: {}]
  %s3 = inlined_call_operand.vmem [shape: f32[7,32], index: 3, kind: input, shape index: {}]
  %s4 = inlined_call_operand.vmem [shape: f32[7,32], index: 4, kind: input, shape index: {}]
  %s5 = inlined_call_operand.vmem [shape: f32[4,32,96], index: 5, kind: input, shape index: {}]
  %s6 = inlined_call_operand.vmem [shape: f32[4,1,96], index: 6, kind: input, shape index: {}]
  %s7 = inlined_call_operand.vmem [shape: f32[4,32,32], index: 7, kind: input, shape index: {}]
  %s8 = inlined_call_operand.vmem [shape: f32[4,1,32], index: 8, kind: input, shape index: {}]
  %s9 = inlined_call_operand.vmem [shape: f32[2,32,64], index: 9, kind: input, shape index: {}]
  %s10 = inlined_call_operand.vmem [shape: f32[2,1,64], index: 10, kind: input, shape index: {}]
  %s11 = inlined_call_operand.vmem [shape: f32[2,64,32], index: 11, kind: input, shape index: {}]
  %s12 = inlined_call_operand.vmem [shape: f32[2,1,32], index: 12, kind: input, shape index: {}]
  %s13 = inlined_call_operand.hbm [shape: f32[16,32], index: 13, kind: output, shape index: {}]
  %s14 = sld [smem:[#allocation0]]
  $region62: #{decoders_forward.1} parent=0
    _
  %s16 = ssub.s32 1, %s14
  %s17 = scalar_select 0, %s16, %s14
  $region1: #{decoders_forward.1} parent=0
    #allocation3 [shape = 'u8[8192]{0}', space=vmem, size = 0x2000, scoped, tag = 'output window, operand 0, single buffered']
    #allocation4 [shape = 's32[1]{0}', space=sflag, size = 0x4, scoped, tag = 'scoped memory for decoders_forward.1']
    %18 = vsyncpa [#allocation4], 0
    // Predicated region
    $region2: #{decoders_forward.1} parent=1 // pred_check
      _
    $region3: #{decoders_forward.1} parent=1 // pred_check_branch
      %20 = sbr.rel (0) target = $region5
    $region4: #{decoders_forward.1} parent=1 // pred_region
      _
    $region5: #{decoders_forward.1} parent=1 // pred_fallthru
      _
    // Predicated region
    $region6: #{decoders_forward.1} parent=1 // pred_check
      _
    $region7: #{decoders_forward.1} parent=1 // pred_check_branch
      %22 = sbr.rel (0) target = $region9
    $region8: #{decoders_forward.1} parent=1 // pred_region
      _
    $region9: #{decoders_forward.1} parent=1 // pred_fallthru
      _
    // Predicated region
    $region10: #{decoders_forward.1} parent=1 // pred_check
      _
    $region11: #{decoders_forward.1} parent=1 // pred_check_branch
      %24 = sbr.rel (0) target = $region13
    $region12: #{decoders_forward.1} parent=1 // pred_region
      _
    $region13: #{decoders_forward.1} parent=1 // pred_fallthru
      _
    // Predicated region
    $region14: #{decoders_forward.1} parent=1 // pred_check
      _
    $region15: #{decoders_forward.1} parent=1 // pred_check_branch
      %26 = sbr.rel (0) target = $region17
    $region16: #{decoders_forward.1} parent=1 // pred_region
      _
    $region17: #{decoders_forward.1} parent=1 // pred_fallthru
      _
    // Predicated region
    $region18: #{decoders_forward.1} parent=1 // pred_check
      _
    $region19: #{decoders_forward.1} parent=1 // pred_check_branch
      %28 = sbr.rel (0) target = $region21
    $region20: #{decoders_forward.1} parent=1 // pred_region
      _
    $region21: #{decoders_forward.1} parent=1 // pred_fallthru
      _
    // Predicated region
    $region22: #{decoders_forward.1} parent=1 // pred_check
      _
    $region23: #{decoders_forward.1} parent=1 // pred_check_branch
      %30 = sbr.rel (0) target = $region25
    $region24: #{decoders_forward.1} parent=1 // pred_region
      _
    $region25: #{decoders_forward.1} parent=1 // pred_fallthru
      _
    // Predicated region
    $region26: #{decoders_forward.1} parent=1 // pred_check
      _
    $region27: #{decoders_forward.1} parent=1 // pred_check_branch
      %32 = sbr.rel (0) target = $region29
    $region28: #{decoders_forward.1} parent=1 // pred_region
      _
    $region29: #{decoders_forward.1} parent=1 // pred_fallthru
      _
    // Predicated region
    $region30: #{decoders_forward.1} parent=1 // pred_check
      _
    $region31: #{decoders_forward.1} parent=1 // pred_check_branch
      %34 = sbr.rel (0) target = $region33
    $region32: #{decoders_forward.1} parent=1 // pred_region
      _
    $region33: #{decoders_forward.1} parent=1 // pred_fallthru
      _
    // Predicated region
    $region34: #{decoders_forward.1} parent=1 // pred_check
      _
    $region35: #{decoders_forward.1} parent=1 // pred_check_branch
      %36 = sbr.rel (0) target = $region37
    $region36: #{decoders_forward.1} parent=1 // pred_region
      _
    $region37: #{decoders_forward.1} parent=1 // pred_fallthru
      _
    // Predicated region
    $region38: #{decoders_forward.1} parent=1 // pred_check
      _
    $region39: #{decoders_forward.1} parent=1 // pred_check_branch
      %38 = sbr.rel (0) target = $region41
    $region40: #{decoders_forward.1} parent=1 // pred_region
      _
    $region41: #{decoders_forward.1} parent=1 // pred_fallthru
      _
    // Predicated region
    $region42: #{decoders_forward.1} parent=1 // pred_check
      _
    $region43: #{decoders_forward.1} parent=1 // pred_check_branch
      %40 = sbr.rel (0) target = $region45
    $region44: #{decoders_forward.1} parent=1 // pred_region
      _
    $region45: #{decoders_forward.1} parent=1 // pred_fallthru
      _
    // Predicated region
    $region46: #{decoders_forward.1} parent=1 // pred_check
      _
    $region47: #{decoders_forward.1} parent=1 // pred_check_branch
      %42 = sbr.rel (0) target = $region49
    $region48: #{decoders_forward.1} parent=1 // pred_region
      _
    $region49: #{decoders_forward.1} parent=1 // pred_fallthru
      _
    // Predicated region
    $region50: #{decoders_forward.1} parent=1 // pred_check
      _
    $region51: #{decoders_forward.1} parent=1 // pred_check_branch
      %44 = sbr.rel (0) target = $region53
    $region52: #{decoders_forward.1} parent=1 // pred_region
      _
    $region53: #{decoders_forward.1} parent=1 // pred_fallthru
      _
    %v45 = vld [vmem:[%s0] sm:$0xff]
    %v46 = vld [vmem:[%s0 + $0x8] sm:$0xff]
    %v47 = vmul.f32 %v45, 5.656854
    %v48 = vmul.f32 %v46, 5.656854
    %v49 = vld [vmem:[%s1] sm:$0xff]
    %v50 = vld [vmem:[%s1 + $0x8] sm:$0xff]
    %v51 = vadd.f32 %v47, %v49
    %v52 = vadd.f32 %v48, %v50
    %v53 = vld [vmem:[%s3] sm:$0x1]
    %v54 = vld [vmem:[%s4] sm:$0x1]
    %vm55 = vcmask 261120
    %v56 = vsel %vm55, %v51, 0.0
    %57 = vadd.xlane.f32.xlu0 %v56
    %v58 = vpop.xlane.xlu0 %57
    %v59 = vsel %vm55, %v52, 0.0
    %60 = vadd.xlane.f32.xlu0 %v59
    %v61 = vpop.xlane.xlu0 %60
    %v62 = vrcp.pop 32.0
    %v63 = vmul.f32 %v58, %v62
    %v64 = vmul.f32 %v61, %v62
    %v65 = vsub.f32 %v51, %v63
    %v66 = vsub.f32 %v52, %v64
    %v67 = vmul.f32 %v65, %v65
    %v68 = vmul.f32 %v66, %v66
    %v69 = vsel %vm55, %v67, 0.0
    %70 = vadd.xlane.f32.xlu0 %v69
    %v71 = vpop.xlane.xlu0 %70
    %v72 = vsel %vm55, %v68, 0.0
    %73 = vadd.xlane.f32.xlu0 %v72
    %v74 = vpop.xlane.xlu0 %73
    %v75 = vmul.f32 %v71, 0.032258064
    %v76 = vmul.f32 %v74, 0.032258064
    %v77 = vrsqrt.pop %v75
    %v78 = vmul.f32 %v75, %v77
    %vm79 = vcmp.eq.f32.partialorder %v75, inf
    %v80 = vsel %vm79, %v75, %v78
    %vm81 = vcmp.eq.f32.partialorder %v75, 0.0
    %v82 = vand.u32 %v75, 2147483648
    %v83 = vsel %vm81, %v82, %v80
    %v84 = vrsqrt.pop %v76
    %v85 = vmul.f32 %v76, %v84
    %vm86 = vcmp.eq.f32.partialorder %v76, inf
    %v87 = vsel %vm86, %v76, %v85
    %vm88 = vcmp.eq.f32.partialorder %v76, 0.0
    %v89 = vand.u32 %v76, 2147483648
    %v90 = vsel %vm88, %v89, %v87
    %v91 = vlaneseq
    %v92 = vshrl.u32 %v91, 7
    %v93 = vsub.s32 0, %v92
    %v94 = vrot.slane %v53, %v93
    %v95 = vmul.f32 %v94, %v65
    %v96 = vmul.f32 %v94, %v66
    %v97 = vadd.f32 %v83, 1e-06
    %v98 = vadd.f32 %v90, 1e-06
    %v99 = vrcp.pop %v97
    %v100 = vrcp.pop %v98
    %v101 = vmul.f32 %v95, %v99
    %v102 = vmul.f32 %v96, %v100
    %v103 = vlaneseq
    %v104 = vshrl.u32 %v103, 7
    %v105 = vsub.s32 0, %v104
    %v106 = vrot.slane %v54, %v105
    %v107 = vadd.f32 %v101, %v106
    %v108 = vadd.f32 %v102, %v106
    %v109 = vld [vmem:[%s5] sm:$0xff]
    %v110 = vld [vmem:[%s5 + $0x8] sm:$0xff]
    %v111 = vld [vmem:[%s5 + $0x10] sm:$0xff]
    %v112 = vld [vmem:[%s5 + $0x18] sm:$0xff]
    %v113 = vld [vmem:[%s6] sm:$0x1]
    %v115 = vlaneseq
    %v116 = vshrl.u32 %v115, 7
    %v117 = vsub.s32 0, %v116
    %v118 = vrot.slane %v113, %v117
    %v121 = vsel %vm55, %v107, 0
    %v124 = vsel %vm55, %v108, 0
    %126 = vmatprep.subr.mxu0 0.0
    %127 = vmatpush1.msra.mxu0 %v109
    %128 = vmatprep.subr.mxu0 0.0
    %129 = vmatpush1.msra.mxu0 %v110
    %130 = vmatprep.subr.mxu0 0.0
    %131 = vmatpush1.msra.mxu0 %v111
    %132 = vmatprep.subr.mxu0 0.0
    %133 = vmatpush1.msra.mxu0 %v112
    %134 = vmatprep.subr.mxu0 0.0
    %135 = vmatpush1.msra.mxu0 0.0
    %136 = vmatprep.subr.mxu0 0.0
    %137 = vmatpush1.msra.mxu0 0.0
    %138 = vmatprep.subr.mxu0 0.0
    %139 = vmatpush1.msra.mxu0 0.0
    %140 = vmatprep.subr.mxu0 0.0
    %141 = vmatpush1.msra.mxu0 0.0
    %142 = vmatprep.subr.mxu0 0.0
    %143 = vmatpush1.msra.mxu0 0.0
    %144 = vmatprep.subr.mxu0 0.0
    %145 = vmatpush1.msra.mxu0 0.0
    %146 = vmatprep.subr.mxu0 0.0
    %147 = vmatpush1.msra.mxu0 0.0
    %148 = vmatprep.subr.mxu0 0.0
    %149 = vmatpush1.msra.mxu0 0.0
    %150 = vmatprep.subr.mxu0 0.0
    %151 = vmatpush1.msra.mxu0 0.0
    %152 = vmatprep.subr.mxu0 0.0
    %153 = vmatpush1.msra.mxu0 0.0
    %154 = vmatprep.subr.mxu0 0.0
    %155 = vmatpush1.msra.mxu0 0.0
    %156 = vmatprep.subr.mxu0 0.0
    %157 = vmatpush1.msra.mxu0 0.0
    %158 = vmatprep.subr.mxu0 0.0
    %159 = vmatpush1.msra.mxu0 0.0
    %160 = vmatprep.subr.mxu0 0.0
    %161 = vmatpush1.msra.mxu0 0.0
    %162 = vmatprep.subr.mxu0 0.0
    %163 = vmatpush1.msra.mxu0 0.0
    %164 = vmatprep.subr.mxu0 0.0
    %165 = vmatpush1.msra.mxu0 0.0
    %166 = vmatprep.subr.mxu0 0.0
    %167 = vmatpush1.msra.mxu0 0.0
    %168 = vmatprep.subr.mxu0 0.0
    %169 = vmatpush1.msra.mxu0 0.0
    %170 = vmatprep.subr.mxu0 0.0
    %171 = vmatpush1.msra.mxu0 0.0
    %172 = vmatprep.subr.mxu0 0.0
    %173 = vmatpush1.msra.mxu0 0.0
    %174 = vmatprep.subr.mxu0 0.0
    %175 = vmatpush1.msra.mxu0 0.0
    %176 = vmatprep.subr.mxu0 0.0
    %177 = vmatpush1.msra.mxu0 0.0
    %178 = vmatprep.subr.mxu0 0.0
    %179 = vmatpush1.msra.mxu0 0.0
    %180 = vmatprep.subr.mxu0 0.0
    %181 = vmatpush1.msra.mxu0 0.0
    %182 = vmatprep.subr.mxu0 0.0
    %183 = vmatpush1.msra.mxu0 0.0
    %184 = vmatprep.subr.mxu0 0.0
    %185 = vmatpush1.msra.mxu0 0.0
    %186 = vmatprep.subr.mxu0 0.0
    %187 = vmatpush1.msra.mxu0 0.0
    %188 = vmatprep.subr.mxu0 0.0
    %189 = vmatpush1.msra.mxu0 0.0
    %190 = vmatprep.mubr.f32.mxu0 0.0
    %191 = vmatmul.mubr.f32.gmra.mrb[0].mxu0 %v121
    %v192 = vpop.f32.mrb[0].mxu0
    %v193 = vadd.f32 %v118, %v192
    %v194 = vpop.f32.mrb[0].mxu0
    %195 = vmatprep.mubr.f32.mxu0 0.0
    %196 = vmatmul.mubr.f32.gmra.mrb[0].mxu0 %v124
    %v197 = vpop.f32.mrb[0].mxu0
    %v198 = vadd.f32 %v118, %v197
    %v199 = vpop.f32.mrb[0].mxu0
    %200 = vdwg.mxu0
    %v201 = vld [vmem:[%s2] sm:$0xff]
    %203 = vrot.lane.b32.xlu0 %v193, 96
    %v204 = vpop.permute.xlu0 %203
    %vm205 = vcmask 64512
    %v206 = vsel %vm205, %v193, 0
    %v208 = vsel %vm205, %v204, 0
    %210 = vmatprep.subr.mxu0 0.0
    %211 = vmatpush1.xpose.msra.mxu0 %v208
    %212 = vmatprep.subr.mxu0 0.0
    %213 = vmatpush1.xpose.msra.mxu0 0.0
    %214 = vmatprep.subr.mxu0 0.0
    %215 = vmatpush1.xpose.msra.mxu0 0.0
    %216 = vmatprep.subr.mxu0 0.0
    %217 = vmatpush1.xpose.msra.mxu0 0.0
    %218 = vmatprep.subr.mxu0 0.0
    %219 = vmatpush1.xpose.msra.mxu0 0.0
    %220 = vmatprep.subr.mxu0 0.0
    %221 = vmatpush1.xpose.msra.mxu0 0.0
    %222 = vmatprep.subr.mxu0 0.0
    %223 = vmatpush1.xpose.msra.mxu0 0.0
    %224 = vmatprep.subr.mxu0 0.0
    %225 = vmatpush1.xpose.msra.mxu0 0.0
    %226 = vmatprep.subr.mxu0 0.0
    %227 = vmatpush1.xpose.msra.mxu0 0.0
    %228 = vmatprep.subr.mxu0 0.0
    %229 = vmatpush1.xpose.msra.mxu0 0.0
    %230 = vmatprep.subr.mxu0 0.0
    %231 = vmatpush1.xpose.msra.mxu0 0.0
    %232 = vmatprep.subr.mxu0 0.0
    %233 = vmatpush1.xpose.msra.mxu0 0.0
    %234 = vmatprep.subr.mxu0 0.0
    %235 = vmatpush1.xpose.msra.mxu0 0.0
    %236 = vmatprep.subr.mxu0 0.0
    %237 = vmatpush1.xpose.msra.mxu0 0.0
    %238 = vmatprep.subr.mxu0 0.0
    %239 = vmatpush1.xpose.msra.mxu0 0.0
    %240 = vmatprep.subr.mxu0 0.0
    %241 = vmatpush1.xpose.msra.mxu0 0.0
    %242 = vmatprep.subr.mxu0 0.0
    %243 = vmatpush1.xpose.msra.mxu0 0.0
    %244 = vmatprep.subr.mxu0 0.0
    %245 = vmatpush1.xpose.msra.mxu0 0.0
    %246 = vmatprep.subr.mxu0 0.0
    %247 = vmatpush1.xpose.msra.mxu0 0.0
    %248 = vmatprep.subr.mxu0 0.0
    %249 = vmatpush1.xpose.msra.mxu0 0.0
    %250 = vmatprep.subr.mxu0 0.0
    %251 = vmatpush1.xpose.msra.mxu0 0.0
    %252 = vmatprep.subr.mxu0 0.0
    %253 = vmatpush1.xpose.msra.mxu0 0.0
    %254 = vmatprep.subr.mxu0 0.0
    %255 = vmatpush1.xpose.msra.mxu0 0.0
    %256 = vmatprep.subr.mxu0 0.0
    %257 = vmatpush1.xpose.msra.mxu0 0.0
    %258 = vmatprep.subr.mxu0 0.0
    %259 = vmatpush1.xpose.msra.mxu0 0.0
    %260 = vmatprep.subr.mxu0 0.0
    %261 = vmatpush1.xpose.msra.mxu0 0.0
    %262 = vmatprep.subr.mxu0 0.0
    %263 = vmatpush1.xpose.msra.mxu0 0.0
    %264 = vmatprep.subr.mxu0 0.0
    %265 = vmatpush1.xpose.msra.mxu0 0.0
    %266 = vmatprep.subr.mxu0 0.0
    %267 = vmatpush1.xpose.msra.mxu0 0.0
    %268 = vmatprep.subr.mxu0 0.0
    %269 = vmatpush1.xpose.msra.mxu0 0.0
    %270 = vmatprep.subr.mxu0 0.0
    %271 = vmatpush1.xpose.msra.mxu0 0.0
    %272 = vmatprep.subr.mxu0 0.0
    %273 = vmatpush1.xpose.msra.mxu0 0.0
    %274 = vmatprep.mubr.f32.mxu0 0.0
    %275 = vmatmul.mubr.f32.gmra.mrb[0].mxu0 %v206
    %v276 = vpop.f32.mrb[0].mxu0
    %v277 = vadd.f32 0.0, %v276
    %v278 = vpop.f32.mrb[0].mxu0
    %279 = vdwg.mxu0
    %v280 = vmul.f32 %v277, 0.35355338
    %v281 = vadd.f32 %v280, %v201
    %v282 = vsel %vm205, %v281, -inf
    %283 = vmax.xlane.f32.xlu0 %v282
    %v284 = vpop.xlane.xlu0 %283
    %v285 = vsub.f32 %v281, %v284
    %v286 = vmul.f32 %v285, 1.442695
    %v287 = vpow.pop %v286
    %v288 = vsel %vm205, %v287, 0.0
    %289 = vadd.xlane.f32.xlu0 %v288
    %v290 = vpop.xlane.xlu0 %289
    %v291 = vrcp.pop %v290
    %v292 = vmul.f32 %v287, %v291
    %293 = vrot.lane.b32.xlu0 %v193, 64
    %v294 = vpop.permute.xlu0 %293
    %v297 = vsel %vm205, %v292, 0
    %299 = vmatprep.subr.mxu0 0.0
    %300 = vmatpush1.msra.mxu0 %v294
    %301 = vmatprep.subr.mxu0 0.0
    %302 = vmatpush1.msra.mxu0 0.0
    %303 = vmatprep.subr.mxu0 0.0
    %304 = vmatpush1.msra.mxu0 0.0
    %305 = vmatprep.subr.mxu0 0.0
    %306 = vmatpush1.msra.mxu0 0.0
    %307 = vmatprep.subr.mxu0 0.0
    %308 = vmatpush1.msra.mxu0 0.0
    %309 = vmatprep.subr.mxu0 0.0
    %310 = vmatpush1.msra.mxu0 0.0
    %311 = vmatprep.subr.mxu0 0.0
    %312 = vmatpush1.msra.mxu0 0.0
    %313 = vmatprep.subr.mxu0 0.0
    %314 = vmatpush1.msra.mxu0 0.0
    %315 = vmatprep.subr.mxu0 0.0
    %316 = vmatpush1.msra.mxu0 0.0
    %317 = vmatprep.subr.mxu0 0.0
    %318 = vmatpush1.msra.mxu0 0.0
    %319 = vmatprep.subr.mxu0 0.0
    %320 = vmatpush1.msra.mxu0 0.0
    %321 = vmatprep.subr.mxu0 0.0
    %322 = vmatpush1.msra.mxu0 0.0
    %323 = vmatprep.subr.mxu0 0.0
    %324 = vmatpush1.msra.mxu0 0.0
    %325 = vmatprep.subr.mxu0 0.0
    %326 = vmatpush1.msra.mxu0 0.0
    %327 = vmatprep.subr.mxu0 0.0
    %328 = vmatpush1.msra.mxu0 0.0
    %329 = vmatprep.subr.mxu0 0.0
    %330 = vmatpush1.msra.mxu0 0.0
    %331 = vmatprep.subr.mxu0 0.0
    %332 = vmatpush1.msra.mxu0 0.0
    %333 = vmatprep.subr.mxu0 0.0
    %334 = vmatpush1.msra.mxu0 0.0
    %335 = vmatprep.subr.mxu0 0.0
    %336 = vmatpush1.msra.mxu0 0.0
    %337 = vmatprep.subr.mxu0 0.0
    %338 = vmatpush1.msra.mxu0 0.0
    %339 = vmatprep.subr.mxu0 0.0
    %340 = vmatpush1.msra.mxu0 0.0
    %341 = vmatprep.subr.mxu0 0.0
    %342 = vmatpush1.msra.mxu0 0.0
    %343 = vmatprep.subr.mxu0 0.0
    %344 = vmatpush1.msra.mxu0 0.0
    %345 = vmatprep.subr.mxu0 0.0
    %346 = vmatpush1.msra.mxu0 0.0
    %347 = vmatprep.subr.mxu0 0.0
    %348 = vmatpush1.msra.mxu0 0.0
    %349 = vmatprep.subr.mxu0 0.0
    %350 = vmatpush1.msra.mxu0 0.0
    %351 = vmatprep.subr.mxu0 0.0
    %352 = vmatpush1.msra.mxu0 0.0
    %353 = vmatprep.subr.mxu0 0.0
    %354 = vmatpush1.msra.mxu0 0.0
    %355 = vmatprep.subr.mxu0 0.0
    %356 = vmatpush1.msra.mxu0 0.0
    %357 = vmatprep.subr.mxu0 0.0
    %358 = vmatpush1.msra.mxu0 0.0
    %359 = vmatprep.subr.mxu0 0.0
    %360 = vmatpush1.msra.mxu0 0.0
    %361 = vmatprep.subr.mxu0 0.0
    %362 = vmatpush1.msra.mxu0 0.0
    %363 = vmatprep.mubr.f32.mxu0 0.0
    %364 = vmatmul.mubr.f32.gmra.mrb[0].mxu0 %v297
    %v365 = vpop.f32.mrb[0].mxu0
    %v366 = vadd.f32 0.0, %v365
    %v367 = vpop.f32.mrb[0].mxu0
    %368 = vdwg.mxu0
    %369 = vst.msk [vmem:[#allocation2] sm:$0xff] %vm205, %v366
    %370 = vrot.lane.b32.xlu0 %v193, 120
    %v371 = vpop.permute.xlu0 %370
    %372 = vrot.lane.b32.xlu0 %v193, 88
    %v373 = vpop.permute.xlu0 %372
    %v374 = vsel %vm205, %v371, 0
    %v376 = vsel %vm205, %v373, 0
    %378 = vmatprep.subr.mxu0 0.0
    %379 = vmatpush1.xpose.msra.mxu0 %v376
    %380 = vmatprep.subr.mxu0 0.0
    %381 = vmatpush1.xpose.msra.mxu0 0.0
    %382 = vmatprep.subr.mxu0 0.0
    %383 = vmatpush1.xpose.msra.mxu0 0.0
    %384 = vmatprep.subr.mxu0 0.0
    %385 = vmatpush1.xpose.msra.mxu0 0.0
    %386 = vmatprep.subr.mxu0 0.0
    %387 = vmatpush1.xpose.msra.mxu0 0.0
    %388 = vmatprep.subr.mxu0 0.0
    %389 = vmatpush1.xpose.msra.mxu0 0.0
    %390 = vmatprep.subr.mxu0 0.0
    %391 = vmatpush1.xpose.msra.mxu0 0.0
    %392 = vmatprep.subr.mxu0 0.0
    %393 = vmatpush1.xpose.msra.mxu0 0.0
    %394 = vmatprep.subr.mxu0 0.0
    %395 = vmatpush1.xpose.msra.mxu0 0.0
    %396 = vmatprep.subr.mxu0 0.0
    %397 = vmatpush1.xpose.msra.mxu0 0.0
    %398 = vmatprep.subr.mxu0 0.0
    %399 = vmatpush1.xpose.msra.mxu0 0.0
    %400 = vmatprep.subr.mxu0 0.0
    %401 = vmatpush1.xpose.msra.mxu0 0.0
    %402 = vmatprep.subr.mxu0 0.0
    %403 = vmatpush1.xpose.msra.mxu0 0.0
    %404 = vmatprep.subr.mxu0 0.0
    %405 = vmatpush1.xpose.msra.mxu0 0.0
    %406 = vmatprep.subr.mxu0 0.0
    %407 = vmatpush1.xpose.msra.mxu0 0.0
    %408 = vmatprep.subr.mxu0 0.0
    %409 = vmatpush1.xpose.msra.mxu0 0.0
    %410 = vmatprep.subr.mxu0 0.0
    %411 = vmatpush1.xpose.msra.mxu0 0.0
    %412 = vmatprep.subr.mxu0 0.0
    %413 = vmatpush1.xpose.msra.mxu0 0.0
    %414 = vmatprep.subr.mxu0 0.0
    %415 = vmatpush1.xpose.msra.mxu0 0.0
    %416 = vmatprep.subr.mxu0 0.0
    %417 = vmatpush1.xpose.msra.mxu0 0.0
    %418 = vmatprep.subr.mxu0 0.0
    %419 = vmatpush1.xpose.msra.mxu0 0.0
    %420 = vmatprep.subr.mxu0 0.0
    %421 = vmatpush1.xpose.msra.mxu0 0.0
    %422 = vmatprep.subr.mxu0 0.0
    %423 = vmatpush1.xpose.msra.mxu0 0.0
    %424 = vmatprep.subr.mxu0 0.0
    %425 = vmatpush1.xpose.msra.mxu0 0.0
    %426 = vmatprep.subr.mxu0 0.0
    %427 = vmatpush1.xpose.msra.mxu0 0.0
    %428 = vmatprep.subr.mxu0 0.0
    %429 = vmatpush1.xpose.msra.mxu0 0.0
    %430 = vmatprep.subr.mxu0 0.0
    %431 = vmatpush1.xpose.msra.mxu0 0.0
    %432 = vmatprep.subr.mxu0 0.0
    %433 = vmatpush1.xpose.msra.mxu0 0.0
    %434 = vmatprep.subr.mxu0 0.0
    %435 = vmatpush1.xpose.msra.mxu0 0.0
    %436 = vmatprep.subr.mxu0 0.0
    %437 = vmatpush1.xpose.msra.mxu0 0.0
    %438 = vmatprep.subr.mxu0 0.0
    %439 = vmatpush1.xpose.msra.mxu0 0.0
    %440 = vmatprep.subr.mxu0 0.0
    %441 = vmatpush1.xpose.msra.mxu0 0.0
    %442 = vmatprep.mubr.f32.mxu0 0.0
    %443 = vmatmul.mubr.f32.gmra.mrb[0].mxu0 %v374
    %v444 = vpop.f32.mrb[0].mxu0
    %v445 = vadd.f32 0.0, %v444
    %v446 = vpop.f32.mrb[0].mxu0
    %447 = vdwg.mxu0
    %v448 = vmul.f32 %v445, 0.35355338
    %v449 = vadd.f32 %v448, %v201
    %v450 = vsel %vm205, %v449, -inf
    %451 = vmax.xlane.f32.xlu0 %v450
    %v452 = vpop.xlane.xlu0 %451
    %v453 = vsub.f32 %v449, %v452
    %v454 = vmul.f32 %v453, 1.442695
    %v455 = vpow.pop %v454
    %v456 = vsel %vm205, %v455, 0.0
    %457 = vadd.xlane.f32.xlu0 %v456
    %v458 = vpop.xlane.xlu0 %457
    %v459 = vrcp.pop %v458
    %v460 = vmul.f32 %v455, %v459
    %461 = vrot.lane.b32.xlu0 %v193, 56
    %v462 = vpop.permute.xlu0 %461
    %v465 = vsel %vm205, %v460, 0
    %467 = vmatprep.subr.mxu0 0.0
    %468 = vmatpush1.msra.mxu0 %v462
    %469 = vmatprep.subr.mxu0 0.0
    %470 = vmatpush1.msra.mxu0 0.0
    %471 = vmatprep.subr.mxu0 0.0
    %472 = vmatpush1.msra.mxu0 0.0
    %473 = vmatprep.subr.mxu0 0.0
    %474 = vmatpush1.msra.mxu0 0.0
    %475 = vmatprep.subr.mxu0 0.0
    %476 = vmatpush1.msra.mxu0 0.0
    %477 = vmatprep.subr.mxu0 0.0
    %478 = vmatpush1.msra.mxu0 0.0
    %479 = vmatprep.subr.mxu0 0.0
    %480 = vmatpush1.msra.mxu0 0.0
    %481 = vmatprep.subr.mxu0 0.0
    %482 = vmatpush1.msra.mxu0 0.0
    %483 = vmatprep.subr.mxu0 0.0
    %484 = vmatpush1.msra.mxu0 0.0
    %485 = vmatprep.subr.mxu0 0.0
    %486 = vmatpush1.msra.mxu0 0.0
    %487 = vmatprep.subr.mxu0 0.0
    %488 = vmatpush1.msra.mxu0 0.0
    %489 = vmatprep.subr.mxu0 0.0
    %490 = vmatpush1.msra.mxu0 0.0
    %491 = vmatprep.subr.mxu0 0.0
    %492 = vmatpush1.msra.mxu0 0.0
    %493 = vmatprep.subr.mxu0 0.0
    %494 = vmatpush1.msra.mxu0 0.0
    %495 = vmatprep.subr.mxu0 0.0
    %496 = vmatpush1.msra.mxu0 0.0
    %497 = vmatprep.subr.mxu0 0.0
    %498 = vmatpush1.msra.mxu0 0.0
    %499 = vmatprep.subr.mxu0 0.0
    %500 = vmatpush1.msra.mxu0 0.0
    %501 = vmatprep.subr.mxu0 0.0
    %502 = vmatpush1.msra.mxu0 0.0
    %503 = vmatprep.subr.mxu0 0.0
    %504 = vmatpush1.msra.mxu0 0.0
    %505 = vmatprep.subr.mxu0 0.0
    %506 = vmatpush1.msra.mxu0 0.0
    %507 = vmatprep.subr.mxu0 0.0
    %508 = vmatpush1.msra.mxu0 0.0
    %509 = vmatprep.subr.mxu0 0.0
    %510 = vmatpush1.msra.mxu0 0.0
    %511 = vmatprep.subr.mxu0 0.0
    %512 = vmatpush1.msra.mxu0 0.0
    %513 = vmatprep.subr.mxu0 0.0
    %514 = vmatpush1.msra.mxu0 0.0
    %515 = vmatprep.subr.mxu0 0.0
    %516 = vmatpush1.msra.mxu0 0.0
    %517 = vmatprep.subr.mxu0 0.0
    %518 = vmatpush1.msra.mxu0 0.0
    %519 = vmatprep.subr.mxu0 0.0
    %520 = vmatpush1.msra.mxu0 0.0
    %521 = vmatprep.subr.mxu0 0.0
    %522 = vmatpush1.msra.mxu0 0.0
    %523 = vmatprep.subr.mxu0 0.0
    %524 = vmatpush1.msra.mxu0 0.0
    %525 = vmatprep.subr.mxu0 0.0
    %526 = vmatpush1.msra.mxu0 0.0
    %527 = vmatprep.subr.mxu0 0.0
    %528 = vmatpush1.msra.mxu0 0.0
    %529 = vmatprep.subr.mxu0 0.0
    %530 = vmatpush1.msra.mxu0 0.0
    %531 = vmatprep.mubr.f32.mxu0 0.0
    %532 = vmatmul.mubr.f32.gmra.mrb[0].mxu0 %v465
    %v533 = vpop.f32.mrb[0].mxu0
    %v534 = vadd.f32 0.0, %v533
    %v535 = vpop.f32.mrb[0].mxu0
    %536 = vdwg.mxu0
    %538 = vrot.lane.b32.xlu0 %v534, 8
    %v539 = vpop.permute.xlu0 %538
    %vm541 = vcmask 130112
    %542 = vst.msk [vmem:[#allocation2] sm:$0xff] %vm541, %v539
    %543 = vrot.lane.b32.xlu0 %v193, 112
    %v544 = vpop.permute.xlu0 %543
    %545 = vrot.lane.b32.xlu0 %v193, 80
    %v546 = vpop.permute.xlu0 %545
    %v547 = vsel %vm205, %v544, 0
    %v549 = vsel %vm205, %v546, 0
    %551 = vmatprep.subr.mxu0 0.0
    %552 = vmatpush1.xpose.msra.mxu0 %v549
    %553 = vmatprep.subr.mxu0 0.0
    %554 = vmatpush1.xpose.msra.mxu0 0.0
    %555 = vmatprep.subr.mxu0 0.0
    %556 = vmatpush1.xpose.msra.mxu0 0.0
    %557 = vmatprep.subr.mxu0 0.0
    %558 = vmatpush1.xpose.msra.mxu0 0.0
    %559 = vmatprep.subr.mxu0 0.0
    %560 = vmatpush1.xpose.msra.mxu0 0.0
    %561 = vmatprep.subr.mxu0 0.0
    %562 = vmatpush1.xpose.msra.mxu0 0.0
    %563 = vmatprep.subr.mxu0 0.0
    %564 = vmatpush1.xpose.msra.mxu0 0.0
    %565 = vmatprep.subr.mxu0 0.0
    %566 = vmatpush1.xpose.msra.mxu0 0.0
    %567 = vmatprep.subr.mxu0 0.0
    %568 = vmatpush1.xpose.msra.mxu0 0.0
    %569 = vmatprep.subr.mxu0 0.0
    %570 = vmatpush1.xpose.msra.mxu0 0.0
    %571 = vmatprep.subr.mxu0 0.0
    %572 = vmatpush1.xpose.msra.mxu0 0.0
    %573 = vmatprep.subr.mxu0 0.0
    %574 = vmatpush1.xpose.msra.mxu0 0.0
    %575 = vmatprep.subr.mxu0 0.0
    %576 = vmatpush1.xpose.msra.mxu0 0.0
    %577 = vmatprep.subr.mxu0 0.0
    %578 = vmatpush1.xpose.msra.mxu0 0.0
    %579 = vmatprep.subr.mxu0 0.0
    %580 = vmatpush1.xpose.msra.mxu0 0.0
    %581 = vmatprep.subr.mxu0 0.0
    %582 = vmatpush1.xpose.msra.mxu0 0.0
    %583 = vmatprep.subr.mxu0 0.0
    %584 = vmatpush1.xpose.msra.mxu0 0.0
    %585 = vmatprep.subr.mxu0 0.0
    %586 = vmatpush1.xpose.msra.mxu0 0.0
    %587 = vmatprep.subr.mxu0 0.0
    %588 = vmatpush1.xpose.msra.mxu0 0.0
    %589 = vmatprep.subr.mxu0 0.0
    %590 = vmatpush1.xpose.msra.mxu0 0.0
    %591 = vmatprep.subr.mxu0 0.0
    %592 = vmatpush1.xpose.msra.mxu0 0.0
    %593 = vmatprep.subr.mxu0 0.0
    %594 = vmatpush1.xpose.msra.mxu0 0.0
    %595 = vmatprep.subr.mxu0 0.0
    %596 = vmatpush1.xpose.msra.mxu0 0.0
    %597 = vmatprep.subr.mxu0 0.0
    %598 = vmatpush1.xpose.msra.mxu0 0.0
    %599 = vmatprep.subr.mxu0 0.0
    %600 = vmatpush1.xpose.msra.mxu0 0.0
    %601 = vmatprep.subr.mxu0 0.0
    %602 = vmatpush1.xpose.msra.mxu0 0.0
    %603 = vmatprep.subr.mxu0 0.0
    %604 = vmatpush1.xpose.msra.mxu0 0.0
    %605 = vmatprep.subr.mxu0 0.0
    %606 = vmatpush1.xpose.msra.mxu0 0.0
    %607 = vmatprep.subr.mxu0 0.0
    %608 = vmatpush1.xpose.msra.mxu0 0.0
    %609 = vmatprep.subr.mxu0 0.0
    %610 = vmatpush1.xpose.msra.mxu0 0.0
    %611 = vmatprep.subr.mxu0 0.0
    %612 = vmatpush1.xpose.msra.mxu0 0.0
    %613 = vmatprep.subr.mxu0 0.0
    %614 = vmatpush1.xpose.msra.mxu0 0.0
    %615 = vmatprep.mubr.f32.mxu0 0.0
    %616 = vmatmul.mubr.f32.gmra.mrb[0].mxu0 %v547
    %v617 = vpop.f32.mrb[0].mxu0
    %v618 = vadd.f32 0.0, %v617
    %v619 = vpop.f32.mrb[0].mxu0
    %620 = vdwg.mxu0
    %v621 = vmul.f32 %v618, 0.35355338
    %v622 = vadd.f32 %v621, %v201
    %v623 = vsel %vm205, %v622, -inf
    %624 = vmax.xlane.f32.xlu0 %v623
    %v625 = vpop.xlane.xlu0 %624
    %v626 = vsub.f32 %v622, %v625
    %v627 = vmul.f32 %v626, 1.442695
    %v628 = vpow.pop %v627
    %v629 = vsel %vm205, %v628, 0.0
    %630 = vadd.xlane.f32.xlu0 %v629
    %v631 = vpop.xlane.xlu0 %630
    %v632 = vrcp.pop %v631
    %v633 = vmul.f32 %v628, %v632
    %634 = vrot.lane.b32.xlu0 %v193, 48
    %v635 = vpop.permute.xlu0 %634
    %v638 = vsel %vm205, %v633, 0
    %640 = vmatprep.subr.mxu0 0.0
    %641 = vmatpush1.msra.mxu0 %v635
    %642 = vmatprep.subr.mxu0 0.0
    %643 = vmatpush1.msra.mxu0 0.0
    %644 = vmatprep.subr.mxu0 0.0
    %645 = vmatpush1.msra.mxu0 0.0
    %646 = vmatprep.subr.mxu0 0.0
    %647 = vmatpush1.msra.mxu0 0.0
    %648 = vmatprep.subr.mxu0 0.0
    %649 = vmatpush1.msra.mxu0 0.0
    %650 = vmatprep.subr.mxu0 0.0
    %651 = vmatpush1.msra.mxu0 0.0
    %652 = vmatprep.subr.mxu0 0.0
    %653 = vmatpush1.msra.mxu0 0.0
    %654 = vmatprep.subr.mxu0 0.0
    %655 = vmatpush1.msra.mxu0 0.0
    %656 = vmatprep.subr.mxu0 0.0
    %657 = vmatpush1.msra.mxu0 0.0
    %658 = vmatprep.subr.mxu0 0.0
    %659 = vmatpush1.msra.mxu0 0.0
    %660 = vmatprep.subr.mxu0 0.0
    %661 = vmatpush1.msra.mxu0 0.0
    %662 = vmatprep.subr.mxu0 0.0
    %663 = vmatpush1.msra.mxu0 0.0
    %664 = vmatprep.subr.mxu0 0.0
    %665 = vmatpush1.msra.mxu0 0.0
    %666 = vmatprep.subr.mxu0 0.0
    %667 = vmatpush1.msra.mxu0 0.0
    %668 = vmatprep.subr.mxu0 0.0
    %669 = vmatpush1.msra.mxu0 0.0
    %670 = vmatprep.subr.mxu0 0.0
    %671 = vmatpush1.msra.mxu0 0.0
    %672 = vmatprep.subr.mxu0 0.0
    %673 = vmatpush1.msra.mxu0 0.0
    %674 = vmatprep.subr.mxu0 0.0
    %675 = vmatpush1.msra.mxu0 0.0
    %676 = vmatprep.subr.mxu0 0.0
    %677 = vmatpush1.msra.mxu0 0.0
    %678 = vmatprep.subr.mxu0 0.0
    %679 = vmatpush1.msra.mxu0 0.0
    %680 = vmatprep.subr.mxu0 0.0
    %681 = vmatpush1.msra.mxu0 0.0
    %682 = vmatprep.subr.mxu0 0.0
    %683 = vmatpush1.msra.mxu0 0.0
    %684 = vmatprep.subr.mxu0 0.0
    %685 = vmatpush1.msra.mxu0 0.0
    %686 = vmatprep.subr.mxu0 0.0
    %687 = vmatpush1.msra.mxu0 0.0
    %688 = vmatprep.subr.mxu0 0.0
    %689 = vmatpush1.msra.mxu0 0.0
    %690 = vmatprep.subr.mxu0 0.0
    %691 = vmatpush1.msra.mxu0 0.0
    %692 = vmatprep.subr.mxu0 0.0
    %693 = vmatpush1.msra.mxu0 0.0
    %694 = vmatprep.subr.mxu0 0.0
    %695 = vmatpush1.msra.mxu0 0.0
    %696 = vmatprep.subr.mxu0 0.0
    %697 = vmatpush1.msra.mxu0 0.0
    %698 = vmatprep.subr.mxu0 0.0
    %699 = vmatpush1.msra.mxu0 0.0
    %700 = vmatprep.subr.mxu0 0.0
    %701 = vmatpush1.msra.mxu0 0.0
    %702 = vmatprep.subr.mxu0 0.0
    %703 = vmatpush1.msra.mxu0 0.0
    %704 = vmatprep.mubr.f32.mxu0 0.0
    %705 = vmatmul.mubr.f32.gmra.mrb[0].mxu0 %v638
    %v706 = vpop.f32.mrb[0].mxu0
    %v707 = vadd.f32 0.0, %v706
    %v708 = vpop.f32.mrb[0].mxu0
    %709 = vdwg.mxu0
    %711 = vrot.lane.b32.xlu0 %v707, 16
    %v712 = vpop.permute.xlu0 %711
    %vm714 = vcmask 195712
    %715 = vst.msk [vmem:[#allocation2] sm:$0xff] %vm714, %v712
    %716 = vrot.lane.b32.xlu0 %v193, 104
    %v717 = vpop.permute.xlu0 %716
    %718 = vrot.lane.b32.xlu0 %v193, 72
    %v719 = vpop.permute.xlu0 %718
    %v720 = vsel %vm205, %v717, 0
    %v722 = vsel %vm205, %v719, 0
    %724 = vmatprep.subr.mxu0 0.0
    %725 = vmatpush1.xpose.msra.mxu0 %v722
    %726 = vmatprep.subr.mxu0 0.0
    %727 = vmatpush1.xpose.msra.mxu0 0.0
    %728 = vmatprep.subr.mxu0 0.0
    %729 = vmatpush1.xpose.msra.mxu0 0.0
    %730 = vmatprep.subr.mxu0 0.0
    %731 = vmatpush1.xpose.msra.mxu0 0.0
    %732 = vmatprep.subr.mxu0 0.0
    %733 = vmatpush1.xpose.msra.mxu0 0.0
    %734 = vmatprep.subr.mxu0 0.0
    %735 = vmatpush1.xpose.msra.mxu0 0.0
    %736 = vmatprep.subr.mxu0 0.0
    %737 = vmatpush1.xpose.msra.mxu0 0.0
    %738 = vmatprep.subr.mxu0 0.0
    %739 = vmatpush1.xpose.msra.mxu0 0.0
    %740 = vmatprep.subr.mxu0 0.0
    %741 = vmatpush1.xpose.msra.mxu0 0.0
    %742 = vmatprep.subr.mxu0 0.0
    %743 = vmatpush1.xpose.msra.mxu0 0.0
    %744 = vmatprep.subr.mxu0 0.0
    %745 = vmatpush1.xpose.msra.mxu0 0.0
    %746 = vmatprep.subr.mxu0 0.0
    %747 = vmatpush1.xpose.msra.mxu0 0.0
    %748 = vmatprep.subr.mxu0 0.0
    %749 = vmatpush1.xpose.msra.mxu0 0.0
    %750 = vmatprep.subr.mxu0 0.0
    %751 = vmatpush1.xpose.msra.mxu0 0.0
    %752 = vmatprep.subr.mxu0 0.0
    %753 = vmatpush1.xpose.msra.mxu0 0.0
    %754 = vmatprep.subr.mxu0 0.0
    %755 = vmatpush1.xpose.msra.mxu0 0.0
    %756 = vmatprep.subr.mxu0 0.0
    %757 = vmatpush1.xpose.msra.mxu0 0.0
    %758 = vmatprep.subr.mxu0 0.0
    %759 = vmatpush1.xpose.msra.mxu0 0.0
    %760 = vmatprep.subr.mxu0 0.0
    %761 = vmatpush1.xpose.msra.mxu0 0.0
    %762 = vmatprep.subr.mxu0 0.0
    %763 = vmatpush1.xpose.msra.mxu0 0.0
    %764 = vmatprep.subr.mxu0 0.0
    %765 = vmatpush1.xpose.msra.mxu0 0.0
    %766 = vmatprep.subr.mxu0 0.0
    %767 = vmatpush1.xpose.msra.mxu0 0.0
    %768 = vmatprep.subr.mxu0 0.0
    %769 = vmatpush1.xpose.msra.mxu0 0.0
    %770 = vmatprep.subr.mxu0 0.0
    %771 = vmatpush1.xpose.msra.mxu0 0.0
    %772 = vmatprep.subr.mxu0 0.0
    %773 = vmatpush1.xpose.msra.mxu0 0.0
    %774 = vmatprep.subr.mxu0 0.0
    %775 = vmatpush1.xpose.msra.mxu0 0.0
    %776 = vmatprep.subr.mxu0 0.0
    %777 = vmatpush1.xpose.msra.mxu0 0.0
    %778 = vmatprep.subr.mxu0 0.0
    %779 = vmatpush1.xpose.msra.mxu0 0.0
    %780 = vmatprep.subr.mxu0 0.0
    %781 = vmatpush1.xpose.msra.mxu0 0.0
    %782 = vmatprep.subr.mxu0 0.0
    %783 = vmatpush1.xpose.msra.mxu0 0.0
    %784 = vmatprep.subr.mxu0 0.0
    %785 = vmatpush1.xpose.msra.mxu0 0.0
    %786 = vmatprep.subr.mxu0 0.0
    %787 = vmatpush1.xpose.msra.mxu0 0.0
    %788 = vmatprep.mubr.f32.mxu0 0.0
    %789 = vmatmul.mubr.f32.gmra.mrb[0].mxu0 %v720
    %v790 = vpop.f32.mrb[0].mxu0
    %v791 = vadd.f32 0.0, %v790
    %v792 = vpop.f32.mrb[0].mxu0
    %793 = vdwg.mxu0
    %v794 = vmul.f32 %v791, 0.35355338
    %v795 = vadd.f32 %v794, %v201
    %v796 = vsel %vm205, %v795, -inf
    %797 = vmax.xlane.f32.xlu0 %v796
    %v798 = vpop.xlane.xlu0 %797
    %v799 = vsub.f32 %v795, %v798
    %v800 = vmul.f32 %v799, 1.442695
    %v801 = vpow.pop %v800
    %v802 = vsel %vm205, %v801, 0.0
    %803 = vadd.xlane.f32.xlu0 %v802
    %v804 = vpop.xlane.xlu0 %803
    %v805 = vrcp.pop %v804
    %v806 = vmul.f32 %v801, %v805
    %807 = vrot.lane.b32.xlu0 %v193, 40
    %v808 = vpop.permute.xlu0 %807
    %v811 = vsel %vm205, %v806, 0
    %813 = vmatprep.subr.mxu0 0.0
    %814 = vmatpush1.msra.mxu0 %v808
    %815 = vmatprep.subr.mxu0 0.0
    %816 = vmatpush1.msra.mxu0 0.0
    %817 = vmatprep.subr.mxu0 0.0
    %818 = vmatpush1.msra.mxu0 0.0
    %819 = vmatprep.subr.mxu0 0.0
    %820 = vmatpush1.msra.mxu0 0.0
    %821 = vmatprep.subr.mxu0 0.0
    %822 = vmatpush1.msra.mxu0 0.0
    %823 = vmatprep.subr.mxu0 0.0
    %824 = vmatpush1.msra.mxu0 0.0
    %825 = vmatprep.subr.mxu0 0.0
    %826 = vmatpush1.msra.mxu0 0.0
    %827 = vmatprep.subr.mxu0 0.0
    %828 = vmatpush1.msra.mxu0 0.0
    %829 = vmatprep.subr.mxu0 0.0
    %830 = vmatpush1.msra.mxu0 0.0
    %831 = vmatprep.subr.mxu0 0.0
    %832 = vmatpush1.msra.mxu0 0.0
    %833 = vmatprep.subr.mxu0 0.0
    %834 = vmatpush1.msra.mxu0 0.0
    %835 = vmatprep.subr.mxu0 0.0
    %836 = vmatpush1.msra.mxu0 0.0
    %837 = vmatprep.subr.mxu0 0.0
    %838 = vmatpush1.msra.mxu0 0.0
    %839 = vmatprep.subr.mxu0 0.0
    %840 = vmatpush1.msra.mxu0 0.0
    %841 = vmatprep.subr.mxu0 0.0
    %842 = vmatpush1.msra.mxu0 0.0
    %843 = vmatprep.subr.mxu0 0.0
    %844 = vmatpush1.msra.mxu0 0.0
    %845 = vmatprep.subr.mxu0 0.0
    %846 = vmatpush1.msra.mxu0 0.0
    %847 = vmatprep.subr.mxu0 0.0
    %848 = vmatpush1.msra.mxu0 0.0
    %849 = vmatprep.subr.mxu0 0.0
    %850 = vmatpush1.msra.mxu0 0.0
    %851 = vmatprep.subr.mxu0 0.0
    %852 = vmatpush1.msra.mxu0 0.0
    %853 = vmatprep.subr.mxu0 0.0
    %854 = vmatpush1.msra.mxu0 0.0
    %855 = vmatprep.subr.mxu0 0.0
    %856 = vmatpush1.msra.mxu0 0.0
    %857 = vmatprep.subr.mxu0 0.0
    %858 = vmatpush1.msra.mxu0 0.0
    %859 = vmatprep.subr.mxu0 0.0
    %860 = vmatpush1.msra.mxu0 0.0
    %861 = vmatprep.subr.mxu0 0.0
    %862 = vmatpush1.msra.mxu0 0.0
    %863 = vmatprep.subr.mxu0 0.0
    %864 = vmatpush1.msra.mxu0 0.0
    %865 = vmatprep.subr.mxu0 0.0
    %866 = vmatpush1.msra.mxu0 0.0
    %867 = vmatprep.subr.mxu0 0.0
    %868 = vmatpush1.msra.mxu0 0.0
    %869 = vmatprep.subr.mxu0 0.0
    %870 = vmatpush1.msra.mxu0 0.0
    %871 = vmatprep.subr.mxu0 0.0
    %872 = vmatpush1.msra.mxu0 0.0
    %873 = vmatprep.subr.mxu0 0.0
    %874 = vmatpush1.msra.mxu0 0.0
    %875 = vmatprep.subr.mxu0 0.0
    %876 = vmatpush1.msra.mxu0 0.0
    %877 = vmatprep.mubr.f32.mxu0 0.0
    %878 = vmatmul.mubr.f32.gmra.mrb[0].mxu0 %v811
    %v879 = vpop.f32.mrb[0].mxu0
    %v880 = vadd.f32 0.0, %v879
    %v881 = vpop.f32.mrb[0].mxu0
    %882 = vdwg.mxu0
    %884 = vrot.lane.b32.xlu0 %v880, 24
    %v885 = vpop.permute.xlu0 %884
    %vm887 = vcmask 261312
    %888 = vst.msk [vmem:[#allocation2] sm:$0xff] %vm887, %v885
    %s889 = scalar_lea.vmem %s2, 8
    %v890 = vld [vmem:[%s889] sm:$0xff]
    %892 = vrot.lane.b32.xlu0 %v198, 96
    %v893 = vpop.permute.xlu0 %892
    %v894 = vsel %vm205, %v198, 0
    %v896 = vsel %vm205, %v893, 0
    %898 = vmatprep.subr.mxu0 0.0
    %899 = vmatpush1.xpose.msra.mxu0 %v896
    %900 = vmatprep.subr.mxu0 0.0
    %901 = vmatpush1.xpose.msra.mxu0 0.0
    %902 = vmatprep.subr.mxu0 0.0
    %903 = vmatpush1.xpose.msra.mxu0 0.0
    %904 = vmatprep.subr.mxu0 0.0
    %905 = vmatpush1.xpose.msra.mxu0 0.0
    %906 = vmatprep.subr.mxu0 0.0
    %907 = vmatpush1.xpose.msra.mxu0 0.0
    %908 = vmatprep.subr.mxu0 0.0
    %909 = vmatpush1.xpose.msra.mxu0 0.0
    %910 = vmatprep.subr.mxu0 0.0
    %911 = vmatpush1.xpose.msra.mxu0 0.0
    %912 = vmatprep.subr.mxu0 0.0
    %913 = vmatpush1.xpose.msra.mxu0 0.0
    %914 = vmatprep.subr.mxu0 0.0
    %915 = vmatpush1.xpose.msra.mxu0 0.0
    %916 = vmatprep.subr.mxu0 0.0
    %917 = vmatpush1.xpose.msra.mxu0 0.0
    %918 = vmatprep.subr.mxu0 0.0
    %919 = vmatpush1.xpose.msra.mxu0 0.0
    %920 = vmatprep.subr.mxu0 0.0
    %921 = vmatpush1.xpose.msra.mxu0 0.0
    %922 = vmatprep.subr.mxu0 0.0
    %923 = vmatpush1.xpose.msra.mxu0 0.0
    %924 = vmatprep.subr.mxu0 0.0
    %925 = vmatpush1.xpose.msra.mxu0 0.0
    %926 = vmatprep.subr.mxu0 0.0
    %927 = vmatpush1.xpose.msra.mxu0 0.0
    %928 = vmatprep.subr.mxu0 0.0
    %929 = vmatpush1.xpose.msra.mxu0 0.0
    %930 = vmatprep.subr.mxu0 0.0
    %931 = vmatpush1.xpose.msra.mxu0 0.0
    %932 = vmatprep.subr.mxu0 0.0
    %933 = vmatpush1.xpose.msra.mxu0 0.0
    %934 = vmatprep.subr.mxu0 0.0
    %935 = vmatpush1.xpose.msra.mxu0 0.0
    %936 = vmatprep.subr.mxu0 0.0
    %937 = vmatpush1.xpose.msra.mxu0 0.0
    %938 = vmatprep.subr.mxu0 0.0
    %939 = vmatpush1.xpose.msra.mxu0 0.0
    %940 = vmatprep.subr.mxu0 0.0
    %941 = vmatpush1.xpose.msra.mxu0 0.0
    %942 = vmatprep.subr.mxu0 0.0
    %943 = vmatpush1.xpose.msra.mxu0 0.0
    %944 = vmatprep.subr.mxu0 0.0
    %945 = vmatpush1.xpose.msra.mxu0 0.0
    %946 = vmatprep.subr.mxu0 0.0
    %947 = vmatpush1.xpose.msra.mxu0 0.0
    %948 = vmatprep.subr.mxu0 0.0
    %949 = vmatpush1.xpose.msra.mxu0 0.0
    %950 = vmatprep.subr.mxu0 0.0
    %951 = vmatpush1.xpose.msra.mxu0 0.0
    %952 = vmatprep.subr.mxu0 0.0
    %953 = vmatpush1.xpose.msra.mxu0 0.0
    %954 = vmatprep.subr.mxu0 0.0
    %955 = vmatpush1.xpose.msra.mxu0 0.0
    %956 = vmatprep.subr.mxu0 0.0
    %957 = vmatpush1.xpose.msra.mxu0 0.0
    %958 = vmatprep.subr.mxu0 0.0
    %959 = vmatpush1.xpose.msra.mxu0 0.0
    %960 = vmatprep.subr.mxu0 0.0
    %961 = vmatpush1.xpose.msra.mxu0 0.0
    %962 = vmatprep.mubr.f32.mxu0 0.0
    %963 = vmatmul.mubr.f32.gmra.mrb[0].mxu0 %v894
    %v964 = vpop.f32.mrb[0].mxu0
    %v965 = vadd.f32 0.0, %v964
    %v966 = vpop.f32.mrb[0].mxu0
    %967 = vdwg.mxu0
    %v968 = vmul.f32 %v965, 0.35355338
    %v969 = vadd.f32 %v968, %v890
    %v970 = vsel %vm205, %v969, -inf
    %971 = vmax.xlane.f32.xlu0 %v970
    %v972 = vpop.xlane.xlu0 %971
    %v973 = vsub.f32 %v969, %v972
    %v974 = vmul.f32 %v973, 1.442695
    %v975 = vpow.pop %v974
    %v976 = vsel %vm205, %v975, 0.0
    %977 = vadd.xlane.f32.xlu0 %v976
    %v978 = vpop.xlane.xlu0 %977
    %v979 = vrcp.pop %v978
    %v980 = vmul.f32 %v975, %v979
    %981 = vrot.lane.b32.xlu0 %v198, 64
    %v982 = vpop.permute.xlu0 %981
    %v985 = vsel %vm205, %v980, 0
    %987 = vmatprep.subr.mxu0 0.0
    %988 = vmatpush1.msra.mxu0 %v982
    %989 = vmatprep.subr.mxu0 0.0
    %990 = vmatpush1.msra.mxu0 0.0
    %991 = vmatprep.subr.mxu0 0.0
    %992 = vmatpush1.msra.mxu0 0.0
    %993 = vmatprep.subr.mxu0 0.0
    %994 = vmatpush1.msra.mxu0 0.0
    %995 = vmatprep.subr.mxu0 0.0
    %996 = vmatpush1.msra.mxu0 0.0
    %997 = vmatprep.subr.mxu0 0.0
    %998 = vmatpush1.msra.mxu0 0.0
    %999 = vmatprep.subr.mxu0 0.0
    %1000 = vmatpush1.msra.mxu0 0.0
    %1001 = vmatprep.subr.mxu0 0.0
    %1002 = vmatpush1.msra.mxu0 0.0
    %1003 = vmatprep.subr.mxu0 0.0
    %1004 = vmatpush1.msra.mxu0 0.0
    %1005 = vmatprep.subr.mxu0 0.0
    %1006 = vmatpush1.msra.mxu0 0.0
    %1007 = vmatprep.subr.mxu0 0.0
    %1008 = vmatpush1.msra.mxu0 0.0
    %1009 = vmatprep.subr.mxu0 0.0
    %1010 = vmatpush1.msra.mxu0 0.0
    %1011 = vmatprep.subr.mxu0 0.0
    %1012 = vmatpush1.msra.mxu0 0.0
    %1013 = vmatprep.subr.mxu0 0.0
    %1014 = vmatpush1.msra.mxu0 0.0
    %1015 = vmatprep.subr.mxu0 0.0
    %1016 = vmatpush1.msra.mxu0 0.0
    %1017 = vmatprep.subr.mxu0 0.0
    %1018 = vmatpush1.msra.mxu0 0.0
    %1019 = vmatprep.subr.mxu0 0.0
    %1020 = vmatpush1.msra.mxu0 0.0
    %1021 = vmatprep.subr.mxu0 0.0
    %1022 = vmatpush1.msra.mxu0 0.0
    %1023 = vmatprep.subr.mxu0 0.0
    %1024 = vmatpush1.msra.mxu0 0.0
    %1025 = vmatprep.subr.mxu0 0.0
    %1026 = vmatpush1.msra.mxu0 0.0
    %1027 = vmatprep.subr.mxu0 0.0
    %1028 = vmatpush1.msra.mxu0 0.0
    %1029 = vmatprep.subr.mxu0 0.0
    %1030 = vmatpush1.msra.mxu0 0.0
    %1031 = vmatprep.subr.mxu0 0.0
    %1032 = vmatpush1.msra.mxu0 0.0
    %1033 = vmatprep.subr.mxu0 0.0
    %1034 = vmatpush1.msra.mxu0 0.0
    %1035 = vmatprep.subr.mxu0 0.0
    %1036 = vmatpush1.msra.mxu0 0.0
    %1037 = vmatprep.subr.mxu0 0.0
    %1038 = vmatpush1.msra.mxu0 0.0
    %1039 = vmatprep.subr.mxu0 0.0
    %1040 = vmatpush1.msra.mxu0 0.0
    %1041 = vmatprep.subr.mxu0 0.0
    %1042 = vmatpush1.msra.mxu0 0.0
    %1043 = vmatprep.subr.mxu0 0.0
    %1044 = vmatpush1.msra.mxu0 0.0
    %1045 = vmatprep.subr.mxu0 0.0
    %1046 = vmatpush1.msra.mxu0 0.0
    %1047 = vmatprep.subr.mxu0 0.0
    %1048 = vmatpush1.msra.mxu0 0.0
    %1049 = vmatprep.subr.mxu0 0.0
    %1050 = vmatpush1.msra.mxu0 0.0
    %1051 = vmatprep.mubr.f32.mxu0 0.0
    %1052 = vmatmul.mubr.f32.gmra.mrb[0].mxu0 %v985
    %v1053 = vpop.f32.mrb[0].mxu0
    %v1054 = vadd.f32 0.0, %v1053
    %v1055 = vpop.f32.mrb[0].mxu0
    %1056 = vdwg.mxu0
    %1057 = vst.msk [vmem:[#allocation2 + $0x8] sm:$0xff] %vm205, %v1054
    %1058 = vrot.lane.b32.xlu0 %v198, 120
    %v1059 = vpop.permute.xlu0 %1058
    %1060 = vrot.lane.b32.xlu0 %v198, 88
    %v1061 = vpop.permute.xlu0 %1060
    %v1062 = vsel %vm205, %v1059, 0
    %v1064 = vsel %vm205, %v1061, 0
    %1066 = vmatprep.subr.mxu0 0.0
    %1067 = vmatpush1.xpose.msra.mxu0 %v1064
    %1068 = vmatprep.subr.mxu0 0.0
    %1069 = vmatpush1.xpose.msra.mxu0 0.0
    %1070 = vmatprep.subr.mxu0 0.0
    %1071 = vmatpush1.xpose.msra.mxu0 0.0
    %1072 = vmatprep.subr.mxu0 0.0
    %1073 = vmatpush1.xpose.msra.mxu0 0.0
    %1074 = vmatprep.subr.mxu0 0.0
    %1075 = vmatpush1.xpose.msra.mxu0 0.0
    %1076 = vmatprep.subr.mxu0 0.0
    %1077 = vmatpush1.xpose.msra.mxu0 0.0
    %1078 = vmatprep.subr.mxu0 0.0
    %1079 = vmatpush1.xpose.msra.mxu0 0.0
    %1080 = vmatprep.subr.mxu0 0.0
    %1081 = vmatpush1.xpose.msra.mxu0 0.0
    %1082 = vmatprep.subr.mxu0 0.0
    %1083 = vmatpush1.xpose.msra.mxu0 0.0
    %1084 = vmatprep.subr.mxu0 0.0
    %1085 = vmatpush1.xpose.msra.mxu0 0.0
    %1086 = vmatprep.subr.mxu0 0.0
    %1087 = vmatpush1.xpose.msra.mxu0 0.0
    %1088 = vmatprep.subr.mxu0 0.0
    %1089 = vmatpush1.xpose.msra.mxu0 0.0
    %1090 = vmatprep.subr.mxu0 0.0
    %1091 = vmatpush1.xpose.msra.mxu0 0.0
    %1092 = vmatprep.subr.mxu0 0.0
    %1093 = vmatpush1.xpose.msra.mxu0 0.0
    %1094 = vmatprep.subr.mxu0 0.0
    %1095 = vmatpush1.xpose.msra.mxu0 0.0
    %1096 = vmatprep.subr.mxu0 0.0
    %1097 = vmatpush1.xpose.msra.mxu0 0.0
    %1098 = vmatprep.subr.mxu0 0.0
    %1099 = vmatpush1.xpose.msra.mxu0 0.0
    %1100 = vmatprep.subr.mxu0 0.0
    %1101 = vmatpush1.xpose.msra.mxu0 0.0
    %1102 = vmatprep.subr.mxu0 0.0
    %1103 = vmatpush1.xpose.msra.mxu0 0.0
    %1104 = vmatprep.subr.mxu0 0.0
    %1105 = vmatpush1.xpose.msra.mxu0 0.0
    %1106 = vmatprep.subr.mxu0 0.0
    %1107 = vmatpush1.xpose.msra.mxu0 0.0
    %1108 = vmatprep.subr.mxu0 0.0
    %1109 = vmatpush1.xpose.msra.mxu0 0.0
    %1110 = vmatprep.subr.mxu0 0.0
    %1111 = vmatpush1.xpose.msra.mxu0 0.0
    %1112 = vmatprep.subr.mxu0 0.0
    %1113 = vmatpush1.xpose.msra.mxu0 0.0
    %1114 = vmatprep.subr.mxu0 0.0
    %1115 = vmatpush1.xpose.msra.mxu0 0.0
    %1116 = vmatprep.subr.mxu0 0.0
    %1117 = vmatpush1.xpose.msra.mxu0 0.0
    %1118 = vmatprep.subr.mxu0 0.0
    %1119 = vmatpush1.xpose.msra.mxu0 0.0
    %1120 = vmatprep.subr.mxu0 0.0
    %1121 = vmatpush1.xpose.msra.mxu0 0.0
    %1122 = vmatprep.subr.mxu0 0.0
    %1123 = vmatpush1.xpose.msra.mxu0 0.0
    %1124 = vmatprep.subr.mxu0 0.0
    %1125 = vmatpush1.xpose.msra.mxu0 0.0
    %1126 = vmatprep.subr.mxu0 0.0
    %1127 = vmatpush1.xpose.msra.mxu0 0.0
    %1128 = vmatprep.subr.mxu0 0.0
    %1129 = vmatpush1.xpose.msra.mxu0 0.0
    %1130 = vmatprep.mubr.f32.mxu0 0.0
    %1131 = vmatmul.mubr.f32.gmra.mrb[0].mxu0 %v1062
    %v1132 = vpop.f32.mrb[0].mxu0
    %v1133 = vadd.f32 0.0, %v1132
    %v1134 = vpop.f32.mrb[0].mxu0
    %1135 = vdwg.mxu0
    %v1136 = vmul.f32 %v1133, 0.35355338
    %v1137 = vadd.f32 %v1136, %v890
    %v1138 = vsel %vm205, %v1137, -inf
    %1139 = vmax.xlane.f32.xlu0 %v1138
    %v1140 = vpop.xlane.xlu0 %1139
    %v1141 = vsub.f32 %v1137, %v1140
    %v1142 = vmul.f32 %v1141, 1.442695
    %v1143 = vpow.pop %v1142
    %v1144 = vsel %vm205, %v1143, 0.0
    %1145 = vadd.xlane.f32.xlu0 %v1144
    %v1146 = vpop.xlane.xlu0 %1145
    %v1147 = vrcp.pop %v1146
    %v1148 = vmul.f32 %v1143, %v1147
    %1149 = vrot.lane.b32.xlu0 %v198, 56
    %v1150 = vpop.permute.xlu0 %1149
    %v1153 = vsel %vm205, %v1148, 0
    %1155 = vmatprep.subr.mxu0 0.0
    %1156 = vmatpush1.msra.mxu0 %v1150
    %1157 = vmatprep.subr.mxu0 0.0
    %1158 = vmatpush1.msra.mxu0 0.0
    %1159 = vmatprep.subr.mxu0 0.0
    %1160 = vmatpush1.msra.mxu0 0.0
    %1161 = vmatprep.subr.mxu0 0.0
    %1162 = vmatpush1.msra.mxu0 0.0
    %1163 = vmatprep.subr.mxu0 0.0
    %1164 = vmatpush1.msra.mxu0 0.0
    %1165 = vmatprep.subr.mxu0 0.0
    %1166 = vmatpush1.msra.mxu0 0.0
    %1167 = vmatprep.subr.mxu0 0.0
    %1168 = vmatpush1.msra.mxu0 0.0
    %1169 = vmatprep.subr.mxu0 0.0
    %1170 = vmatpush1.msra.mxu0 0.0
    %1171 = vmatprep.subr.mxu0 0.0
    %1172 = vmatpush1.msra.mxu0 0.0
    %1173 = vmatprep.subr.mxu0 0.0
    %1174 = vmatpush1.msra.mxu0 0.0
    %1175 = vmatprep.subr.mxu0 0.0
    %1176 = vmatpush1.msra.mxu0 0.0
    %1177 = vmatprep.subr.mxu0 0.0
    %1178 = vmatpush1.msra.mxu0 0.0
    %1179 = vmatprep.subr.mxu0 0.0
    %1180 = vmatpush1.msra.mxu0 0.0
    %1181 = vmatprep.subr.mxu0 0.0
    %1182 = vmatpush1.msra.mxu0 0.0
    %1183 = vmatprep.subr.mxu0 0.0
    %1184 = vmatpush1.msra.mxu0 0.0
    %1185 = vmatprep.subr.mxu0 0.0
    %1186 = vmatpush1.msra.mxu0 0.0
    %1187 = vmatprep.subr.mxu0 0.0
    %1188 = vmatpush1.msra.mxu0 0.0
    %1189 = vmatprep.subr.mxu0 0.0
    %1190 = vmatpush1.msra.mxu0 0.0
    %1191 = vmatprep.subr.mxu0 0.0
    %1192 = vmatpush1.msra.mxu0 0.0
    %1193 = vmatprep.subr.mxu0 0.0
    %1194 = vmatpush1.msra.mxu0 0.0
    %1195 = vmatprep.subr.mxu0 0.0
    %1196 = vmatpush1.msra.mxu0 0.0
    %1197 = vmatprep.subr.mxu0 0.0
    %1198 = vmatpush1.msra.mxu0 0.0
    %1199 = vmatprep.subr.mxu0 0.0
    %1200 = vmatpush1.msra.mxu0 0.0
    %1201 = vmatprep.subr.mxu0 0.0
    %1202 = vmatpush1.msra.mxu0 0.0
    %1203 = vmatprep.subr.mxu0 0.0
    %1204 = vmatpush1.msra.mxu0 0.0
    %1205 = vmatprep.subr.mxu0 0.0
    %1206 = vmatpush1.msra.mxu0 0.0
    %1207 = vmatprep.subr.mxu0 0.0
    %1208 = vmatpush1.msra.mxu0 0.0
    %1209 = vmatprep.subr.mxu0 0.0
    %1210 = vmatpush1.msra.mxu0 0.0
    %1211 = vmatprep.subr.mxu0 0.0
    %1212 = vmatpush1.msra.mxu0 0.0
    %1213 = vmatprep.subr.mxu0 0.0
    %1214 = vmatpush1.msra.mxu0 0.0
    %1215 = vmatprep.subr.mxu0 0.0
    %1216 = vmatpush1.msra.mxu0 0.0
    %1217 = vmatprep.subr.mxu0 0.0
    %1218 = vmatpush1.msra.mxu0 0.0
    %1219 = vmatprep.mubr.f32.mxu0 0.0
    %1220 = vmatmul.mubr.f32.gmra.mrb[0].mxu0 %v1153
    %v1221 = vpop.f32.mrb[0].mxu0
    %v1222 = vadd.f32 0.0, %v1221
    %v1223 = vpop.f32.mrb[0].mxu0
    %1224 = vdwg.mxu0
    %1226 = vrot.lane.b32.xlu0 %v1222, 8
    %v1227 = vpop.permute.xlu0 %1226
    %1229 = vst.msk [vmem:[#allocation2 + $0x8] sm:$0xff] %vm541, %v1227
    %1230 = vrot.lane.b32.xlu0 %v198, 112
    %v1231 = vpop.permute.xlu0 %1230
    %1232 = vrot.lane.b32.xlu0 %v198, 80
    %v1233 = vpop.permute.xlu0 %1232
    %v1234 = vsel %vm205, %v1231, 0
    %v1236 = vsel %vm205, %v1233, 0
    %1238 = vmatprep.subr.mxu0 0.0
    %1239 = vmatpush1.xpose.msra.mxu0 %v1236
    %1240 = vmatprep.subr.mxu0 0.0
    %1241 = vmatpush1.xpose.msra.mxu0 0.0
    %1242 = vmatprep.subr.mxu0 0.0
    %1243 = vmatpush1.xpose.msra.mxu0 0.0
    %1244 = vmatprep.subr.mxu0 0.0
    %1245 = vmatpush1.xpose.msra.mxu0 0.0
    %1246 = vmatprep.subr.mxu0 0.0
    %1247 = vmatpush1.xpose.msra.mxu0 0.0
    %1248 = vmatprep.subr.mxu0 0.0
    %1249 = vmatpush1.xpose.msra.mxu0 0.0
    %1250 = vmatprep.subr.mxu0 0.0
    %1251 = vmatpush1.xpose.msra.mxu0 0.0
    %1252 = vmatprep.subr.mxu0 0.0
    %1253 = vmatpush1.xpose.msra.mxu0 0.0
    %1254 = vmatprep.subr.mxu0 0.0
    %1255 = vmatpush1.xpose.msra.mxu0 0.0
    %1256 = vmatprep.subr.mxu0 0.0
    %1257 = vmatpush1.xpose.msra.mxu0 0.0
    %1258 = vmatprep.subr.mxu0 0.0
    %1259 = vmatpush1.xpose.msra.mxu0 0.0
    %1260 = vmatprep.subr.mxu0 0.0
    %1261 = vmatpush1.xpose.msra.mxu0 0.0
    %1262 = vmatprep.subr.mxu0 0.0
    %1263 = vmatpush1.xpose.msra.mxu0 0.0
    %1264 = vmatprep.subr.mxu0 0.0
    %1265 = vmatpush1.xpose.msra.mxu0 0.0
    %1266 = vmatprep.subr.mxu0 0.0
    %1267 = vmatpush1.xpose.msra.mxu0 0.0
    %1268 = vmatprep.subr.mxu0 0.0
    %1269 = vmatpush1.xpose.msra.mxu0 0.0
    %1270 = vmatprep.subr.mxu0 0.0
    %1271 = vmatpush1.xpose.msra.mxu0 0.0
    %1272 = vmatprep.subr.mxu0 0.0
    %1273 = vmatpush1.xpose.msra.mxu0 0.0
    %1274 = vmatprep.subr.mxu0 0.0
    %1275 = vmatpush1.xpose.msra.mxu0 0.0
    %1276 = vmatprep.subr.mxu0 0.0
    %1277 = vmatpush1.xpose.msra.mxu0 0.0
    %1278 = vmatprep.subr.mxu0 0.0
    %1279 = vmatpush1.xpose.msra.mxu0 0.0
    %1280 = vmatprep.subr.mxu0 0.0
    %1281 = vmatpush1.xpose.msra.mxu0 0.0
    %1282 = vmatprep.subr.mxu0 0.0
    %1283 = vmatpush1.xpose.msra.mxu0 0.0
    %1284 = vmatprep.subr.mxu0 0.0
    %1285 = vmatpush1.xpose.msra.mxu0 0.0
    %1286 = vmatprep.subr.mxu0 0.0
    %1287 = vmatpush1.xpose.msra.mxu0 0.0
    %1288 = vmatprep.subr.mxu0 0.0
    %1289 = vmatpush1.xpose.msra.mxu0 0.0
    %1290 = vmatprep.subr.mxu0 0.0
    %1291 = vmatpush1.xpose.msra.mxu0 0.0
    %1292 = vmatprep.subr.mxu0 0.0
    %1293 = vmatpush1.xpose.msra.mxu0 0.0
    %1294 = vmatprep.subr.mxu0 0.0
    %1295 = vmatpush1.xpose.msra.mxu0 0.0
    %1296 = vmatprep.subr.mxu0 0.0
    %1297 = vmatpush1.xpose.msra.mxu0 0.0
    %1298 = vmatprep.subr.mxu0 0.0
    %1299 = vmatpush1.xpose.msra.mxu0 0.0
    %1300 = vmatprep.subr.mxu0 0.0
    %1301 = vmatpush1.xpose.msra.mxu0 0.0
    %1302 = vmatprep.mubr.f32.mxu0 0.0
    %1303 = vmatmul.mubr.f32.gmra.mrb[0].mxu0 %v1234
    %v1304 = vpop.f32.mrb[0].mxu0
    %v1305 = vadd.f32 0.0, %v1304
    %v1306 = vpop.f32.mrb[0].mxu0
    %1307 = vdwg.mxu0
    %v1308 = vmul.f32 %v1305, 0.35355338
    %v1309 = vadd.f32 %v1308, %v890
    %v1310 = vsel %vm205, %v1309, -inf
    %1311 = vmax.xlane.f32.xlu0 %v1310
    %v1312 = vpop.xlane.xlu0 %1311
    %v1313 = vsub.f32 %v1309, %v1312
    %v1314 = vmul.f32 %v1313, 1.442695
    %v1315 = vpow.pop %v1314
    %v1316 = vsel %vm205, %v1315, 0.0
    %1317 = vadd.xlane.f32.xlu0 %v1316
    %v1318 = vpop.xlane.xlu0 %1317
    %v1319 = vrcp.pop %v1318
    %v1320 = vmul.f32 %v1315, %v1319
    %1321 = vrot.lane.b32.xlu0 %v198, 48
    %v1322 = vpop.permute.xlu0 %1321
    %v1325 = vsel %vm205, %v1320, 0
    %1327 = vmatprep.subr.mxu0 0.0
    %1328 = vmatpush1.msra.mxu0 %v1322
    %1329 = vmatprep.subr.mxu0 0.0
    %1330 = vmatpush1.msra.mxu0 0.0
    %1331 = vmatprep.subr.mxu0 0.0
    %1332 = vmatpush1.msra.mxu0 0.0
    %1333 = vmatprep.subr.mxu0 0.0
    %1334 = vmatpush1.msra.mxu0 0.0
    %1335 = vmatprep.subr.mxu0 0.0
    %1336 = vmatpush1.msra.mxu0 0.0
    %1337 = vmatprep.subr.mxu0 0.0
    %1338 = vmatpush1.msra.mxu0 0.0
    %1339 = vmatprep.subr.mxu0 0.0
    %1340 = vmatpush1.msra.mxu0 0.0
    %1341 = vmatprep.subr.mxu0 0.0
    %1342 = vmatpush1.msra.mxu0 0.0
    %1343 = vmatprep.subr.mxu0 0.0
    %1344 = vmatpush1.msra.mxu0 0.0
    %1345 = vmatprep.subr.mxu0 0.0
    %1346 = vmatpush1.msra.mxu0 0.0
    %1347 = vmatprep.subr.mxu0 0.0
    %1348 = vmatpush1.msra.mxu0 0.0
    %1349 = vmatprep.subr.mxu0 0.0
    %1350 = vmatpush1.msra.mxu0 0.0
    %1351 = vmatprep.subr.mxu0 0.0
    %1352 = vmatpush1.msra.mxu0 0.0
    %1353 = vmatprep.subr.mxu0 0.0
    %1354 = vmatpush1.msra.mxu0 0.0
    %1355 = vmatprep.subr.mxu0 0.0
    %1356 = vmatpush1.msra.mxu0 0.0
    %1357 = vmatprep.subr.mxu0 0.0
    %1358 = vmatpush1.msra.mxu0 0.0
    %1359 = vmatprep.subr.mxu0 0.0
    %1360 = vmatpush1.msra.mxu0 0.0
    %1361 = vmatprep.subr.mxu0 0.0
    %1362 = vmatpush1.msra.mxu0 0.0
    %1363 = vmatprep.subr.mxu0 0.0
    %1364 = vmatpush1.msra.mxu0 0.0
    %1365 = vmatprep.subr.mxu0 0.0
    %1366 = vmatpush1.msra.mxu0 0.0
    %1367 = vmatprep.subr.mxu0 0.0
    %1368 = vmatpush1.msra.mxu0 0.0
    %1369 = vmatprep.subr.mxu0 0.0
    %1370 = vmatpush1.msra.mxu0 0.0
    %1371 = vmatprep.subr.mxu0 0.0
    %1372 = vmatpush1.msra.mxu0 0.0
    %1373 = vmatprep.subr.mxu0 0.0
    %1374 = vmatpush1.msra.mxu0 0.0
    %1375 = vmatprep.subr.mxu0 0.0
    %1376 = vmatpush1.msra.mxu0 0.0
    %1377 = vmatprep.subr.mxu0 0.0
    %1378 = vmatpush1.msra.mxu0 0.0
    %1379 = vmatprep.subr.mxu0 0.0
    %1380 = vmatpush1.msra.mxu0 0.0
    %1381 = vmatprep.subr.mxu0 0.0
    %1382 = vmatpush1.msra.mxu0 0.0
    %1383 = vmatprep.subr.mxu0 0.0
    %1384 = vmatpush1.msra.mxu0 0.0
    %1385 = vmatprep.subr.mxu0 0.0
    %1386 = vmatpush1.msra.mxu0 0.0
    %1387 = vmatprep.subr.mxu0 0.0
    %1388 = vmatpush1.msra.mxu0 0.0
    %1389 = vmatprep.subr.mxu0 0.0
    %1390 = vmatpush1.msra.mxu0 0.0
    %1391 = vmatprep.mubr.f32.mxu0 0.0
    %1392 = vmatmul.mubr.f32.gmra.mrb[0].mxu0 %v1325
    %v1393 = vpop.f32.mrb[0].mxu0
    %v1394 = vadd.f32 0.0, %v1393
    %v1395 = vpop.f32.mrb[0].mxu0
    %1396 = vdwg.mxu0
    %1398 = vrot.lane.b32.xlu0 %v1394, 16
    %v1399 = vpop.permute.xlu0 %1398
    %1401 = vst.msk [vmem:[#allocation2 + $0x8] sm:$0xff] %vm714, %v1399
    %1402 = vrot.lane.b32.xlu0 %v198, 104
    %v1403 = vpop.permute.xlu0 %1402
    %1404 = vrot.lane.b32.xlu0 %v198, 72
    %v1405 = vpop.permute.xlu0 %1404
    %v1406 = vsel %vm205, %v1403, 0
    %v1408 = vsel %vm205, %v1405, 0
    %1410 = vmatprep.subr.mxu0 0.0
    %1411 = vmatpush1.xpose.msra.mxu0 %v1408
    %1412 = vmatprep.subr.mxu0 0.0
    %1413 = vmatpush1.xpose.msra.mxu0 0.0
    %1414 = vmatprep.subr.mxu0 0.0
    %1415 = vmatpush1.xpose.msra.mxu0 0.0
    %1416 = vmatprep.subr.mxu0 0.0
    %1417 = vmatpush1.xpose.msra.mxu0 0.0
    %1418 = vmatprep.subr.mxu0 0.0
    %1419 = vmatpush1.xpose.msra.mxu0 0.0
    %1420 = vmatprep.subr.mxu0 0.0
    %1421 = vmatpush1.xpose.msra.mxu0 0.0
    %1422 = vmatprep.subr.mxu0 0.0
    %1423 = vmatpush1.xpose.msra.mxu0 0.0
    %1424 = vmatprep.subr.mxu0 0.0
    %1425 = vmatpush1.xpose.msra.mxu0 0.0
    %1426 = vmatprep.subr.mxu0 0.0
    %1427 = vmatpush1.xpose.msra.mxu0 0.0
    %1428 = vmatprep.subr.mxu0 0.0
    %1429 = vmatpush1.xpose.msra.mxu0 0.0
    %1430 = vmatprep.subr.mxu0 0.0
    %1431 = vmatpush1.xpose.msra.mxu0 0.0
    %1432 = vmatprep.subr.mxu0 0.0
    %1433 = vmatpush1.xpose.msra.mxu0 0.0
    %1434 = vmatprep.subr.mxu0 0.0
    %1435 = vmatpush1.xpose.msra.mxu0 0.0
    %1436 = vmatprep.subr.mxu0 0.0
    %1437 = vmatpush1.xpose.msra.mxu0 0.0
    %1438 = vmatprep.subr.mxu0 0.0
    %1439 = vmatpush1.xpose.msra.mxu0 0.0
    %1440 = vmatprep.subr.mxu0 0.0
    %1441 = vmatpush1.xpose.msra.mxu0 0.0
    %1442 = vmatprep.subr.mxu0 0.0
    %1443 = vmatpush1.xpose.msra.mxu0 0.0
    %1444 = vmatprep.subr.mxu0 0.0
    %1445 = vmatpush1.xpose.msra.mxu0 0.0
    %1446 = vmatprep.subr.mxu0 0.0
    %1447 = vmatpush1.xpose.msra.mxu0 0.0
    %1448 = vmatprep.subr.mxu0 0.0
    %1449 = vmatpush1.xpose.msra.mxu0 0.0
    %1450 = vmatprep.subr.mxu0 0.0
    %1451 = vmatpush1.xpose.msra.mxu0 0.0
    %1452 = vmatprep.subr.mxu0 0.0
    %1453 = vmatpush1.xpose.msra.mxu0 0.0
    %1454 = vmatprep.subr.mxu0 0.0
    %1455 = vmatpush1.xpose.msra.mxu0 0.0
    %1456 = vmatprep.subr.mxu0 0.0
    %1457 = vmatpush1.xpose.msra.mxu0 0.0
    %1458 = vmatprep.subr.mxu0 0.0
    %1459 = vmatpush1.xpose.msra.mxu0 0.0
    %1460 = vmatprep.subr.mxu0 0.0
    %1461 = vmatpush1.xpose.msra.mxu0 0.0
    %1462 = vmatprep.subr.mxu0 0.0
    %1463 = vmatpush1.xpose.msra.mxu0 0.0
    %1464 = vmatprep.subr.mxu0 0.0
    %1465 = vmatpush1.xpose.msra.mxu0 0.0
    %1466 = vmatprep.subr.mxu0 0.0
    %1467 = vmatpush1.xpose.msra.mxu0 0.0
    %1468 = vmatprep.subr.mxu0 0.0
    %1469 = vmatpush1.xpose.msra.mxu0 0.0
    %1470 = vmatprep.subr.mxu0 0.0
    %1471 = vmatpush1.xpose.msra.mxu0 0.0
    %1472 = vmatprep.subr.mxu0 0.0
    %1473 = vmatpush1.xpose.msra.mxu0 0.0
    %1474 = vmatprep.mubr.f32.mxu0 0.0
    %1475 = vmatmul.mubr.f32.gmra.mrb[0].mxu0 %v1406
    %v1476 = vpop.f32.mrb[0].mxu0
    %v1477 = vadd.f32 0.0, %v1476
    %v1478 = vpop.f32.mrb[0].mxu0
    %1479 = vdwg.mxu0
    %v1480 = vmul.f32 %v1477, 0.35355338
    %v1481 = vadd.f32 %v1480, %v890
    %v1482 = vsel %vm205, %v1481, -inf
    %1483 = vmax.xlane.f32.xlu0 %v1482
    %v1484 = vpop.xlane.xlu0 %1483
    %v1485 = vsub.f32 %v1481, %v1484
    %v1486 = vmul.f32 %v1485, 1.442695
    %v1487 = vpow.pop %v1486
    %v1488 = vsel %vm205, %v1487, 0.0
    %1489 = vadd.xlane.f32.xlu0 %v1488
    %v1490 = vpop.xlane.xlu0 %1489
    %v1491 = vrcp.pop %v1490
    %v1492 = vmul.f32 %v1487, %v1491
    %1493 = vrot.lane.b32.xlu0 %v198, 40
    %v1494 = vpop.permute.xlu0 %1493
    %v1497 = vsel %vm205, %v1492, 0
    %1499 = vmatprep.subr.mxu0 0.0
    %1500 = vmatpush1.msra.mxu0 %v1494
    %1501 = vmatprep.subr.mxu0 0.0
    %1502 = vmatpush1.msra.mxu0 0.0
    %1503 = vmatprep.subr.mxu0 0.0
    %1504 = vmatpush1.msra.mxu0 0.0
    %1505 = vmatprep.subr.mxu0 0.0
    %1506 = vmatpush1.msra.mxu0 0.0
    %1507 = vmatprep.subr.mxu0 0.0
    %1508 = vmatpush1.msra.mxu0 0.0
    %1509 = vmatprep.subr.mxu0 0.0
    %1510 = vmatpush1.msra.mxu0 0.0
    %1511 = vmatprep.subr.mxu0 0.0
    %1512 = vmatpush1.msra.mxu0 0.0
    %1513 = vmatprep.subr.mxu0 0.0
    %1514 = vmatpush1.msra.mxu0 0.0
    %1515 = vmatprep.subr.mxu0 0.0
    %1516 = vmatpush1.msra.mxu0 0.0
    %1517 = vmatprep.subr.mxu0 0.0
    %1518 = vmatpush1.msra.mxu0 0.0
    %1519 = vmatprep.subr.mxu0 0.0
    %1520 = vmatpush1.msra.mxu0 0.0
    %1521 = vmatprep.subr.mxu0 0.0
    %1522 = vmatpush1.msra.mxu0 0.0
    %1523 = vmatprep.subr.mxu0 0.0
    %1524 = vmatpush1.msra.mxu0 0.0
    %1525 = vmatprep.subr.mxu0 0.0
    %1526 = vmatpush1.msra.mxu0 0.0
    %1527 = vmatprep.subr.mxu0 0.0
    %1528 = vmatpush1.msra.mxu0 0.0
    %1529 = vmatprep.subr.mxu0 0.0
    %1530 = vmatpush1.msra.mxu0 0.0
    %1531 = vmatprep.subr.mxu0 0.0
    %1532 = vmatpush1.msra.mxu0 0.0
    %1533 = vmatprep.subr.mxu0 0.0
    %1534 = vmatpush1.msra.mxu0 0.0
    %1535 = vmatprep.subr.mxu0 0.0
    %1536 = vmatpush1.msra.mxu0 0.0
    %1537 = vmatprep.subr.mxu0 0.0
    %1538 = vmatpush1.msra.mxu0 0.0
    %1539 = vmatprep.subr.mxu0 0.0
    %1540 = vmatpush1.msra.mxu0 0.0
    %1541 = vmatprep.subr.mxu0 0.0
    %1542 = vmatpush1.msra.mxu0 0.0
    %1543 = vmatprep.subr.mxu0 0.0
    %1544 = vmatpush1.msra.mxu0 0.0
    %1545 = vmatprep.subr.mxu0 0.0
    %1546 = vmatpush1.msra.mxu0 0.0
    %1547 = vmatprep.subr.mxu0 0.0
    %1548 = vmatpush1.msra.mxu0 0.0
    %1549 = vmatprep.subr.mxu0 0.0
    %1550 = vmatpush1.msra.mxu0 0.0
    %1551 = vmatprep.subr.mxu0 0.0
    %1552 = vmatpush1.msra.mxu0 0.0
    %1553 = vmatprep.subr.mxu0 0.0
    %1554 = vmatpush1.msra.mxu0 0.0
    %1555 = vmatprep.subr.mxu0 0.0
    %1556 = vmatpush1.msra.mxu0 0.0
    %1557 = vmatprep.subr.mxu0 0.0
    %1558 = vmatpush1.msra.mxu0 0.0
    %1559 = vmatprep.subr.mxu0 0.0
    %1560 = vmatpush1.msra.mxu0 0.0
    %1561 = vmatprep.subr.mxu0 0.0
    %1562 = vmatpush1.msra.mxu0 0.0
    %1563 = vmatprep.mubr.f32.mxu0 0.0
    %1564 = vmatmul.mubr.f32.gmra.mrb[0].mxu0 %v1497
    %v1565 = vpop.f32.mrb[0].mxu0
    %v1566 = vadd.f32 0.0, %v1565
    %v1567 = vpop.f32.mrb[0].mxu0
    %1568 = vdwg.mxu0
    %1570 = vrot.lane.b32.xlu0 %v1566, 24
    %v1571 = vpop.permute.xlu0 %1570
    %1573 = vst.msk [vmem:[#allocation2 + $0x8] sm:$0xff] %vm887, %v1571
    %v1574 = vld [vmem:[#allocation2] sm:$0xff]
    %v1575 = vld [vmem:[#allocation2 + $0x8] sm:$0xff]
    %v1576 = vld [vmem:[%s7] sm:$0xff]
    %v1577 = vld [vmem:[%s7 + $0x8] sm:$0xff]
    %v1578 = vld [vmem:[%s7 + $0x10] sm:$0xff]
    %v1579 = vld [vmem:[%s7 + $0x18] sm:$0xff]
    %v1580 = vld [vmem:[%s8] sm:$0x1]
    %v1582 = vlaneseq
    %v1583 = vshrl.u32 %v1582, 7
    %v1584 = vsub.s32 0, %v1583
    %v1585 = vrot.slane %v1580, %v1584
    %v1588 = vsel %vm55, %v1574, 0
    %v1591 = vsel %vm55, %v1575, 0
    %1593 = vmatprep.subr.mxu0 0.0
    %1594 = vmatpush1.msra.mxu0 %v1576
    %1595 = vmatprep.subr.mxu0 0.0
    %1596 = vmatpush1.msra.mxu0 %v1577
    %1597 = vmatprep.subr.mxu0 0.0
    %1598 = vmatpush1.msra.mxu0 %v1578
    %1599 = vmatprep.subr.mxu0 0.0
    %1600 = vmatpush1.msra.mxu0 %v1579
    %1601 = vmatprep.subr.mxu0 0.0
    %1602 = vmatpush1.msra.mxu0 0.0
    %1603 = vmatprep.subr.mxu0 0.0
    %1604 = vmatpush1.msra.mxu0 0.0
    %1605 = vmatprep.subr.mxu0 0.0
    %1606 = vmatpush1.msra.mxu0 0.0
    %1607 = vmatprep.subr.mxu0 0.0
    %1608 = vmatpush1.msra.mxu0 0.0
    %1609 = vmatprep.subr.mxu0 0.0
    %1610 = vmatpush1.msra.mxu0 0.0
    %1611 = vmatprep.subr.mxu0 0.0
    %1612 = vmatpush1.msra.mxu0 0.0
    %1613 = vmatprep.subr.mxu0 0.0
    %1614 = vmatpush1.msra.mxu0 0.0
    %1615 = vmatprep.subr.mxu0 0.0
    %1616 = vmatpush1.msra.mxu0 0.0
    %1617 = vmatprep.subr.mxu0 0.0
    %1618 = vmatpush1.msra.mxu0 0.0
    %1619 = vmatprep.subr.mxu0 0.0
    %1620 = vmatpush1.msra.mxu0 0.0
    %1621 = vmatprep.subr.mxu0 0.0
    %1622 = vmatpush1.msra.mxu0 0.0
    %1623 = vmatprep.subr.mxu0 0.0
    %1624 = vmatpush1.msra.mxu0 0.0
    %1625 = vmatprep.subr.mxu0 0.0
    %1626 = vmatpush1.msra.mxu0 0.0
    %1627 = vmatprep.subr.mxu0 0.0
    %1628 = vmatpush1.msra.mxu0 0.0
    %1629 = vmatprep.subr.mxu0 0.0
    %1630 = vmatpush1.msra.mxu0 0.0
    %1631 = vmatprep.subr.mxu0 0.0
    %1632 = vmatpush1.msra.mxu0 0.0
    %1633 = vmatprep.subr.mxu0 0.0
    %1634 = vmatpush1.msra.mxu0 0.0
    %1635 = vmatprep.subr.mxu0 0.0
    %1636 = vmatpush1.msra.mxu0 0.0
    %1637 = vmatprep.subr.mxu0 0.0
    %1638 = vmatpush1.msra.mxu0 0.0
    %1639 = vmatprep.subr.mxu0 0.0
    %1640 = vmatpush1.msra.mxu0 0.0
    %1641 = vmatprep.subr.mxu0 0.0
    %1642 = vmatpush1.msra.mxu0 0.0
    %1643 = vmatprep.subr.mxu0 0.0
    %1644 = vmatpush1.msra.mxu0 0.0
    %1645 = vmatprep.subr.mxu0 0.0
    %1646 = vmatpush1.msra.mxu0 0.0
    %1647 = vmatprep.subr.mxu0 0.0
    %1648 = vmatpush1.msra.mxu0 0.0
    %1649 = vmatprep.subr.mxu0 0.0
    %1650 = vmatpush1.msra.mxu0 0.0
    %1651 = vmatprep.subr.mxu0 0.0
    %1652 = vmatpush1.msra.mxu0 0.0
    %1653 = vmatprep.subr.mxu0 0.0
    %1654 = vmatpush1.msra.mxu0 0.0
    %1655 = vmatprep.subr.mxu0 0.0
    %1656 = vmatpush1.msra.mxu0 0.0
    %1657 = vmatprep.mubr.f32.mxu0 0.0
    %1658 = vmatmul.mubr.f32.gmra.mrb[0].mxu0 %v1588
    %v1659 = vpop.f32.mrb[0].mxu0
    %v1660 = vadd.f32 %v1585, %v1659
    %v1661 = vpop.f32.mrb[0].mxu0
    %1662 = vmatprep.mubr.f32.mxu0 0.0
    %1663 = vmatmul.mubr.f32.gmra.mrb[0].mxu0 %v1591
    %v1664 = vpop.f32.mrb[0].mxu0
    %v1665 = vadd.f32 %v1585, %v1664
    %v1666 = vpop.f32.mrb[0].mxu0
    %1667 = vdwg.mxu0
    %v1668 = vadd.f32 %v1660, %v51
    %v1669 = vadd.f32 %v1665, %v52
    %v1670 = vld [vmem:[%s3 + $0x1] sm:$0x1]
    %v1671 = vld [vmem:[%s4 + $0x1] sm:$0x1]
    %v1672 = vsel %vm55, %v1668, 0.0
    %1673 = vadd.xlane.f32.xlu0 %v1672
    %v1674 = vpop.xlane.xlu0 %1673
    %v1675 = vsel %vm55, %v1669, 0.0
    %1676 = vadd.xlane.f32.xlu0 %v1675
    %v1677 = vpop.xlane.xlu0 %1676
    %v1678 = vmul.f32 %v1674, %v62
    %v1679 = vmul.f32 %v1677, %v62
    %v1680 = vsub.f32 %v1668, %v1678
    %v1681 = vsub.f32 %v1669, %v1679
    %v1682 = vmul.f32 %v1680, %v1680
    %v1683 = vmul.f32 %v1681, %v1681
    %v1684 = vsel %vm55, %v1682, 0.0
    %1685 = vadd.xlane.f32.xlu0 %v1684
    %v1686 = vpop.xlane.xlu0 %1685
    %v1687 = vsel %vm55, %v1683, 0.0
    %1688 = vadd.xlane.f32.xlu0 %v1687
    %v1689 = vpop.xlane.xlu0 %1688
    %v1690 = vmul.f32 %v1686, 0.032258064
    %v1691 = vmul.f32 %v1689, 0.032258064
    %v1692 = vrsqrt.pop %v1690
    %v1693 = vmul.f32 %v1690, %v1692
    %vm1694 = vcmp.eq.f32.partialorder %v1690, inf
    %v1695 = vsel %vm1694, %v1690, %v1693
    %vm1696 = vcmp.eq.f32.partialorder %v1690, 0.0
    %v1697 = vand.u32 %v1690, 2147483648
    %v1698 = vsel %vm1696, %v1697, %v1695
    %v1699 = vrsqrt.pop %v1691
    %v1700 = vmul.f32 %v1691, %v1699
    %vm1701 = vcmp.eq.f32.partialorder %v1691, inf
    %v1702 = vsel %vm1701, %v1691, %v1700
    %vm1703 = vcmp.eq.f32.partialorder %v1691, 0.0
    %v1704 = vand.u32 %v1691, 2147483648
    %v1705 = vsel %vm1703, %v1704, %v1702
    %v1706 = vlaneseq
    %v1707 = vshrl.u32 %v1706, 7
    %v1708 = vsub.s32 0, %v1707
    %v1709 = vrot.slane %v1670, %v1708
    %v1710 = vmul.f32 %v1709, %v1680
    %v1711 = vmul.f32 %v1709, %v1681
    %v1712 = vadd.f32 %v1698, 1e-06
    %v1713 = vadd.f32 %v1705, 1e-06
    %v1714 = vrcp.pop %v1712
    %v1715 = vrcp.pop %v1713
    %v1716 = vmul.f32 %v1710, %v1714
    %v1717 = vmul.f32 %v1711, %v1715
    %v1718 = vlaneseq
    %v1719 = vshrl.u32 %v1718, 7
    %v1720 = vsub.s32 0, %v1719
    %v1721 = vrot.slane %v1671, %v1720
    %v1722 = vadd.f32 %v1716, %v1721
    %v1723 = vadd.f32 %v1717, %v1721
    %s1724 = scalar_lea.vmem %s5, 32
    %v1725 = vld [vmem:[%s1724] sm:$0xff]
    %v1726 = vld [vmem:[%s1724 + $0x8] sm:$0xff]
    %v1727 = vld [vmem:[%s1724 + $0x10] sm:$0xff]
    %v1728 = vld [vmem:[%s1724 + $0x18] sm:$0xff]
    %s1729 = scalar_lea.vmem %s6, 1
    %v1730 = vld [vmem:[%s1729] sm:$0x1]
    %v1732 = vlaneseq
    %v1733 = vshrl.u32 %v1732, 7
    %v1734 = vsub.s32 0, %v1733
    %v1735 = vrot.slane %v1730, %v1734
    %v1738 = vsel %vm55, %v1722, 0
    %v1741 = vsel %vm55, %v1723, 0
    %1743 = vmatprep.subr.mxu0 0.0
    %1744 = vmatpush1.msra.mxu0 %v1725
    %1745 = vmatprep.subr.mxu0 0.0
    %1746 = vmatpush1.msra.mxu0 %v1726
    %1747 = vmatprep.subr.mxu0 0.0
    %1748 = vmatpush1.msra.mxu0 %v1727
    %1749 = vmatprep.subr.mxu0 0.0
    %1750 = vmatpush1.msra.mxu0 %v1728
    %1751 = vmatprep.subr.mxu0 0.0
    %1752 = vmatpush1.msra.mxu0 0.0
    %1753 = vmatprep.subr.mxu0 0.0
    %1754 = vmatpush1.msra.mxu0 0.0
    %1755 = vmatprep.subr.mxu0 0.0
    %1756 = vmatpush1.msra.mxu0 0.0
    %1757 = vmatprep.subr.mxu0 0.0
    %1758 = vmatpush1.msra.mxu0 0.0
    %1759 = vmatprep.subr.mxu0 0.0
    %1760 = vmatpush1.msra.mxu0 0.0
    %1761 = vmatprep.subr.mxu0 0.0
    %1762 = vmatpush1.msra.mxu0 0.0
    %1763 = vmatprep.subr.mxu0 0.0
    %1764 = vmatpush1.msra.mxu0 0.0
    %1765 = vmatprep.subr.mxu0 0.0
    %1766 = vmatpush1.msra.mxu0 0.0
    %1767 = vmatprep.subr.mxu0 0.0
    %1768 = vmatpush1.msra.mxu0 0.0
    %1769 = vmatprep.subr.mxu0 0.0
    %1770 = vmatpush1.msra.mxu0 0.0
    %1771 = vmatprep.subr.mxu0 0.0
    %1772 = vmatpush1.msra.mxu0 0.0
    %1773 = vmatprep.subr.mxu0 0.0
    %1774 = vmatpush1.msra.mxu0 0.0
    %1775 = vmatprep.subr.mxu0 0.0
    %1776 = vmatpush1.msra.mxu0 0.0
    %1777 = vmatprep.subr.mxu0 0.0
    %1778 = vmatpush1.msra.mxu0 0.0
    %1779 = vmatprep.subr.mxu0 0.0
    %1780 = vmatpush1.msra.mxu0 0.0
    %1781 = vmatprep.subr.mxu0 0.0
    %1782 = vmatpush1.msra.mxu0 0.0
    %1783 = vmatprep.subr.mxu0 0.0
    %1784 = vmatpush1.msra.mxu0 0.0
    %1785 = vmatprep.subr.mxu0 0.0
    %1786 = vmatpush1.msra.mxu0 0.0
    %1787 = vmatprep.subr.mxu0 0.0
    %1788 = vmatpush1.msra.mxu0 0.0
    %1789 = vmatprep.subr.mxu0 0.0
    %1790 = vmatpush1.msra.mxu0 0.0
    %1791 = vmatprep.subr.mxu0 0.0
    %1792 = vmatpush1.msra.mxu0 0.0
    %1793 = vmatprep.subr.mxu0 0.0
    %1794 = vmatpush1.msra.mxu0 0.0
    %1795 = vmatprep.subr.mxu0 0.0
    %1796 = vmatpush1.msra.mxu0 0.0
    %1797 = vmatprep.subr.mxu0 0.0
    %1798 = vmatpush1.msra.mxu0 0.0
    %1799 = vmatprep.subr.mxu0 0.0
    %1800 = vmatpush1.msra.mxu0 0.0
    %1801 = vmatprep.subr.mxu0 0.0
    %1802 = vmatpush1.msra.mxu0 0.0
    %1803 = vmatprep.subr.mxu0 0.0
    %1804 = vmatpush1.msra.mxu0 0.0
    %1805 = vmatprep.subr.mxu0 0.0
    %1806 = vmatpush1.msra.mxu0 0.0
    %1807 = vmatprep.mubr.f32.mxu0 0.0
    %1808 = vmatmul.mubr.f32.gmra.mrb[0].mxu0 %v1738
    %v1809 = vpop.f32.mrb[0].mxu0
    %v1810 = vadd.f32 %v1735, %v1809
    %v1811 = vpop.f32.mrb[0].mxu0
    %1812 = vmatprep.mubr.f32.mxu0 0.0
    %1813 = vmatmul.mubr.f32.gmra.mrb[0].mxu0 %v1741
    %v1814 = vpop.f32.mrb[0].mxu0
    %v1815 = vadd.f32 %v1735, %v1814
    %v1816 = vpop.f32.mrb[0].mxu0
    %1817 = vdwg.mxu0
    %s1818 = scalar_lea.vmem %s2, 16
    %v1819 = vld [vmem:[%s1818] sm:$0xff]
    %1821 = vrot.lane.b32.xlu0 %v1810, 96
    %v1822 = vpop.permute.xlu0 %1821
    %v1823 = vsel %vm205, %v1810, 0
    %v1825 = vsel %vm205, %v1822, 0
    %1827 = vmatprep.subr.mxu0 0.0
    %1828 = vmatpush1.xpose.msra.mxu0 %v1825
    %1829 = vmatprep.subr.mxu0 0.0
    %1830 = vmatpush1.xpose.msra.mxu0 0.0
    %1831 = vmatprep.subr.mxu0 0.0
    %1832 = vmatpush1.xpose.msra.mxu0 0.0
    %1833 = vmatprep.subr.mxu0 0.0
    %1834 = vmatpush1.xpose.msra.mxu0 0.0
    %1835 = vmatprep.subr.mxu0 0.0
    %1836 = vmatpush1.xpose.msra.mxu0 0.0
    %1837 = vmatprep.subr.mxu0 0.0
    %1838 = vmatpush1.xpose.msra.mxu0 0.0
    %1839 = vmatprep.subr.mxu0 0.0
    %1840 = vmatpush1.xpose.msra.mxu0 0.0
    %1841 = vmatprep.subr.mxu0 0.0
    %1842 = vmatpush1.xpose.msra.mxu0 0.0
    %1843 = vmatprep.subr.mxu0 0.0
    %1844 = vmatpush1.xpose.msra.mxu0 0.0
    %1845 = vmatprep.subr.mxu0 0.0
    %1846 = vmatpush1.xpose.msra.mxu0 0.0
    %1847 = vmatprep.subr.mxu0 0.0
    %1848 = vmatpush1.xpose.msra.mxu0 0.0
    %1849 = vmatprep.subr.mxu0 0.0
    %1850 = vmatpush1.xpose.msra.mxu0 0.0
    %1851 = vmatprep.subr.mxu0 0.0
    %1852 = vmatpush1.xpose.msra.mxu0 0.0
    %1853 = vmatprep.subr.mxu0 0.0
    %1854 = vmatpush1.xpose.msra.mxu0 0.0
    %1855 = vmatprep.subr.mxu0 0.0
    %1856 = vmatpush1.xpose.msra.mxu0 0.0
    %1857 = vmatprep.subr.mxu0 0.0
    %1858 = vmatpush1.xpose.msra.mxu0 0.0
    %1859 = vmatprep.subr.mxu0 0.0
    %1860 = vmatpush1.xpose.msra.mxu0 0.0
    %1861 = vmatprep.subr.mxu0 0.0
    %1862 = vmatpush1.xpose.msra.mxu0 0.0
    %1863 = vmatprep.subr.mxu0 0.0
    %1864 = vmatpush1.xpose.msra.mxu0 0.0
    %1865 = vmatprep.subr.mxu0 0.0
    %1866 = vmatpush1.xpose.msra.mxu0 0.0
    %1867 = vmatprep.subr.mxu0 0.0
    %1868 = vmatpush1.xpose.msra.mxu0 0.0
    %1869 = vmatprep.subr.mxu0 0.0
    %1870 = vmatpush1.xpose.msra.mxu0 0.0
    %1871 = vmatprep.subr.mxu0 0.0
    %1872 = vmatpush1.xpose.msra.mxu0 0.0
    %1873 = vmatprep.subr.mxu0 0.0
    %1874 = vmatpush1.xpose.msra.mxu0 0.0
    %1875 = vmatprep.subr.mxu0 0.0
    %1876 = vmatpush1.xpose.msra.mxu0 0.0
    %1877 = vmatprep.subr.mxu0 0.0
    %1878 = vmatpush1.xpose.msra.mxu0 0.0
    %1879 = vmatprep.subr.mxu0 0.0
    %1880 = vmatpush1.xpose.msra.mxu0 0.0
    %1881 = vmatprep.subr.mxu0 0.0
    %1882 = vmatpush1.xpose.msra.mxu0 0.0
    %1883 = vmatprep.subr.mxu0 0.0
    %1884 = vmatpush1.xpose.msra.mxu0 0.0
    %1885 = vmatprep.subr.mxu0 0.0
    %1886 = vmatpush1.xpose.msra.mxu0 0.0
    %1887 = vmatprep.subr.mxu0 0.0
    %1888 = vmatpush1.xpose.msra.mxu0 0.0
    %1889 = vmatprep.subr.mxu0 0.0
    %1890 = vmatpush1.xpose.msra.mxu0 0.0
    %1891 = vmatprep.mubr.f32.mxu0 0.0
    %1892 = vmatmul.mubr.f32.gmra.mrb[0].mxu0 %v1823
    %v1893 = vpop.f32.mrb[0].mxu0
    %v1894 = vadd.f32 0.0, %v1893
    %v1895 = vpop.f32.mrb[0].mxu0
    %1896 = vdwg.mxu0
    %v1897 = vmul.f32 %v1894, 0.35355338
    %v1898 = vadd.f32 %v1897, %v1819
    %v1899 = vsel %vm205, %v1898, -inf
    %1900 = vmax.xlane.f32.xlu0 %v1899
    %v1901 = vpop.xlane.xlu0 %1900
    %v1902 = vsub.f32 %v1898, %v1901
    %v1903 = vmul.f32 %v1902, 1.442695
    %v1904 = vpow.pop %v1903
    %v1905 = vsel %vm205, %v1904, 0.0
    %1906 = vadd.xlane.f32.xlu0 %v1905
    %v1907 = vpop.xlane.xlu0 %1906
    %v1908 = vrcp.pop %v1907
    %v1909 = vmul.f32 %v1904, %v1908
    %1910 = vrot.lane.b32.xlu0 %v1810, 64
    %v1911 = vpop.permute.xlu0 %1910
    %v1914 = vsel %vm205, %v1909, 0
    %1916 = vmatprep.subr.mxu0 0.0
    %1917 = vmatpush1.msra.mxu0 %v1911
    %1918 = vmatprep.subr.mxu0 0.0
    %1919 = vmatpush1.msra.mxu0 0.0
    %1920 = vmatprep.subr.mxu0 0.0
    %1921 = vmatpush1.msra.mxu0 0.0
    %1922 = vmatprep.subr.mxu0 0.0
    %1923 = vmatpush1.msra.mxu0 0.0
    %1924 = vmatprep.subr.mxu0 0.0
    %1925 = vmatpush1.msra.mxu0 0.0
    %1926 = vmatprep.subr.mxu0 0.0
    %1927 = vmatpush1.msra.mxu0 0.0
    %1928 = vmatprep.subr.mxu0 0.0
    %1929 = vmatpush1.msra.mxu0 0.0
    %1930 = vmatprep.subr.mxu0 0.0
    %1931 = vmatpush1.msra.mxu0 0.0
    %1932 = vmatprep.subr.mxu0 0.0
    %1933 = vmatpush1.msra.mxu0 0.0
    %1934 = vmatprep.subr.mxu0 0.0
    %1935 = vmatpush1.msra.mxu0 0.0
    %1936 = vmatprep.subr.mxu0 0.0
    %1937 = vmatpush1.msra.mxu0 0.0
    %1938 = vmatprep.subr.mxu0 0.0
    %1939 = vmatpush1.msra.mxu0 0.0
    %1940 = vmatprep.subr.mxu0 0.0
    %1941 = vmatpush1.msra.mxu0 0.0
    %1942 = vmatprep.subr.mxu0 0.0
    %1943 = vmatpush1.msra.mxu0 0.0
    %1944 = vmatprep.subr.mxu0 0.0
    %1945 = vmatpush1.msra.mxu0 0.0
    %1946 = vmatprep.subr.mxu0 0.0
    %1947 = vmatpush1.msra.mxu0 0.0
    %1948 = vmatprep.subr.mxu0 0.0
    %1949 = vmatpush1.msra.mxu0 0.0
    %1950 = vmatprep.subr.mxu0 0.0
    %1951 = vmatpush1.msra.mxu0 0.0
    %1952 = vmatprep.subr.mxu0 0.0
    %1953 = vmatpush1.msra.mxu0 0.0
    %1954 = vmatprep.subr.mxu0 0.0
    %1955 = vmatpush1.msra.mxu0 0.0
    %1956 = vmatprep.subr.mxu0 0.0
    %1957 = vmatpush1.msra.mxu0 0.0
    %1958 = vmatprep.subr.mxu0 0.0
    %1959 = vmatpush1.msra.mxu0 0.0
    %1960 = vmatprep.subr.mxu0 0.0
    %1961 = vmatpush1.msra.mxu0 0.0
    %1962 = vmatprep.subr.mxu0 0.0
    %1963 = vmatpush1.msra.mxu0 0.0
    %1964 = vmatprep.subr.mxu0 0.0
    %1965 = vmatpush1.msra.mxu0 0.0
    %1966 = vmatprep.subr.mxu0 0.0
    %1967 = vmatpush1.msra.mxu0 0.0
    %1968 = vmatprep.subr.mxu0 0.0
    %1969 = vmatpush1.msra.mxu0 0.0
    %1970 = vmatprep.subr.mxu0 0.0
    %1971 = vmatpush1.msra.mxu0 0.0
    %1972 = vmatprep.subr.mxu0 0.0
    %1973 = vmatpush1.msra.mxu0 0.0
    %1974 = vmatprep.subr.mxu0 0.0
    %1975 = vmatpush1.msra.mxu0 0.0
    %1976 = vmatprep.subr.mxu0 0.0
    %1977 = vmatpush1.msra.mxu0 0.0
    %1978 = vmatprep.subr.mxu0 0.0
    %1979 = vmatpush1.msra.mxu0 0.0
    %1980 = vmatprep.mubr.f32.mxu0 0.0
    %1981 = vmatmul.mubr.f32.gmra.mrb[0].mxu0 %v1914
    %v1982 = vpop.f32.mrb[0].mxu0
    %v1983 = vadd.f32 0.0, %v1982
    %v1984 = vpop.f32.mrb[0].mxu0
    %1985 = vdwg.mxu0
    %1986 = vst.msk [vmem:[#allocation2] sm:$0xff] %vm205, %v1983
    %1987 = vrot.lane.b32.xlu0 %v1810, 120
    %v1988 = vpop.permute.xlu0 %1987
    %1989 = vrot.lane.b32.xlu0 %v1810, 88
    %v1990 = vpop.permute.xlu0 %1989
    %v1991 = vsel %vm205, %v1988, 0
    %v1993 = vsel %vm205, %v1990, 0
    %1995 = vmatprep.subr.mxu0 0.0
    %1996 = vmatpush1.xpose.msra.mxu0 %v1993
    %1997 = vmatprep.subr.mxu0 0.0
    %1998 = vmatpush1.xpose.msra.mxu0 0.0
    %1999 = vmatprep.subr.mxu0 0.0
    %2000 = vmatpush1.xpose.msra.mxu0 0.0
    %2001 = vmatprep.subr.mxu0 0.0
    %2002 = vmatpush1.xpose.msra.mxu0 0.0
    %2003 = vmatprep.subr.mxu0 0.0
    %2004 = vmatpush1.xpose.msra.mxu0 0.0
    %2005 = vmatprep.subr.mxu0 0.0
    %2006 = vmatpush1.xpose.msra.mxu0 0.0
    %2007 = vmatprep.subr.mxu0 0.0
    %2008 = vmatpush1.xpose.msra.mxu0 0.0
    %2009 = vmatprep.subr.mxu0 0.0
    %2010 = vmatpush1.xpose.msra.mxu0 0.0
    %2011 = vmatprep.subr.mxu0 0.0
    %2012 = vmatpush1.xpose.msra.mxu0 0.0
    %2013 = vmatprep.subr.mxu0 0.0
    %2014 = vmatpush1.xpose.msra.mxu0 0.0
    %2015 = vmatprep.subr.mxu0 0.0
    %2016 = vmatpush1.xpose.msra.mxu0 0.0
    %2017 = vmatprep.subr.mxu0 0.0
    %2018 = vmatpush1.xpose.msra.mxu0 0.0
    %2019 = vmatprep.subr.mxu0 0.0
    %2020 = vmatpush1.xpose.msra.mxu0 0.0
    %2021 = vmatprep.subr.mxu0 0.0
    %2022 = vmatpush1.xpose.msra.mxu0 0.0
    %2023 = vmatprep.subr.mxu0 0.0
    %2024 = vmatpush1.xpose.msra.mxu0 0.0
    %2025 = vmatprep.subr.mxu0 0.0
    %2026 = vmatpush1.xpose.msra.mxu0 0.0
    %2027 = vmatprep.subr.mxu0 0.0
    %2028 = vmatpush1.xpose.msra.mxu0 0.0
    %2029 = vmatprep.subr.mxu0 0.0
    %2030 = vmatpush1.xpose.msra.mxu0 0.0
    %2031 = vmatprep.subr.mxu0 0.0
    %2032 = vmatpush1.xpose.msra.mxu0 0.0
    %2033 = vmatprep.subr.mxu0 0.0
    %2034 = vmatpush1.xpose.msra.mxu0 0.0
    %2035 = vmatprep.subr.mxu0 0.0
    %2036 = vmatpush1.xpose.msra.mxu0 0.0
    %2037 = vmatprep.subr.mxu0 0.0
    %2038 = vmatpush1.xpose.msra.mxu0 0.0
    %2039 = vmatprep.subr.mxu0 0.0
    %2040 = vmatpush1.xpose.msra.mxu0 0.0
    %2041 = vmatprep.subr.mxu0 0.0
    %2042 = vmatpush1.xpose.msra.mxu0 0.0
    %2043 = vmatprep.subr.mxu0 0.0
    %2044 = vmatpush1.xpose.msra.mxu0 0.0
    %2045 = vmatprep.subr.mxu0 0.0
    %2046 = vmatpush1.xpose.msra.mxu0 0.0
    %2047 = vmatprep.subr.mxu0 0.0
    %2048 = vmatpush1.xpose.msra.mxu0 0.0
    %2049 = vmatprep.subr.mxu0 0.0
    %2050 = vmatpush1.xpose.msra.mxu0 0.0
    %2051 = vmatprep.subr.mxu0 0.0
    %2052 = vmatpush1.xpose.msra.mxu0 0.0
    %2053 = vmatprep.subr.mxu0 0.0
    %2054 = vmatpush1.xpose.msra.mxu0 0.0
    %2055 = vmatprep.subr.mxu0 0.0
    %2056 = vmatpush1.xpose.msra.mxu0 0.0
    %2057 = vmatprep.subr.mxu0 0.0
    %2058 = vmatpush1.xpose.msra.mxu0 0.0
    %2059 = vmatprep.mubr.f32.mxu0 0.0
    %2060 = vmatmul.mubr.f32.gmra.mrb[0].mxu0 %v1991
    %v2061 = vpop.f32.mrb[0].mxu0
    %v2062 = vadd.f32 0.0, %v2061
    %v2063 = vpop.f32.mrb[0].mxu0
    %2064 = vdwg.mxu0
    %v2065 = vmul.f32 %v2062, 0.35355338
    %v2066 = vadd.f32 %v2065, %v1819
    %v2067 = vsel %vm205, %v2066, -inf
    %2068 = vmax.xlane.f32.xlu0 %v2067
    %v2069 = vpop.xlane.xlu0 %2068
    %v2070 = vsub.f32 %v2066, %v2069
    %v2071 = vmul.f32 %v2070, 1.442695
    %v2072 = vpow.pop %v2071
    %v2073 = vsel %vm205, %v2072, 0.0
    %2074 = vadd.xlane.f32.xlu0 %v2073
    %v2075 = vpop.xlane.xlu0 %2074
    %v2076 = vrcp.pop %v2075
    %v2077 = vmul.f32 %v2072, %v2076
    %2078 = vrot.lane.b32.xlu0 %v1810, 56
    %v2079 = vpop.permute.xlu0 %2078
    %v2082 = vsel %vm205, %v2077, 0
    %2084 = vmatprep.subr.mxu0 0.0
    %2085 = vmatpush1.msra.mxu0 %v2079
    %2086 = vmatprep.subr.mxu0 0.0
    %2087 = vmatpush1.msra.mxu0 0.0
    %2088 = vmatprep.subr.mxu0 0.0
    %2089 = vmatpush1.msra.mxu0 0.0
    %2090 = vmatprep.subr.mxu0 0.0
    %2091 = vmatpush1.msra.mxu0 0.0
    %2092 = vmatprep.subr.mxu0 0.0
    %2093 = vmatpush1.msra.mxu0 0.0
    %2094 = vmatprep.subr.mxu0 0.0
    %2095 = vmatpush1.msra.mxu0 0.0
    %2096 = vmatprep.subr.mxu0 0.0
    %2097 = vmatpush1.msra.mxu0 0.0
    %2098 = vmatprep.subr.mxu0 0.0
    %2099 = vmatpush1.msra.mxu0 0.0
    %2100 = vmatprep.subr.mxu0 0.0
    %2101 = vmatpush1.msra.mxu0 0.0
    %2102 = vmatprep.subr.mxu0 0.0
    %2103 = vmatpush1.msra.mxu0 0.0
    %2104 = vmatprep.subr.mxu0 0.0
    %2105 = vmatpush1.msra.mxu0 0.0
    %2106 = vmatprep.subr.mxu0 0.0
    %2107 = vmatpush1.msra.mxu0 0.0
    %2108 = vmatprep.subr.mxu0 0.0
    %2109 = vmatpush1.msra.mxu0 0.0
    %2110 = vmatprep.subr.mxu0 0.0
    %2111 = vmatpush1.msra.mxu0 0.0
    %2112 = vmatprep.subr.mxu0 0.0
    %2113 = vmatpush1.msra.mxu0 0.0
    %2114 = vmatprep.subr.mxu0 0.0
    %2115 = vmatpush1.msra.mxu0 0.0
    %2116 = vmatprep.subr.mxu0 0.0
    %2117 = vmatpush1.msra.mxu0 0.0
    %2118 = vmatprep.subr.mxu0 0.0
    %2119 = vmatpush1.msra.mxu0 0.0
    %2120 = vmatprep.subr.mxu0 0.0
    %2121 = vmatpush1.msra.mxu0 0.0
    %2122 = vmatprep.subr.mxu0 0.0
    %2123 = vmatpush1.msra.mxu0 0.0
    %2124 = vmatprep.subr.mxu0 0.0
    %2125 = vmatpush1.msra.mxu0 0.0
    %2126 = vmatprep.subr.mxu0 0.0
    %2127 = vmatpush1.msra.mxu0 0.0
    %2128 = vmatprep.subr.mxu0 0.0
    %2129 = vmatpush1.msra.mxu0 0.0
    %2130 = vmatprep.subr.mxu0 0.0
    %2131 = vmatpush1.msra.mxu0 0.0
    %2132 = vmatprep.subr.mxu0 0.0
    %2133 = vmatpush1.msra.mxu0 0.0
    %2134 = vmatprep.subr.mxu0 0.0
    %2135 = vmatpush1.msra.mxu0 0.0
    %2136 = vmatprep.subr.mxu0 0.0
    %2137 = vmatpush1.msra.mxu0 0.0
    %2138 = vmatprep.subr.mxu0 0.0
    %2139 = vmatpush1.msra.mxu0 0.0
    %2140 = vmatprep.subr.mxu0 0.0
    %2141 = vmatpush1.msra.mxu0 0.0
    %2142 = vmatprep.subr.mxu0 0.0
    %2143 = vmatpush1.msra.mxu0 0.0
    %2144 = vmatprep.subr.mxu0 0.0
    %2145 = vmatpush1.msra.mxu0 0.0
    %2146 = vmatprep.subr.mxu0 0.0
    %2147 = vmatpush1.msra.mxu0 0.0
    %2148 = vmatprep.mubr.f32.mxu0 0.0
    %2149 = vmatmul.mubr.f32.gmra.mrb[0].mxu0 %v2082
    %v2150 = vpop.f32.mrb[0].mxu0
    %v2151 = vadd.f32 0.0, %v2150
    %v2152 = vpop.f32.mrb[0].mxu0
    %2153 = vdwg.mxu0
    %2155 = vrot.lane.b32.xlu0 %v2151, 8
    %v2156 = vpop.permute.xlu0 %2155
    %2158 = vst.msk [vmem:[#allocation2] sm:$0xff] %vm541, %v2156
    %2159 = vrot.lane.b32.xlu0 %v1810, 112
    %v2160 = vpop.permute.xlu0 %2159
    %2161 = vrot.lane.b32.xlu0 %v1810, 80
    %v2162 = vpop.permute.xlu0 %2161
    %v2163 = vsel %vm205, %v2160, 0
    %v2165 = vsel %vm205, %v2162, 0
    %2167 = vmatprep.subr.mxu0 0.0
    %2168 = vmatpush1.xpose.msra.mxu0 %v2165
    %2169 = vmatprep.subr.mxu0 0.0
    %2170 = vmatpush1.xpose.msra.mxu0 0.0
    %2171 = vmatprep.subr.mxu0 0.0
    %2172 = vmatpush1.xpose.msra.mxu0 0.0
    %2173 = vmatprep.subr.mxu0 0.0
    %2174 = vmatpush1.xpose.msra.mxu0 0.0
    %2175 = vmatprep.subr.mxu0 0.0
    %2176 = vmatpush1.xpose.msra.mxu0 0.0
    %2177 = vmatprep.subr.mxu0 0.0
    %2178 = vmatpush1.xpose.msra.mxu0 0.0
    %2179 = vmatprep.subr.mxu0 0.0
    %2180 = vmatpush1.xpose.msra.mxu0 0.0
    %2181 = vmatprep.subr.mxu0 0.0
    %2182 = vmatpush1.xpose.msra.mxu0 0.0
    %2183 = vmatprep.subr.mxu0 0.0
    %2184 = vmatpush1.xpose.msra.mxu0 0.0
    %2185 = vmatprep.subr.mxu0 0.0
    %2186 = vmatpush1.xpose.msra.mxu0 0.0
    %2187 = vmatprep.subr.mxu0 0.0
    %2188 = vmatpush1.xpose.msra.mxu0 0.0
    %2189 = vmatprep.subr.mxu0 0.0
    %2190 = vmatpush1.xpose.msra.mxu0 0.0
    %2191 = vmatprep.subr.mxu0 0.0
    %2192 = vmatpush1.xpose.msra.mxu0 0.0
    %2193 = vmatprep.subr.mxu0 0.0
    %2194 = vmatpush1.xpose.msra.mxu0 0.0
    %2195 = vmatprep.subr.mxu0 0.0
    %2196 = vmatpush1.xpose.msra.mxu0 0.0
    %2197 = vmatprep.subr.mxu0 0.0
    %2198 = vmatpush1.xpose.msra.mxu0 0.0
    %2199 = vmatprep.subr.mxu0 0.0
    %2200 = vmatpush1.xpose.msra.mxu0 0.0
    %2201 = vmatprep.subr.mxu0 0.0
    %2202 = vmatpush1.xpose.msra.mxu0 0.0
    %2203 = vmatprep.subr.mxu0 0.0
    %2204 = vmatpush1.xpose.msra.mxu0 0.0
    %2205 = vmatprep.subr.mxu0 0.0
    %2206 = vmatpush1.xpose.msra.mxu0 0.0
    %2207 = vmatprep.subr.mxu0 0.0
    %2208 = vmatpush1.xpose.msra.mxu0 0.0
    %2209 = vmatprep.subr.mxu0 0.0
    %2210 = vmatpush1.xpose.msra.mxu0 0.0
    %2211 = vmatprep.subr.mxu0 0.0
    %2212 = vmatpush1.xpose.msra.mxu0 0.0
    %2213 = vmatprep.subr.mxu0 0.0
    %2214 = vmatpush1.xpose.msra.mxu0 0.0
    %2215 = vmatprep.subr.mxu0 0.0
    %2216 = vmatpush1.xpose.msra.mxu0 0.0
    %2217 = vmatprep.subr.mxu0 0.0
    %2218 = vmatpush1.xpose.msra.mxu0 0.0
    %2219 = vmatprep.subr.mxu0 0.0
    %2220 = vmatpush1.xpose.msra.mxu0 0.0
    %2221 = vmatprep.subr.mxu0 0.0
    %2222 = vmatpush1.xpose.msra.mxu0 0.0
    %2223 = vmatprep.subr.mxu0 0.0
    %2224 = vmatpush1.xpose.msra.mxu0 0.0
    %2225 = vmatprep.subr.mxu0 0.0
    %2226 = vmatpush1.xpose.msra.mxu0 0.0
    %2227 = vmatprep.subr.mxu0 0.0
    %2228 = vmatpush1.xpose.msra.mxu0 0.0
    %2229 = vmatprep.subr.mxu0 0.0
    %2230 = vmatpush1.xpose.msra.mxu0 0.0
    %2231 = vmatprep.mubr.f32.mxu0 0.0
    %2232 = vmatmul.mubr.f32.gmra.mrb[0].mxu0 %v2163
    %v2233 = vpop.f32.mrb[0].mxu0
    %v2234 = vadd.f32 0.0, %v2233
    %v2235 = vpop.f32.mrb[0].mxu0
    %2236 = vdwg.mxu0
    %v2237 = vmul.f32 %v2234, 0.35355338
    %v2238 = vadd.f32 %v2237, %v1819
    %v2239 = vsel %vm205, %v2238, -inf
    %2240 = vmax.xlane.f32.xlu0 %v2239
    %v2241 = vpop.xlane.xlu0 %2240
    %v2242 = vsub.f32 %v2238, %v2241
    %v2243 = vmul.f32 %v2242, 1.442695
    %v2244 = vpow.pop %v2243
    %v2245 = vsel %vm205, %v2244, 0.0
    %2246 = vadd.xlane.f32.xlu0 %v2245
    %v2247 = vpop.xlane.xlu0 %2246
    %v2248 = vrcp.pop %v2247
    %v2249 = vmul.f32 %v2244, %v2248
    %2250 = vrot.lane.b32.xlu0 %v1810, 48
    %v2251 = vpop.permute.xlu0 %2250
    %v2254 = vsel %vm205, %v2249, 0
    %2256 = vmatprep.subr.mxu0 0.0
    %2257 = vmatpush1.msra.mxu0 %v2251
    %2258 = vmatprep.subr.mxu0 0.0
    %2259 = vmatpush1.msra.mxu0 0.0
    %2260 = vmatprep.subr.mxu0 0.0
    %2261 = vmatpush1.msra.mxu0 0.0
    %2262 = vmatprep.subr.mxu0 0.0
    %2263 = vmatpush1.msra.mxu0 0.0
    %2264 = vmatprep.subr.mxu0 0.0
    %2265 = vmatpush1.msra.mxu0 0.0
    %2266 = vmatprep.subr.mxu0 0.0
    %2267 = vmatpush1.msra.mxu0 0.0
    %2268 = vmatprep.subr.mxu0 0.0
    %2269 = vmatpush1.msra.mxu0 0.0
    %2270 = vmatprep.subr.mxu0 0.0
    %2271 = vmatpush1.msra.mxu0 0.0
    %2272 = vmatprep.subr.mxu0 0.0
    %2273 = vmatpush1.msra.mxu0 0.0
    %2274 = vmatprep.subr.mxu0 0.0
    %2275 = vmatpush1.msra.mxu0 0.0
    %2276 = vmatprep.subr.mxu0 0.0
    %2277 = vmatpush1.msra.mxu0 0.0
    %2278 = vmatprep.subr.mxu0 0.0
    %2279 = vmatpush1.msra.mxu0 0.0
    %2280 = vmatprep.subr.mxu0 0.0
    %2281 = vmatpush1.msra.mxu0 0.0
    %2282 = vmatprep.subr.mxu0 0.0
    %2283 = vmatpush1.msra.mxu0 0.0
    %2284 = vmatprep.subr.mxu0 0.0
    %2285 = vmatpush1.msra.mxu0 0.0
    %2286 = vmatprep.subr.mxu0 0.0
    %2287 = vmatpush1.msra.mxu0 0.0
    %2288 = vmatprep.subr.mxu0 0.0
    %2289 = vmatpush1.msra.mxu0 0.0
    %2290 = vmatprep.subr.mxu0 0.0
    %2291 = vmatpush1.msra.mxu0 0.0
    %2292 = vmatprep.subr.mxu0 0.0
    %2293 = vmatpush1.msra.mxu0 0.0
    %2294 = vmatprep.subr.mxu0 0.0
    %2295 = vmatpush1.msra.mxu0 0.0
    %2296 = vmatprep.subr.mxu0 0.0
    %2297 = vmatpush1.msra.mxu0 0.0
    %2298 = vmatprep.subr.mxu0 0.0
    %2299 = vmatpush1.msra.mxu0 0.0
    %2300 = vmatprep.subr.mxu0 0.0
    %2301 = vmatpush1.msra.mxu0 0.0
    %2302 = vmatprep.subr.mxu0 0.0
    %2303 = vmatpush1.msra.mxu0 0.0
    %2304 = vmatprep.subr.mxu0 0.0
    %2305 = vmatpush1.msra.mxu0 0.0
    %2306 = vmatprep.subr.mxu0 0.0
    %2307 = vmatpush1.msra.mxu0 0.0
    %2308 = vmatprep.subr.mxu0 0.0
    %2309 = vmatpush1.msra.mxu0 0.0
    %2310 = vmatprep.subr.mxu0 0.0
    %2311 = vmatpush1.msra.mxu0 0.0
    %2312 = vmatprep.subr.mxu0 0.0
    %2313 = vmatpush1.msra.mxu0 0.0
    %2314 = vmatprep.subr.mxu0 0.0
    %2315 = vmatpush1.msra.mxu0 0.0
    %2316 = vmatprep.subr.mxu0 0.0
    %2317 = vmatpush1.msra.mxu0 0.0
    %2318 = vmatprep.subr.mxu0 0.0
    %2319 = vmatpush1.msra.mxu0 0.0
    %2320 = vmatprep.mubr.f32.mxu0 0.0
    %2321 = vmatmul.mubr.f32.gmra.mrb[0].mxu0 %v2254
    %v2322 = vpop.f32.mrb[0].mxu0
    %v2323 = vadd.f32 0.0, %v2322
    %v2324 = vpop.f32.mrb[0].mxu0
    %2325 = vdwg.mxu0
    %2327 = vrot.lane.b32.xlu0 %v2323, 16
    %v2328 = vpop.permute.xlu0 %2327
    %2330 = vst.msk [vmem:[#allocation2] sm:$0xff] %vm714, %v2328
    %2331 = vrot.lane.b32.xlu0 %v1810, 104
    %v2332 = vpop.permute.xlu0 %2331
    %2333 = vrot.lane.b32.xlu0 %v1810, 72
    %v2334 = vpop.permute.xlu0 %2333
    %v2335 = vsel %vm205, %v2332, 0
    %v2337 = vsel %vm205, %v2334, 0
    %2339 = vmatprep.subr.mxu0 0.0
    %2340 = vmatpush1.xpose.msra.mxu0 %v2337
    %2341 = vmatprep.subr.mxu0 0.0
    %2342 = vmatpush1.xpose.msra.mxu0 0.0
    %2343 = vmatprep.subr.mxu0 0.0
    %2344 = vmatpush1.xpose.msra.mxu0 0.0
    %2345 = vmatprep.subr.mxu0 0.0
    %2346 = vmatpush1.xpose.msra.mxu0 0.0
    %2347 = vmatprep.subr.mxu0 0.0
    %2348 = vmatpush1.xpose.msra.mxu0 0.0
    %2349 = vmatprep.subr.mxu0 0.0
    %2350 = vmatpush1.xpose.msra.mxu0 0.0
    %2351 = vmatprep.subr.mxu0 0.0
    %2352 = vmatpush1.xpose.msra.mxu0 0.0
    %2353 = vmatprep.subr.mxu0 0.0
    %2354 = vmatpush1.xpose.msra.mxu0 0.0
    %2355 = vmatprep.subr.mxu0 0.0
    %2356 = vmatpush1.xpose.msra.mxu0 0.0
    %2357 = vmatprep.subr.mxu0 0.0
    %2358 = vmatpush1.xpose.msra.mxu0 0.0
    %2359 = vmatprep.subr.mxu0 0.0
    %2360 = vmatpush1.xpose.msra.mxu0 0.0
    %2361 = vmatprep.subr.mxu0 0.0
    %2362 = vmatpush1.xpose.msra.mxu0 0.0
    %2363 = vmatprep.subr.mxu0 0.0
    %2364 = vmatpush1.xpose.msra.mxu0 0.0
    %2365 = vmatprep.subr.mxu0 0.0
    %2366 = vmatpush1.xpose.msra.mxu0 0.0
    %2367 = vmatprep.subr.mxu0 0.0
    %2368 = vmatpush1.xpose.msra.mxu0 0.0
    %2369 = vmatprep.subr.mxu0 0.0
    %2370 = vmatpush1.xpose.msra.mxu0 0.0
    %2371 = vmatprep.subr.mxu0 0.0
    %2372 = vmatpush1.xpose.msra.mxu0 0.0
    %2373 = vmatprep.subr.mxu0 0.0
    %2374 = vmatpush1.xpose.msra.mxu0 0.0
    %2375 = vmatprep.subr.mxu0 0.0
    %2376 = vmatpush1.xpose.msra.mxu0 0.0
    %2377 = vmatprep.subr.mxu0 0.0
    %2378 = vmatpush1.xpose.msra.mxu0 0.0
    %2379 = vmatprep.subr.mxu0 0.0
    %2380 = vmatpush1.xpose.msra.mxu0 0.0
    %2381 = vmatprep.subr.mxu0 0.0
    %2382 = vmatpush1.xpose.msra.mxu0 0.0
    %2383 = vmatprep.subr.mxu0 0.0
    %2384 = vmatpush1.xpose.msra.mxu0 0.0
    %2385 = vmatprep.subr.mxu0 0.0
    %2386 = vmatpush1.xpose.msra.mxu0 0.0
    %2387 = vmatprep.subr.mxu0 0.0
    %2388 = vmatpush1.xpose.msra.mxu0 0.0
    %2389 = vmatprep.subr.mxu0 0.0
    %2390 = vmatpush1.xpose.msra.mxu0 0.0
    %2391 = vmatprep.subr.mxu0 0.0
    %2392 = vmatpush1.xpose.msra.mxu0 0.0
    %2393 = vmatprep.subr.mxu0 0.0
    %2394 = vmatpush1.xpose.msra.mxu0 0.0
    %2395 = vmatprep.subr.mxu0 0.0
    %2396 = vmatpush1.xpose.msra.mxu0 0.0
    %2397 = vmatprep.subr.mxu0 0.0
    %2398 = vmatpush1.xpose.msra.mxu0 0.0
    %2399 = vmatprep.subr.mxu0 0.0
    %2400 = vmatpush1.xpose.msra.mxu0 0.0
    %2401 = vmatprep.subr.mxu0 0.0
    %2402 = vmatpush1.xpose.msra.mxu0 0.0
    %2403 = vmatprep.mubr.f32.mxu0 0.0
    %2404 = vmatmul.mubr.f32.gmra.mrb[0].mxu0 %v2335
    %v2405 = vpop.f32.mrb[0].mxu0
    %v2406 = vadd.f32 0.0, %v2405
    %v2407 = vpop.f32.mrb[0].mxu0
    %2408 = vdwg.mxu0
    %v2409 = vmul.f32 %v2406, 0.35355338
    %v2410 = vadd.f32 %v2409, %v1819
    %v2411 = vsel %vm205, %v2410, -inf
    %2412 = vmax.xlane.f32.xlu0 %v2411
    %v2413 = vpop.xlane.xlu0 %2412
    %v2414 = vsub.f32 %v2410, %v2413
    %v2415 = vmul.f32 %v2414, 1.442695
    %v2416 = vpow.pop %v2415
    %v2417 = vsel %vm205, %v2416, 0.0
    %2418 = vadd.xlane.f32.xlu0 %v2417
    %v2419 = vpop.xlane.xlu0 %2418
    %v2420 = vrcp.pop %v2419
    %v2421 = vmul.f32 %v2416, %v2420
    %2422 = vrot.lane.b32.xlu0 %v1810, 40
    %v2423 = vpop.permute.xlu0 %2422
    %v2426 = vsel %vm205, %v2421, 0
    %2428 = vmatprep.subr.mxu0 0.0
    %2429 = vmatpush1.msra.mxu0 %v2423
    %2430 = vmatprep.subr.mxu0 0.0
    %2431 = vmatpush1.msra.mxu0 0.0
    %2432 = vmatprep.subr.mxu0 0.0
    %2433 = vmatpush1.msra.mxu0 0.0
    %2434 = vmatprep.subr.mxu0 0.0
    %2435 = vmatpush1.msra.mxu0 0.0
    %2436 = vmatprep.subr.mxu0 0.0
    %2437 = vmatpush1.msra.mxu0 0.0
    %2438 = vmatprep.subr.mxu0 0.0
    %2439 = vmatpush1.msra.mxu0 0.0
    %2440 = vmatprep.subr.mxu0 0.0
    %2441 = vmatpush1.msra.mxu0 0.0
    %2442 = vmatprep.subr.mxu0 0.0
    %2443 = vmatpush1.msra.mxu0 0.0
    %2444 = vmatprep.subr.mxu0 0.0
    %2445 = vmatpush1.msra.mxu0 0.0
    %2446 = vmatprep.subr.mxu0 0.0
    %2447 = vmatpush1.msra.mxu0 0.0
    %2448 = vmatprep.subr.mxu0 0.0
    %2449 = vmatpush1.msra.mxu0 0.0
    %2450 = vmatprep.subr.mxu0 0.0
    %2451 = vmatpush1.msra.mxu0 0.0
    %2452 = vmatprep.subr.mxu0 0.0
    %2453 = vmatpush1.msra.mxu0 0.0
    %2454 = vmatprep.subr.mxu0 0.0
    %2455 = vmatpush1.msra.mxu0 0.0
    %2456 = vmatprep.subr.mxu0 0.0
    %2457 = vmatpush1.msra.mxu0 0.0
    %2458 = vmatprep.subr.mxu0 0.0
    %2459 = vmatpush1.msra.mxu0 0.0
    %2460 = vmatprep.subr.mxu0 0.0
    %2461 = vmatpush1.msra.mxu0 0.0
    %2462 = vmatprep.subr.mxu0 0.0
    %2463 = vmatpush1.msra.mxu0 0.0
    %2464 = vmatprep.subr.mxu0 0.0
    %2465 = vmatpush1.msra.mxu0 0.0
    %2466 = vmatprep.subr.mxu0 0.0
    %2467 = vmatpush1.msra.mxu0 0.0
    %2468 = vmatprep.subr.mxu0 0.0
    %2469 = vmatpush1.msra.mxu0 0.0
    %2470 = vmatprep.subr.mxu0 0.0
    %2471 = vmatpush1.msra.mxu0 0.0
    %2472 = vmatprep.subr.mxu0 0.0
    %2473 = vmatpush1.msra.mxu0 0.0
    %2474 = vmatprep.subr.mxu0 0.0
    %2475 = vmatpush1.msra.mxu0 0.0
    %2476 = vmatprep.subr.mxu0 0.0
    %2477 = vmatpush1.msra.mxu0 0.0
    %2478 = vmatprep.subr.mxu0 0.0
    %2479 = vmatpush1.msra.mxu0 0.0
    %2480 = vmatprep.subr.mxu0 0.0
    %2481 = vmatpush1.msra.mxu0 0.0
    %2482 = vmatprep.subr.mxu0 0.0
    %2483 = vmatpush1.msra.mxu0 0.0
    %2484 = vmatprep.subr.mxu0 0.0
    %2485 = vmatpush1.msra.mxu0 0.0
    %2486 = vmatprep.subr.mxu0 0.0
    %2487 = vmatpush1.msra.mxu0 0.0
    %2488 = vmatprep.subr.mxu0 0.0
    %2489 = vmatpush1.msra.mxu0 0.0
    %2490 = vmatprep.subr.mxu0 0.0
    %2491 = vmatpush1.msra.mxu0 0.0
    %2492 = vmatprep.mubr.f32.mxu0 0.0
    %2493 = vmatmul.mubr.f32.gmra.mrb[0].mxu0 %v2426
    %v2494 = vpop.f32.mrb[0].mxu0
    %v2495 = vadd.f32 0.0, %v2494
    %v2496 = vpop.f32.mrb[0].mxu0
    %2497 = vdwg.mxu0
    %2499 = vrot.lane.b32.xlu0 %v2495, 24
    %v2500 = vpop.permute.xlu0 %2499
    %2502 = vst.msk [vmem:[#allocation2] sm:$0xff] %vm887, %v2500
    %s2503 = scalar_lea.vmem %s2, 24
    %v2504 = vld [vmem:[%s2503] sm:$0xff]
    %2506 = vrot.lane.b32.xlu0 %v1815, 96
    %v2507 = vpop.permute.xlu0 %2506
    %v2508 = vsel %vm205, %v1815, 0
    %v2510 = vsel %vm205, %v2507, 0
    %2512 = vmatprep.subr.mxu0 0.0
    %2513 = vmatpush1.xpose.msra.mxu0 %v2510
    %2514 = vmatprep.subr.mxu0 0.0
    %2515 = vmatpush1.xpose.msra.mxu0 0.0
    %2516 = vmatprep.subr.mxu0 0.0
    %2517 = vmatpush1.xpose.msra.mxu0 0.0
    %2518 = vmatprep.subr.mxu0 0.0
    %2519 = vmatpush1.xpose.msra.mxu0 0.0
    %2520 = vmatprep.subr.mxu0 0.0
    %2521 = vmatpush1.xpose.msra.mxu0 0.0
    %2522 = vmatprep.subr.mxu0 0.0
    %2523 = vmatpush1.xpose.msra.mxu0 0.0
    %2524 = vmatprep.subr.mxu0 0.0
    %2525 = vmatpush1.xpose.msra.mxu0 0.0
    %2526 = vmatprep.subr.mxu0 0.0
    %2527 = vmatpush1.xpose.msra.mxu0 0.0
    %2528 = vmatprep.subr.mxu0 0.0
    %2529 = vmatpush1.xpose.msra.mxu0 0.0
    %2530 = vmatprep.subr.mxu0 0.0
    %2531 = vmatpush1.xpose.msra.mxu0 0.0
    %2532 = vmatprep.subr.mxu0 0.0
    %2533 = vmatpush1.xpose.msra.mxu0 0.0
    %2534 = vmatprep.subr.mxu0 0.0
    %2535 = vmatpush1.xpose.msra.mxu0 0.0
    %2536 = vmatprep.subr.mxu0 0.0
    %2537 = vmatpush1.xpose.msra.mxu0 0.0
    %2538 = vmatprep.subr.mxu0 0.0
    %2539 = vmatpush1.xpose.msra.mxu0 0.0
    %2540 = vmatprep.subr.mxu0 0.0
    %2541 = vmatpush1.xpose.msra.mxu0 0.0
    %2542 = vmatprep.subr.mxu0 0.0
    %2543 = vmatpush1.xpose.msra.mxu0 0.0
    %2544 = vmatprep.subr.mxu0 0.0
    %2545 = vmatpush1.xpose.msra.mxu0 0.0
    %2546 = vmatprep.subr.mxu0 0.0
    %2547 = vmatpush1.xpose.msra.mxu0 0.0
    %2548 = vmatprep.subr.mxu0 0.0
    %2549 = vmatpush1.xpose.msra.mxu0 0.0
    %2550 = vmatprep.subr.mxu0 0.0
    %2551 = vmatpush1.xpose.msra.mxu0 0.0
    %2552 = vmatprep.subr.mxu0 0.0
    %2553 = vmatpush1.xpose.msra.mxu0 0.0
    %2554 = vmatprep.subr.mxu0 0.0
    %2555 = vmatpush1.xpose.msra.mxu0 0.0
    %2556 = vmatprep.subr.mxu0 0.0
    %2557 = vmatpush1.xpose.msra.mxu0 0.0
    %2558 = vmatprep.subr.mxu0 0.0
    %2559 = vmatpush1.xpose.msra.mxu0 0.0
    %2560 = vmatprep.subr.mxu0 0.0
    %2561 = vmatpush1.xpose.msra.mxu0 0.0
    %2562 = vmatprep.subr.mxu0 0.0
    %2563 = vmatpush1.xpose.msra.mxu0 0.0
    %2564 = vmatprep.subr.mxu0 0.0
    %2565 = vmatpush1.xpose.msra.mxu0 0.0
    %2566 = vmatprep.subr.mxu0 0.0
    %2567 = vmatpush1.xpose.msra.mxu0 0.0
    %2568 = vmatprep.subr.mxu0 0.0
    %2569 = vmatpush1.xpose.msra.mxu0 0.0
    %2570 = vmatprep.subr.mxu0 0.0
    %2571 = vmatpush1.xpose.msra.mxu0 0.0
    %2572 = vmatprep.subr.mxu0 0.0
    %2573 = vmatpush1.xpose.msra.mxu0 0.0
    %2574 = vmatprep.subr.mxu0 0.0
    %2575 = vmatpush1.xpose.msra.mxu0 0.0
    %2576 = vmatprep.mubr.f32.mxu0 0.0
    %2577 = vmatmul.mubr.f32.gmra.mrb[0].mxu0 %v2508
    %v2578 = vpop.f32.mrb[0].mxu0
    %v2579 = vadd.f32 0.0, %v2578
    %v2580 = vpop.f32.mrb[0].mxu0
    %2581 = vdwg.mxu0
    %v2582 = vmul.f32 %v2579, 0.35355338
    %v2583 = vadd.f32 %v2582, %v2504
    %v2584 = vsel %vm205, %v2583, -inf
    %2585 = vmax.xlane.f32.xlu0 %v2584
    %v2586 = vpop.xlane.xlu0 %2585
    %v2587 = vsub.f32 %v2583, %v2586
    %v2588 = vmul.f32 %v2587, 1.442695
    %v2589 = vpow.pop %v2588
    %v2590 = vsel %vm205, %v2589, 0.0
    %2591 = vadd.xlane.f32.xlu0 %v2590
    %v2592 = vpop.xlane.xlu0 %2591
    %v2593 = vrcp.pop %v2592
    %v2594 = vmul.f32 %v2589, %v2593
    %2595 = vrot.lane.b32.xlu0 %v1815, 64
    %v2596 = vpop.permute.xlu0 %2595
    %v2599 = vsel %vm205, %v2594, 0
    %2601 = vmatprep.subr.mxu0 0.0
    %2602 = vmatpush1.msra.mxu0 %v2596
    %2603 = vmatprep.subr.mxu0 0.0
    %2604 = vmatpush1.msra.mxu0 0.0
    %2605 = vmatprep.subr.mxu0 0.0
    %2606 = vmatpush1.msra.mxu0 0.0
    %2607 = vmatprep.subr.mxu0 0.0
    %2608 = vmatpush1.msra.mxu0 0.0
    %2609 = vmatprep.subr.mxu0 0.0
    %2610 = vmatpush1.msra.mxu0 0.0
    %2611 = vmatprep.subr.mxu0 0.0
    %2612 = vmatpush1.msra.mxu0 0.0
    %2613 = vmatprep.subr.mxu0 0.0
    %2614 = vmatpush1.msra.mxu0 0.0
    %2615 = vmatprep.subr.mxu0 0.0
    %2616 = vmatpush1.msra.mxu0 0.0
    %2617 = vmatprep.subr.mxu0 0.0
    %2618 = vmatpush1.msra.mxu0 0.0
    %2619 = vmatprep.subr.mxu0 0.0
    %2620 = vmatpush1.msra.mxu0 0.0
    %2621 = vmatprep.subr.mxu0 0.0
    %2622 = vmatpush1.msra.mxu0 0.0
    %2623 = vmatprep.subr.mxu0 0.0
    %2624 = vmatpush1.msra.mxu0 0.0
    %2625 = vmatprep.subr.mxu0 0.0
    %2626 = vmatpush1.msra.mxu0 0.0
    %2627 = vmatprep.subr.mxu0 0.0
    %2628 = vmatpush1.msra.mxu0 0.0
    %2629 = vmatprep.subr.mxu0 0.0
    %2630 = vmatpush1.msra.mxu0 0.0
    %2631 = vmatprep.subr.mxu0 0.0
    %2632 = vmatpush1.msra.mxu0 0.0
    %2633 = vmatprep.subr.mxu0 0.0
    %2634 = vmatpush1.msra.mxu0 0.0
    %2635 = vmatprep.subr.mxu0 0.0
    %2636 = vmatpush1.msra.mxu0 0.0
    %2637 = vmatprep.subr.mxu0 0.0
    %2638 = vmatpush1.msra.mxu0 0.0
    %2639 = vmatprep.subr.mxu0 0.0
    %2640 = vmatpush1.msra.mxu0 0.0
    %2641 = vmatprep.subr.mxu0 0.0
    %2642 = vmatpush1.msra.mxu0 0.0
    %2643 = vmatprep.subr.mxu0 0.0
    %2644 = vmatpush1.msra.mxu0 0.0
    %2645 = vmatprep.subr.mxu0 0.0
    %2646 = vmatpush1.msra.mxu0 0.0
    %2647 = vmatprep.subr.mxu0 0.0
    %2648 = vmatpush1.msra.mxu0 0.0
    %2649 = vmatprep.subr.mxu0 0.0
    %2650 = vmatpush1.msra.mxu0 0.0
    %2651 = vmatprep.subr.mxu0 0.0
    %2652 = vmatpush1.msra.mxu0 0.0
    %2653 = vmatprep.subr.mxu0 0.0
    %2654 = vmatpush1.msra.mxu0 0.0
    %2655 = vmatprep.subr.mxu0 0.0
    %2656 = vmatpush1.msra.mxu0 0.0
    %2657 = vmatprep.subr.mxu0 0.0
    %2658 = vmatpush1.msra.mxu0 0.0
    %2659 = vmatprep.subr.mxu0 0.0
    %2660 = vmatpush1.msra.mxu0 0.0
    %2661 = vmatprep.subr.mxu0 0.0
    %2662 = vmatpush1.msra.mxu0 0.0
    %2663 = vmatprep.subr.mxu0 0.0
    %2664 = vmatpush1.msra.mxu0 0.0
    %2665 = vmatprep.mubr.f32.mxu0 0.0
    %2666 = vmatmul.mubr.f32.gmra.mrb[0].mxu0 %v2599
    %v2667 = vpop.f32.mrb[0].mxu0
    %v2668 = vadd.f32 0.0, %v2667
    %v2669 = vpop.f32.mrb[0].mxu0
    %2670 = vdwg.mxu0
    %2671 = vst.msk [vmem:[#allocation2 + $0x8] sm:$0xff] %vm205, %v2668
    %2672 = vrot.lane.b32.xlu0 %v1815, 120
    %v2673 = vpop.permute.xlu0 %2672
    %2674 = vrot.lane.b32.xlu0 %v1815, 88
    %v2675 = vpop.permute.xlu0 %2674
    %v2676 = vsel %vm205, %v2673, 0
    %v2678 = vsel %vm205, %v2675, 0
    %2680 = vmatprep.subr.mxu0 0.0
    %2681 = vmatpush1.xpose.msra.mxu0 %v2678
    %2682 = vmatprep.subr.mxu0 0.0
    %2683 = vmatpush1.xpose.msra.mxu0 0.0
    %2684 = vmatprep.subr.mxu0 0.0
    %2685 = vmatpush1.xpose.msra.mxu0 0.0
    %2686 = vmatprep.subr.mxu0 0.0
    %2687 = vmatpush1.xpose.msra.mxu0 0.0
    %2688 = vmatprep.subr.mxu0 0.0
    %2689 = vmatpush1.xpose.msra.mxu0 0.0
    %2690 = vmatprep.subr.mxu0 0.0
    %2691 = vmatpush1.xpose.msra.mxu0 0.0
    %2692 = vmatprep.subr.mxu0 0.0
    %2693 = vmatpush1.xpose.msra.mxu0 0.0
    %2694 = vmatprep.subr.mxu0 0.0
    %2695 = vmatpush1.xpose.msra.mxu0 0.0
    %2696 = vmatprep.subr.mxu0 0.0
    %2697 = vmatpush1.xpose.msra.mxu0 0.0
    %2698 = vmatprep.subr.mxu0 0.0
    %2699 = vmatpush1.xpose.msra.mxu0 0.0
    %2700 = vmatprep.subr.mxu0 0.0
    %2701 = vmatpush1.xpose.msra.mxu0 0.0
    %2702 = vmatprep.subr.mxu0 0.0
    %2703 = vmatpush1.xpose.msra.mxu0 0.0
    %2704 = vmatprep.subr.mxu0 0.0
    %2705 = vmatpush1.xpose.msra.mxu0 0.0
    %2706 = vmatprep.subr.mxu0 0.0
    %2707 = vmatpush1.xpose.msra.mxu0 0.0
    %2708 = vmatprep.subr.mxu0 0.0
    %2709 = vmatpush1.xpose.msra.mxu0 0.0
    %2710 = vmatprep.subr.mxu0 0.0
    %2711 = vmatpush1.xpose.msra.mxu0 0.0
    %2712 = vmatprep.subr.mxu0 0.0
    %2713 = vmatpush1.xpose.msra.mxu0 0.0
    %2714 = vmatprep.subr.mxu0 0.0
    %2715 = vmatpush1.xpose.msra.mxu0 0.0
    %2716 = vmatprep.subr.mxu0 0.0
    %2717 = vmatpush1.xpose.msra.mxu0 0.0
    %2718 = vmatprep.subr.mxu0 0.0
    %2719 = vmatpush1.xpose.msra.mxu0 0.0
    %2720 = vmatprep.subr.mxu0 0.0
    %2721 = vmatpush1.xpose.msra.mxu0 0.0
    %2722 = vmatprep.subr.mxu0 0.0
    %2723 = vmatpush1.xpose.msra.mxu0 0.0
    %2724 = vmatprep.subr.mxu0 0.0
    %2725 = vmatpush1.xpose.msra.mxu0 0.0
    %2726 = vmatprep.subr.mxu0 0.0
    %2727 = vmatpush1.xpose.msra.mxu0 0.0
    %2728 = vmatprep.subr.mxu0 0.0
    %2729 = vmatpush1.xpose.msra.mxu0 0.0
    %2730 = vmatprep.subr.mxu0 0.0
    %2731 = vmatpush1.xpose.msra.mxu0 0.0
    %2732 = vmatprep.subr.mxu0 0.0
    %2733 = vmatpush1.xpose.msra.mxu0 0.0
    %2734 = vmatprep.subr.mxu0 0.0
    %2735 = vmatpush1.xpose.msra.mxu0 0.0
    %2736 = vmatprep.subr.mxu0 0.0
    %2737 = vmatpush1.xpose.msra.mxu0 0.0
    %2738 = vmatprep.subr.mxu0 0.0
    %2739 = vmatpush1.xpose.msra.mxu0 0.0
    %2740 = vmatprep.subr.mxu0 0.0
    %2741 = vmatpush1.xpose.msra.mxu0 0.0
    %2742 = vmatprep.subr.mxu0 0.0
    %2743 = vmatpush1.xpose.msra.mxu0 0.0
    %2744 = vmatprep.mubr.f32.mxu0 0.0
    %2745 = vmatmul.mubr.f32.gmra.mrb[0].mxu0 %v2676
    %v2746 = vpop.f32.mrb[0].mxu0
    %v2747 = vadd.f32 0.0, %v2746
    %v2748 = vpop.f32.mrb[0].mxu0
    %2749 = vdwg.mxu0
    %v2750 = vmul.f32 %v2747, 0.35355338
    %v2751 = vadd.f32 %v2750, %v2504
    %v2752 = vsel %vm205, %v2751, -inf
    %2753 = vmax.xlane.f32.xlu0 %v2752
    %v2754 = vpop.xlane.xlu0 %2753
    %v2755 = vsub.f32 %v2751, %v2754
    %v2756 = vmul.f32 %v2755, 1.442695
    %v2757 = vpow.pop %v2756
    %v2758 = vsel %vm205, %v2757, 0.0
    %2759 = vadd.xlane.f32.xlu0 %v2758
    %v2760 = vpop.xlane.xlu0 %2759
    %v2761 = vrcp.pop %v2760
    %v2762 = vmul.f32 %v2757, %v2761
    %2763 = vrot.lane.b32.xlu0 %v1815, 56
    %v2764 = vpop.permute.xlu0 %2763
    %v2767 = vsel %vm205, %v2762, 0
    %2769 = vmatprep.subr.mxu0 0.0
    %2770 = vmatpush1.msra.mxu0 %v2764
    %2771 = vmatprep.subr.mxu0 0.0
    %2772 = vmatpush1.msra.mxu0 0.0
    %2773 = vmatprep.subr.mxu0 0.0
    %2774 = vmatpush1.msra.mxu0 0.0
    %2775 = vmatprep.subr.mxu0 0.0
    %2776 = vmatpush1.msra.mxu0 0.0
    %2777 = vmatprep.subr.mxu0 0.0
    %2778 = vmatpush1.msra.mxu0 0.0
    %2779 = vmatprep.subr.mxu0 0.0
    %2780 = vmatpush1.msra.mxu0 0.0
    %2781 = vmatprep.subr.mxu0 0.0
    %2782 = vmatpush1.msra.mxu0 0.0
    %2783 = vmatprep.subr.mxu0 0.0
    %2784 = vmatpush1.msra.mxu0 0.0
    %2785 = vmatprep.subr.mxu0 0.0
    %2786 = vmatpush1.msra.mxu0 0.0
    %2787 = vmatprep.subr.mxu0 0.0
    %2788 = vmatpush1.msra.mxu0 0.0
    %2789 = vmatprep.subr.mxu0 0.0
    %2790 = vmatpush1.msra.mxu0 0.0
    %2791 = vmatprep.subr.mxu0 0.0
    %2792 = vmatpush1.msra.mxu0 0.0
    %2793 = vmatprep.subr.mxu0 0.0
    %2794 = vmatpush1.msra.mxu0 0.0
    %2795 = vmatprep.subr.mxu0 0.0
    %2796 = vmatpush1.msra.mxu0 0.0
    %2797 = vmatprep.subr.mxu0 0.0
    %2798 = vmatpush1.msra.mxu0 0.0
    %2799 = vmatprep.subr.mxu0 0.0
    %2800 = vmatpush1.msra.mxu0 0.0
    %2801 = vmatprep.subr.mxu0 0.0
    %2802 = vmatpush1.msra.mxu0 0.0
    %2803 = vmatprep.subr.mxu0 0.0
    %2804 = vmatpush1.msra.mxu0 0.0
    %2805 = vmatprep.subr.mxu0 0.0
    %2806 = vmatpush1.msra.mxu0 0.0
    %2807 = vmatprep.subr.mxu0 0.0
    %2808 = vmatpush1.msra.mxu0 0.0
    %2809 = vmatprep.subr.mxu0 0.0
    %2810 = vmatpush1.msra.mxu0 0.0
    %2811 = vmatprep.subr.mxu0 0.0
    %2812 = vmatpush1.msra.mxu0 0.0
    %2813 = vmatprep.subr.mxu0 0.0
    %2814 = vmatpush1.msra.mxu0 0.0
    %2815 = vmatprep.subr.mxu0 0.0
    %2816 = vmatpush1.msra.mxu0 0.0
    %2817 = vmatprep.subr.mxu0 0.0
    %2818 = vmatpush1.msra.mxu0 0.0
    %2819 = vmatprep.subr.mxu0 0.0
    %2820 = vmatpush1.msra.mxu0 0.0
    %2821 = vmatprep.subr.mxu0 0.0
    %2822 = vmatpush1.msra.mxu0 0.0
    %2823 = vmatprep.subr.mxu0 0.0
    %2824 = vmatpush1.msra.mxu0 0.0
    %2825 = vmatprep.subr.mxu0 0.0
    %2826 = vmatpush1.msra.mxu0 0.0
    %2827 = vmatprep.subr.mxu0 0.0
    %2828 = vmatpush1.msra.mxu0 0.0
    %2829 = vmatprep.subr.mxu0 0.0
    %2830 = vmatpush1.msra.mxu0 0.0
    %2831 = vmatprep.subr.mxu0 0.0
    %2832 = vmatpush1.msra.mxu0 0.0
    %2833 = vmatprep.mubr.f32.mxu0 0.0
    %2834 = vmatmul.mubr.f32.gmra.mrb[0].mxu0 %v2767
    %v2835 = vpop.f32.mrb[0].mxu0
    %v2836 = vadd.f32 0.0, %v2835
    %v2837 = vpop.f32.mrb[0].mxu0
    %2838 = vdwg.mxu0
    %2840 = vrot.lane.b32.xlu0 %v2836, 8
    %v2841 = vpop.permute.xlu0 %2840
    %2843 = vst.msk [vmem:[#allocation2 + $0x8] sm:$0xff] %vm541, %v2841
    %2844 = vrot.lane.b32.xlu0 %v1815, 112
    %v2845 = vpop.permute.xlu0 %2844
    %2846 = vrot.lane.b32.xlu0 %v1815, 80
    %v2847 = vpop.permute.xlu0 %2846
    %v2848 = vsel %vm205, %v2845, 0
    %v2850 = vsel %vm205, %v2847, 0
    %2852 = vmatprep.subr.mxu0 0.0
    %2853 = vmatpush1.xpose.msra.mxu0 %v2850
    %2854 = vmatprep.subr.mxu0 0.0
    %2855 = vmatpush1.xpose.msra.mxu0 0.0
    %2856 = vmatprep.subr.mxu0 0.0
    %2857 = vmatpush1.xpose.msra.mxu0 0.0
    %2858 = vmatprep.subr.mxu0 0.0
    %2859 = vmatpush1.xpose.msra.mxu0 0.0
    %2860 = vmatprep.subr.mxu0 0.0
    %2861 = vmatpush1.xpose.msra.mxu0 0.0
    %2862 = vmatprep.subr.mxu0 0.0
    %2863 = vmatpush1.xpose.msra.mxu0 0.0
    %2864 = vmatprep.subr.mxu0 0.0
    %2865 = vmatpush1.xpose.msra.mxu0 0.0
    %2866 = vmatprep.subr.mxu0 0.0
    %2867 = vmatpush1.xpose.msra.mxu0 0.0
    %2868 = vmatprep.subr.mxu0 0.0
    %2869 = vmatpush1.xpose.msra.mxu0 0.0
    %2870 = vmatprep.subr.mxu0 0.0
    %2871 = vmatpush1.xpose.msra.mxu0 0.0
    %2872 = vmatprep.subr.mxu0 0.0
    %2873 = vmatpush1.xpose.msra.mxu0 0.0
    %2874 = vmatprep.subr.mxu0 0.0
    %2875 = vmatpush1.xpose.msra.mxu0 0.0
    %2876 = vmatprep.subr.mxu0 0.0
    %2877 = vmatpush1.xpose.msra.mxu0 0.0
    %2878 = vmatprep.subr.mxu0 0.0
    %2879 = vmatpush1.xpose.msra.mxu0 0.0
    %2880 = vmatprep.subr.mxu0 0.0
    %2881 = vmatpush1.xpose.msra.mxu0 0.0
    %2882 = vmatprep.subr.mxu0 0.0
    %2883 = vmatpush1.xpose.msra.mxu0 0.0
    %2884 = vmatprep.subr.mxu0 0.0
    %2885 = vmatpush1.xpose.msra.mxu0 0.0
    %2886 = vmatprep.subr.mxu0 0.0
    %2887 = vmatpush1.xpose.msra.mxu0 0.0
    %2888 = vmatprep.subr.mxu0 0.0
    %2889 = vmatpush1.xpose.msra.mxu0 0.0
    %2890 = vmatprep.subr.mxu0 0.0
    %2891 = vmatpush1.xpose.msra.mxu0 0.0
    %2892 = vmatprep.subr.mxu0 0.0
    %2893 = vmatpush1.xpose.msra.mxu0 0.0
    %2894 = vmatprep.subr.mxu0 0.0
    %2895 = vmatpush1.xpose.msra.mxu0 0.0
    %2896 = vmatprep.subr.mxu0 0.0
    %2897 = vmatpush1.xpose.msra.mxu0 0.0
    %2898 = vmatprep.subr.mxu0 0.0
    %2899 = vmatpush1.xpose.msra.mxu0 0.0
    %2900 = vmatprep.subr.mxu0 0.0
    %2901 = vmatpush1.xpose.msra.mxu0 0.0
    %2902 = vmatprep.subr.mxu0 0.0
    %2903 = vmatpush1.xpose.msra.mxu0 0.0
    %2904 = vmatprep.subr.mxu0 0.0
    %2905 = vmatpush1.xpose.msra.mxu0 0.0
    %2906 = vmatprep.subr.mxu0 0.0
    %2907 = vmatpush1.xpose.msra.mxu0 0.0
    %2908 = vmatprep.subr.mxu0 0.0
    %2909 = vmatpush1.xpose.msra.mxu0 0.0
    %2910 = vmatprep.subr.mxu0 0.0
    %2911 = vmatpush1.xpose.msra.mxu0 0.0
    %2912 = vmatprep.subr.mxu0 0.0
    %2913 = vmatpush1.xpose.msra.mxu0 0.0
    %2914 = vmatprep.subr.mxu0 0.0
    %2915 = vmatpush1.xpose.msra.mxu0 0.0
    %2916 = vmatprep.mubr.f32.mxu0 0.0
    %2917 = vmatmul.mubr.f32.gmra.mrb[0].mxu0 %v2848
    %v2918 = vpop.f32.mrb[0].mxu0
    %v2919 = vadd.f32 0.0, %v2918
    %v2920 = vpop.f32.mrb[0].mxu0
    %2921 = vdwg.mxu0
    %v2922 = vmul.f32 %v2919, 0.35355338
    %v2923 = vadd.f32 %v2922, %v2504
    %v2924 = vsel %vm205, %v2923, -inf
    %2925 = vmax.xlane.f32.xlu0 %v2924
    %v2926 = vpop.xlane.xlu0 %2925
    %v2927 = vsub.f32 %v2923, %v2926
    %v2928 = vmul.f32 %v2927, 1.442695
    %v2929 = vpow.pop %v2928
    %v2930 = vsel %vm205, %v2929, 0.0
    %2931 = vadd.xlane.f32.xlu0 %v2930
    %v2932 = vpop.xlane.xlu0 %2931
    %v2933 = vrcp.pop %v2932
    %v2934 = vmul.f32 %v2929, %v2933
    %2935 = vrot.lane.b32.xlu0 %v1815, 48
    %v2936 = vpop.permute.xlu0 %2935
    %v2939 = vsel %vm205, %v2934, 0
    %2941 = vmatprep.subr.mxu0 0.0
    %2942 = vmatpush1.msra.mxu0 %v2936
    %2943 = vmatprep.subr.mxu0 0.0
    %2944 = vmatpush1.msra.mxu0 0.0
    %2945 = vmatprep.subr.mxu0 0.0
    %2946 = vmatpush1.msra.mxu0 0.0
    %2947 = vmatprep.subr.mxu0 0.0
    %2948 = vmatpush1.msra.mxu0 0.0
    %2949 = vmatprep.subr.mxu0 0.0
    %2950 = vmatpush1.msra.mxu0 0.0
    %2951 = vmatprep.subr.mxu0 0.0
    %2952 = vmatpush1.msra.mxu0 0.0
    %2953 = vmatprep.subr.mxu0 0.0
    %2954 = vmatpush1.msra.mxu0 0.0
    %2955 = vmatprep.subr.mxu0 0.0
    %2956 = vmatpush1.msra.mxu0 0.0
    %2957 = vmatprep.subr.mxu0 0.0
    %2958 = vmatpush1.msra.mxu0 0.0
    %2959 = vmatprep.subr.mxu0 0.0
    %2960 = vmatpush1.msra.mxu0 0.0
    %2961 = vmatprep.subr.mxu0 0.0
    %2962 = vmatpush1.msra.mxu0 0.0
    %2963 = vmatprep.subr.mxu0 0.0
    %2964 = vmatpush1.msra.mxu0 0.0
    %2965 = vmatprep.subr.mxu0 0.0
    %2966 = vmatpush1.msra.mxu0 0.0
    %2967 = vmatprep.subr.mxu0 0.0
    %2968 = vmatpush1.msra.mxu0 0.0
    %2969 = vmatprep.subr.mxu0 0.0
    %2970 = vmatpush1.msra.mxu0 0.0
    %2971 = vmatprep.subr.mxu0 0.0
    %2972 = vmatpush1.msra.mxu0 0.0
    %2973 = vmatprep.subr.mxu0 0.0
    %2974 = vmatpush1.msra.mxu0 0.0
    %2975 = vmatprep.subr.mxu0 0.0
    %2976 = vmatpush1.msra.mxu0 0.0
    %2977 = vmatprep.subr.mxu0 0.0
    %2978 = vmatpush1.msra.mxu0 0.0
    %2979 = vmatprep.subr.mxu0 0.0
    %2980 = vmatpush1.msra.mxu0 0.0
    %2981 = vmatprep.subr.mxu0 0.0
    %2982 = vmatpush1.msra.mxu0 0.0
    %2983 = vmatprep.subr.mxu0 0.0
    %2984 = vmatpush1.msra.mxu0 0.0
    %2985 = vmatprep.subr.mxu0 0.0
    %2986 = vmatpush1.msra.mxu0 0.0
    %2987 = vmatprep.subr.mxu0 0.0
    %2988 = vmatpush1.msra.mxu0 0.0
    %2989 = vmatprep.subr.mxu0 0.0
    %2990 = vmatpush1.msra.mxu0 0.0
    %2991 = vmatprep.subr.mxu0 0.0
    %2992 = vmatpush1.msra.mxu0 0.0
    %2993 = vmatprep.subr.mxu0 0.0
    %2994 = vmatpush1.msra.mxu0 0.0
    %2995 = vmatprep.subr.mxu0 0.0
    %2996 = vmatpush1.msra.mxu0 0.0
    %2997 = vmatprep.subr.mxu0 0.0
    %2998 = vmatpush1.msra.mxu0 0.0
    %2999 = vmatprep.subr.mxu0 0.0
    %3000 = vmatpush1.msra.mxu0 0.0
    %3001 = vmatprep.subr.mxu0 0.0
    %3002 = vmatpush1.msra.mxu0 0.0
    %3003 = vmatprep.subr.mxu0 0.0
    %3004 = vmatpush1.msra.mxu0 0.0
    %3005 = vmatprep.mubr.f32.mxu0 0.0
    %3006 = vmatmul.mubr.f32.gmra.mrb[0].mxu0 %v2939
    %v3007 = vpop.f32.mrb[0].mxu0
    %v3008 = vadd.f32 0.0, %v3007
    %v3009 = vpop.f32.mrb[0].mxu0
    %3010 = vdwg.mxu0
    %3012 = vrot.lane.b32.xlu0 %v3008, 16
    %v3013 = vpop.permute.xlu0 %3012
    %3015 = vst.msk [vmem:[#allocation2 + $0x8] sm:$0xff] %vm714, %v3013
    %3016 = vrot.lane.b32.xlu0 %v1815, 104
    %v3017 = vpop.permute.xlu0 %3016
    %3018 = vrot.lane.b32.xlu0 %v1815, 72
    %v3019 = vpop.permute.xlu0 %3018
    %v3020 = vsel %vm205, %v3017, 0
    %v3022 = vsel %vm205, %v3019, 0
    %3024 = vmatprep.subr.mxu0 0.0
    %3025 = vmatpush1.xpose.msra.mxu0 %v3022
    %3026 = vmatprep.subr.mxu0 0.0
    %3027 = vmatpush1.xpose.msra.mxu0 0.0
    %3028 = vmatprep.subr.mxu0 0.0
    %3029 = vmatpush1.xpose.msra.mxu0 0.0
    %3030 = vmatprep.subr.mxu0 0.0
    %3031 = vmatpush1.xpose.msra.mxu0 0.0
    %3032 = vmatprep.subr.mxu0 0.0
    %3033 = vmatpush1.xpose.msra.mxu0 0.0
    %3034 = vmatprep.subr.mxu0 0.0
    %3035 = vmatpush1.xpose.msra.mxu0 0.0
    %3036 = vmatprep.subr.mxu0 0.0
    %3037 = vmatpush1.xpose.msra.mxu0 0.0
    %3038 = vmatprep.subr.mxu0 0.0
    %3039 = vmatpush1.xpose.msra.mxu0 0.0
    %3040 = vmatprep.subr.mxu0 0.0
    %3041 = vmatpush1.xpose.msra.mxu0 0.0
    %3042 = vmatprep.subr.mxu0 0.0
    %3043 = vmatpush1.xpose.msra.mxu0 0.0
    %3044 = vmatprep.subr.mxu0 0.0
    %3045 = vmatpush1.xpose.msra.mxu0 0.0
    %3046 = vmatprep.subr.mxu0 0.0
    %3047 = vmatpush1.xpose.msra.mxu0 0.0
    %3048 = vmatprep.subr.mxu0 0.0
    %3049 = vmatpush1.xpose.msra.mxu0 0.0
    %3050 = vmatprep.subr.mxu0 0.0
    %3051 = vmatpush1.xpose.msra.mxu0 0.0
    %3052 = vmatprep.subr.mxu0 0.0
    %3053 = vmatpush1.xpose.msra.mxu0 0.0
    %3054 = vmatprep.subr.mxu0 0.0
    %3055 = vmatpush1.xpose.msra.mxu0 0.0
    %3056 = vmatprep.subr.mxu0 0.0
    %3057 = vmatpush1.xpose.msra.mxu0 0.0
    %3058 = vmatprep.subr.mxu0 0.0
    %3059 = vmatpush1.xpose.msra.mxu0 0.0
    %3060 = vmatprep.subr.mxu0 0.0
    %3061 = vmatpush1.xpose.msra.mxu0 0.0
    %3062 = vmatprep.subr.mxu0 0.0
    %3063 = vmatpush1.xpose.msra.mxu0 0.0
    %3064 = vmatprep.subr.mxu0 0.0
    %3065 = vmatpush1.xpose.msra.mxu0 0.0
    %3066 = vmatprep.subr.mxu0 0.0
    %3067 = vmatpush1.xpose.msra.mxu0 0.0
    %3068 = vmatprep.subr.mxu0 0.0
    %3069 = vmatpush1.xpose.msra.mxu0 0.0
    %3070 = vmatprep.subr.mxu0 0.0
    %3071 = vmatpush1.xpose.msra.mxu0 0.0
    %3072 = vmatprep.subr.mxu0 0.0
    %3073 = vmatpush1.xpose.msra.mxu0 0.0
    %3074 = vmatprep.subr.mxu0 0.0
    %3075 = vmatpush1.xpose.msra.mxu0 0.0
    %3076 = vmatprep.subr.mxu0 0.0
    %3077 = vmatpush1.xpose.msra.mxu0 0.0
    %3078 = vmatprep.subr.mxu0 0.0
    %3079 = vmatpush1.xpose.msra.mxu0 0.0
    %3080 = vmatprep.subr.mxu0 0.0
    %3081 = vmatpush1.xpose.msra.mxu0 0.0
    %3082 = vmatprep.subr.mxu0 0.0
    %3083 = vmatpush1.xpose.msra.mxu0 0.0
    %3084 = vmatprep.subr.mxu0 0.0
    %3085 = vmatpush1.xpose.msra.mxu0 0.0
    %3086 = vmatprep.subr.mxu0 0.0
    %3087 = vmatpush1.xpose.msra.mxu0 0.0
    %3088 = vmatprep.mubr.f32.mxu0 0.0
    %3089 = vmatmul.mubr.f32.gmra.mrb[0].mxu0 %v3020
    %v3090 = vpop.f32.mrb[0].mxu0
    %v3091 = vadd.f32 0.0, %v3090
    %v3092 = vpop.f32.mrb[0].mxu0
    %3093 = vdwg.mxu0
    %v3094 = vmul.f32 %v3091, 0.35355338
    %v3095 = vadd.f32 %v3094, %v2504
    %v3096 = vsel %vm205, %v3095, -inf
    %3097 = vmax.xlane.f32.xlu0 %v3096
    %v3098 = vpop.xlane.xlu0 %3097
    %v3099 = vsub.f32 %v3095, %v3098
    %v3100 = vmul.f32 %v3099, 1.442695
    %v3101 = vpow.pop %v3100
    %v3102 = vsel %vm205, %v3101, 0.0
    %3103 = vadd.xlane.f32.xlu0 %v3102
    %v3104 = vpop.xlane.xlu0 %3103
    %v3105 = vrcp.pop %v3104
    %v3106 = vmul.f32 %v3101, %v3105
    %3107 = vrot.lane.b32.xlu0 %v1815, 40
    %v3108 = vpop.permute.xlu0 %3107
    %v3111 = vsel %vm205, %v3106, 0
    %3113 = vmatprep.subr.mxu0 0.0
    %3114 = vmatpush1.msra.mxu0 %v3108
    %3115 = vmatprep.subr.mxu0 0.0
    %3116 = vmatpush1.msra.mxu0 0.0
    %3117 = vmatprep.subr.mxu0 0.0
    %3118 = vmatpush1.msra.mxu0 0.0
    %3119 = vmatprep.subr.mxu0 0.0
    %3120 = vmatpush1.msra.mxu0 0.0
    %3121 = vmatprep.subr.mxu0 0.0
    %3122 = vmatpush1.msra.mxu0 0.0
    %3123 = vmatprep.subr.mxu0 0.0
    %3124 = vmatpush1.msra.mxu0 0.0
    %3125 = vmatprep.subr.mxu0 0.0
    %3126 = vmatpush1.msra.mxu0 0.0
    %3127 = vmatprep.subr.mxu0 0.0
    %3128 = vmatpush1.msra.mxu0 0.0
    %3129 = vmatprep.subr.mxu0 0.0
    %3130 = vmatpush1.msra.mxu0 0.0
    %3131 = vmatprep.subr.mxu0 0.0
    %3132 = vmatpush1.msra.mxu0 0.0
    %3133 = vmatprep.subr.mxu0 0.0
    %3134 = vmatpush1.msra.mxu0 0.0
    %3135 = vmatprep.subr.mxu0 0.0
    %3136 = vmatpush1.msra.mxu0 0.0
    %3137 = vmatprep.subr.mxu0 0.0
    %3138 = vmatpush1.msra.mxu0 0.0
    %3139 = vmatprep.subr.mxu0 0.0
    %3140 = vmatpush1.msra.mxu0 0.0
    %3141 = vmatprep.subr.mxu0 0.0
    %3142 = vmatpush1.msra.mxu0 0.0
    %3143 = vmatprep.subr.mxu0 0.0
    %3144 = vmatpush1.msra.mxu0 0.0
    %3145 = vmatprep.subr.mxu0 0.0
    %3146 = vmatpush1.msra.mxu0 0.0
    %3147 = vmatprep.subr.mxu0 0.0
    %3148 = vmatpush1.msra.mxu0 0.0
    %3149 = vmatprep.subr.mxu0 0.0
    %3150 = vmatpush1.msra.mxu0 0.0
    %3151 = vmatprep.subr.mxu0 0.0
    %3152 = vmatpush1.msra.mxu0 0.0
    %3153 = vmatprep.subr.mxu0 0.0
    %3154 = vmatpush1.msra.mxu0 0.0
    %3155 = vmatprep.subr.mxu0 0.0
    %3156 = vmatpush1.msra.mxu0 0.0
    %3157 = vmatprep.subr.mxu0 0.0
    %3158 = vmatpush1.msra.mxu0 0.0
    %3159 = vmatprep.subr.mxu0 0.0
    %3160 = vmatpush1.msra.mxu0 0.0
    %3161 = vmatprep.subr.mxu0 0.0
    %3162 = vmatpush1.msra.mxu0 0.0
    %3163 = vmatprep.subr.mxu0 0.0
    %3164 = vmatpush1.msra.mxu0 0.0
    %3165 = vmatprep.subr.mxu0 0.0
    %3166 = vmatpush1.msra.mxu0 0.0
    %3167 = vmatprep.subr.mxu0 0.0
    %3168 = vmatpush1.msra.mxu0 0.0
    %3169 = vmatprep.subr.mxu0 0.0
    %3170 = vmatpush1.msra.mxu0 0.0
    %3171 = vmatprep.subr.mxu0 0.0
    %3172 = vmatpush1.msra.mxu0 0.0
    %3173 = vmatprep.subr.mxu0 0.0
    %3174 = vmatpush1.msra.mxu0 0.0
    %3175 = vmatprep.subr.mxu0 0.0
    %3176 = vmatpush1.msra.mxu0 0.0
    %3177 = vmatprep.mubr.f32.mxu0 0.0
    %3178 = vmatmul.mubr.f32.gmra.mrb[0].mxu0 %v3111
    %v3179 = vpop.f32.mrb[0].mxu0
    %v3180 = vadd.f32 0.0, %v3179
    %v3181 = vpop.f32.mrb[0].mxu0
    %3182 = vdwg.mxu0
    %3184 = vrot.lane.b32.xlu0 %v3180, 24
    %v3185 = vpop.permute.xlu0 %3184
    %3187 = vst.msk [vmem:[#allocation2 + $0x8] sm:$0xff] %vm887, %v3185
    %v3188 = vld [vmem:[#allocation2] sm:$0xff]
    %v3189 = vld [vmem:[#allocation2 + $0x8] sm:$0xff]
    %s3190 = scalar_lea.vmem %s7, 32
    %v3191 = vld [vmem:[%s3190] sm:$0xff]
    %v3192 = vld [vmem:[%s3190 + $0x8] sm:$0xff]
    %v3193 = vld [vmem:[%s3190 + $0x10] sm:$0xff]
    %v3194 = vld [vmem:[%s3190 + $0x18] sm:$0xff]
    %s3195 = scalar_lea.vmem %s8, 1
    %v3196 = vld [vmem:[%s3195] sm:$0x1]
    %v3198 = vlaneseq
    %v3199 = vshrl.u32 %v3198, 7
    %v3200 = vsub.s32 0, %v3199
    %v3201 = vrot.slane %v3196, %v3200
    %v3204 = vsel %vm55, %v3188, 0
    %v3207 = vsel %vm55, %v3189, 0
    %3209 = vmatprep.subr.mxu0 0.0
    %3210 = vmatpush1.msra.mxu0 %v3191
    %3211 = vmatprep.subr.mxu0 0.0
    %3212 = vmatpush1.msra.mxu0 %v3192
    %3213 = vmatprep.subr.mxu0 0.0
    %3214 = vmatpush1.msra.mxu0 %v3193
    %3215 = vmatprep.subr.mxu0 0.0
    %3216 = vmatpush1.msra.mxu0 %v3194
    %3217 = vmatprep.subr.mxu0 0.0
    %3218 = vmatpush1.msra.mxu0 0.0
    %3219 = vmatprep.subr.mxu0 0.0
    %3220 = vmatpush1.msra.mxu0 0.0
    %3221 = vmatprep.subr.mxu0 0.0
    %3222 = vmatpush1.msra.mxu0 0.0
    %3223 = vmatprep.subr.mxu0 0.0
    %3224 = vmatpush1.msra.mxu0 0.0
    %3225 = vmatprep.subr.mxu0 0.0
    %3226 = vmatpush1.msra.mxu0 0.0
    %3227 = vmatprep.subr.mxu0 0.0
    %3228 = vmatpush1.msra.mxu0 0.0
    %3229 = vmatprep.subr.mxu0 0.0
    %3230 = vmatpush1.msra.mxu0 0.0
    %3231 = vmatprep.subr.mxu0 0.0
    %3232 = vmatpush1.msra.mxu0 0.0
    %3233 = vmatprep.subr.mxu0 0.0
    %3234 = vmatpush1.msra.mxu0 0.0
    %3235 = vmatprep.subr.mxu0 0.0
    %3236 = vmatpush1.msra.mxu0 0.0
    %3237 = vmatprep.subr.mxu0 0.0
    %3238 = vmatpush1.msra.mxu0 0.0
    %3239 = vmatprep.subr.mxu0 0.0
    %3240 = vmatpush1.msra.mxu0 0.0
    %3241 = vmatprep.subr.mxu0 0.0
    %3242 = vmatpush1.msra.mxu0 0.0
    %3243 = vmatprep.subr.mxu0 0.0
    %3244 = vmatpush1.msra.mxu0 0.0
    %3245 = vmatprep.subr.mxu0 0.0
    %3246 = vmatpush1.msra.mxu0 0.0
    %3247 = vmatprep.subr.mxu0 0.0
    %3248 = vmatpush1.msra.mxu0 0.0
    %3249 = vmatprep.subr.mxu0 0.0
    %3250 = vmatpush1.msra.mxu0 0.0
    %3251 = vmatprep.subr.mxu0 0.0
    %3252 = vmatpush1.msra.mxu0 0.0
    %3253 = vmatprep.subr.mxu0 0.0
    %3254 = vmatpush1.msra.mxu0 0.0
    %3255 = vmatprep.subr.mxu0 0.0
    %3256 = vmatpush1.msra.mxu0 0.0
    %3257 = vmatprep.subr.mxu0 0.0
    %3258 = vmatpush1.msra.mxu0 0.0
    %3259 = vmatprep.subr.mxu0 0.0
    %3260 = vmatpush1.msra.mxu0 0.0
    %3261 = vmatprep.subr.mxu0 0.0
    %3262 = vmatpush1.msra.mxu0 0.0
    %3263 = vmatprep.subr.mxu0 0.0
    %3264 = vmatpush1.msra.mxu0 0.0
    %3265 = vmatprep.subr.mxu0 0.0
    %3266 = vmatpush1.msra.mxu0 0.0
    %3267 = vmatprep.subr.mxu0 0.0
    %3268 = vmatpush1.msra.mxu0 0.0
    %3269 = vmatprep.subr.mxu0 0.0
    %3270 = vmatpush1.msra.mxu0 0.0
    %3271 = vmatprep.subr.mxu0 0.0
    %3272 = vmatpush1.msra.mxu0 0.0
    %3273 = vmatprep.mubr.f32.mxu0 0.0
    %3274 = vmatmul.mubr.f32.gmra.mrb[0].mxu0 %v3204
    %v3275 = vpop.f32.mrb[0].mxu0
    %v3276 = vadd.f32 %v3201, %v3275
    %v3277 = vpop.f32.mrb[0].mxu0
    %3278 = vmatprep.mubr.f32.mxu0 0.0
    %3279 = vmatmul.mubr.f32.gmra.mrb[0].mxu0 %v3207
    %v3280 = vpop.f32.mrb[0].mxu0
    %v3281 = vadd.f32 %v3201, %v3280
    %v3282 = vpop.f32.mrb[0].mxu0
    %3283 = vdwg.mxu0
    %v3284 = vadd.f32 %v3276, %v1668
    %v3285 = vadd.f32 %v3281, %v1669
    %v3286 = vld [vmem:[%s3 + $0x2] sm:$0x1]
    %v3287 = vld [vmem:[%s4 + $0x2] sm:$0x1]
    %v3288 = vsel %vm55, %v3284, 0.0
    %3289 = vadd.xlane.f32.xlu0 %v3288
    %v3290 = vpop.xlane.xlu0 %3289
    %v3291 = vsel %vm55, %v3285, 0.0
    %3292 = vadd.xlane.f32.xlu0 %v3291
    %v3293 = vpop.xlane.xlu0 %3292
    %v3294 = vmul.f32 %v3290, %v62
    %v3295 = vmul.f32 %v3293, %v62
    %v3296 = vsub.f32 %v3284, %v3294
    %v3297 = vsub.f32 %v3285, %v3295
    %v3298 = vmul.f32 %v3296, %v3296
    %v3299 = vmul.f32 %v3297, %v3297
    %v3300 = vsel %vm55, %v3298, 0.0
    %3301 = vadd.xlane.f32.xlu0 %v3300
    %v3302 = vpop.xlane.xlu0 %3301
    %v3303 = vsel %vm55, %v3299, 0.0
    %3304 = vadd.xlane.f32.xlu0 %v3303
    %v3305 = vpop.xlane.xlu0 %3304
    %v3306 = vmul.f32 %v3302, 0.032258064
    %v3307 = vmul.f32 %v3305, 0.032258064
    %v3308 = vrsqrt.pop %v3306
    %v3309 = vmul.f32 %v3306, %v3308
    %vm3310 = vcmp.eq.f32.partialorder %v3306, inf
    %v3311 = vsel %vm3310, %v3306, %v3309
    %vm3312 = vcmp.eq.f32.partialorder %v3306, 0.0
    %v3313 = vand.u32 %v3306, 2147483648
    %v3314 = vsel %vm3312, %v3313, %v3311
    %v3315 = vrsqrt.pop %v3307
    %v3316 = vmul.f32 %v3307, %v3315
    %vm3317 = vcmp.eq.f32.partialorder %v3307, inf
    %v3318 = vsel %vm3317, %v3307, %v3316
    %vm3319 = vcmp.eq.f32.partialorder %v3307, 0.0
    %v3320 = vand.u32 %v3307, 2147483648
    %v3321 = vsel %vm3319, %v3320, %v3318
    %v3322 = vlaneseq
    %v3323 = vshrl.u32 %v3322, 7
    %v3324 = vsub.s32 0, %v3323
    %v3325 = vrot.slane %v3286, %v3324
    %v3326 = vmul.f32 %v3325, %v3296
    %v3327 = vmul.f32 %v3325, %v3297
    %v3328 = vadd.f32 %v3314, 1e-06
    %v3329 = vadd.f32 %v3321, 1e-06
    %v3330 = vrcp.pop %v3328
    %v3331 = vrcp.pop %v3329
    %v3332 = vmul.f32 %v3326, %v3330
    %v3333 = vmul.f32 %v3327, %v3331
    %v3334 = vlaneseq
    %v3335 = vshrl.u32 %v3334, 7
    %v3336 = vsub.s32 0, %v3335
    %v3337 = vrot.slane %v3287, %v3336
    %v3338 = vadd.f32 %v3332, %v3337
    %v3339 = vadd.f32 %v3333, %v3337
    %v3340 = vld [vmem:[%s9] sm:$0xff]
    %v3341 = vld [vmem:[%s9 + $0x8] sm:$0xff]
    %v3342 = vld [vmem:[%s9 + $0x10] sm:$0xff]
    %v3343 = vld [vmem:[%s9 + $0x18] sm:$0xff]
    %v3344 = vld [vmem:[%s10] sm:$0x1]
    %v3346 = vlaneseq
    %v3347 = vshrl.u32 %v3346, 7
    %v3348 = vsub.s32 0, %v3347
    %v3349 = vrot.slane %v3344, %v3348
    %v3352 = vsel %vm55, %v3338, 0
    %v3355 = vsel %vm55, %v3339, 0
    %3357 = vmatprep.subr.mxu0 0.0
    %3358 = vmatpush1.msra.mxu0 %v3340
    %3359 = vmatprep.subr.mxu0 0.0
    %3360 = vmatpush1.msra.mxu0 %v3341
    %3361 = vmatprep.subr.mxu0 0.0
    %3362 = vmatpush1.msra.mxu0 %v3342
    %3363 = vmatprep.subr.mxu0 0.0
    %3364 = vmatpush1.msra.mxu0 %v3343
    %3365 = vmatprep.subr.mxu0 0.0
    %3366 = vmatpush1.msra.mxu0 0.0
    %3367 = vmatprep.subr.mxu0 0.0
    %3368 = vmatpush1.msra.mxu0 0.0
    %3369 = vmatprep.subr.mxu0 0.0
    %3370 = vmatpush1.msra.mxu0 0.0
    %3371 = vmatprep.subr.mxu0 0.0
    %3372 = vmatpush1.msra.mxu0 0.0
    %3373 = vmatprep.subr.mxu0 0.0
    %3374 = vmatpush1.msra.mxu0 0.0
    %3375 = vmatprep.subr.mxu0 0.0
    %3376 = vmatpush1.msra.mxu0 0.0
    %3377 = vmatprep.subr.mxu0 0.0
    %3378 = vmatpush1.msra.mxu0 0.0
    %3379 = vmatprep.subr.mxu0 0.0
    %3380 = vmatpush1.msra.mxu0 0.0
    %3381 = vmatprep.subr.mxu0 0.0
    %3382 = vmatpush1.msra.mxu0 0.0
    %3383 = vmatprep.subr.mxu0 0.0
    %3384 = vmatpush1.msra.mxu0 0.0
    %3385 = vmatprep.subr.mxu0 0.0
    %3386 = vmatpush1.msra.mxu0 0.0
    %3387 = vmatprep.subr.mxu0 0.0
    %3388 = vmatpush1.msra.mxu0 0.0
    %3389 = vmatprep.subr.mxu0 0.0
    %3390 = vmatpush1.msra.mxu0 0.0
    %3391 = vmatprep.subr.mxu0 0.0
    %3392 = vmatpush1.msra.mxu0 0.0
    %3393 = vmatprep.subr.mxu0 0.0
    %3394 = vmatpush1.msra.mxu0 0.0
    %3395 = vmatprep.subr.mxu0 0.0
    %3396 = vmatpush1.msra.mxu0 0.0
    %3397 = vmatprep.subr.mxu0 0.0
    %3398 = vmatpush1.msra.mxu0 0.0
    %3399 = vmatprep.subr.mxu0 0.0
    %3400 = vmatpush1.msra.mxu0 0.0
    %3401 = vmatprep.subr.mxu0 0.0
    %3402 = vmatpush1.msra.mxu0 0.0
    %3403 = vmatprep.subr.mxu0 0.0
    %3404 = vmatpush1.msra.mxu0 0.0
    %3405 = vmatprep.subr.mxu0 0.0
    %3406 = vmatpush1.msra.mxu0 0.0
    %3407 = vmatprep.subr.mxu0 0.0
    %3408 = vmatpush1.msra.mxu0 0.0
    %3409 = vmatprep.subr.mxu0 0.0
    %3410 = vmatpush1.msra.mxu0 0.0
    %3411 = vmatprep.subr.mxu0 0.0
    %3412 = vmatpush1.msra.mxu0 0.0
    %3413 = vmatprep.subr.mxu0 0.0
    %3414 = vmatpush1.msra.mxu0 0.0
    %3415 = vmatprep.subr.mxu0 0.0
    %3416 = vmatpush1.msra.mxu0 0.0
    %3417 = vmatprep.subr.mxu0 0.0
    %3418 = vmatpush1.msra.mxu0 0.0
    %3419 = vmatprep.subr.mxu0 0.0
    %3420 = vmatpush1.msra.mxu0 0.0
    %3421 = vmatprep.mubr.f32.mxu0 0.0
    %3422 = vmatmul.mubr.f32.gmra.mrb[0].mxu0 %v3352
    %v3423 = vpop.f32.mrb[0].mxu0
    %v3424 = vadd.f32 %v3349, %v3423
    %v3425 = vpop.f32.mrb[0].mxu0
    %3426 = vmatprep.mubr.f32.mxu0 0.0
    %3427 = vmatmul.mubr.f32.gmra.mrb[0].mxu0 %v3355
    %v3428 = vpop.f32.mrb[0].mxu0
    %v3429 = vadd.f32 %v3349, %v3428
    %v3430 = vpop.f32.mrb[0].mxu0
    %3431 = vdwg.mxu0
    %v3432 = vmax.f32 %v3424, 0.0
    %v3433 = vmax.f32 %v3429, 0.0
    %v3434 = vld [vmem:[%s11] sm:$0xff]
    %v3435 = vld [vmem:[%s11 + $0x8] sm:$0xff]
    %v3436 = vld [vmem:[%s11 + $0x10] sm:$0xff]
    %v3437 = vld [vmem:[%s11 + $0x18] sm:$0xff]
    %v3438 = vld [vmem:[%s11 + $0x20] sm:$0xff]
    %v3439 = vld [vmem:[%s11 + $0x28] sm:$0xff]
    %v3440 = vld [vmem:[%s11 + $0x30] sm:$0xff]
    %v3441 = vld [vmem:[%s11 + $0x38] sm:$0xff]
    %v3442 = vld [vmem:[%s12] sm:$0x1]
    %v3444 = vlaneseq
    %v3445 = vshrl.u32 %v3444, 7
    %v3446 = vsub.s32 0, %v3445
    %v3447 = vrot.slane %v3442, %v3446
    %vm3449 = vcmask 523264
    %v3451 = vsel %vm3449, %v3432, 0
    %v3454 = vsel %vm3449, %v3433, 0
    %3456 = vmatprep.subr.mxu0 0.0
    %3457 = vmatpush1.msra.mxu0 %v3434
    %3458 = vmatprep.subr.mxu0 0.0
    %3459 = vmatpush1.msra.mxu0 %v3435
    %3460 = vmatprep.subr.mxu0 0.0
    %3461 = vmatpush1.msra.mxu0 %v3436
    %3462 = vmatprep.subr.mxu0 0.0
    %3463 = vmatpush1.msra.mxu0 %v3437
    %3464 = vmatprep.subr.mxu0 0.0
    %3465 = vmatpush1.msra.mxu0 %v3438
    %3466 = vmatprep.subr.mxu0 0.0
    %3467 = vmatpush1.msra.mxu0 %v3439
    %3468 = vmatprep.subr.mxu0 0.0
    %3469 = vmatpush1.msra.mxu0 %v3440
    %3470 = vmatprep.subr.mxu0 0.0
    %3471 = vmatpush1.msra.mxu0 %v3441
    %3472 = vmatprep.subr.mxu0 0.0
    %3473 = vmatpush1.msra.mxu0 0.0
    %3474 = vmatprep.subr.mxu0 0.0
    %3475 = vmatpush1.msra.mxu0 0.0
    %3476 = vmatprep.subr.mxu0 0.0
    %3477 = vmatpush1.msra.mxu0 0.0
    %3478 = vmatprep.subr.mxu0 0.0
    %3479 = vmatpush1.msra.mxu0 0.0
    %3480 = vmatprep.subr.mxu0 0.0
    %3481 = vmatpush1.msra.mxu0 0.0
    %3482 = vmatprep.subr.mxu0 0.0
    %3483 = vmatpush1.msra.mxu0 0.0
    %3484 = vmatprep.subr.mxu0 0.0
    %3485 = vmatpush1.msra.mxu0 0.0
    %3486 = vmatprep.subr.mxu0 0.0
    %3487 = vmatpush1.msra.mxu0 0.0
    %3488 = vmatprep.subr.mxu0 0.0
    %3489 = vmatpush1.msra.mxu0 0.0
    %3490 = vmatprep.subr.mxu0 0.0
    %3491 = vmatpush1.msra.mxu0 0.0
    %3492 = vmatprep.subr.mxu0 0.0
    %3493 = vmatpush1.msra.mxu0 0.0
    %3494 = vmatprep.subr.mxu0 0.0
    %3495 = vmatpush1.msra.mxu0 0.0
    %3496 = vmatprep.subr.mxu0 0.0
    %3497 = vmatpush1.msra.mxu0 0.0
    %3498 = vmatprep.subr.mxu0 0.0
    %3499 = vmatpush1.msra.mxu0 0.0
    %3500 = vmatprep.subr.mxu0 0.0
    %3501 = vmatpush1.msra.mxu0 0.0
    %3502 = vmatprep.subr.mxu0 0.0
    %3503 = vmatpush1.msra.mxu0 0.0
    %3504 = vmatprep.subr.mxu0 0.0
    %3505 = vmatpush1.msra.mxu0 0.0
    %3506 = vmatprep.subr.mxu0 0.0
    %3507 = vmatpush1.msra.mxu0 0.0
    %3508 = vmatprep.subr.mxu0 0.0
    %3509 = vmatpush1.msra.mxu0 0.0
    %3510 = vmatprep.subr.mxu0 0.0
    %3511 = vmatpush1.msra.mxu0 0.0
    %3512 = vmatprep.subr.mxu0 0.0
    %3513 = vmatpush1.msra.mxu0 0.0
    %3514 = vmatprep.subr.mxu0 0.0
    %3515 = vmatpush1.msra.mxu0 0.0
    %3516 = vmatprep.subr.mxu0 0.0
    %3517 = vmatpush1.msra.mxu0 0.0
    %3518 = vmatprep.subr.mxu0 0.0
    %3519 = vmatpush1.msra.mxu0 0.0
    %3520 = vmatprep.mubr.f32.mxu0 0.0
    %3521 = vmatmul.mubr.f32.gmra.mrb[0].mxu0 %v3451
    %v3522 = vpop.f32.mrb[0].mxu0
    %v3523 = vadd.f32 %v3447, %v3522
    %v3524 = vpop.f32.mrb[0].mxu0
    %3525 = vmatprep.mubr.f32.mxu0 0.0
    %3526 = vmatmul.mubr.f32.gmra.mrb[0].mxu0 %v3454
    %v3527 = vpop.f32.mrb[0].mxu0
    %v3528 = vadd.f32 %v3447, %v3527
    %v3529 = vpop.f32.mrb[0].mxu0
    %3530 = vdwg.mxu0
    %v3531 = vadd.f32 %v3523, %v3284
    %v3532 = vadd.f32 %v3528, %v3285
    %v3533 = vld [vmem:[%s3 + $0x3] sm:$0x1]
    %v3534 = vld [vmem:[%s4 + $0x3] sm:$0x1]
    %v3535 = vsel %vm55, %v3531, 0.0
    %3536 = vadd.xlane.f32.xlu0 %v3535
    %v3537 = vpop.xlane.xlu0 %3536
    %v3538 = vsel %vm55, %v3532, 0.0
    %3539 = vadd.xlane.f32.xlu0 %v3538
    %v3540 = vpop.xlane.xlu0 %3539
    %v3541 = vmul.f32 %v3537, %v62
    %v3542 = vmul.f32 %v3540, %v62
    %v3543 = vsub.f32 %v3531, %v3541
    %v3544 = vsub.f32 %v3532, %v3542
    %v3545 = vmul.f32 %v3543, %v3543
    %v3546 = vmul.f32 %v3544, %v3544
    %v3547 = vsel %vm55, %v3545, 0.0
    %3548 = vadd.xlane.f32.xlu0 %v3547
    %v3549 = vpop.xlane.xlu0 %3548
    %v3550 = vsel %vm55, %v3546, 0.0
    %3551 = vadd.xlane.f32.xlu0 %v3550
    %v3552 = vpop.xlane.xlu0 %3551
    %v3553 = vmul.f32 %v3549, 0.032258064
    %v3554 = vmul.f32 %v3552, 0.032258064
    %v3555 = vrsqrt.pop %v3553
    %v3556 = vmul.f32 %v3553, %v3555
    %vm3557 = vcmp.eq.f32.partialorder %v3553, inf
    %v3558 = vsel %vm3557, %v3553, %v3556
    %vm3559 = vcmp.eq.f32.partialorder %v3553, 0.0
    %v3560 = vand.u32 %v3553, 2147483648
    %v3561 = vsel %vm3559, %v3560, %v3558
    %v3562 = vrsqrt.pop %v3554
    %v3563 = vmul.f32 %v3554, %v3562
    %vm3564 = vcmp.eq.f32.partialorder %v3554, inf
    %v3565 = vsel %vm3564, %v3554, %v3563
    %vm3566 = vcmp.eq.f32.partialorder %v3554, 0.0
    %v3567 = vand.u32 %v3554, 2147483648
    %v3568 = vsel %vm3566, %v3567, %v3565
    %v3569 = vlaneseq
    %v3570 = vshrl.u32 %v3569, 7
    %v3571 = vsub.s32 0, %v3570
    %v3572 = vrot.slane %v3533, %v3571
    %v3573 = vmul.f32 %v3572, %v3543
    %v3574 = vmul.f32 %v3572, %v3544
    %v3575 = vadd.f32 %v3561, 1e-06
    %v3576 = vadd.f32 %v3568, 1e-06
    %v3577 = vrcp.pop %v3575
    %v3578 = vrcp.pop %v3576
    %v3579 = vmul.f32 %v3573, %v3577
    %v3580 = vmul.f32 %v3574, %v3578
    %v3581 = vlaneseq
    %v3582 = vshrl.u32 %v3581, 7
    %v3583 = vsub.s32 0, %v3582
    %v3584 = vrot.slane %v3534, %v3583
    %v3585 = vadd.f32 %v3579, %v3584
    %v3586 = vadd.f32 %v3580, %v3584
    %s3587 = scalar_lea.vmem %s5, 64
    %v3588 = vld [vmem:[%s3587] sm:$0xff]
    %v3589 = vld [vmem:[%s3587 + $0x8] sm:$0xff]
    %v3590 = vld [vmem:[%s3587 + $0x10] sm:$0xff]
    %v3591 = vld [vmem:[%s3587 + $0x18] sm:$0xff]
    %s3592 = scalar_lea.vmem %s6, 2
    %v3593 = vld [vmem:[%s3592] sm:$0x1]
    %v3595 = vlaneseq
    %v3596 = vshrl.u32 %v3595, 7
    %v3597 = vsub.s32 0, %v3596
    %v3598 = vrot.slane %v3593, %v3597
    %v3601 = vsel %vm55, %v3585, 0
    %v3604 = vsel %vm55, %v3586, 0
    %3606 = vmatprep.subr.mxu0 0.0
    %3607 = vmatpush1.msra.mxu0 %v3588
    %3608 = vmatprep.subr.mxu0 0.0
    %3609 = vmatpush1.msra.mxu0 %v3589
    %3610 = vmatprep.subr.mxu0 0.0
    %3611 = vmatpush1.msra.mxu0 %v3590
    %3612 = vmatprep.subr.mxu0 0.0
    %3613 = vmatpush1.msra.mxu0 %v3591
    %3614 = vmatprep.subr.mxu0 0.0
    %3615 = vmatpush1.msra.mxu0 0.0
    %3616 = vmatprep.subr.mxu0 0.0
    %3617 = vmatpush1.msra.mxu0 0.0
    %3618 = vmatprep.subr.mxu0 0.0
    %3619 = vmatpush1.msra.mxu0 0.0
    %3620 = vmatprep.subr.mxu0 0.0
    %3621 = vmatpush1.msra.mxu0 0.0
    %3622 = vmatprep.subr.mxu0 0.0
    %3623 = vmatpush1.msra.mxu0 0.0
    %3624 = vmatprep.subr.mxu0 0.0
    %3625 = vmatpush1.msra.mxu0 0.0
    %3626 = vmatprep.subr.mxu0 0.0
    %3627 = vmatpush1.msra.mxu0 0.0
    %3628 = vmatprep.subr.mxu0 0.0
    %3629 = vmatpush1.msra.mxu0 0.0
    %3630 = vmatprep.subr.mxu0 0.0
    %3631 = vmatpush1.msra.mxu0 0.0
    %3632 = vmatprep.subr.mxu0 0.0
    %3633 = vmatpush1.msra.mxu0 0.0
    %3634 = vmatprep.subr.mxu0 0.0
    %3635 = vmatpush1.msra.mxu0 0.0
    %3636 = vmatprep.subr.mxu0 0.0
    %3637 = vmatpush1.msra.mxu0 0.0
    %3638 = vmatprep.subr.mxu0 0.0
    %3639 = vmatpush1.msra.mxu0 0.0
    %3640 = vmatprep.subr.mxu0 0.0
    %3641 = vmatpush1.msra.mxu0 0.0
    %3642 = vmatprep.subr.mxu0 0.0
    %3643 = vmatpush1.msra.mxu0 0.0
    %3644 = vmatprep.subr.mxu0 0.0
    %3645 = vmatpush1.msra.mxu0 0.0
    %3646 = vmatprep.subr.mxu0 0.0
    %3647 = vmatpush1.msra.mxu0 0.0
    %3648 = vmatprep.subr.mxu0 0.0
    %3649 = vmatpush1.msra.mxu0 0.0
    %3650 = vmatprep.subr.mxu0 0.0
    %3651 = vmatpush1.msra.mxu0 0.0
    %3652 = vmatprep.subr.mxu0 0.0
    %3653 = vmatpush1.msra.mxu0 0.0
    %3654 = vmatprep.subr.mxu0 0.0
    %3655 = vmatpush1.msra.mxu0 0.0
    %3656 = vmatprep.subr.mxu0 0.0
    %3657 = vmatpush1.msra.mxu0 0.0
    %3658 = vmatprep.subr.mxu0 0.0
    %3659 = vmatpush1.msra.mxu0 0.0
    %3660 = vmatprep.subr.mxu0 0.0
    %3661 = vmatpush1.msra.mxu0 0.0
    %3662 = vmatprep.subr.mxu0 0.0
    %3663 = vmatpush1.msra.mxu0 0.0
    %3664 = vmatprep.subr.mxu0 0.0
    %3665 = vmatpush1.msra.mxu0 0.0
    %3666 = vmatprep.subr.mxu0 0.0
    %3667 = vmatpush1.msra.mxu0 0.0
    %3668 = vmatprep.subr.mxu0 0.0
    %3669 = vmatpush1.msra.mxu0 0.0
    %3670 = vmatprep.mubr.f32.mxu0 0.0
    %3671 = vmatmul.mubr.f32.gmra.mrb[0].mxu0 %v3601
    %v3672 = vpop.f32.mrb[0].mxu0
    %v3673 = vadd.f32 %v3598, %v3672
    %v3674 = vpop.f32.mrb[0].mxu0
    %3675 = vmatprep.mubr.f32.mxu0 0.0
    %3676 = vmatmul.mubr.f32.gmra.mrb[0].mxu0 %v3604
    %v3677 = vpop.f32.mrb[0].mxu0
    %v3678 = vadd.f32 %v3598, %v3677
    %v3679 = vpop.f32.mrb[0].mxu0
    %3680 = vdwg.mxu0
    %v3681 = vld [vmem:[%s2] sm:$0xff]
    %3683 = vrot.lane.b32.xlu0 %v3673, 96
    %v3684 = vpop.permute.xlu0 %3683
    %v3685 = vsel %vm205, %v3673, 0
    %v3687 = vsel %vm205, %v3684, 0
    %3689 = vmatprep.subr.mxu0 0.0
    %3690 = vmatpush1.xpose.msra.mxu0 %v3687
    %3691 = vmatprep.subr.mxu0 0.0
    %3692 = vmatpush1.xpose.msra.mxu0 0.0
    %3693 = vmatprep.subr.mxu0 0.0
    %3694 = vmatpush1.xpose.msra.mxu0 0.0
    %3695 = vmatprep.subr.mxu0 0.0
    %3696 = vmatpush1.xpose.msra.mxu0 0.0
    %3697 = vmatprep.subr.mxu0 0.0
    %3698 = vmatpush1.xpose.msra.mxu0 0.0
    %3699 = vmatprep.subr.mxu0 0.0
    %3700 = vmatpush1.xpose.msra.mxu0 0.0
    %3701 = vmatprep.subr.mxu0 0.0
    %3702 = vmatpush1.xpose.msra.mxu0 0.0
    %3703 = vmatprep.subr.mxu0 0.0
    %3704 = vmatpush1.xpose.msra.mxu0 0.0
    %3705 = vmatprep.subr.mxu0 0.0
    %3706 = vmatpush1.xpose.msra.mxu0 0.0
    %3707 = vmatprep.subr.mxu0 0.0
    %3708 = vmatpush1.xpose.msra.mxu0 0.0
    %3709 = vmatprep.subr.mxu0 0.0
    %3710 = vmatpush1.xpose.msra.mxu0 0.0
    %3711 = vmatprep.subr.mxu0 0.0
    %3712 = vmatpush1.xpose.msra.mxu0 0.0
    %3713 = vmatprep.subr.mxu0 0.0
    %3714 = vmatpush1.xpose.msra.mxu0 0.0
    %3715 = vmatprep.subr.mxu0 0.0
    %3716 = vmatpush1.xpose.msra.mxu0 0.0
    %3717 = vmatprep.subr.mxu0 0.0
    %3718 = vmatpush1.xpose.msra.mxu0 0.0
    %3719 = vmatprep.subr.mxu0 0.0
    %3720 = vmatpush1.xpose.msra.mxu0 0.0
    %3721 = vmatprep.subr.mxu0 0.0
    %3722 = vmatpush1.xpose.msra.mxu0 0.0
    %3723 = vmatprep.subr.mxu0 0.0
    %3724 = vmatpush1.xpose.msra.mxu0 0.0
    %3725 = vmatprep.subr.mxu0 0.0
    %3726 = vmatpush1.xpose.msra.mxu0 0.0
    %3727 = vmatprep.subr.mxu0 0.0
    %3728 = vmatpush1.xpose.msra.mxu0 0.0
    %3729 = vmatprep.subr.mxu0 0.0
    %3730 = vmatpush1.xpose.msra.mxu0 0.0
    %3731 = vmatprep.subr.mxu0 0.0
    %3732 = vmatpush1.xpose.msra.mxu0 0.0
    %3733 = vmatprep.subr.mxu0 0.0
    %3734 = vmatpush1.xpose.msra.mxu0 0.0
    %3735 = vmatprep.subr.mxu0 0.0
    %3736 = vmatpush1.xpose.msra.mxu0 0.0
    %3737 = vmatprep.subr.mxu0 0.0
    %3738 = vmatpush1.xpose.msra.mxu0 0.0
    %3739 = vmatprep.subr.mxu0 0.0
    %3740 = vmatpush1.xpose.msra.mxu0 0.0
    %3741 = vmatprep.subr.mxu0 0.0
    %3742 = vmatpush1.xpose.msra.mxu0 0.0
    %3743 = vmatprep.subr.mxu0 0.0
    %3744 = vmatpush1.xpose.msra.mxu0 0.0
    %3745 = vmatprep.subr.mxu0 0.0
    %3746 = vmatpush1.xpose.msra.mxu0 0.0
    %3747 = vmatprep.subr.mxu0 0.0
    %3748 = vmatpush1.xpose.msra.mxu0 0.0
    %3749 = vmatprep.subr.mxu0 0.0
    %3750 = vmatpush1.xpose.msra.mxu0 0.0
    %3751 = vmatprep.subr.mxu0 0.0
    %3752 = vmatpush1.xpose.msra.mxu0 0.0
    %3753 = vmatprep.mubr.f32.mxu0 0.0
    %3754 = vmatmul.mubr.f32.gmra.mrb[0].mxu0 %v3685
    %v3755 = vpop.f32.mrb[0].mxu0
    %v3756 = vadd.f32 0.0, %v3755
    %v3757 = vpop.f32.mrb[0].mxu0
    %3758 = vdwg.mxu0
    %v3759 = vmul.f32 %v3756, 0.35355338
    %v3760 = vadd.f32 %v3759, %v3681
    %v3761 = vsel %vm205, %v3760, -inf
    %3762 = vmax.xlane.f32.xlu0 %v3761
    %v3763 = vpop.xlane.xlu0 %3762
    %v3764 = vsub.f32 %v3760, %v3763
    %v3765 = vmul.f32 %v3764, 1.442695
    %v3766 = vpow.pop %v3765
    %v3767 = vsel %vm205, %v3766, 0.0
    %3768 = vadd.xlane.f32.xlu0 %v3767
    %v3769 = vpop.xlane.xlu0 %3768
    %v3770 = vrcp.pop %v3769
    %v3771 = vmul.f32 %v3766, %v3770
    %3772 = vrot.lane.b32.xlu0 %v3673, 64
    %v3773 = vpop.permute.xlu0 %3772
    %v3776 = vsel %vm205, %v3771, 0
    %3778 = vmatprep.subr.mxu0 0.0
    %3779 = vmatpush1.msra.mxu0 %v3773
    %3780 = vmatprep.subr.mxu0 0.0
    %3781 = vmatpush1.msra.mxu0 0.0
    %3782 = vmatprep.subr.mxu0 0.0
    %3783 = vmatpush1.msra.mxu0 0.0
    %3784 = vmatprep.subr.mxu0 0.0
    %3785 = vmatpush1.msra.mxu0 0.0
    %3786 = vmatprep.subr.mxu0 0.0
    %3787 = vmatpush1.msra.mxu0 0.0
    %3788 = vmatprep.subr.mxu0 0.0
    %3789 = vmatpush1.msra.mxu0 0.0
    %3790 = vmatprep.subr.mxu0 0.0
    %3791 = vmatpush1.msra.mxu0 0.0
    %3792 = vmatprep.subr.mxu0 0.0
    %3793 = vmatpush1.msra.mxu0 0.0
    %3794 = vmatprep.subr.mxu0 0.0
    %3795 = vmatpush1.msra.mxu0 0.0
    %3796 = vmatprep.subr.mxu0 0.0
    %3797 = vmatpush1.msra.mxu0 0.0
    %3798 = vmatprep.subr.mxu0 0.0
    %3799 = vmatpush1.msra.mxu0 0.0
    %3800 = vmatprep.subr.mxu0 0.0
    %3801 = vmatpush1.msra.mxu0 0.0
    %3802 = vmatprep.subr.mxu0 0.0
    %3803 = vmatpush1.msra.mxu0 0.0
    %3804 = vmatprep.subr.mxu0 0.0
    %3805 = vmatpush1.msra.mxu0 0.0
    %3806 = vmatprep.subr.mxu0 0.0
    %3807 = vmatpush1.msra.mxu0 0.0
    %3808 = vmatprep.subr.mxu0 0.0
    %3809 = vmatpush1.msra.mxu0 0.0
    %3810 = vmatprep.subr.mxu0 0.0
    %3811 = vmatpush1.msra.mxu0 0.0
    %3812 = vmatprep.subr.mxu0 0.0
    %3813 = vmatpush1.msra.mxu0 0.0
    %3814 = vmatprep.subr.mxu0 0.0
    %3815 = vmatpush1.msra.mxu0 0.0
    %3816 = vmatprep.subr.mxu0 0.0
    %3817 = vmatpush1.msra.mxu0 0.0
    %3818 = vmatprep.subr.mxu0 0.0
    %3819 = vmatpush1.msra.mxu0 0.0
    %3820 = vmatprep.subr.mxu0 0.0
    %3821 = vmatpush1.msra.mxu0 0.0
    %3822 = vmatprep.subr.mxu0 0.0
    %3823 = vmatpush1.msra.mxu0 0.0
    %3824 = vmatprep.subr.mxu0 0.0
    %3825 = vmatpush1.msra.mxu0 0.0
    %3826 = vmatprep.subr.mxu0 0.0
    %3827 = vmatpush1.msra.mxu0 0.0
    %3828 = vmatprep.subr.mxu0 0.0
    %3829 = vmatpush1.msra.mxu0 0.0
    %3830 = vmatprep.subr.mxu0 0.0
    %3831 = vmatpush1.msra.mxu0 0.0
    %3832 = vmatprep.subr.mxu0 0.0
    %3833 = vmatpush1.msra.mxu0 0.0
    %3834 = vmatprep.subr.mxu0 0.0
    %3835 = vmatpush1.msra.mxu0 0.0
    %3836 = vmatprep.subr.mxu0 0.0
    %3837 = vmatpush1.msra.mxu0 0.0
    %3838 = vmatprep.subr.mxu0 0.0
    %3839 = vmatpush1.msra.mxu0 0.0
    %3840 = vmatprep.subr.mxu0 0.0
    %3841 = vmatpush1.msra.mxu0 0.0
    %3842 = vmatprep.mubr.f32.mxu0 0.0
    %3843 = vmatmul.mubr.f32.gmra.mrb[0].mxu0 %v3776
    %v3844 = vpop.f32.mrb[0].mxu0
    %v3845 = vadd.f32 0.0, %v3844
    %v3846 = vpop.f32.mrb[0].mxu0
    %3847 = vdwg.mxu0
    %3848 = vst.msk [vmem:[#allocation2] sm:$0xff] %vm205, %v3845
    %3849 = vrot.lane.b32.xlu0 %v3673, 120
    %v3850 = vpop.permute.xlu0 %3849
    %3851 = vrot.lane.b32.xlu0 %v3673, 88
    %v3852 = vpop.permute.xlu0 %3851
    %v3853 = vsel %vm205, %v3850, 0
    %v3855 = vsel %vm205, %v3852, 0
    %3857 = vmatprep.subr.mxu0 0.0
    %3858 = vmatpush1.xpose.msra.mxu0 %v3855
    %3859 = vmatprep.subr.mxu0 0.0
    %3860 = vmatpush1.xpose.msra.mxu0 0.0
    %3861 = vmatprep.subr.mxu0 0.0
    %3862 = vmatpush1.xpose.msra.mxu0 0.0
    %3863 = vmatprep.subr.mxu0 0.0
    %3864 = vmatpush1.xpose.msra.mxu0 0.0
    %3865 = vmatprep.subr.mxu0 0.0
    %3866 = vmatpush1.xpose.msra.mxu0 0.0
    %3867 = vmatprep.subr.mxu0 0.0
    %3868 = vmatpush1.xpose.msra.mxu0 0.0
    %3869 = vmatprep.subr.mxu0 0.0
    %3870 = vmatpush1.xpose.msra.mxu0 0.0
    %3871 = vmatprep.subr.mxu0 0.0
    %3872 = vmatpush1.xpose.msra.mxu0 0.0
    %3873 = vmatprep.subr.mxu0 0.0
    %3874 = vmatpush1.xpose.msra.mxu0 0.0
    %3875 = vmatprep.subr.mxu0 0.0
    %3876 = vmatpush1.xpose.msra.mxu0 0.0
    %3877 = vmatprep.subr.mxu0 0.0
    %3878 = vmatpush1.xpose.msra.mxu0 0.0
    %3879 = vmatprep.subr.mxu0 0.0
    %3880 = vmatpush1.xpose.msra.mxu0 0.0
    %3881 = vmatprep.subr.mxu0 0.0
    %3882 = vmatpush1.xpose.msra.mxu0 0.0
    %3883 = vmatprep.subr.mxu0 0.0
    %3884 = vmatpush1.xpose.msra.mxu0 0.0
    %3885 = vmatprep.subr.mxu0 0.0
    %3886 = vmatpush1.xpose.msra.mxu0 0.0
    %3887 = vmatprep.subr.mxu0 0.0
    %3888 = vmatpush1.xpose.msra.mxu0 0.0
    %3889 = vmatprep.subr.mxu0 0.0
    %3890 = vmatpush1.xpose.msra.mxu0 0.0
    %3891 = vmatprep.subr.mxu0 0.0
    %3892 = vmatpush1.xpose.msra.mxu0 0.0
    %3893 = vmatprep.subr.mxu0 0.0
    %3894 = vmatpush1.xpose.msra.mxu0 0.0
    %3895 = vmatprep.subr.mxu0 0.0
    %3896 = vmatpush1.xpose.msra.mxu0 0.0
    %3897 = vmatprep.subr.mxu0 0.0
    %3898 = vmatpush1.xpose.msra.mxu0 0.0
    %3899 = vmatprep.subr.mxu0 0.0
    %3900 = vmatpush1.xpose.msra.mxu0 0.0
    %3901 = vmatprep.subr.mxu0 0.0
    %3902 = vmatpush1.xpose.msra.mxu0 0.0
    %3903 = vmatprep.subr.mxu0 0.0
    %3904 = vmatpush1.xpose.msra.mxu0 0.0
    %3905 = vmatprep.subr.mxu0 0.0
    %3906 = vmatpush1.xpose.msra.mxu0 0.0
    %3907 = vmatprep.subr.mxu0 0.0
    %3908 = vmatpush1.xpose.msra.mxu0 0.0
    %3909 = vmatprep.subr.mxu0 0.0
    %3910 = vmatpush1.xpose.msra.mxu0 0.0
    %3911 = vmatprep.subr.mxu0 0.0
    %3912 = vmatpush1.xpose.msra.mxu0 0.0
    %3913 = vmatprep.subr.mxu0 0.0
    %3914 = vmatpush1.xpose.msra.mxu0 0.0
    %3915 = vmatprep.subr.mxu0 0.0
    %3916 = vmatpush1.xpose.msra.mxu0 0.0
    %3917 = vmatprep.subr.mxu0 0.0
    %3918 = vmatpush1.xpose.msra.mxu0 0.0
    %3919 = vmatprep.subr.mxu0 0.0
    %3920 = vmatpush1.xpose.msra.mxu0 0.0
    %3921 = vmatprep.mubr.f32.mxu0 0.0
    %3922 = vmatmul.mubr.f32.gmra.mrb[0].mxu0 %v3853
    %v3923 = vpop.f32.mrb[0].mxu0
    %v3924 = vadd.f32 0.0, %v3923
    %v3925 = vpop.f32.mrb[0].mxu0
    %3926 = vdwg.mxu0
    %v3927 = vmul.f32 %v3924, 0.35355338
    %v3928 = vadd.f32 %v3927, %v3681
    %v3929 = vsel %vm205, %v3928, -inf
    %3930 = vmax.xlane.f32.xlu0 %v3929
    %v3931 = vpop.xlane.xlu0 %3930
    %v3932 = vsub.f32 %v3928, %v3931
    %v3933 = vmul.f32 %v3932, 1.442695
    %v3934 = vpow.pop %v3933
    %v3935 = vsel %vm205, %v3934, 0.0
    %3936 = vadd.xlane.f32.xlu0 %v3935
    %v3937 = vpop.xlane.xlu0 %3936
    %v3938 = vrcp.pop %v3937
    %v3939 = vmul.f32 %v3934, %v3938
    %3940 = vrot.lane.b32.xlu0 %v3673, 56
    %v3941 = vpop.permute.xlu0 %3940
    %v3944 = vsel %vm205, %v3939, 0
    %3946 = vmatprep.subr.mxu0 0.0
    %3947 = vmatpush1.msra.mxu0 %v3941
    %3948 = vmatprep.subr.mxu0 0.0
    %3949 = vmatpush1.msra.mxu0 0.0
    %3950 = vmatprep.subr.mxu0 0.0
    %3951 = vmatpush1.msra.mxu0 0.0
    %3952 = vmatprep.subr.mxu0 0.0
    %3953 = vmatpush1.msra.mxu0 0.0
    %3954 = vmatprep.subr.mxu0 0.0
    %3955 = vmatpush1.msra.mxu0 0.0
    %3956 = vmatprep.subr.mxu0 0.0
    %3957 = vmatpush1.msra.mxu0 0.0
    %3958 = vmatprep.subr.mxu0 0.0
    %3959 = vmatpush1.msra.mxu0 0.0
    %3960 = vmatprep.subr.mxu0 0.0
    %3961 = vmatpush1.msra.mxu0 0.0
    %3962 = vmatprep.subr.mxu0 0.0
    %3963 = vmatpush1.msra.mxu0 0.0
    %3964 = vmatprep.subr.mxu0 0.0
    %3965 = vmatpush1.msra.mxu0 0.0
    %3966 = vmatprep.subr.mxu0 0.0
    %3967 = vmatpush1.msra.mxu0 0.0
    %3968 = vmatprep.subr.mxu0 0.0
    %3969 = vmatpush1.msra.mxu0 0.0
    %3970 = vmatprep.subr.mxu0 0.0
    %3971 = vmatpush1.msra.mxu0 0.0
    %3972 = vmatprep.subr.mxu0 0.0
    %3973 = vmatpush1.msra.mxu0 0.0
    %3974 = vmatprep.subr.mxu0 0.0
    %3975 = vmatpush1.msra.mxu0 0.0
    %3976 = vmatprep.subr.mxu0 0.0
    %3977 = vmatpush1.msra.mxu0 0.0
    %3978 = vmatprep.subr.mxu0 0.0
    %3979 = vmatpush1.msra.mxu0 0.0
    %3980 = vmatprep.subr.mxu0 0.0
    %3981 = vmatpush1.msra.mxu0 0.0
    %3982 = vmatprep.subr.mxu0 0.0
    %3983 = vmatpush1.msra.mxu0 0.0
    %3984 = vmatprep.subr.mxu0 0.0
    %3985 = vmatpush1.msra.mxu0 0.0
    %3986 = vmatprep.subr.mxu0 0.0
    %3987 = vmatpush1.msra.mxu0 0.0
    %3988 = vmatprep.subr.mxu0 0.0
    %3989 = vmatpush1.msra.mxu0 0.0
    %3990 = vmatprep.subr.mxu0 0.0
    %3991 = vmatpush1.msra.mxu0 0.0
    %3992 = vmatprep.subr.mxu0 0.0
    %3993 = vmatpush1.msra.mxu0 0.0
    %3994 = vmatprep.subr.mxu0 0.0
    %3995 = vmatpush1.msra.mxu0 0.0
    %3996 = vmatprep.subr.mxu0 0.0
    %3997 = vmatpush1.msra.mxu0 0.0
    %3998 = vmatprep.subr.mxu0 0.0
    %3999 = vmatpush1.msra.mxu0 0.0
    %4000 = vmatprep.subr.mxu0 0.0
    %4001 = vmatpush1.msra.mxu0 0.0
    %4002 = vmatprep.subr.mxu0 0.0
    %4003 = vmatpush1.msra.mxu0 0.0
    %4004 = vmatprep.subr.mxu0 0.0
    %4005 = vmatpush1.msra.mxu0 0.0
    %4006 = vmatprep.subr.mxu0 0.0
    %4007 = vmatpush1.msra.mxu0 0.0
    %4008 = vmatprep.subr.mxu0 0.0
    %4009 = vmatpush1.msra.mxu0 0.0
    %4010 = vmatprep.mubr.f32.mxu0 0.0
    %4011 = vmatmul.mubr.f32.gmra.mrb[0].mxu0 %v3944
    %v4012 = vpop.f32.mrb[0].mxu0
    %v4013 = vadd.f32 0.0, %v4012
    %v4014 = vpop.f32.mrb[0].mxu0
    %4015 = vdwg.mxu0
    %4017 = vrot.lane.b32.xlu0 %v4013, 8
    %v4018 = vpop.permute.xlu0 %4017
    %4020 = vst.msk [vmem:[#allocation2] sm:$0xff] %vm541, %v4018
    %4021 = vrot.lane.b32.xlu0 %v3673, 112
    %v4022 = vpop.permute.xlu0 %4021
    %4023 = vrot.lane.b32.xlu0 %v3673, 80
    %v4024 = vpop.permute.xlu0 %4023
    %v4025 = vsel %vm205, %v4022, 0
    %v4027 = vsel %vm205, %v4024, 0
    %4029 = vmatprep.subr.mxu0 0.0
    %4030 = vmatpush1.xpose.msra.mxu0 %v4027
    %4031 = vmatprep.subr.mxu0 0.0
    %4032 = vmatpush1.xpose.msra.mxu0 0.0
    %4033 = vmatprep.subr.mxu0 0.0
    %4034 = vmatpush1.xpose.msra.mxu0 0.0
    %4035 = vmatprep.subr.mxu0 0.0
    %4036 = vmatpush1.xpose.msra.mxu0 0.0
    %4037 = vmatprep.subr.mxu0 0.0
    %4038 = vmatpush1.xpose.msra.mxu0 0.0
    %4039 = vmatprep.subr.mxu0 0.0
    %4040 = vmatpush1.xpose.msra.mxu0 0.0
    %4041 = vmatprep.subr.mxu0 0.0
    %4042 = vmatpush1.xpose.msra.mxu0 0.0
    %4043 = vmatprep.subr.mxu0 0.0
    %4044 = vmatpush1.xpose.msra.mxu0 0.0
    %4045 = vmatprep.subr.mxu0 0.0
    %4046 = vmatpush1.xpose.msra.mxu0 0.0
    %4047 = vmatprep.subr.mxu0 0.0
    %4048 = vmatpush1.xpose.msra.mxu0 0.0
    %4049 = vmatprep.subr.mxu0 0.0
    %4050 = vmatpush1.xpose.msra.mxu0 0.0
    %4051 = vmatprep.subr.mxu0 0.0
    %4052 = vmatpush1.xpose.msra.mxu0 0.0
    %4053 = vmatprep.subr.mxu0 0.0
    %4054 = vmatpush1.xpose.msra.mxu0 0.0
    %4055 = vmatprep.subr.mxu0 0.0
    %4056 = vmatpush1.xpose.msra.mxu0 0.0
    %4057 = vmatprep.subr.mxu0 0.0
    %4058 = vmatpush1.xpose.msra.mxu0 0.0
    %4059 = vmatprep.subr.mxu0 0.0
    %4060 = vmatpush1.xpose.msra.mxu0 0.0
    %4061 = vmatprep.subr.mxu0 0.0
    %4062 = vmatpush1.xpose.msra.mxu0 0.0
    %4063 = vmatprep.subr.mxu0 0.0
    %4064 = vmatpush1.xpose.msra.mxu0 0.0
    %4065 = vmatprep.subr.mxu0 0.0
    %4066 = vmatpush1.xpose.msra.mxu0 0.0
    %4067 = vmatprep.subr.mxu0 0.0
    %4068 = vmatpush1.xpose.msra.mxu0 0.0
    %4069 = vmatprep.subr.mxu0 0.0
    %4070 = vmatpush1.xpose.msra.mxu0 0.0
    %4071 = vmatprep.subr.mxu0 0.0
    %4072 = vmatpush1.xpose.msra.mxu0 0.0
    %4073 = vmatprep.subr.mxu0 0.0
    %4074 = vmatpush1.xpose.msra.mxu0 0.0
    %4075 = vmatprep.subr.mxu0 0.0
    %4076 = vmatpush1.xpose.msra.mxu0 0.0
    %4077 = vmatprep.subr.mxu0 0.0
    %4078 = vmatpush1.xpose.msra.mxu0 0.0
    %4079 = vmatprep.subr.mxu0 0.0
    %4080 = vmatpush1.xpose.msra.mxu0 0.0
    %4081 = vmatprep.subr.mxu0 0.0
    %4082 = vmatpush1.xpose.msra.mxu0 0.0
    %4083 = vmatprep.subr.mxu0 0.0
    %4084 = vmatpush1.xpose.msra.mxu0 0.0
    %4085 = vmatprep.subr.mxu0 0.0
    %4086 = vmatpush1.xpose.msra.mxu0 0.0
    %4087 = vmatprep.subr.mxu0 0.0
    %4088 = vmatpush1.xpose.msra.mxu0 0.0
    %4089 = vmatprep.subr.mxu0 0.0
    %4090 = vmatpush1.xpose.msra.mxu0 0.0
    %4091 = vmatprep.subr.mxu0 0.0
    %4092 = vmatpush1.xpose.msra.mxu0 0.0
    %4093 = vmatprep.mubr.f32.mxu0 0.0
    %4094 = vmatmul.mubr.f32.gmra.mrb[0].mxu0 %v4025
    %v4095 = vpop.f32.mrb[0].mxu0
    %v4096 = vadd.f32 0.0, %v4095
    %v4097 = vpop.f32.mrb[0].mxu0
    %4098 = vdwg.mxu0
    %v4099 = vmul.f32 %v4096, 0.35355338
    %v4100 = vadd.f32 %v4099, %v3681
    %v4101 = vsel %vm205, %v4100, -inf
    %4102 = vmax.xlane.f32.xlu0 %v4101
    %v4103 = vpop.xlane.xlu0 %4102
    %v4104 = vsub.f32 %v4100, %v4103
    %v4105 = vmul.f32 %v4104, 1.442695
    %v4106 = vpow.pop %v4105
    %v4107 = vsel %vm205, %v4106, 0.0
    %4108 = vadd.xlane.f32.xlu0 %v4107
    %v4109 = vpop.xlane.xlu0 %4108
    %v4110 = vrcp.pop %v4109
    %v4111 = vmul.f32 %v4106, %v4110
    %4112 = vrot.lane.b32.xlu0 %v3673, 48
    %v4113 = vpop.permute.xlu0 %4112
    %v4116 = vsel %vm205, %v4111, 0
    %4118 = vmatprep.subr.mxu0 0.0
    %4119 = vmatpush1.msra.mxu0 %v4113
    %4120 = vmatprep.subr.mxu0 0.0
    %4121 = vmatpush1.msra.mxu0 0.0
    %4122 = vmatprep.subr.mxu0 0.0
    %4123 = vmatpush1.msra.mxu0 0.0
    %4124 = vmatprep.subr.mxu0 0.0
    %4125 = vmatpush1.msra.mxu0 0.0
    %4126 = vmatprep.subr.mxu0 0.0
    %4127 = vmatpush1.msra.mxu0 0.0
    %4128 = vmatprep.subr.mxu0 0.0
    %4129 = vmatpush1.msra.mxu0 0.0
    %4130 = vmatprep.subr.mxu0 0.0
    %4131 = vmatpush1.msra.mxu0 0.0
    %4132 = vmatprep.subr.mxu0 0.0
    %4133 = vmatpush1.msra.mxu0 0.0
    %4134 = vmatprep.subr.mxu0 0.0
    %4135 = vmatpush1.msra.mxu0 0.0
    %4136 = vmatprep.subr.mxu0 0.0
    %4137 = vmatpush1.msra.mxu0 0.0
    %4138 = vmatprep.subr.mxu0 0.0
    %4139 = vmatpush1.msra.mxu0 0.0
    %4140 = vmatprep.subr.mxu0 0.0
    %4141 = vmatpush1.msra.mxu0 0.0
    %4142 = vmatprep.subr.mxu0 0.0
    %4143 = vmatpush1.msra.mxu0 0.0
    %4144 = vmatprep.subr.mxu0 0.0
    %4145 = vmatpush1.msra.mxu0 0.0
    %4146 = vmatprep.subr.mxu0 0.0
    %4147 = vmatpush1.msra.mxu0 0.0
    %4148 = vmatprep.subr.mxu0 0.0
    %4149 = vmatpush1.msra.mxu0 0.0
    %4150 = vmatprep.subr.mxu0 0.0
    %4151 = vmatpush1.msra.mxu0 0.0
    %4152 = vmatprep.subr.mxu0 0.0
    %4153 = vmatpush1.msra.mxu0 0.0
    %4154 = vmatprep.subr.mxu0 0.0
    %4155 = vmatpush1.msra.mxu0 0.0
    %4156 = vmatprep.subr.mxu0 0.0
    %4157 = vmatpush1.msra.mxu0 0.0
    %4158 = vmatprep.subr.mxu0 0.0
    %4159 = vmatpush1.msra.mxu0 0.0
    %4160 = vmatprep.subr.mxu0 0.0
    %4161 = vmatpush1.msra.mxu0 0.0
    %4162 = vmatprep.subr.mxu0 0.0
    %4163 = vmatpush1.msra.mxu0 0.0
    %4164 = vmatprep.subr.mxu0 0.0
    %4165 = vmatpush1.msra.mxu0 0.0
    %4166 = vmatprep.subr.mxu0 0.0
    %4167 = vmatpush1.msra.mxu0 0.0
    %4168 = vmatprep.subr.mxu0 0.0
    %4169 = vmatpush1.msra.mxu0 0.0
    %4170 = vmatprep.subr.mxu0 0.0
    %4171 = vmatpush1.msra.mxu0 0.0
    %4172 = vmatprep.subr.mxu0 0.0
    %4173 = vmatpush1.msra.mxu0 0.0
    %4174 = vmatprep.subr.mxu0 0.0
    %4175 = vmatpush1.msra.mxu0 0.0
    %4176 = vmatprep.subr.mxu0 0.0
    %4177 = vmatpush1.msra.mxu0 0.0
    %4178 = vmatprep.subr.mxu0 0.0
    %4179 = vmatpush1.msra.mxu0 0.0
    %4180 = vmatprep.subr.mxu0 0.0
    %4181 = vmatpush1.msra.mxu0 0.0
    %4182 = vmatprep.mubr.f32.mxu0 0.0
    %4183 = vmatmul.mubr.f32.gmra.mrb[0].mxu0 %v4116
    %v4184 = vpop.f32.mrb[0].mxu0
    %v4185 = vadd.f32 0.0, %v4184
    %v4186 = vpop.f32.mrb[0].mxu0
    %4187 = vdwg.mxu0
    %4189 = vrot.lane.b32.xlu0 %v4185, 16
    %v4190 = vpop.permute.xlu0 %4189
    %4192 = vst.msk [vmem:[#allocation2] sm:$0xff] %vm714, %v4190
    %4193 = vrot.lane.b32.xlu0 %v3673, 104
    %v4194 = vpop.permute.xlu0 %4193
    %4195 = vrot.lane.b32.xlu0 %v3673, 72
    %v4196 = vpop.permute.xlu0 %4195
    %v4197 = vsel %vm205, %v4194, 0
    %v4199 = vsel %vm205, %v4196, 0
    %4201 = vmatprep.subr.mxu0 0.0
    %4202 = vmatpush1.xpose.msra.mxu0 %v4199
    %4203 = vmatprep.subr.mxu0 0.0
    %4204 = vmatpush1.xpose.msra.mxu0 0.0
    %4205 = vmatprep.subr.mxu0 0.0
    %4206 = vmatpush1.xpose.msra.mxu0 0.0
    %4207 = vmatprep.subr.mxu0 0.0
    %4208 = vmatpush1.xpose.msra.mxu0 0.0
    %4209 = vmatprep.subr.mxu0 0.0
    %4210 = vmatpush1.xpose.msra.mxu0 0.0
    %4211 = vmatprep.subr.mxu0 0.0
    %4212 = vmatpush1.xpose.msra.mxu0 0.0
    %4213 = vmatprep.subr.mxu0 0.0
    %4214 = vmatpush1.xpose.msra.mxu0 0.0
    %4215 = vmatprep.subr.mxu0 0.0
    %4216 = vmatpush1.xpose.msra.mxu0 0.0
    %4217 = vmatprep.subr.mxu0 0.0
    %4218 = vmatpush1.xpose.msra.mxu0 0.0
    %4219 = vmatprep.subr.mxu0 0.0
    %4220 = vmatpush1.xpose.msra.mxu0 0.0
    %4221 = vmatprep.subr.mxu0 0.0
    %4222 = vmatpush1.xpose.msra.mxu0 0.0
    %4223 = vmatprep.subr.mxu0 0.0
    %4224 = vmatpush1.xpose.msra.mxu0 0.0
    %4225 = vmatprep.subr.mxu0 0.0
    %4226 = vmatpush1.xpose.msra.mxu0 0.0
    %4227 = vmatprep.subr.mxu0 0.0
    %4228 = vmatpush1.xpose.msra.mxu0 0.0
    %4229 = vmatprep.subr.mxu0 0.0
    %4230 = vmatpush1.xpose.msra.mxu0 0.0
    %4231 = vmatprep.subr.mxu0 0.0
    %4232 = vmatpush1.xpose.msra.mxu0 0.0
    %4233 = vmatprep.subr.mxu0 0.0
    %4234 = vmatpush1.xpose.msra.mxu0 0.0
    %4235 = vmatprep.subr.mxu0 0.0
    %4236 = vmatpush1.xpose.msra.mxu0 0.0
    %4237 = vmatprep.subr.mxu0 0.0
    %4238 = vmatpush1.xpose.msra.mxu0 0.0
    %4239 = vmatprep.subr.mxu0 0.0
    %4240 = vmatpush1.xpose.msra.mxu0 0.0
    %4241 = vmatprep.subr.mxu0 0.0
    %4242 = vmatpush1.xpose.msra.mxu0 0.0
    %4243 = vmatprep.subr.mxu0 0.0
    %4244 = vmatpush1.xpose.msra.mxu0 0.0
    %4245 = vmatprep.subr.mxu0 0.0
    %4246 = vmatpush1.xpose.msra.mxu0 0.0
    %4247 = vmatprep.subr.mxu0 0.0
    %4248 = vmatpush1.xpose.msra.mxu0 0.0
    %4249 = vmatprep.subr.mxu0 0.0
    %4250 = vmatpush1.xpose.msra.mxu0 0.0
    %4251 = vmatprep.subr.mxu0 0.0
    %4252 = vmatpush1.xpose.msra.mxu0 0.0
    %4253 = vmatprep.subr.mxu0 0.0
    %4254 = vmatpush1.xpose.msra.mxu0 0.0
    %4255 = vmatprep.subr.mxu0 0.0
    %4256 = vmatpush1.xpose.msra.mxu0 0.0
    %4257 = vmatprep.subr.mxu0 0.0
    %4258 = vmatpush1.xpose.msra.mxu0 0.0
    %4259 = vmatprep.subr.mxu0 0.0
    %4260 = vmatpush1.xpose.msra.mxu0 0.0
    %4261 = vmatprep.subr.mxu0 0.0
    %4262 = vmatpush1.xpose.msra.mxu0 0.0
    %4263 = vmatprep.subr.mxu0 0.0
    %4264 = vmatpush1.xpose.msra.mxu0 0.0
    %4265 = vmatprep.mubr.f32.mxu0 0.0
    %4266 = vmatmul.mubr.f32.gmra.mrb[0].mxu0 %v4197
    %v4267 = vpop.f32.mrb[0].mxu0
    %v4268 = vadd.f32 0.0, %v4267
    %v4269 = vpop.f32.mrb[0].mxu0
    %4270 = vdwg.mxu0
    %v4271 = vmul.f32 %v4268, 0.35355338
    %v4272 = vadd.f32 %v4271, %v3681
    %v4273 = vsel %vm205, %v4272, -inf
    %4274 = vmax.xlane.f32.xlu0 %v4273
    %v4275 = vpop.xlane.xlu0 %4274
    %v4276 = vsub.f32 %v4272, %v4275
    %v4277 = vmul.f32 %v4276, 1.442695
    %v4278 = vpow.pop %v4277
    %v4279 = vsel %vm205, %v4278, 0.0
    %4280 = vadd.xlane.f32.xlu0 %v4279
    %v4281 = vpop.xlane.xlu0 %4280
    %v4282 = vrcp.pop %v4281
    %v4283 = vmul.f32 %v4278, %v4282
    %4284 = vrot.lane.b32.xlu0 %v3673, 40
    %v4285 = vpop.permute.xlu0 %4284
    %v4288 = vsel %vm205, %v4283, 0
    %4290 = vmatprep.subr.mxu0 0.0
    %4291 = vmatpush1.msra.mxu0 %v4285
    %4292 = vmatprep.subr.mxu0 0.0
    %4293 = vmatpush1.msra.mxu0 0.0
    %4294 = vmatprep.subr.mxu0 0.0
    %4295 = vmatpush1.msra.mxu0 0.0
    %4296 = vmatprep.subr.mxu0 0.0
    %4297 = vmatpush1.msra.mxu0 0.0
    %4298 = vmatprep.subr.mxu0 0.0
    %4299 = vmatpush1.msra.mxu0 0.0
    %4300 = vmatprep.subr.mxu0 0.0
    %4301 = vmatpush1.msra.mxu0 0.0
    %4302 = vmatprep.subr.mxu0 0.0
    %4303 = vmatpush1.msra.mxu0 0.0
    %4304 = vmatprep.subr.mxu0 0.0
    %4305 = vmatpush1.msra.mxu0 0.0
    %4306 = vmatprep.subr.mxu0 0.0
    %4307 = vmatpush1.msra.mxu0 0.0
    %4308 = vmatprep.subr.mxu0 0.0
    %4309 = vmatpush1.msra.mxu0 0.0
    %4310 = vmatprep.subr.mxu0 0.0
    %4311 = vmatpush1.msra.mxu0 0.0
    %4312 = vmatprep.subr.mxu0 0.0
    %4313 = vmatpush1.msra.mxu0 0.0
    %4314 = vmatprep.subr.mxu0 0.0
    %4315 = vmatpush1.msra.mxu0 0.0
    %4316 = vmatprep.subr.mxu0 0.0
    %4317 = vmatpush1.msra.mxu0 0.0
    %4318 = vmatprep.subr.mxu0 0.0
    %4319 = vmatpush1.msra.mxu0 0.0
    %4320 = vmatprep.subr.mxu0 0.0
    %4321 = vmatpush1.msra.mxu0 0.0
    %4322 = vmatprep.subr.mxu0 0.0
    %4323 = vmatpush1.msra.mxu0 0.0
    %4324 = vmatprep.subr.mxu0 0.0
    %4325 = vmatpush1.msra.mxu0 0.0
    %4326 = vmatprep.subr.mxu0 0.0
    %4327 = vmatpush1.msra.mxu0 0.0
    %4328 = vmatprep.subr.mxu0 0.0
    %4329 = vmatpush1.msra.mxu0 0.0
    %4330 = vmatprep.subr.mxu0 0.0
    %4331 = vmatpush1.msra.mxu0 0.0
    %4332 = vmatprep.subr.mxu0 0.0
    %4333 = vmatpush1.msra.mxu0 0.0
    %4334 = vmatprep.subr.mxu0 0.0
    %4335 = vmatpush1.msra.mxu0 0.0
    %4336 = vmatprep.subr.mxu0 0.0
    %4337 = vmatpush1.msra.mxu0 0.0
    %4338 = vmatprep.subr.mxu0 0.0
    %4339 = vmatpush1.msra.mxu0 0.0
    %4340 = vmatprep.subr.mxu0 0.0
    %4341 = vmatpush1.msra.mxu0 0.0
    %4342 = vmatprep.subr.mxu0 0.0
    %4343 = vmatpush1.msra.mxu0 0.0
    %4344 = vmatprep.subr.mxu0 0.0
    %4345 = vmatpush1.msra.mxu0 0.0
    %4346 = vmatprep.subr.mxu0 0.0
    %4347 = vmatpush1.msra.mxu0 0.0
    %4348 = vmatprep.subr.mxu0 0.0
    %4349 = vmatpush1.msra.mxu0 0.0
    %4350 = vmatprep.subr.mxu0 0.0
    %4351 = vmatpush1.msra.mxu0 0.0
    %4352 = vmatprep.subr.mxu0 0.0
    %4353 = vmatpush1.msra.mxu0 0.0
    %4354 = vmatprep.mubr.f32.mxu0 0.0
    %4355 = vmatmul.mubr.f32.gmra.mrb[0].mxu0 %v4288
    %v4356 = vpop.f32.mrb[0].mxu0
    %v4357 = vadd.f32 0.0, %v4356
    %v4358 = vpop.f32.mrb[0].mxu0
    %4359 = vdwg.mxu0
    %4361 = vrot.lane.b32.xlu0 %v4357, 24
    %v4362 = vpop.permute.xlu0 %4361
    %4364 = vst.msk [vmem:[#allocation2] sm:$0xff] %vm887, %v4362
    %v4365 = vld [vmem:[%s889] sm:$0xff]
    %4367 = vrot.lane.b32.xlu0 %v3678, 96
    %v4368 = vpop.permute.xlu0 %4367
    %v4369 = vsel %vm205, %v3678, 0
    %v4371 = vsel %vm205, %v4368, 0
    %4373 = vmatprep.subr.mxu0 0.0
    %4374 = vmatpush1.xpose.msra.mxu0 %v4371
    %4375 = vmatprep.subr.mxu0 0.0
    %4376 = vmatpush1.xpose.msra.mxu0 0.0
    %4377 = vmatprep.subr.mxu0 0.0
    %4378 = vmatpush1.xpose.msra.mxu0 0.0
    %4379 = vmatprep.subr.mxu0 0.0
    %4380 = vmatpush1.xpose.msra.mxu0 0.0
    %4381 = vmatprep.subr.mxu0 0.0
    %4382 = vmatpush1.xpose.msra.mxu0 0.0
    %4383 = vmatprep.subr.mxu0 0.0
    %4384 = vmatpush1.xpose.msra.mxu0 0.0
    %4385 = vmatprep.subr.mxu0 0.0
    %4386 = vmatpush1.xpose.msra.mxu0 0.0
    %4387 = vmatprep.subr.mxu0 0.0
    %4388 = vmatpush1.xpose.msra.mxu0 0.0
    %4389 = vmatprep.subr.mxu0 0.0
    %4390 = vmatpush1.xpose.msra.mxu0 0.0
    %4391 = vmatprep.subr.mxu0 0.0
    %4392 = vmatpush1.xpose.msra.mxu0 0.0
    %4393 = vmatprep.subr.mxu0 0.0
    %4394 = vmatpush1.xpose.msra.mxu0 0.0
    %4395 = vmatprep.subr.mxu0 0.0
    %4396 = vmatpush1.xpose.msra.mxu0 0.0
    %4397 = vmatprep.subr.mxu0 0.0
    %4398 = vmatpush1.xpose.msra.mxu0 0.0
    %4399 = vmatprep.subr.mxu0 0.0
    %4400 = vmatpush1.xpose.msra.mxu0 0.0
    %4401 = vmatprep.subr.mxu0 0.0
    %4402 = vmatpush1.xpose.msra.mxu0 0.0
    %4403 = vmatprep.subr.mxu0 0.0
    %4404 = vmatpush1.xpose.msra.mxu0 0.0
    %4405 = vmatprep.subr.mxu0 0.0
    %4406 = vmatpush1.xpose.msra.mxu0 0.0
    %4407 = vmatprep.subr.mxu0 0.0
    %4408 = vmatpush1.xpose.msra.mxu0 0.0
    %4409 = vmatprep.subr.mxu0 0.0
    %4410 = vmatpush1.xpose.msra.mxu0 0.0
    %4411 = vmatprep.subr.mxu0 0.0
    %4412 = vmatpush1.xpose.msra.mxu0 0.0
    %4413 = vmatprep.subr.mxu0 0.0
    %4414 = vmatpush1.xpose.msra.mxu0 0.0
    %4415 = vmatprep.subr.mxu0 0.0
    %4416 = vmatpush1.xpose.msra.mxu0 0.0
    %4417 = vmatprep.subr.mxu0 0.0
    %4418 = vmatpush1.xpose.msra.mxu0 0.0
    %4419 = vmatprep.subr.mxu0 0.0
    %4420 = vmatpush1.xpose.msra.mxu0 0.0
    %4421 = vmatprep.subr.mxu0 0.0
    %4422 = vmatpush1.xpose.msra.mxu0 0.0
    %4423 = vmatprep.subr.mxu0 0.0
    %4424 = vmatpush1.xpose.msra.mxu0 0.0
    %4425 = vmatprep.subr.mxu0 0.0
    %4426 = vmatpush1.xpose.msra.mxu0 0.0
    %4427 = vmatprep.subr.mxu0 0.0
    %4428 = vmatpush1.xpose.msra.mxu0 0.0
    %4429 = vmatprep.subr.mxu0 0.0
    %4430 = vmatpush1.xpose.msra.mxu0 0.0
    %4431 = vmatprep.subr.mxu0 0.0
    %4432 = vmatpush1.xpose.msra.mxu0 0.0
    %4433 = vmatprep.subr.mxu0 0.0
    %4434 = vmatpush1.xpose.msra.mxu0 0.0
    %4435 = vmatprep.subr.mxu0 0.0
    %4436 = vmatpush1.xpose.msra.mxu0 0.0
    %4437 = vmatprep.mubr.f32.mxu0 0.0
    %4438 = vmatmul.mubr.f32.gmra.mrb[0].mxu0 %v4369
    %v4439 = vpop.f32.mrb[0].mxu0
    %v4440 = vadd.f32 0.0, %v4439
    %v4441 = vpop.f32.mrb[0].mxu0
    %4442 = vdwg.mxu0
    %v4443 = vmul.f32 %v4440, 0.35355338
    %v4444 = vadd.f32 %v4443, %v4365
    %v4445 = vsel %vm205, %v4444, -inf
    %4446 = vmax.xlane.f32.xlu0 %v4445
    %v4447 = vpop.xlane.xlu0 %4446
    %v4448 = vsub.f32 %v4444, %v4447
    %v4449 = vmul.f32 %v4448, 1.442695
    %v4450 = vpow.pop %v4449
    %v4451 = vsel %vm205, %v4450, 0.0
    %4452 = vadd.xlane.f32.xlu0 %v4451
    %v4453 = vpop.xlane.xlu0 %4452
    %v4454 = vrcp.pop %v4453
    %v4455 = vmul.f32 %v4450, %v4454
    %4456 = vrot.lane.b32.xlu0 %v3678, 64
    %v4457 = vpop.permute.xlu0 %4456
    %v4460 = vsel %vm205, %v4455, 0
    %4462 = vmatprep.subr.mxu0 0.0
    %4463 = vmatpush1.msra.mxu0 %v4457
    %4464 = vmatprep.subr.mxu0 0.0
    %4465 = vmatpush1.msra.mxu0 0.0
    %4466 = vmatprep.subr.mxu0 0.0
    %4467 = vmatpush1.msra.mxu0 0.0
    %4468 = vmatprep.subr.mxu0 0.0
    %4469 = vmatpush1.msra.mxu0 0.0
    %4470 = vmatprep.subr.mxu0 0.0
    %4471 = vmatpush1.msra.mxu0 0.0
    %4472 = vmatprep.subr.mxu0 0.0
    %4473 = vmatpush1.msra.mxu0 0.0
    %4474 = vmatprep.subr.mxu0 0.0
    %4475 = vmatpush1.msra.mxu0 0.0
    %4476 = vmatprep.subr.mxu0 0.0
    %4477 = vmatpush1.msra.mxu0 0.0
    %4478 = vmatprep.subr.mxu0 0.0
    %4479 = vmatpush1.msra.mxu0 0.0
    %4480 = vmatprep.subr.mxu0 0.0
    %4481 = vmatpush1.msra.mxu0 0.0
    %4482 = vmatprep.subr.mxu0 0.0
    %4483 = vmatpush1.msra.mxu0 0.0
    %4484 = vmatprep.subr.mxu0 0.0
    %4485 = vmatpush1.msra.mxu0 0.0
    %4486 = vmatprep.subr.mxu0 0.0
    %4487 = vmatpush1.msra.mxu0 0.0
    %4488 = vmatprep.subr.mxu0 0.0
    %4489 = vmatpush1.msra.mxu0 0.0
    %4490 = vmatprep.subr.mxu0 0.0
    %4491 = vmatpush1.msra.mxu0 0.0
    %4492 = vmatprep.subr.mxu0 0.0
    %4493 = vmatpush1.msra.mxu0 0.0
    %4494 = vmatprep.subr.mxu0 0.0
    %4495 = vmatpush1.msra.mxu0 0.0
    %4496 = vmatprep.subr.mxu0 0.0
    %4497 = vmatpush1.msra.mxu0 0.0
    %4498 = vmatprep.subr.mxu0 0.0
    %4499 = vmatpush1.msra.mxu0 0.0
    %4500 = vmatprep.subr.mxu0 0.0
    %4501 = vmatpush1.msra.mxu0 0.0
    %4502 = vmatprep.subr.mxu0 0.0
    %4503 = vmatpush1.msra.mxu0 0.0
    %4504 = vmatprep.subr.mxu0 0.0
    %4505 = vmatpush1.msra.mxu0 0.0
    %4506 = vmatprep.subr.mxu0 0.0
    %4507 = vmatpush1.msra.mxu0 0.0
    %4508 = vmatprep.subr.mxu0 0.0
    %4509 = vmatpush1.msra.mxu0 0.0
    %4510 = vmatprep.subr.mxu0 0.0
    %4511 = vmatpush1.msra.mxu0 0.0
    %4512 = vmatprep.subr.mxu0 0.0
    %4513 = vmatpush1.msra.mxu0 0.0
    %4514 = vmatprep.subr.mxu0 0.0
    %4515 = vmatpush1.msra.mxu0 0.0
    %4516 = vmatprep.subr.mxu0 0.0
    %4517 = vmatpush1.msra.mxu0 0.0
    %4518 = vmatprep.subr.mxu0 0.0
    %4519 = vmatpush1.msra.mxu0 0.0
    %4520 = vmatprep.subr.mxu0 0.0
    %4521 = vmatpush1.msra.mxu0 0.0
    %4522 = vmatprep.subr.mxu0 0.0
    %4523 = vmatpush1.msra.mxu0 0.0
    %4524 = vmatprep.subr.mxu0 0.0
    %4525 = vmatpush1.msra.mxu0 0.0
    %4526 = vmatprep.mubr.f32.mxu0 0.0
    %4527 = vmatmul.mubr.f32.gmra.mrb[0].mxu0 %v4460
    %v4528 = vpop.f32.mrb[0].mxu0
    %v4529 = vadd.f32 0.0, %v4528
    %v4530 = vpop.f32.mrb[0].mxu0
    %4531 = vdwg.mxu0
    %4532 = vst.msk [vmem:[#allocation2 + $0x8] sm:$0xff] %vm205, %v4529
    %4533 = vrot.lane.b32.xlu0 %v3678, 120
    %v4534 = vpop.permute.xlu0 %4533
    %4535 = vrot.lane.b32.xlu0 %v3678, 88
    %v4536 = vpop.permute.xlu0 %4535
    %v4537 = vsel %vm205, %v4534, 0
    %v4539 = vsel %vm205, %v4536, 0
    %4541 = vmatprep.subr.mxu0 0.0
    %4542 = vmatpush1.xpose.msra.mxu0 %v4539
    %4543 = vmatprep.subr.mxu0 0.0
    %4544 = vmatpush1.xpose.msra.mxu0 0.0
    %4545 = vmatprep.subr.mxu0 0.0
    %4546 = vmatpush1.xpose.msra.mxu0 0.0
    %4547 = vmatprep.subr.mxu0 0.0
    %4548 = vmatpush1.xpose.msra.mxu0 0.0
    %4549 = vmatprep.subr.mxu0 0.0
    %4550 = vmatpush1.xpose.msra.mxu0 0.0
    %4551 = vmatprep.subr.mxu0 0.0
    %4552 = vmatpush1.xpose.msra.mxu0 0.0
    %4553 = vmatprep.subr.mxu0 0.0
    %4554 = vmatpush1.xpose.msra.mxu0 0.0
    %4555 = vmatprep.subr.mxu0 0.0
    %4556 = vmatpush1.xpose.msra.mxu0 0.0
    %4557 = vmatprep.subr.mxu0 0.0
    %4558 = vmatpush1.xpose.msra.mxu0 0.0
    %4559 = vmatprep.subr.mxu0 0.0
    %4560 = vmatpush1.xpose.msra.mxu0 0.0
    %4561 = vmatprep.subr.mxu0 0.0
    %4562 = vmatpush1.xpose.msra.mxu0 0.0
    %4563 = vmatprep.subr.mxu0 0.0
    %4564 = vmatpush1.xpose.msra.mxu0 0.0
    %4565 = vmatprep.subr.mxu0 0.0
    %4566 = vmatpush1.xpose.msra.mxu0 0.0
    %4567 = vmatprep.subr.mxu0 0.0
    %4568 = vmatpush1.xpose.msra.mxu0 0.0
    %4569 = vmatprep.subr.mxu0 0.0
    %4570 = vmatpush1.xpose.msra.mxu0 0.0
    %4571 = vmatprep.subr.mxu0 0.0
    %4572 = vmatpush1.xpose.msra.mxu0 0.0
    %4573 = vmatprep.subr.mxu0 0.0
    %4574 = vmatpush1.xpose.msra.mxu0 0.0
    %4575 = vmatprep.subr.mxu0 0.0
    %4576 = vmatpush1.xpose.msra.mxu0 0.0
    %4577 = vmatprep.subr.mxu0 0.0
    %4578 = vmatpush1.xpose.msra.mxu0 0.0
    %4579 = vmatprep.subr.mxu0 0.0
    %4580 = vmatpush1.xpose.msra.mxu0 0.0
    %4581 = vmatprep.subr.mxu0 0.0
    %4582 = vmatpush1.xpose.msra.mxu0 0.0
    %4583 = vmatprep.subr.mxu0 0.0
    %4584 = vmatpush1.xpose.msra.mxu0 0.0
    %4585 = vmatprep.subr.mxu0 0.0
    %4586 = vmatpush1.xpose.msra.mxu0 0.0
    %4587 = vmatprep.subr.mxu0 0.0
    %4588 = vmatpush1.xpose.msra.mxu0 0.0
    %4589 = vmatprep.subr.mxu0 0.0
    %4590 = vmatpush1.xpose.msra.mxu0 0.0
    %4591 = vmatprep.subr.mxu0 0.0
    %4592 = vmatpush1.xpose.msra.mxu0 0.0
    %4593 = vmatprep.subr.mxu0 0.0
    %4594 = vmatpush1.xpose.msra.mxu0 0.0
    %4595 = vmatprep.subr.mxu0 0.0
    %4596 = vmatpush1.xpose.msra.mxu0 0.0
    %4597 = vmatprep.subr.mxu0 0.0
    %4598 = vmatpush1.xpose.msra.mxu0 0.0
    %4599 = vmatprep.subr.mxu0 0.0
    %4600 = vmatpush1.xpose.msra.mxu0 0.0
    %4601 = vmatprep.subr.mxu0 0.0
    %4602 = vmatpush1.xpose.msra.mxu0 0.0
    %4603 = vmatprep.subr.mxu0 0.0
    %4604 = vmatpush1.xpose.msra.mxu0 0.0
    %4605 = vmatprep.mubr.f32.mxu0 0.0
    %4606 = vmatmul.mubr.f32.gmra.mrb[0].mxu0 %v4537
    %v4607 = vpop.f32.mrb[0].mxu0
    %v4608 = vadd.f32 0.0, %v4607
    %v4609 = vpop.f32.mrb[0].mxu0
    %4610 = vdwg.mxu0
    %v4611 = vmul.f32 %v4608, 0.35355338
    %v4612 = vadd.f32 %v4611, %v4365
    %v4613 = vsel %vm205, %v4612, -inf
    %4614 = vmax.xlane.f32.xlu0 %v4613
    %v4615 = vpop.xlane.xlu0 %4614
    %v4616 = vsub.f32 %v4612, %v4615
    %v4617 = vmul.f32 %v4616, 1.442695
    %v4618 = vpow.pop %v4617
    %v4619 = vsel %vm205, %v4618, 0.0
    %4620 = vadd.xlane.f32.xlu0 %v4619
    %v4621 = vpop.xlane.xlu0 %4620
    %v4622 = vrcp.pop %v4621
    %v4623 = vmul.f32 %v4618, %v4622
    %4624 = vrot.lane.b32.xlu0 %v3678, 56
    %v4625 = vpop.permute.xlu0 %4624
    %v4628 = vsel %vm205, %v4623, 0
    %4630 = vmatprep.subr.mxu0 0.0
    %4631 = vmatpush1.msra.mxu0 %v4625
    %4632 = vmatprep.subr.mxu0 0.0
    %4633 = vmatpush1.msra.mxu0 0.0
    %4634 = vmatprep.subr.mxu0 0.0
    %4635 = vmatpush1.msra.mxu0 0.0
    %4636 = vmatprep.subr.mxu0 0.0
    %4637 = vmatpush1.msra.mxu0 0.0
    %4638 = vmatprep.subr.mxu0 0.0
    %4639 = vmatpush1.msra.mxu0 0.0
    %4640 = vmatprep.subr.mxu0 0.0
    %4641 = vmatpush1.msra.mxu0 0.0
    %4642 = vmatprep.subr.mxu0 0.0
    %4643 = vmatpush1.msra.mxu0 0.0
    %4644 = vmatprep.subr.mxu0 0.0
    %4645 = vmatpush1.msra.mxu0 0.0
    %4646 = vmatprep.subr.mxu0 0.0
    %4647 = vmatpush1.msra.mxu0 0.0
    %4648 = vmatprep.subr.mxu0 0.0
    %4649 = vmatpush1.msra.mxu0 0.0
    %4650 = vmatprep.subr.mxu0 0.0
    %4651 = vmatpush1.msra.mxu0 0.0
    %4652 = vmatprep.subr.mxu0 0.0
    %4653 = vmatpush1.msra.mxu0 0.0
    %4654 = vmatprep.subr.mxu0 0.0
    %4655 = vmatpush1.msra.mxu0 0.0
    %4656 = vmatprep.subr.mxu0 0.0
    %4657 = vmatpush1.msra.mxu0 0.0
    %4658 = vmatprep.subr.mxu0 0.0
    %4659 = vmatpush1.msra.mxu0 0.0
    %4660 = vmatprep.subr.mxu0 0.0
    %4661 = vmatpush1.msra.mxu0 0.0
    %4662 = vmatprep.subr.mxu0 0.0
    %4663 = vmatpush1.msra.mxu0 0.0
    %4664 = vmatprep.subr.mxu0 0.0
    %4665 = vmatpush1.msra.mxu0 0.0
    %4666 = vmatprep.subr.mxu0 0.0
    %4667 = vmatpush1.msra.mxu0 0.0
    %4668 = vmatprep.subr.mxu0 0.0
    %4669 = vmatpush1.msra.mxu0 0.0
    %4670 = vmatprep.subr.mxu0 0.0
    %4671 = vmatpush1.msra.mxu0 0.0
    %4672 = vmatprep.subr.mxu0 0.0
    %4673 = vmatpush1.msra.mxu0 0.0
    %4674 = vmatprep.subr.mxu0 0.0
    %4675 = vmatpush1.msra.mxu0 0.0
    %4676 = vmatprep.subr.mxu0 0.0
    %4677 = vmatpush1.msra.mxu0 0.0
    %4678 = vmatprep.subr.mxu0 0.0
    %4679 = vmatpush1.msra.mxu0 0.0
    %4680 = vmatprep.subr.mxu0 0.0
    %4681 = vmatpush1.msra.mxu0 0.0
    %4682 = vmatprep.subr.mxu0 0.0
    %4683 = vmatpush1.msra.mxu0 0.0
    %4684 = vmatprep.subr.mxu0 0.0
    %4685 = vmatpush1.msra.mxu0 0.0
    %4686 = vmatprep.subr.mxu0 0.0
    %4687 = vmatpush1.msra.mxu0 0.0
    %4688 = vmatprep.subr.mxu0 0.0
    %4689 = vmatpush1.msra.mxu0 0.0
    %4690 = vmatprep.subr.mxu0 0.0
    %4691 = vmatpush1.msra.mxu0 0.0
    %4692 = vmatprep.subr.mxu0 0.0
    %4693 = vmatpush1.msra.mxu0 0.0
    %4694 = vmatprep.mubr.f32.mxu0 0.0
    %4695 = vmatmul.mubr.f32.gmra.mrb[0].mxu0 %v4628
    %v4696 = vpop.f32.mrb[0].mxu0
    %v4697 = vadd.f32 0.0, %v4696
    %v4698 = vpop.f32.mrb[0].mxu0
    %4699 = vdwg.mxu0
    %4701 = vrot.lane.b32.xlu0 %v4697, 8
    %v4702 = vpop.permute.xlu0 %4701
    %4704 = vst.msk [vmem:[#allocation2 + $0x8] sm:$0xff] %vm541, %v4702
    %4705 = vrot.lane.b32.xlu0 %v3678, 112
    %v4706 = vpop.permute.xlu0 %4705
    %4707 = vrot.lane.b32.xlu0 %v3678, 80
    %v4708 = vpop.permute.xlu0 %4707
    %v4709 = vsel %vm205, %v4706, 0
    %v4711 = vsel %vm205, %v4708, 0
    %4713 = vmatprep.subr.mxu0 0.0
    %4714 = vmatpush1.xpose.msra.mxu0 %v4711
    %4715 = vmatprep.subr.mxu0 0.0
    %4716 = vmatpush1.xpose.msra.mxu0 0.0
    %4717 = vmatprep.subr.mxu0 0.0
    %4718 = vmatpush1.xpose.msra.mxu0 0.0
    %4719 = vmatprep.subr.mxu0 0.0
    %4720 = vmatpush1.xpose.msra.mxu0 0.0
    %4721 = vmatprep.subr.mxu0 0.0
    %4722 = vmatpush1.xpose.msra.mxu0 0.0
    %4723 = vmatprep.subr.mxu0 0.0
    %4724 = vmatpush1.xpose.msra.mxu0 0.0
    %4725 = vmatprep.subr.mxu0 0.0
    %4726 = vmatpush1.xpose.msra.mxu0 0.0
    %4727 = vmatprep.subr.mxu0 0.0
    %4728 = vmatpush1.xpose.msra.mxu0 0.0
    %4729 = vmatprep.subr.mxu0 0.0
    %4730 = vmatpush1.xpose.msra.mxu0 0.0
    %4731 = vmatprep.subr.mxu0 0.0
    %4732 = vmatpush1.xpose.msra.mxu0 0.0
    %4733 = vmatprep.subr.mxu0 0.0
    %4734 = vmatpush1.xpose.msra.mxu0 0.0
    %4735 = vmatprep.subr.mxu0 0.0
    %4736 = vmatpush1.xpose.msra.mxu0 0.0
    %4737 = vmatprep.subr.mxu0 0.0
    %4738 = vmatpush1.xpose.msra.mxu0 0.0
    %4739 = vmatprep.subr.mxu0 0.0
    %4740 = vmatpush1.xpose.msra.mxu0 0.0
    %4741 = vmatprep.subr.mxu0 0.0
    %4742 = vmatpush1.xpose.msra.mxu0 0.0
    %4743 = vmatprep.subr.mxu0 0.0
    %4744 = vmatpush1.xpose.msra.mxu0 0.0
    %4745 = vmatprep.subr.mxu0 0.0
    %4746 = vmatpush1.xpose.msra.mxu0 0.0
    %4747 = vmatprep.subr.mxu0 0.0
    %4748 = vmatpush1.xpose.msra.mxu0 0.0
    %4749 = vmatprep.subr.mxu0 0.0
    %4750 = vmatpush1.xpose.msra.mxu0 0.0
    %4751 = vmatprep.subr.mxu0 0.0
    %4752 = vmatpush1.xpose.msra.mxu0 0.0
    %4753 = vmatprep.subr.mxu0 0.0
    %4754 = vmatpush1.xpose.msra.mxu0 0.0
    %4755 = vmatprep.subr.mxu0 0.0
    %4756 = vmatpush1.xpose.msra.mxu0 0.0
    %4757 = vmatprep.subr.mxu0 0.0
    %4758 = vmatpush1.xpose.msra.mxu0 0.0
    %4759 = vmatprep.subr.mxu0 0.0
    %4760 = vmatpush1.xpose.msra.mxu0 0.0
    %4761 = vmatprep.subr.mxu0 0.0
    %4762 = vmatpush1.xpose.msra.mxu0 0.0
    %4763 = vmatprep.subr.mxu0 0.0
    %4764 = vmatpush1.xpose.msra.mxu0 0.0
    %4765 = vmatprep.subr.mxu0 0.0
    %4766 = vmatpush1.xpose.msra.mxu0 0.0
    %4767 = vmatprep.subr.mxu0 0.0
    %4768 = vmatpush1.xpose.msra.mxu0 0.0
    %4769 = vmatprep.subr.mxu0 0.0
    %4770 = vmatpush1.xpose.msra.mxu0 0.0
    %4771 = vmatprep.subr.mxu0 0.0
    %4772 = vmatpush1.xpose.msra.mxu0 0.0
    %4773 = vmatprep.subr.mxu0 0.0
    %4774 = vmatpush1.xpose.msra.mxu0 0.0
    %4775 = vmatprep.subr.mxu0 0.0
    %4776 = vmatpush1.xpose.msra.mxu0 0.0
    %4777 = vmatprep.mubr.f32.mxu0 0.0
    %4778 = vmatmul.mubr.f32.gmra.mrb[0].mxu0 %v4709
    %v4779 = vpop.f32.mrb[0].mxu0
    %v4780 = vadd.f32 0.0, %v4779
    %v4781 = vpop.f32.mrb[0].mxu0
    %4782 = vdwg.mxu0
    %v4783 = vmul.f32 %v4780, 0.35355338
    %v4784 = vadd.f32 %v4783, %v4365
    %v4785 = vsel %vm205, %v4784, -inf
    %4786 = vmax.xlane.f32.xlu0 %v4785
    %v4787 = vpop.xlane.xlu0 %4786
    %v4788 = vsub.f32 %v4784, %v4787
    %v4789 = vmul.f32 %v4788, 1.442695
    %v4790 = vpow.pop %v4789
    %v4791 = vsel %vm205, %v4790, 0.0
    %4792 = vadd.xlane.f32.xlu0 %v4791
    %v4793 = vpop.xlane.xlu0 %4792
    %v4794 = vrcp.pop %v4793
    %v4795 = vmul.f32 %v4790, %v4794
    %4796 = vrot.lane.b32.xlu0 %v3678, 48
    %v4797 = vpop.permute.xlu0 %4796
    %v4800 = vsel %vm205, %v4795, 0
    %4802 = vmatprep.subr.mxu0 0.0
    %4803 = vmatpush1.msra.mxu0 %v4797
    %4804 = vmatprep.subr.mxu0 0.0
    %4805 = vmatpush1.msra.mxu0 0.0
    %4806 = vmatprep.subr.mxu0 0.0
    %4807 = vmatpush1.msra.mxu0 0.0
    %4808 = vmatprep.subr.mxu0 0.0
    %4809 = vmatpush1.msra.mxu0 0.0
    %4810 = vmatprep.subr.mxu0 0.0
    %4811 = vmatpush1.msra.mxu0 0.0
    %4812 = vmatprep.subr.mxu0 0.0
    %4813 = vmatpush1.msra.mxu0 0.0
    %4814 = vmatprep.subr.mxu0 0.0
    %4815 = vmatpush1.msra.mxu0 0.0
    %4816 = vmatprep.subr.mxu0 0.0
    %4817 = vmatpush1.msra.mxu0 0.0
    %4818 = vmatprep.subr.mxu0 0.0
    %4819 = vmatpush1.msra.mxu0 0.0
    %4820 = vmatprep.subr.mxu0 0.0
    %4821 = vmatpush1.msra.mxu0 0.0
    %4822 = vmatprep.subr.mxu0 0.0
    %4823 = vmatpush1.msra.mxu0 0.0
    %4824 = vmatprep.subr.mxu0 0.0
    %4825 = vmatpush1.msra.mxu0 0.0
    %4826 = vmatprep.subr.mxu0 0.0
    %4827 = vmatpush1.msra.mxu0 0.0
    %4828 = vmatprep.subr.mxu0 0.0
    %4829 = vmatpush1.msra.mxu0 0.0
    %4830 = vmatprep.subr.mxu0 0.0
    %4831 = vmatpush1.msra.mxu0 0.0
    %4832 = vmatprep.subr.mxu0 0.0
    %4833 = vmatpush1.msra.mxu0 0.0
    %4834 = vmatprep.subr.mxu0 0.0
    %4835 = vmatpush1.msra.mxu0 0.0
    %4836 = vmatprep.subr.mxu0 0.0
    %4837 = vmatpush1.msra.mxu0 0.0
    %4838 = vmatprep.subr.mxu0 0.0
    %4839 = vmatpush1.msra.mxu0 0.0
    %4840 = vmatprep.subr.mxu0 0.0
    %4841 = vmatpush1.msra.mxu0 0.0
    %4842 = vmatprep.subr.mxu0 0.0
    %4843 = vmatpush1.msra.mxu0 0.0
    %4844 = vmatprep.subr.mxu0 0.0
    %4845 = vmatpush1.msra.mxu0 0.0
    %4846 = vmatprep.subr.mxu0 0.0
    %4847 = vmatpush1.msra.mxu0 0.0
    %4848 = vmatprep.subr.mxu0 0.0
    %4849 = vmatpush1.msra.mxu0 0.0
    %4850 = vmatprep.subr.mxu0 0.0
    %4851 = vmatpush1.msra.mxu0 0.0
    %4852 = vmatprep.subr.mxu0 0.0
    %4853 = vmatpush1.msra.mxu0 0.0
    %4854 = vmatprep.subr.mxu0 0.0
    %4855 = vmatpush1.msra.mxu0 0.0
    %4856 = vmatprep.subr.mxu0 0.0
    %4857 = vmatpush1.msra.mxu0 0.0
    %4858 = vmatprep.subr.mxu0 0.0
    %4859 = vmatpush1.msra.mxu0 0.0
    %4860 = vmatprep.subr.mxu0 0.0
    %4861 = vmatpush1.msra.mxu0 0.0
    %4862 = vmatprep.subr.mxu0 0.0
    %4863 = vmatpush1.msra.mxu0 0.0
    %4864 = vmatprep.subr.mxu0 0.0
    %4865 = vmatpush1.msra.mxu0 0.0
    %4866 = vmatprep.mubr.f32.mxu0 0.0
    %4867 = vmatmul.mubr.f32.gmra.mrb[0].mxu0 %v4800
    %v4868 = vpop.f32.mrb[0].mxu0
    %v4869 = vadd.f32 0.0, %v4868
    %v4870 = vpop.f32.mrb[0].mxu0
    %4871 = vdwg.mxu0
    %4873 = vrot.lane.b32.xlu0 %v4869, 16
    %v4874 = vpop.permute.xlu0 %4873
    %4876 = vst.msk [vmem:[#allocation2 + $0x8] sm:$0xff] %vm714, %v4874
    %4877 = vrot.lane.b32.xlu0 %v3678, 104
    %v4878 = vpop.permute.xlu0 %4877
    %4879 = vrot.lane.b32.xlu0 %v3678, 72
    %v4880 = vpop.permute.xlu0 %4879
    %v4881 = vsel %vm205, %v4878, 0
    %v4883 = vsel %vm205, %v4880, 0
    %4885 = vmatprep.subr.mxu0 0.0
    %4886 = vmatpush1.xpose.msra.mxu0 %v4883
    %4887 = vmatprep.subr.mxu0 0.0
    %4888 = vmatpush1.xpose.msra.mxu0 0.0
    %4889 = vmatprep.subr.mxu0 0.0
    %4890 = vmatpush1.xpose.msra.mxu0 0.0
    %4891 = vmatprep.subr.mxu0 0.0
    %4892 = vmatpush1.xpose.msra.mxu0 0.0
    %4893 = vmatprep.subr.mxu0 0.0
    %4894 = vmatpush1.xpose.msra.mxu0 0.0
    %4895 = vmatprep.subr.mxu0 0.0
    %4896 = vmatpush1.xpose.msra.mxu0 0.0
    %4897 = vmatprep.subr.mxu0 0.0
    %4898 = vmatpush1.xpose.msra.mxu0 0.0
    %4899 = vmatprep.subr.mxu0 0.0
    %4900 = vmatpush1.xpose.msra.mxu0 0.0
    %4901 = vmatprep.subr.mxu0 0.0
    %4902 = vmatpush1.xpose.msra.mxu0 0.0
    %4903 = vmatprep.subr.mxu0 0.0
    %4904 = vmatpush1.xpose.msra.mxu0 0.0
    %4905 = vmatprep.subr.mxu0 0.0
    %4906 = vmatpush1.xpose.msra.mxu0 0.0
    %4907 = vmatprep.subr.mxu0 0.0
    %4908 = vmatpush1.xpose.msra.mxu0 0.0
    %4909 = vmatprep.subr.mxu0 0.0
    %4910 = vmatpush1.xpose.msra.mxu0 0.0
    %4911 = vmatprep.subr.mxu0 0.0
    %4912 = vmatpush1.xpose.msra.mxu0 0.0
    %4913 = vmatprep.subr.mxu0 0.0
    %4914 = vmatpush1.xpose.msra.mxu0 0.0
    %4915 = vmatprep.subr.mxu0 0.0
    %4916 = vmatpush1.xpose.msra.mxu0 0.0
    %4917 = vmatprep.subr.mxu0 0.0
    %4918 = vmatpush1.xpose.msra.mxu0 0.0
    %4919 = vmatprep.subr.mxu0 0.0
    %4920 = vmatpush1.xpose.msra.mxu0 0.0
    %4921 = vmatprep.subr.mxu0 0.0
    %4922 = vmatpush1.xpose.msra.mxu0 0.0
    %4923 = vmatprep.subr.mxu0 0.0
    %4924 = vmatpush1.xpose.msra.mxu0 0.0
    %4925 = vmatprep.subr.mxu0 0.0
    %4926 = vmatpush1.xpose.msra.mxu0 0.0
    %4927 = vmatprep.subr.mxu0 0.0
    %4928 = vmatpush1.xpose.msra.mxu0 0.0
    %4929 = vmatprep.subr.mxu0 0.0
    %4930 = vmatpush1.xpose.msra.mxu0 0.0
    %4931 = vmatprep.subr.mxu0 0.0
    %4932 = vmatpush1.xpose.msra.mxu0 0.0
    %4933 = vmatprep.subr.mxu0 0.0
    %4934 = vmatpush1.xpose.msra.mxu0 0.0
    %4935 = vmatprep.subr.mxu0 0.0
    %4936 = vmatpush1.xpose.msra.mxu0 0.0
    %4937 = vmatprep.subr.mxu0 0.0
    %4938 = vmatpush1.xpose.msra.mxu0 0.0
    %4939 = vmatprep.subr.mxu0 0.0
    %4940 = vmatpush1.xpose.msra.mxu0 0.0
    %4941 = vmatprep.subr.mxu0 0.0
    %4942 = vmatpush1.xpose.msra.mxu0 0.0
    %4943 = vmatprep.subr.mxu0 0.0
    %4944 = vmatpush1.xpose.msra.mxu0 0.0
    %4945 = vmatprep.subr.mxu0 0.0
    %4946 = vmatpush1.xpose.msra.mxu0 0.0
    %4947 = vmatprep.subr.mxu0 0.0
    %4948 = vmatpush1.xpose.msra.mxu0 0.0
    %4949 = vmatprep.mubr.f32.mxu0 0.0
    %4950 = vmatmul.mubr.f32.gmra.mrb[0].mxu0 %v4881
    %v4951 = vpop.f32.mrb[0].mxu0
    %v4952 = vadd.f32 0.0, %v4951
    %v4953 = vpop.f32.mrb[0].mxu0
    %4954 = vdwg.mxu0
    %v4955 = vmul.f32 %v4952, 0.35355338
    %v4956 = vadd.f32 %v4955, %v4365
    %v4957 = vsel %vm205, %v4956, -inf
    %4958 = vmax.xlane.f32.xlu0 %v4957
    %v4959 = vpop.xlane.xlu0 %4958
    %v4960 = vsub.f32 %v4956, %v4959
    %v4961 = vmul.f32 %v4960, 1.442695
    %v4962 = vpow.pop %v4961
    %v4963 = vsel %vm205, %v4962, 0.0
    %4964 = vadd.xlane.f32.xlu0 %v4963
    %v4965 = vpop.xlane.xlu0 %4964
    %v4966 = vrcp.pop %v4965
    %v4967 = vmul.f32 %v4962, %v4966
    %4968 = vrot.lane.b32.xlu0 %v3678, 40
    %v4969 = vpop.permute.xlu0 %4968
    %v4972 = vsel %vm205, %v4967, 0
    %4974 = vmatprep.subr.mxu0 0.0
    %4975 = vmatpush1.msra.mxu0 %v4969
    %4976 = vmatprep.subr.mxu0 0.0
    %4977 = vmatpush1.msra.mxu0 0.0
    %4978 = vmatprep.subr.mxu0 0.0
    %4979 = vmatpush1.msra.mxu0 0.0
    %4980 = vmatprep.subr.mxu0 0.0
    %4981 = vmatpush1.msra.mxu0 0.0
    %4982 = vmatprep.subr.mxu0 0.0
    %4983 = vmatpush1.msra.mxu0 0.0
    %4984 = vmatprep.subr.mxu0 0.0
    %4985 = vmatpush1.msra.mxu0 0.0
    %4986 = vmatprep.subr.mxu0 0.0
    %4987 = vmatpush1.msra.mxu0 0.0
    %4988 = vmatprep.subr.mxu0 0.0
    %4989 = vmatpush1.msra.mxu0 0.0
    %4990 = vmatprep.subr.mxu0 0.0
    %4991 = vmatpush1.msra.mxu0 0.0
    %4992 = vmatprep.subr.mxu0 0.0
    %4993 = vmatpush1.msra.mxu0 0.0
    %4994 = vmatprep.subr.mxu0 0.0
    %4995 = vmatpush1.msra.mxu0 0.0
    %4996 = vmatprep.subr.mxu0 0.0
    %4997 = vmatpush1.msra.mxu0 0.0
    %4998 = vmatprep.subr.mxu0 0.0
    %4999 = vmatpush1.msra.mxu0 0.0
    %5000 = vmatprep.subr.mxu0 0.0
    %5001 = vmatpush1.msra.mxu0 0.0
    %5002 = vmatprep.subr.mxu0 0.0
    %5003 = vmatpush1.msra.mxu0 0.0
    %5004 = vmatprep.subr.mxu0 0.0
    %5005 = vmatpush1.msra.mxu0 0.0
    %5006 = vmatprep.subr.mxu0 0.0
    %5007 = vmatpush1.msra.mxu0 0.0
    %5008 = vmatprep.subr.mxu0 0.0
    %5009 = vmatpush1.msra.mxu0 0.0
    %5010 = vmatprep.subr.mxu0 0.0
    %5011 = vmatpush1.msra.mxu0 0.0
    %5012 = vmatprep.subr.mxu0 0.0
    %5013 = vmatpush1.msra.mxu0 0.0
    %5014 = vmatprep.subr.mxu0 0.0
    %5015 = vmatpush1.msra.mxu0 0.0
    %5016 = vmatprep.subr.mxu0 0.0
    %5017 = vmatpush1.msra.mxu0 0.0
    %5018 = vmatprep.subr.mxu0 0.0
    %5019 = vmatpush1.msra.mxu0 0.0
    %5020 = vmatprep.subr.mxu0 0.0
    %5021 = vmatpush1.msra.mxu0 0.0
    %5022 = vmatprep.subr.mxu0 0.0
    %5023 = vmatpush1.msra.mxu0 0.0
    %5024 = vmatprep.subr.mxu0 0.0
    %5025 = vmatpush1.msra.mxu0 0.0
    %5026 = vmatprep.subr.mxu0 0.0
    %5027 = vmatpush1.msra.mxu0 0.0
    %5028 = vmatprep.subr.mxu0 0.0
    %5029 = vmatpush1.msra.mxu0 0.0
    %5030 = vmatprep.subr.mxu0 0.0
    %5031 = vmatpush1.msra.mxu0 0.0
    %5032 = vmatprep.subr.mxu0 0.0
    %5033 = vmatpush1.msra.mxu0 0.0
    %5034 = vmatprep.subr.mxu0 0.0
    %5035 = vmatpush1.msra.mxu0 0.0
    %5036 = vmatprep.subr.mxu0 0.0
    %5037 = vmatpush1.msra.mxu0 0.0
    %5038 = vmatprep.mubr.f32.mxu0 0.0
    %5039 = vmatmul.mubr.f32.gmra.mrb[0].mxu0 %v4972
    %v5040 = vpop.f32.mrb[0].mxu0
    %v5041 = vadd.f32 0.0, %v5040
    %v5042 = vpop.f32.mrb[0].mxu0
    %5043 = vdwg.mxu0
    %5045 = vrot.lane.b32.xlu0 %v5041, 24
    %v5046 = vpop.permute.xlu0 %5045
    %5048 = vst.msk [vmem:[#allocation2 + $0x8] sm:$0xff] %vm887, %v5046
    %v5049 = vld [vmem:[#allocation2] sm:$0xff]
    %v5050 = vld [vmem:[#allocation2 + $0x8] sm:$0xff]
    %s5051 = scalar_lea.vmem %s7, 64
    %v5052 = vld [vmem:[%s5051] sm:$0xff]
    %v5053 = vld [vmem:[%s5051 + $0x8] sm:$0xff]
    %v5054 = vld [vmem:[%s5051 + $0x10] sm:$0xff]
    %v5055 = vld [vmem:[%s5051 + $0x18] sm:$0xff]
    %s5056 = scalar_lea.vmem %s8, 2
    %v5057 = vld [vmem:[%s5056] sm:$0x1]
    %v5059 = vlaneseq
    %v5060 = vshrl.u32 %v5059, 7
    %v5061 = vsub.s32 0, %v5060
    %v5062 = vrot.slane %v5057, %v5061
    %v5065 = vsel %vm55, %v5049, 0
    %v5068 = vsel %vm55, %v5050, 0
    %5070 = vmatprep.subr.mxu0 0.0
    %5071 = vmatpush1.msra.mxu0 %v5052
    %5072 = vmatprep.subr.mxu0 0.0
    %5073 = vmatpush1.msra.mxu0 %v5053
    %5074 = vmatprep.subr.mxu0 0.0
    %5075 = vmatpush1.msra.mxu0 %v5054
    %5076 = vmatprep.subr.mxu0 0.0
    %5077 = vmatpush1.msra.mxu0 %v5055
    %5078 = vmatprep.subr.mxu0 0.0
    %5079 = vmatpush1.msra.mxu0 0.0
    %5080 = vmatprep.subr.mxu0 0.0
    %5081 = vmatpush1.msra.mxu0 0.0
    %5082 = vmatprep.subr.mxu0 0.0
    %5083 = vmatpush1.msra.mxu0 0.0
    %5084 = vmatprep.subr.mxu0 0.0
    %5085 = vmatpush1.msra.mxu0 0.0
    %5086 = vmatprep.subr.mxu0 0.0
    %5087 = vmatpush1.msra.mxu0 0.0
    %5088 = vmatprep.subr.mxu0 0.0
    %5089 = vmatpush1.msra.mxu0 0.0
    %5090 = vmatprep.subr.mxu0 0.0
    %5091 = vmatpush1.msra.mxu0 0.0
    %5092 = vmatprep.subr.mxu0 0.0
    %5093 = vmatpush1.msra.mxu0 0.0
    %5094 = vmatprep.subr.mxu0 0.0
    %5095 = vmatpush1.msra.mxu0 0.0
    %5096 = vmatprep.subr.mxu0 0.0
    %5097 = vmatpush1.msra.mxu0 0.0
    %5098 = vmatprep.subr.mxu0 0.0
    %5099 = vmatpush1.msra.mxu0 0.0
    %5100 = vmatprep.subr.mxu0 0.0
    %5101 = vmatpush1.msra.mxu0 0.0
    %5102 = vmatprep.subr.mxu0 0.0
    %5103 = vmatpush1.msra.mxu0 0.0
    %5104 = vmatprep.subr.mxu0 0.0
    %5105 = vmatpush1.msra.mxu0 0.0
    %5106 = vmatprep.subr.mxu0 0.0
    %5107 = vmatpush1.msra.mxu0 0.0
    %5108 = vmatprep.subr.mxu0 0.0
    %5109 = vmatpush1.msra.mxu0 0.0
    %5110 = vmatprep.subr.mxu0 0.0
    %5111 = vmatpush1.msra.mxu0 0.0
    %5112 = vmatprep.subr.mxu0 0.0
    %5113 = vmatpush1.msra.mxu0 0.0
    %5114 = vmatprep.subr.mxu0 0.0
    %5115 = vmatpush1.msra.mxu0 0.0
    %5116 = vmatprep.subr.mxu0 0.0
    %5117 = vmatpush1.msra.mxu0 0.0
    %5118 = vmatprep.subr.mxu0 0.0
    %5119 = vmatpush1.msra.mxu0 0.0
    %5120 = vmatprep.subr.mxu0 0.0
    %5121 = vmatpush1.msra.mxu0 0.0
    %5122 = vmatprep.subr.mxu0 0.0
    %5123 = vmatpush1.msra.mxu0 0.0
    %5124 = vmatprep.subr.mxu0 0.0
    %5125 = vmatpush1.msra.mxu0 0.0
    %5126 = vmatprep.subr.mxu0 0.0
    %5127 = vmatpush1.msra.mxu0 0.0
    %5128 = vmatprep.subr.mxu0 0.0
    %5129 = vmatpush1.msra.mxu0 0.0
    %5130 = vmatprep.subr.mxu0 0.0
    %5131 = vmatpush1.msra.mxu0 0.0
    %5132 = vmatprep.subr.mxu0 0.0
    %5133 = vmatpush1.msra.mxu0 0.0
    %5134 = vmatprep.mubr.f32.mxu0 0.0
    %5135 = vmatmul.mubr.f32.gmra.mrb[0].mxu0 %v5065
    %v5136 = vpop.f32.mrb[0].mxu0
    %v5137 = vadd.f32 %v5062, %v5136
    %v5138 = vpop.f32.mrb[0].mxu0
    %5139 = vmatprep.mubr.f32.mxu0 0.0
    %5140 = vmatmul.mubr.f32.gmra.mrb[0].mxu0 %v5068
    %v5141 = vpop.f32.mrb[0].mxu0
    %v5142 = vadd.f32 %v5062, %v5141
    %v5143 = vpop.f32.mrb[0].mxu0
    %5144 = vdwg.mxu0
    %v5145 = vadd.f32 %v5137, %v3531
    %v5146 = vadd.f32 %v5142, %v3532
    %v5147 = vld [vmem:[%s3 + $0x4] sm:$0x1]
    %v5148 = vld [vmem:[%s4 + $0x4] sm:$0x1]
    %v5149 = vsel %vm55, %v5145, 0.0
    %5150 = vadd.xlane.f32.xlu0 %v5149
    %v5151 = vpop.xlane.xlu0 %5150
    %v5152 = vsel %vm55, %v5146, 0.0
    %5153 = vadd.xlane.f32.xlu0 %v5152
    %v5154 = vpop.xlane.xlu0 %5153
    %v5155 = vmul.f32 %v5151, %v62
    %v5156 = vmul.f32 %v5154, %v62
    %v5157 = vsub.f32 %v5145, %v5155
    %v5158 = vsub.f32 %v5146, %v5156
    %v5159 = vmul.f32 %v5157, %v5157
    %v5160 = vmul.f32 %v5158, %v5158
    %v5161 = vsel %vm55, %v5159, 0.0
    %5162 = vadd.xlane.f32.xlu0 %v5161
    %v5163 = vpop.xlane.xlu0 %5162
    %v5164 = vsel %vm55, %v5160, 0.0
    %5165 = vadd.xlane.f32.xlu0 %v5164
    %v5166 = vpop.xlane.xlu0 %5165
    %v5167 = vmul.f32 %v5163, 0.032258064
    %v5168 = vmul.f32 %v5166, 0.032258064
    %v5169 = vrsqrt.pop %v5167
    %v5170 = vmul.f32 %v5167, %v5169
    %vm5171 = vcmp.eq.f32.partialorder %v5167, inf
    %v5172 = vsel %vm5171, %v5167, %v5170
    %vm5173 = vcmp.eq.f32.partialorder %v5167, 0.0
    %v5174 = vand.u32 %v5167, 2147483648
    %v5175 = vsel %vm5173, %v5174, %v5172
    %v5176 = vrsqrt.pop %v5168
    %v5177 = vmul.f32 %v5168, %v5176
    %vm5178 = vcmp.eq.f32.partialorder %v5168, inf
    %v5179 = vsel %vm5178, %v5168, %v5177
    %vm5180 = vcmp.eq.f32.partialorder %v5168, 0.0
    %v5181 = vand.u32 %v5168, 2147483648
    %v5182 = vsel %vm5180, %v5181, %v5179
    %v5183 = vlaneseq
    %v5184 = vshrl.u32 %v5183, 7
    %v5185 = vsub.s32 0, %v5184
    %v5186 = vrot.slane %v5147, %v5185
    %v5187 = vmul.f32 %v5186, %v5157
    %v5188 = vmul.f32 %v5186, %v5158
    %v5189 = vadd.f32 %v5175, 1e-06
    %v5190 = vadd.f32 %v5182, 1e-06
    %v5191 = vrcp.pop %v5189
    %v5192 = vrcp.pop %v5190
    %v5193 = vmul.f32 %v5187, %v5191
    %v5194 = vmul.f32 %v5188, %v5192
    %v5195 = vlaneseq
    %v5196 = vshrl.u32 %v5195, 7
    %v5197 = vsub.s32 0, %v5196
    %v5198 = vrot.slane %v5148, %v5197
    %v5199 = vadd.f32 %v5193, %v5198
    %v5200 = vadd.f32 %v5194, %v5198
    %s5201 = scalar_lea.vmem %s5, 96
    %v5202 = vld [vmem:[%s5201] sm:$0xff]
    %v5203 = vld [vmem:[%s5201 + $0x8] sm:$0xff]
    %v5204 = vld [vmem:[%s5201 + $0x10] sm:$0xff]
    %v5205 = vld [vmem:[%s5201 + $0x18] sm:$0xff]
    %s5206 = scalar_lea.vmem %s6, 3
    %v5207 = vld [vmem:[%s5206] sm:$0x1]
    %v5209 = vlaneseq
    %v5210 = vshrl.u32 %v5209, 7
    %v5211 = vsub.s32 0, %v5210
    %v5212 = vrot.slane %v5207, %v5211
    %v5215 = vsel %vm55, %v5199, 0
    %v5218 = vsel %vm55, %v5200, 0
    %5220 = vmatprep.subr.mxu0 0.0
    %5221 = vmatpush1.msra.mxu0 %v5202
    %5222 = vmatprep.subr.mxu0 0.0
    %5223 = vmatpush1.msra.mxu0 %v5203
    %5224 = vmatprep.subr.mxu0 0.0
    %5225 = vmatpush1.msra.mxu0 %v5204
    %5226 = vmatprep.subr.mxu0 0.0
    %5227 = vmatpush1.msra.mxu0 %v5205
    %5228 = vmatprep.subr.mxu0 0.0
    %5229 = vmatpush1.msra.mxu0 0.0
    %5230 = vmatprep.subr.mxu0 0.0
    %5231 = vmatpush1.msra.mxu0 0.0
    %5232 = vmatprep.subr.mxu0 0.0
    %5233 = vmatpush1.msra.mxu0 0.0
    %5234 = vmatprep.subr.mxu0 0.0
    %5235 = vmatpush1.msra.mxu0 0.0
    %5236 = vmatprep.subr.mxu0 0.0
    %5237 = vmatpush1.msra.mxu0 0.0
    %5238 = vmatprep.subr.mxu0 0.0
    %5239 = vmatpush1.msra.mxu0 0.0
    %5240 = vmatprep.subr.mxu0 0.0
    %5241 = vmatpush1.msra.mxu0 0.0
    %5242 = vmatprep.subr.mxu0 0.0
    %5243 = vmatpush1.msra.mxu0 0.0
    %5244 = vmatprep.subr.mxu0 0.0
    %5245 = vmatpush1.msra.mxu0 0.0
    %5246 = vmatprep.subr.mxu0 0.0
    %5247 = vmatpush1.msra.mxu0 0.0
    %5248 = vmatprep.subr.mxu0 0.0
    %5249 = vmatpush1.msra.mxu0 0.0
    %5250 = vmatprep.subr.mxu0 0.0
    %5251 = vmatpush1.msra.mxu0 0.0
    %5252 = vmatprep.subr.mxu0 0.0
    %5253 = vmatpush1.msra.mxu0 0.0
    %5254 = vmatprep.subr.mxu0 0.0
    %5255 = vmatpush1.msra.mxu0 0.0
    %5256 = vmatprep.subr.mxu0 0.0
    %5257 = vmatpush1.msra.mxu0 0.0
    %5258 = vmatprep.subr.mxu0 0.0
    %5259 = vmatpush1.msra.mxu0 0.0
    %5260 = vmatprep.subr.mxu0 0.0
    %5261 = vmatpush1.msra.mxu0 0.0
    %5262 = vmatprep.subr.mxu0 0.0
    %5263 = vmatpush1.msra.mxu0 0.0
    %5264 = vmatprep.subr.mxu0 0.0
    %5265 = vmatpush1.msra.mxu0 0.0
    %5266 = vmatprep.subr.mxu0 0.0
    %5267 = vmatpush1.msra.mxu0 0.0
    %5268 = vmatprep.subr.mxu0 0.0
    %5269 = vmatpush1.msra.mxu0 0.0
    %5270 = vmatprep.subr.mxu0 0.0
    %5271 = vmatpush1.msra.mxu0 0.0
    %5272 = vmatprep.subr.mxu0 0.0
    %5273 = vmatpush1.msra.mxu0 0.0
    %5274 = vmatprep.subr.mxu0 0.0
    %5275 = vmatpush1.msra.mxu0 0.0
    %5276 = vmatprep.subr.mxu0 0.0
    %5277 = vmatpush1.msra.mxu0 0.0
    %5278 = vmatprep.subr.mxu0 0.0
    %5279 = vmatpush1.msra.mxu0 0.0
    %5280 = vmatprep.subr.mxu0 0.0
    %5281 = vmatpush1.msra.mxu0 0.0
    %5282 = vmatprep.subr.mxu0 0.0
    %5283 = vmatpush1.msra.mxu0 0.0
    %5284 = vmatprep.mubr.f32.mxu0 0.0
    %5285 = vmatmul.mubr.f32.gmra.mrb[0].mxu0 %v5215
    %v5286 = vpop.f32.mrb[0].mxu0
    %v5287 = vadd.f32 %v5212, %v5286
    %v5288 = vpop.f32.mrb[0].mxu0
    %5289 = vmatprep.mubr.f32.mxu0 0.0
    %5290 = vmatmul.mubr.f32.gmra.mrb[0].mxu0 %v5218
    %v5291 = vpop.f32.mrb[0].mxu0
    %v5292 = vadd.f32 %v5212, %v5291
    %v5293 = vpop.f32.mrb[0].mxu0
    %5294 = vdwg.mxu0
    %v5295 = vld [vmem:[%s1818] sm:$0xff]
    %5297 = vrot.lane.b32.xlu0 %v5287, 96
    %v5298 = vpop.permute.xlu0 %5297
    %v5299 = vsel %vm205, %v5287, 0
    %v5301 = vsel %vm205, %v5298, 0
    %5303 = vmatprep.subr.mxu0 0.0
    %5304 = vmatpush1.xpose.msra.mxu0 %v5301
    %5305 = vmatprep.subr.mxu0 0.0
    %5306 = vmatpush1.xpose.msra.mxu0 0.0
    %5307 = vmatprep.subr.mxu0 0.0
    %5308 = vmatpush1.xpose.msra.mxu0 0.0
    %5309 = vmatprep.subr.mxu0 0.0
    %5310 = vmatpush1.xpose.msra.mxu0 0.0
    %5311 = vmatprep.subr.mxu0 0.0
    %5312 = vmatpush1.xpose.msra.mxu0 0.0
    %5313 = vmatprep.subr.mxu0 0.0
    %5314 = vmatpush1.xpose.msra.mxu0 0.0
    %5315 = vmatprep.subr.mxu0 0.0
    %5316 = vmatpush1.xpose.msra.mxu0 0.0
    %5317 = vmatprep.subr.mxu0 0.0
    %5318 = vmatpush1.xpose.msra.mxu0 0.0
    %5319 = vmatprep.subr.mxu0 0.0
    %5320 = vmatpush1.xpose.msra.mxu0 0.0
    %5321 = vmatprep.subr.mxu0 0.0
    %5322 = vmatpush1.xpose.msra.mxu0 0.0
    %5323 = vmatprep.subr.mxu0 0.0
    %5324 = vmatpush1.xpose.msra.mxu0 0.0
    %5325 = vmatprep.subr.mxu0 0.0
    %5326 = vmatpush1.xpose.msra.mxu0 0.0
    %5327 = vmatprep.subr.mxu0 0.0
    %5328 = vmatpush1.xpose.msra.mxu0 0.0
    %5329 = vmatprep.subr.mxu0 0.0
    %5330 = vmatpush1.xpose.msra.mxu0 0.0
    %5331 = vmatprep.subr.mxu0 0.0
    %5332 = vmatpush1.xpose.msra.mxu0 0.0
    %5333 = vmatprep.subr.mxu0 0.0
    %5334 = vmatpush1.xpose.msra.mxu0 0.0
    %5335 = vmatprep.subr.mxu0 0.0
    %5336 = vmatpush1.xpose.msra.mxu0 0.0
    %5337 = vmatprep.subr.mxu0 0.0
    %5338 = vmatpush1.xpose.msra.mxu0 0.0
    %5339 = vmatprep.subr.mxu0 0.0
    %5340 = vmatpush1.xpose.msra.mxu0 0.0
    %5341 = vmatprep.subr.mxu0 0.0
    %5342 = vmatpush1.xpose.msra.mxu0 0.0
    %5343 = vmatprep.subr.mxu0 0.0
    %5344 = vmatpush1.xpose.msra.mxu0 0.0
    %5345 = vmatprep.subr.mxu0 0.0
    %5346 = vmatpush1.xpose.msra.mxu0 0.0
    %5347 = vmatprep.subr.mxu0 0.0
    %5348 = vmatpush1.xpose.msra.mxu0 0.0
    %5349 = vmatprep.subr.mxu0 0.0
    %5350 = vmatpush1.xpose.msra.mxu0 0.0
    %5351 = vmatprep.subr.mxu0 0.0
    %5352 = vmatpush1.xpose.msra.mxu0 0.0
    %5353 = vmatprep.subr.mxu0 0.0
    %5354 = vmatpush1.xpose.msra.mxu0 0.0
    %5355 = vmatprep.subr.mxu0 0.0
    %5356 = vmatpush1.xpose.msra.mxu0 0.0
    %5357 = vmatprep.subr.mxu0 0.0
    %5358 = vmatpush1.xpose.msra.mxu0 0.0
    %5359 = vmatprep.subr.mxu0 0.0
    %5360 = vmatpush1.xpose.msra.mxu0 0.0
    %5361 = vmatprep.subr.mxu0 0.0
    %5362 = vmatpush1.xpose.msra.mxu0 0.0
    %5363 = vmatprep.subr.mxu0 0.0
    %5364 = vmatpush1.xpose.msra.mxu0 0.0
    %5365 = vmatprep.subr.mxu0 0.0
    %5366 = vmatpush1.xpose.msra.mxu0 0.0
    %5367 = vmatprep.mubr.f32.mxu0 0.0
    %5368 = vmatmul.mubr.f32.gmra.mrb[0].mxu0 %v5299
    %v5369 = vpop.f32.mrb[0].mxu0
    %v5370 = vadd.f32 0.0, %v5369
    %v5371 = vpop.f32.mrb[0].mxu0
    %5372 = vdwg.mxu0
    %v5373 = vmul.f32 %v5370, 0.35355338
    %v5374 = vadd.f32 %v5373, %v5295
    %v5375 = vsel %vm205, %v5374, -inf
    %5376 = vmax.xlane.f32.xlu0 %v5375
    %v5377 = vpop.xlane.xlu0 %5376
    %v5378 = vsub.f32 %v5374, %v5377
    %v5379 = vmul.f32 %v5378, 1.442695
    %v5380 = vpow.pop %v5379
    %v5381 = vsel %vm205, %v5380, 0.0
    %5382 = vadd.xlane.f32.xlu0 %v5381
    %v5383 = vpop.xlane.xlu0 %5382
    %v5384 = vrcp.pop %v5383
    %v5385 = vmul.f32 %v5380, %v5384
    %5386 = vrot.lane.b32.xlu0 %v5287, 64
    %v5387 = vpop.permute.xlu0 %5386
    %v5390 = vsel %vm205, %v5385, 0
    %5392 = vmatprep.subr.mxu0 0.0
    %5393 = vmatpush1.msra.mxu0 %v5387
    %5394 = vmatprep.subr.mxu0 0.0
    %5395 = vmatpush1.msra.mxu0 0.0
    %5396 = vmatprep.subr.mxu0 0.0
    %5397 = vmatpush1.msra.mxu0 0.0
    %5398 = vmatprep.subr.mxu0 0.0
    %5399 = vmatpush1.msra.mxu0 0.0
    %5400 = vmatprep.subr.mxu0 0.0
    %5401 = vmatpush1.msra.mxu0 0.0
    %5402 = vmatprep.subr.mxu0 0.0
    %5403 = vmatpush1.msra.mxu0 0.0
    %5404 = vmatprep.subr.mxu0 0.0
    %5405 = vmatpush1.msra.mxu0 0.0
    %5406 = vmatprep.subr.mxu0 0.0
    %5407 = vmatpush1.msra.mxu0 0.0
    %5408 = vmatprep.subr.mxu0 0.0
    %5409 = vmatpush1.msra.mxu0 0.0
    %5410 = vmatprep.subr.mxu0 0.0
    %5411 = vmatpush1.msra.mxu0 0.0
    %5412 = vmatprep.subr.mxu0 0.0
    %5413 = vmatpush1.msra.mxu0 0.0
    %5414 = vmatprep.subr.mxu0 0.0
    %5415 = vmatpush1.msra.mxu0 0.0
    %5416 = vmatprep.subr.mxu0 0.0
    %5417 = vmatpush1.msra.mxu0 0.0
    %5418 = vmatprep.subr.mxu0 0.0
    %5419 = vmatpush1.msra.mxu0 0.0
    %5420 = vmatprep.subr.mxu0 0.0
    %5421 = vmatpush1.msra.mxu0 0.0
    %5422 = vmatprep.subr.mxu0 0.0
    %5423 = vmatpush1.msra.mxu0 0.0
    %5424 = vmatprep.subr.mxu0 0.0
    %5425 = vmatpush1.msra.mxu0 0.0
    %5426 = vmatprep.subr.mxu0 0.0
    %5427 = vmatpush1.msra.mxu0 0.0
    %5428 = vmatprep.subr.mxu0 0.0
    %5429 = vmatpush1.msra.mxu0 0.0
    %5430 = vmatprep.subr.mxu0 0.0
    %5431 = vmatpush1.msra.mxu0 0.0
    %5432 = vmatprep.subr.mxu0 0.0
    %5433 = vmatpush1.msra.mxu0 0.0
    %5434 = vmatprep.subr.mxu0 0.0
    %5435 = vmatpush1.msra.mxu0 0.0
    %5436 = vmatprep.subr.mxu0 0.0
    %5437 = vmatpush1.msra.mxu0 0.0
    %5438 = vmatprep.subr.mxu0 0.0
    %5439 = vmatpush1.msra.mxu0 0.0
    %5440 = vmatprep.subr.mxu0 0.0
    %5441 = vmatpush1.msra.mxu0 0.0
    %5442 = vmatprep.subr.mxu0 0.0
    %5443 = vmatpush1.msra.mxu0 0.0
    %5444 = vmatprep.subr.mxu0 0.0
    %5445 = vmatpush1.msra.mxu0 0.0
    %5446 = vmatprep.subr.mxu0 0.0
    %5447 = vmatpush1.msra.mxu0 0.0
    %5448 = vmatprep.subr.mxu0 0.0
    %5449 = vmatpush1.msra.mxu0 0.0
    %5450 = vmatprep.subr.mxu0 0.0
    %5451 = vmatpush1.msra.mxu0 0.0
    %5452 = vmatprep.subr.mxu0 0.0
    %5453 = vmatpush1.msra.mxu0 0.0
    %5454 = vmatprep.subr.mxu0 0.0
    %5455 = vmatpush1.msra.mxu0 0.0
    %5456 = vmatprep.mubr.f32.mxu0 0.0
    %5457 = vmatmul.mubr.f32.gmra.mrb[0].mxu0 %v5390
    %v5458 = vpop.f32.mrb[0].mxu0
    %v5459 = vadd.f32 0.0, %v5458
    %v5460 = vpop.f32.mrb[0].mxu0
    %5461 = vdwg.mxu0
    %5462 = vst.msk [vmem:[#allocation2] sm:$0xff] %vm205, %v5459
    %5463 = vrot.lane.b32.xlu0 %v5287, 120
    %v5464 = vpop.permute.xlu0 %5463
    %5465 = vrot.lane.b32.xlu0 %v5287, 88
    %v5466 = vpop.permute.xlu0 %5465
    %v5467 = vsel %vm205, %v5464, 0
    %v5469 = vsel %vm205, %v5466, 0
    %5471 = vmatprep.subr.mxu0 0.0
    %5472 = vmatpush1.xpose.msra.mxu0 %v5469
    %5473 = vmatprep.subr.mxu0 0.0
    %5474 = vmatpush1.xpose.msra.mxu0 0.0
    %5475 = vmatprep.subr.mxu0 0.0
    %5476 = vmatpush1.xpose.msra.mxu0 0.0
    %5477 = vmatprep.subr.mxu0 0.0
    %5478 = vmatpush1.xpose.msra.mxu0 0.0
    %5479 = vmatprep.subr.mxu0 0.0
    %5480 = vmatpush1.xpose.msra.mxu0 0.0
    %5481 = vmatprep.subr.mxu0 0.0
    %5482 = vmatpush1.xpose.msra.mxu0 0.0
    %5483 = vmatprep.subr.mxu0 0.0
    %5484 = vmatpush1.xpose.msra.mxu0 0.0
    %5485 = vmatprep.subr.mxu0 0.0
    %5486 = vmatpush1.xpose.msra.mxu0 0.0
    %5487 = vmatprep.subr.mxu0 0.0
    %5488 = vmatpush1.xpose.msra.mxu0 0.0
    %5489 = vmatprep.subr.mxu0 0.0
    %5490 = vmatpush1.xpose.msra.mxu0 0.0
    %5491 = vmatprep.subr.mxu0 0.0
    %5492 = vmatpush1.xpose.msra.mxu0 0.0
    %5493 = vmatprep.subr.mxu0 0.0
    %5494 = vmatpush1.xpose.msra.mxu0 0.0
    %5495 = vmatprep.subr.mxu0 0.0
    %5496 = vmatpush1.xpose.msra.mxu0 0.0
    %5497 = vmatprep.subr.mxu0 0.0
    %5498 = vmatpush1.xpose.msra.mxu0 0.0
    %5499 = vmatprep.subr.mxu0 0.0
    %5500 = vmatpush1.xpose.msra.mxu0 0.0
    %5501 = vmatprep.subr.mxu0 0.0
    %5502 = vmatpush1.xpose.msra.mxu0 0.0
    %5503 = vmatprep.subr.mxu0 0.0
    %5504 = vmatpush1.xpose.msra.mxu0 0.0
    %5505 = vmatprep.subr.mxu0 0.0
    %5506 = vmatpush1.xpose.msra.mxu0 0.0
    %5507 = vmatprep.subr.mxu0 0.0
    %5508 = vmatpush1.xpose.msra.mxu0 0.0
    %5509 = vmatprep.subr.mxu0 0.0
    %5510 = vmatpush1.xpose.msra.mxu0 0.0
    %5511 = vmatprep.subr.mxu0 0.0
    %5512 = vmatpush1.xpose.msra.mxu0 0.0
    %5513 = vmatprep.subr.mxu0 0.0
    %5514 = vmatpush1.xpose.msra.mxu0 0.0
    %5515 = vmatprep.subr.mxu0 0.0
    %5516 = vmatpush1.xpose.msra.mxu0 0.0
    %5517 = vmatprep.subr.mxu0 0.0
    %5518 = vmatpush1.xpose.msra.mxu0 0.0
    %5519 = vmatprep.subr.mxu0 0.0
    %5520 = vmatpush1.xpose.msra.mxu0 0.0
    %5521 = vmatprep.subr.mxu0 0.0
    %5522 = vmatpush1.xpose.msra.mxu0 0.0
    %5523 = vmatprep.subr.mxu0 0.0
    %5524 = vmatpush1.xpose.msra.mxu0 0.0
    %5525 = vmatprep.subr.mxu0 0.0
    %5526 = vmatpush1.xpose.msra.mxu0 0.0
    %5527 = vmatprep.subr.mxu0 0.0
    %5528 = vmatpush1.xpose.msra.mxu0 0.0
    %5529 = vmatprep.subr.mxu0 0.0
    %5530 = vmatpush1.xpose.msra.mxu0 0.0
    %5531 = vmatprep.subr.mxu0 0.0
    %5532 = vmatpush1.xpose.msra.mxu0 0.0
    %5533 = vmatprep.subr.mxu0 0.0
    %5534 = vmatpush1.xpose.msra.mxu0 0.0
    %5535 = vmatprep.mubr.f32.mxu0 0.0
    %5536 = vmatmul.mubr.f32.gmra.mrb[0].mxu0 %v5467
    %v5537 = vpop.f32.mrb[0].mxu0
    %v5538 = vadd.f32 0.0, %v5537
    %v5539 = vpop.f32.mrb[0].mxu0
    %5540 = vdwg.mxu0
    %v5541 = vmul.f32 %v5538, 0.35355338
    %v5542 = vadd.f32 %v5541, %v5295
    %v5543 = vsel %vm205, %v5542, -inf
    %5544 = vmax.xlane.f32.xlu0 %v5543
    %v5545 = vpop.xlane.xlu0 %5544
    %v5546 = vsub.f32 %v5542, %v5545
    %v5547 = vmul.f32 %v5546, 1.442695
    %v5548 = vpow.pop %v5547
    %v5549 = vsel %vm205, %v5548, 0.0
    %5550 = vadd.xlane.f32.xlu0 %v5549
    %v5551 = vpop.xlane.xlu0 %5550
    %v5552 = vrcp.pop %v5551
    %v5553 = vmul.f32 %v5548, %v5552
    %5554 = vrot.lane.b32.xlu0 %v5287, 56
    %v5555 = vpop.permute.xlu0 %5554
    %v5558 = vsel %vm205, %v5553, 0
    %5560 = vmatprep.subr.mxu0 0.0
    %5561 = vmatpush1.msra.mxu0 %v5555
    %5562 = vmatprep.subr.mxu0 0.0
    %5563 = vmatpush1.msra.mxu0 0.0
    %5564 = vmatprep.subr.mxu0 0.0
    %5565 = vmatpush1.msra.mxu0 0.0
    %5566 = vmatprep.subr.mxu0 0.0
    %5567 = vmatpush1.msra.mxu0 0.0
    %5568 = vmatprep.subr.mxu0 0.0
    %5569 = vmatpush1.msra.mxu0 0.0
    %5570 = vmatprep.subr.mxu0 0.0
    %5571 = vmatpush1.msra.mxu0 0.0
    %5572 = vmatprep.subr.mxu0 0.0
    %5573 = vmatpush1.msra.mxu0 0.0
    %5574 = vmatprep.subr.mxu0 0.0
    %5575 = vmatpush1.msra.mxu0 0.0
    %5576 = vmatprep.subr.mxu0 0.0
    %5577 = vmatpush1.msra.mxu0 0.0
    %5578 = vmatprep.subr.mxu0 0.0
    %5579 = vmatpush1.msra.mxu0 0.0
    %5580 = vmatprep.subr.mxu0 0.0
    %5581 = vmatpush1.msra.mxu0 0.0
    %5582 = vmatprep.subr.mxu0 0.0
    %5583 = vmatpush1.msra.mxu0 0.0
    %5584 = vmatprep.subr.mxu0 0.0
    %5585 = vmatpush1.msra.mxu0 0.0
    %5586 = vmatprep.subr.mxu0 0.0
    %5587 = vmatpush1.msra.mxu0 0.0
    %5588 = vmatprep.subr.mxu0 0.0
    %5589 = vmatpush1.msra.mxu0 0.0
    %5590 = vmatprep.subr.mxu0 0.0
    %5591 = vmatpush1.msra.mxu0 0.0
    %5592 = vmatprep.subr.mxu0 0.0
    %5593 = vmatpush1.msra.mxu0 0.0
    %5594 = vmatprep.subr.mxu0 0.0
    %5595 = vmatpush1.msra.mxu0 0.0
    %5596 = vmatprep.subr.mxu0 0.0
    %5597 = vmatpush1.msra.mxu0 0.0
    %5598 = vmatprep.subr.mxu0 0.0
    %5599 = vmatpush1.msra.mxu0 0.0
    %5600 = vmatprep.subr.mxu0 0.0
    %5601 = vmatpush1.msra.mxu0 0.0
    %5602 = vmatprep.subr.mxu0 0.0
    %5603 = vmatpush1.msra.mxu0 0.0
    %5604 = vmatprep.subr.mxu0 0.0
    %5605 = vmatpush1.msra.mxu0 0.0
    %5606 = vmatprep.subr.mxu0 0.0
    %5607 = vmatpush1.msra.mxu0 0.0
    %5608 = vmatprep.subr.mxu0 0.0
    %5609 = vmatpush1.msra.mxu0 0.0
    %5610 = vmatprep.subr.mxu0 0.0
    %5611 = vmatpush1.msra.mxu0 0.0
    %5612 = vmatprep.subr.mxu0 0.0
    %5613 = vmatpush1.msra.mxu0 0.0
    %5614 = vmatprep.subr.mxu0 0.0
    %5615 = vmatpush1.msra.mxu0 0.0
    %5616 = vmatprep.subr.mxu0 0.0
    %5617 = vmatpush1.msra.mxu0 0.0
    %5618 = vmatprep.subr.mxu0 0.0
    %5619 = vmatpush1.msra.mxu0 0.0
    %5620 = vmatprep.subr.mxu0 0.0
    %5621 = vmatpush1.msra.mxu0 0.0
    %5622 = vmatprep.subr.mxu0 0.0
    %5623 = vmatpush1.msra.mxu0 0.0
    %5624 = vmatprep.mubr.f32.mxu0 0.0
    %5625 = vmatmul.mubr.f32.gmra.mrb[0].mxu0 %v5558
    %v5626 = vpop.f32.mrb[0].mxu0
    %v5627 = vadd.f32 0.0, %v5626
    %v5628 = vpop.f32.mrb[0].mxu0
    %5629 = vdwg.mxu0
    %5631 = vrot.lane.b32.xlu0 %v5627, 8
    %v5632 = vpop.permute.xlu0 %5631
    %5634 = vst.msk [vmem:[#allocation2] sm:$0xff] %vm541, %v5632
    %5635 = vrot.lane.b32.xlu0 %v5287, 112
    %v5636 = vpop.permute.xlu0 %5635
    %5637 = vrot.lane.b32.xlu0 %v5287, 80
    %v5638 = vpop.permute.xlu0 %5637
    %v5639 = vsel %vm205, %v5636, 0
    %v5641 = vsel %vm205, %v5638, 0
    %5643 = vmatprep.subr.mxu0 0.0
    %5644 = vmatpush1.xpose.msra.mxu0 %v5641
    %5645 = vmatprep.subr.mxu0 0.0
    %5646 = vmatpush1.xpose.msra.mxu0 0.0
    %5647 = vmatprep.subr.mxu0 0.0
    %5648 = vmatpush1.xpose.msra.mxu0 0.0
    %5649 = vmatprep.subr.mxu0 0.0
    %5650 = vmatpush1.xpose.msra.mxu0 0.0
    %5651 = vmatprep.subr.mxu0 0.0
    %5652 = vmatpush1.xpose.msra.mxu0 0.0
    %5653 = vmatprep.subr.mxu0 0.0
    %5654 = vmatpush1.xpose.msra.mxu0 0.0
    %5655 = vmatprep.subr.mxu0 0.0
    %5656 = vmatpush1.xpose.msra.mxu0 0.0
    %5657 = vmatprep.subr.mxu0 0.0
    %5658 = vmatpush1.xpose.msra.mxu0 0.0
    %5659 = vmatprep.subr.mxu0 0.0
    %5660 = vmatpush1.xpose.msra.mxu0 0.0
    %5661 = vmatprep.subr.mxu0 0.0
    %5662 = vmatpush1.xpose.msra.mxu0 0.0
    %5663 = vmatprep.subr.mxu0 0.0
    %5664 = vmatpush1.xpose.msra.mxu0 0.0
    %5665 = vmatprep.subr.mxu0 0.0
    %5666 = vmatpush1.xpose.msra.mxu0 0.0
    %5667 = vmatprep.subr.mxu0 0.0
    %5668 = vmatpush1.xpose.msra.mxu0 0.0
    %5669 = vmatprep.subr.mxu0 0.0
    %5670 = vmatpush1.xpose.msra.mxu0 0.0
    %5671 = vmatprep.subr.mxu0 0.0
    %5672 = vmatpush1.xpose.msra.mxu0 0.0
    %5673 = vmatprep.subr.mxu0 0.0
    %5674 = vmatpush1.xpose.msra.mxu0 0.0
    %5675 = vmatprep.subr.mxu0 0.0
    %5676 = vmatpush1.xpose.msra.mxu0 0.0
    %5677 = vmatprep.subr.mxu0 0.0
    %5678 = vmatpush1.xpose.msra.mxu0 0.0
    %5679 = vmatprep.subr.mxu0 0.0
    %5680 = vmatpush1.xpose.msra.mxu0 0.0
    %5681 = vmatprep.subr.mxu0 0.0
    %5682 = vmatpush1.xpose.msra.mxu0 0.0
    %5683 = vmatprep.subr.mxu0 0.0
    %5684 = vmatpush1.xpose.msra.mxu0 0.0
    %5685 = vmatprep.subr.mxu0 0.0
    %5686 = vmatpush1.xpose.msra.mxu0 0.0
    %5687 = vmatprep.subr.mxu0 0.0
    %5688 = vmatpush1.xpose.msra.mxu0 0.0
    %5689 = vmatprep.subr.mxu0 0.0
    %5690 = vmatpush1.xpose.msra.mxu0 0.0
    %5691 = vmatprep.subr.mxu0 0.0
    %5692 = vmatpush1.xpose.msra.mxu0 0.0
    %5693 = vmatprep.subr.mxu0 0.0
    %5694 = vmatpush1.xpose.msra.mxu0 0.0
    %5695 = vmatprep.subr.mxu0 0.0
    %5696 = vmatpush1.xpose.msra.mxu0 0.0
    %5697 = vmatprep.subr.mxu0 0.0
    %5698 = vmatpush1.xpose.msra.mxu0 0.0
    %5699 = vmatprep.subr.mxu0 0.0
    %5700 = vmatpush1.xpose.msra.mxu0 0.0
    %5701 = vmatprep.subr.mxu0 0.0
    %5702 = vmatpush1.xpose.msra.mxu0 0.0
    %5703 = vmatprep.subr.mxu0 0.0
    %5704 = vmatpush1.xpose.msra.mxu0 0.0
    %5705 = vmatprep.subr.mxu0 0.0
    %5706 = vmatpush1.xpose.msra.mxu0 0.0
    %5707 = vmatprep.mubr.f32.mxu0 0.0
    %5708 = vmatmul.mubr.f32.gmra.mrb[0].mxu0 %v5639
    %v5709 = vpop.f32.mrb[0].mxu0
    %v5710 = vadd.f32 0.0, %v5709
    %v5711 = vpop.f32.mrb[0].mxu0
    %5712 = vdwg.mxu0
    %v5713 = vmul.f32 %v5710, 0.35355338
    %v5714 = vadd.f32 %v5713, %v5295
    %v5715 = vsel %vm205, %v5714, -inf
    %5716 = vmax.xlane.f32.xlu0 %v5715
    %v5717 = vpop.xlane.xlu0 %5716
    %v5718 = vsub.f32 %v5714, %v5717
    %v5719 = vmul.f32 %v5718, 1.442695
    %v5720 = vpow.pop %v5719
    %v5721 = vsel %vm205, %v5720, 0.0
    %5722 = vadd.xlane.f32.xlu0 %v5721
    %v5723 = vpop.xlane.xlu0 %5722
    %v5724 = vrcp.pop %v5723
    %v5725 = vmul.f32 %v5720, %v5724
    %5726 = vrot.lane.b32.xlu0 %v5287, 48
    %v5727 = vpop.permute.xlu0 %5726
    %v5730 = vsel %vm205, %v5725, 0
    %5732 = vmatprep.subr.mxu0 0.0
    %5733 = vmatpush1.msra.mxu0 %v5727
    %5734 = vmatprep.subr.mxu0 0.0
    %5735 = vmatpush1.msra.mxu0 0.0
    %5736 = vmatprep.subr.mxu0 0.0
    %5737 = vmatpush1.msra.mxu0 0.0
    %5738 = vmatprep.subr.mxu0 0.0
    %5739 = vmatpush1.msra.mxu0 0.0
    %5740 = vmatprep.subr.mxu0 0.0
    %5741 = vmatpush1.msra.mxu0 0.0
    %5742 = vmatprep.subr.mxu0 0.0
    %5743 = vmatpush1.msra.mxu0 0.0
    %5744 = vmatprep.subr.mxu0 0.0
    %5745 = vmatpush1.msra.mxu0 0.0
    %5746 = vmatprep.subr.mxu0 0.0
    %5747 = vmatpush1.msra.mxu0 0.0
    %5748 = vmatprep.subr.mxu0 0.0
    %5749 = vmatpush1.msra.mxu0 0.0
    %5750 = vmatprep.subr.mxu0 0.0
    %5751 = vmatpush1.msra.mxu0 0.0
    %5752 = vmatprep.subr.mxu0 0.0
    %5753 = vmatpush1.msra.mxu0 0.0
    %5754 = vmatprep.subr.mxu0 0.0
    %5755 = vmatpush1.msra.mxu0 0.0
    %5756 = vmatprep.subr.mxu0 0.0
    %5757 = vmatpush1.msra.mxu0 0.0
    %5758 = vmatprep.subr.mxu0 0.0
    %5759 = vmatpush1.msra.mxu0 0.0
    %5760 = vmatprep.subr.mxu0 0.0
    %5761 = vmatpush1.msra.mxu0 0.0
    %5762 = vmatprep.subr.mxu0 0.0
    %5763 = vmatpush1.msra.mxu0 0.0
    %5764 = vmatprep.subr.mxu0 0.0
    %5765 = vmatpush1.msra.mxu0 0.0
    %5766 = vmatprep.subr.mxu0 0.0
    %5767 = vmatpush1.msra.mxu0 0.0
    %5768 = vmatprep.subr.mxu0 0.0
    %5769 = vmatpush1.msra.mxu0 0.0
    %5770 = vmatprep.subr.mxu0 0.0
    %5771 = vmatpush1.msra.mxu0 0.0
    %5772 = vmatprep.subr.mxu0 0.0
    %5773 = vmatpush1.msra.mxu0 0.0
    %5774 = vmatprep.subr.mxu0 0.0
    %5775 = vmatpush1.msra.mxu0 0.0
    %5776 = vmatprep.subr.mxu0 0.0
    %5777 = vmatpush1.msra.mxu0 0.0
    %5778 = vmatprep.subr.mxu0 0.0
    %5779 = vmatpush1.msra.mxu0 0.0
    %5780 = vmatprep.subr.mxu0 0.0
    %5781 = vmatpush1.msra.mxu0 0.0
    %5782 = vmatprep.subr.mxu0 0.0
    %5783 = vmatpush1.msra.mxu0 0.0
    %5784 = vmatprep.subr.mxu0 0.0
    %5785 = vmatpush1.msra.mxu0 0.0
    %5786 = vmatprep.subr.mxu0 0.0
    %5787 = vmatpush1.msra.mxu0 0.0
    %5788 = vmatprep.subr.mxu0 0.0
    %5789 = vmatpush1.msra.mxu0 0.0
    %5790 = vmatprep.subr.mxu0 0.0
    %5791 = vmatpush1.msra.mxu0 0.0
    %5792 = vmatprep.subr.mxu0 0.0
    %5793 = vmatpush1.msra.mxu0 0.0
    %5794 = vmatprep.subr.mxu0 0.0
    %5795 = vmatpush1.msra.mxu0 0.0
    %5796 = vmatprep.mubr.f32.mxu0 0.0
    %5797 = vmatmul.mubr.f32.gmra.mrb[0].mxu0 %v5730
    %v5798 = vpop.f32.mrb[0].mxu0
    %v5799 = vadd.f32 0.0, %v5798
    %v5800 = vpop.f32.mrb[0].mxu0
    %5801 = vdwg.mxu0
    %5803 = vrot.lane.b32.xlu0 %v5799, 16
    %v5804 = vpop.permute.xlu0 %5803
    %5806 = vst.msk [vmem:[#allocation2] sm:$0xff] %vm714, %v5804
    %5807 = vrot.lane.b32.xlu0 %v5287, 104
    %v5808 = vpop.permute.xlu0 %5807
    %5809 = vrot.lane.b32.xlu0 %v5287, 72
    %v5810 = vpop.permute.xlu0 %5809
    %v5811 = vsel %vm205, %v5808, 0
    %v5813 = vsel %vm205, %v5810, 0
    %5815 = vmatprep.subr.mxu0 0.0
    %5816 = vmatpush1.xpose.msra.mxu0 %v5813
    %5817 = vmatprep.subr.mxu0 0.0
    %5818 = vmatpush1.xpose.msra.mxu0 0.0
    %5819 = vmatprep.subr.mxu0 0.0
    %5820 = vmatpush1.xpose.msra.mxu0 0.0
    %5821 = vmatprep.subr.mxu0 0.0
    %5822 = vmatpush1.xpose.msra.mxu0 0.0
    %5823 = vmatprep.subr.mxu0 0.0
    %5824 = vmatpush1.xpose.msra.mxu0 0.0
    %5825 = vmatprep.subr.mxu0 0.0
    %5826 = vmatpush1.xpose.msra.mxu0 0.0
    %5827 = vmatprep.subr.mxu0 0.0
    %5828 = vmatpush1.xpose.msra.mxu0 0.0
    %5829 = vmatprep.subr.mxu0 0.0
    %5830 = vmatpush1.xpose.msra.mxu0 0.0
    %5831 = vmatprep.subr.mxu0 0.0
    %5832 = vmatpush1.xpose.msra.mxu0 0.0
    %5833 = vmatprep.subr.mxu0 0.0
    %5834 = vmatpush1.xpose.msra.mxu0 0.0
    %5835 = vmatprep.subr.mxu0 0.0
    %5836 = vmatpush1.xpose.msra.mxu0 0.0
    %5837 = vmatprep.subr.mxu0 0.0
    %5838 = vmatpush1.xpose.msra.mxu0 0.0
    %5839 = vmatprep.subr.mxu0 0.0
    %5840 = vmatpush1.xpose.msra.mxu0 0.0
    %5841 = vmatprep.subr.mxu0 0.0
    %5842 = vmatpush1.xpose.msra.mxu0 0.0
    %5843 = vmatprep.subr.mxu0 0.0
    %5844 = vmatpush1.xpose.msra.mxu0 0.0
    %5845 = vmatprep.subr.mxu0 0.0
    %5846 = vmatpush1.xpose.msra.mxu0 0.0
    %5847 = vmatprep.subr.mxu0 0.0
    %5848 = vmatpush1.xpose.msra.mxu0 0.0
    %5849 = vmatprep.subr.mxu0 0.0
    %5850 = vmatpush1.xpose.msra.mxu0 0.0
    %5851 = vmatprep.subr.mxu0 0.0
    %5852 = vmatpush1.xpose.msra.mxu0 0.0
    %5853 = vmatprep.subr.mxu0 0.0
    %5854 = vmatpush1.xpose.msra.mxu0 0.0
    %5855 = vmatprep.subr.mxu0 0.0
    %5856 = vmatpush1.xpose.msra.mxu0 0.0
    %5857 = vmatprep.subr.mxu0 0.0
    %5858 = vmatpush1.xpose.msra.mxu0 0.0
    %5859 = vmatprep.subr.mxu0 0.0
    %5860 = vmatpush1.xpose.msra.mxu0 0.0
    %5861 = vmatprep.subr.mxu0 0.0
    %5862 = vmatpush1.xpose.msra.mxu0 0.0
    %5863 = vmatprep.subr.mxu0 0.0
    %5864 = vmatpush1.xpose.msra.mxu0 0.0
    %5865 = vmatprep.subr.mxu0 0.0
    %5866 = vmatpush1.xpose.msra.mxu0 0.0
    %5867 = vmatprep.subr.mxu0 0.0
    %5868 = vmatpush1.xpose.msra.mxu0 0.0
    %5869 = vmatprep.subr.mxu0 0.0
    %5870 = vmatpush1.xpose.msra.mxu0 0.0
    %5871 = vmatprep.subr.mxu0 0.0
    %5872 = vmatpush1.xpose.msra.mxu0 0.0
    %5873 = vmatprep.subr.mxu0 0.0
    %5874 = vmatpush1.xpose.msra.mxu0 0.0
    %5875 = vmatprep.subr.mxu0 0.0
    %5876 = vmatpush1.xpose.msra.mxu0 0.0
    %5877 = vmatprep.subr.mxu0 0.0
    %5878 = vmatpush1.xpose.msra.mxu0 0.0
    %5879 = vmatprep.mubr.f32.mxu0 0.0
    %5880 = vmatmul.mubr.f32.gmra.mrb[0].mxu0 %v5811
    %v5881 = vpop.f32.mrb[0].mxu0
    %v5882 = vadd.f32 0.0, %v5881
    %v5883 = vpop.f32.mrb[0].mxu0
    %5884 = vdwg.mxu0
    %v5885 = vmul.f32 %v5882, 0.35355338
    %v5886 = vadd.f32 %v5885, %v5295
    %v5887 = vsel %vm205, %v5886, -inf
    %5888 = vmax.xlane.f32.xlu0 %v5887
    %v5889 = vpop.xlane.xlu0 %5888
    %v5890 = vsub.f32 %v5886, %v5889
    %v5891 = vmul.f32 %v5890, 1.442695
    %v5892 = vpow.pop %v5891
    %v5893 = vsel %vm205, %v5892, 0.0
    %5894 = vadd.xlane.f32.xlu0 %v5893
    %v5895 = vpop.xlane.xlu0 %5894
    %v5896 = vrcp.pop %v5895
    %v5897 = vmul.f32 %v5892, %v5896
    %5898 = vrot.lane.b32.xlu0 %v5287, 40
    %v5899 = vpop.permute.xlu0 %5898
    %v5902 = vsel %vm205, %v5897, 0
    %5904 = vmatprep.subr.mxu0 0.0
    %5905 = vmatpush1.msra.mxu0 %v5899
    %5906 = vmatprep.subr.mxu0 0.0
    %5907 = vmatpush1.msra.mxu0 0.0
    %5908 = vmatprep.subr.mxu0 0.0
    %5909 = vmatpush1.msra.mxu0 0.0
    %5910 = vmatprep.subr.mxu0 0.0
    %5911 = vmatpush1.msra.mxu0 0.0
    %5912 = vmatprep.subr.mxu0 0.0
    %5913 = vmatpush1.msra.mxu0 0.0
    %5914 = vmatprep.subr.mxu0 0.0
    %5915 = vmatpush1.msra.mxu0 0.0
    %5916 = vmatprep.subr.mxu0 0.0
    %5917 = vmatpush1.msra.mxu0 0.0
    %5918 = vmatprep.subr.mxu0 0.0
    %5919 = vmatpush1.msra.mxu0 0.0
    %5920 = vmatprep.subr.mxu0 0.0
    %5921 = vmatpush1.msra.mxu0 0.0
    %5922 = vmatprep.subr.mxu0 0.0
    %5923 = vmatpush1.msra.mxu0 0.0
    %5924 = vmatprep.subr.mxu0 0.0
    %5925 = vmatpush1.msra.mxu0 0.0
    %5926 = vmatprep.subr.mxu0 0.0
    %5927 = vmatpush1.msra.mxu0 0.0
    %5928 = vmatprep.subr.mxu0 0.0
    %5929 = vmatpush1.msra.mxu0 0.0
    %5930 = vmatprep.subr.mxu0 0.0
    %5931 = vmatpush1.msra.mxu0 0.0
    %5932 = vmatprep.subr.mxu0 0.0
    %5933 = vmatpush1.msra.mxu0 0.0
    %5934 = vmatprep.subr.mxu0 0.0
    %5935 = vmatpush1.msra.mxu0 0.0
    %5936 = vmatprep.subr.mxu0 0.0
    %5937 = vmatpush1.msra.mxu0 0.0
    %5938 = vmatprep.subr.mxu0 0.0
    %5939 = vmatpush1.msra.mxu0 0.0
    %5940 = vmatprep.subr.mxu0 0.0
    %5941 = vmatpush1.msra.mxu0 0.0
    %5942 = vmatprep.subr.mxu0 0.0
    %5943 = vmatpush1.msra.mxu0 0.0
    %5944 = vmatprep.subr.mxu0 0.0
    %5945 = vmatpush1.msra.mxu0 0.0
    %5946 = vmatprep.subr.mxu0 0.0
    %5947 = vmatpush1.msra.mxu0 0.0
    %5948 = vmatprep.subr.mxu0 0.0
    %5949 = vmatpush1.msra.mxu0 0.0
    %5950 = vmatprep.subr.mxu0 0.0
    %5951 = vmatpush1.msra.mxu0 0.0
    %5952 = vmatprep.subr.mxu0 0.0
    %5953 = vmatpush1.msra.mxu0 0.0
    %5954 = vmatprep.subr.mxu0 0.0
    %5955 = vmatpush1.msra.mxu0 0.0
    %5956 = vmatprep.subr.mxu0 0.0
    %5957 = vmatpush1.msra.mxu0 0.0
    %5958 = vmatprep.subr.mxu0 0.0
    %5959 = vmatpush1.msra.mxu0 0.0
    %5960 = vmatprep.subr.mxu0 0.0
    %5961 = vmatpush1.msra.mxu0 0.0
    %5962 = vmatprep.subr.mxu0 0.0
    %5963 = vmatpush1.msra.mxu0 0.0
    %5964 = vmatprep.subr.mxu0 0.0
    %5965 = vmatpush1.msra.mxu0 0.0
    %5966 = vmatprep.subr.mxu0 0.0
    %5967 = vmatpush1.msra.mxu0 0.0
    %5968 = vmatprep.mubr.f32.mxu0 0.0
    %5969 = vmatmul.mubr.f32.gmra.mrb[0].mxu0 %v5902
    %v5970 = vpop.f32.mrb[0].mxu0
    %v5971 = vadd.f32 0.0, %v5970
    %v5972 = vpop.f32.mrb[0].mxu0
    %5973 = vdwg.mxu0
    %5975 = vrot.lane.b32.xlu0 %v5971, 24
    %v5976 = vpop.permute.xlu0 %5975
    %5978 = vst.msk [vmem:[#allocation2] sm:$0xff] %vm887, %v5976
    %v5979 = vld [vmem:[%s2503] sm:$0xff]
    %5981 = vrot.lane.b32.xlu0 %v5292, 96
    %v5982 = vpop.permute.xlu0 %5981
    %v5983 = vsel %vm205, %v5292, 0
    %v5985 = vsel %vm205, %v5982, 0
    %5987 = vmatprep.subr.mxu0 0.0
    %5988 = vmatpush1.xpose.msra.mxu0 %v5985
    %5989 = vmatprep.subr.mxu0 0.0
    %5990 = vmatpush1.xpose.msra.mxu0 0.0
    %5991 = vmatprep.subr.mxu0 0.0
    %5992 = vmatpush1.xpose.msra.mxu0 0.0
    %5993 = vmatprep.subr.mxu0 0.0
    %5994 = vmatpush1.xpose.msra.mxu0 0.0
    %5995 = vmatprep.subr.mxu0 0.0
    %5996 = vmatpush1.xpose.msra.mxu0 0.0
    %5997 = vmatprep.subr.mxu0 0.0
    %5998 = vmatpush1.xpose.msra.mxu0 0.0
    %5999 = vmatprep.subr.mxu0 0.0
    %6000 = vmatpush1.xpose.msra.mxu0 0.0
    %6001 = vmatprep.subr.mxu0 0.0
    %6002 = vmatpush1.xpose.msra.mxu0 0.0
    %6003 = vmatprep.subr.mxu0 0.0
    %6004 = vmatpush1.xpose.msra.mxu0 0.0
    %6005 = vmatprep.subr.mxu0 0.0
    %6006 = vmatpush1.xpose.msra.mxu0 0.0
    %6007 = vmatprep.subr.mxu0 0.0
    %6008 = vmatpush1.xpose.msra.mxu0 0.0
    %6009 = vmatprep.subr.mxu0 0.0
    %6010 = vmatpush1.xpose.msra.mxu0 0.0
    %6011 = vmatprep.subr.mxu0 0.0
    %6012 = vmatpush1.xpose.msra.mxu0 0.0
    %6013 = vmatprep.subr.mxu0 0.0
    %6014 = vmatpush1.xpose.msra.mxu0 0.0
    %6015 = vmatprep.subr.mxu0 0.0
    %6016 = vmatpush1.xpose.msra.mxu0 0.0
    %6017 = vmatprep.subr.mxu0 0.0
    %6018 = vmatpush1.xpose.msra.mxu0 0.0
    %6019 = vmatprep.subr.mxu0 0.0
    %6020 = vmatpush1.xpose.msra.mxu0 0.0
    %6021 = vmatprep.subr.mxu0 0.0
    %6022 = vmatpush1.xpose.msra.mxu0 0.0
    %6023 = vmatprep.subr.mxu0 0.0
    %6024 = vmatpush1.xpose.msra.mxu0 0.0
    %6025 = vmatprep.subr.mxu0 0.0
    %6026 = vmatpush1.xpose.msra.mxu0 0.0
    %6027 = vmatprep.subr.mxu0 0.0
    %6028 = vmatpush1.xpose.msra.mxu0 0.0
    %6029 = vmatprep.subr.mxu0 0.0
    %6030 = vmatpush1.xpose.msra.mxu0 0.0
    %6031 = vmatprep.subr.mxu0 0.0
    %6032 = vmatpush1.xpose.msra.mxu0 0.0
    %6033 = vmatprep.subr.mxu0 0.0
    %6034 = vmatpush1.xpose.msra.mxu0 0.0
    %6035 = vmatprep.subr.mxu0 0.0
    %6036 = vmatpush1.xpose.msra.mxu0 0.0
    %6037 = vmatprep.subr.mxu0 0.0
    %6038 = vmatpush1.xpose.msra.mxu0 0.0
    %6039 = vmatprep.subr.mxu0 0.0
    %6040 = vmatpush1.xpose.msra.mxu0 0.0
    %6041 = vmatprep.subr.mxu0 0.0
    %6042 = vmatpush1.xpose.msra.mxu0 0.0
    %6043 = vmatprep.subr.mxu0 0.0
    %6044 = vmatpush1.xpose.msra.mxu0 0.0
    %6045 = vmatprep.subr.mxu0 0.0
    %6046 = vmatpush1.xpose.msra.mxu0 0.0
    %6047 = vmatprep.subr.mxu0 0.0
    %6048 = vmatpush1.xpose.msra.mxu0 0.0
    %6049 = vmatprep.subr.mxu0 0.0
    %6050 = vmatpush1.xpose.msra.mxu0 0.0
    %6051 = vmatprep.mubr.f32.mxu0 0.0
    %6052 = vmatmul.mubr.f32.gmra.mrb[0].mxu0 %v5983
    %v6053 = vpop.f32.mrb[0].mxu0
    %v6054 = vadd.f32 0.0, %v6053
    %v6055 = vpop.f32.mrb[0].mxu0
    %6056 = vdwg.mxu0
    %v6057 = vmul.f32 %v6054, 0.35355338
    %v6058 = vadd.f32 %v6057, %v5979
    %v6059 = vsel %vm205, %v6058, -inf
    %6060 = vmax.xlane.f32.xlu0 %v6059
    %v6061 = vpop.xlane.xlu0 %6060
    %v6062 = vsub.f32 %v6058, %v6061
    %v6063 = vmul.f32 %v6062, 1.442695
    %v6064 = vpow.pop %v6063
    %v6065 = vsel %vm205, %v6064, 0.0
    %6066 = vadd.xlane.f32.xlu0 %v6065
    %v6067 = vpop.xlane.xlu0 %6066
    %v6068 = vrcp.pop %v6067
    %v6069 = vmul.f32 %v6064, %v6068
    %6070 = vrot.lane.b32.xlu0 %v5292, 64
    %v6071 = vpop.permute.xlu0 %6070
    %v6074 = vsel %vm205, %v6069, 0
    %6076 = vmatprep.subr.mxu0 0.0
    %6077 = vmatpush1.msra.mxu0 %v6071
    %6078 = vmatprep.subr.mxu0 0.0
    %6079 = vmatpush1.msra.mxu0 0.0
    %6080 = vmatprep.subr.mxu0 0.0
    %6081 = vmatpush1.msra.mxu0 0.0
    %6082 = vmatprep.subr.mxu0 0.0
    %6083 = vmatpush1.msra.mxu0 0.0
    %6084 = vmatprep.subr.mxu0 0.0
    %6085 = vmatpush1.msra.mxu0 0.0
    %6086 = vmatprep.subr.mxu0 0.0
    %6087 = vmatpush1.msra.mxu0 0.0
    %6088 = vmatprep.subr.mxu0 0.0
    %6089 = vmatpush1.msra.mxu0 0.0
    %6090 = vmatprep.subr.mxu0 0.0
    %6091 = vmatpush1.msra.mxu0 0.0
    %6092 = vmatprep.subr.mxu0 0.0
    %6093 = vmatpush1.msra.mxu0 0.0
    %6094 = vmatprep.subr.mxu0 0.0
    %6095 = vmatpush1.msra.mxu0 0.0
    %6096 = vmatprep.subr.mxu0 0.0
    %6097 = vmatpush1.msra.mxu0 0.0
    %6098 = vmatprep.subr.mxu0 0.0
    %6099 = vmatpush1.msra.mxu0 0.0
    %6100 = vmatprep.subr.mxu0 0.0
    %6101 = vmatpush1.msra.mxu0 0.0
    %6102 = vmatprep.subr.mxu0 0.0
    %6103 = vmatpush1.msra.mxu0 0.0
    %6104 = vmatprep.subr.mxu0 0.0
    %6105 = vmatpush1.msra.mxu0 0.0
    %6106 = vmatprep.subr.mxu0 0.0
    %6107 = vmatpush1.msra.mxu0 0.0
    %6108 = vmatprep.subr.mxu0 0.0
    %6109 = vmatpush1.msra.mxu0 0.0
    %6110 = vmatprep.subr.mxu0 0.0
    %6111 = vmatpush1.msra.mxu0 0.0
    %6112 = vmatprep.subr.mxu0 0.0
    %6113 = vmatpush1.msra.mxu0 0.0
    %6114 = vmatprep.subr.mxu0 0.0
    %6115 = vmatpush1.msra.mxu0 0.0
    %6116 = vmatprep.subr.mxu0 0.0
    %6117 = vmatpush1.msra.mxu0 0.0
    %6118 = vmatprep.subr.mxu0 0.0
    %6119 = vmatpush1.msra.mxu0 0.0
    %6120 = vmatprep.subr.mxu0 0.0
    %6121 = vmatpush1.msra.mxu0 0.0
    %6122 = vmatprep.subr.mxu0 0.0
    %6123 = vmatpush1.msra.mxu0 0.0
    %6124 = vmatprep.subr.mxu0 0.0
    %6125 = vmatpush1.msra.mxu0 0.0
    %6126 = vmatprep.subr.mxu0 0.0
    %6127 = vmatpush1.msra.mxu0 0.0
    %6128 = vmatprep.subr.mxu0 0.0
    %6129 = vmatpush1.msra.mxu0 0.0
    %6130 = vmatprep.subr.mxu0 0.0
    %6131 = vmatpush1.msra.mxu0 0.0
    %6132 = vmatprep.subr.mxu0 0.0
    %6133 = vmatpush1.msra.mxu0 0.0
    %6134 = vmatprep.subr.mxu0 0.0
    %6135 = vmatpush1.msra.mxu0 0.0
    %6136 = vmatprep.subr.mxu0 0.0
    %6137 = vmatpush1.msra.mxu0 0.0
    %6138 = vmatprep.subr.mxu0 0.0
    %6139 = vmatpush1.msra.mxu0 0.0
    %6140 = vmatprep.mubr.f32.mxu0 0.0
    %6141 = vmatmul.mubr.f32.gmra.mrb[0].mxu0 %v6074
    %v6142 = vpop.f32.mrb[0].mxu0
    %v6143 = vadd.f32 0.0, %v6142
    %v6144 = vpop.f32.mrb[0].mxu0
    %6145 = vdwg.mxu0
    %6146 = vst.msk [vmem:[#allocation2 + $0x8] sm:$0xff] %vm205, %v6143
    %6147 = vrot.lane.b32.xlu0 %v5292, 120
    %v6148 = vpop.permute.xlu0 %6147
    %6149 = vrot.lane.b32.xlu0 %v5292, 88
    %v6150 = vpop.permute.xlu0 %6149
    %v6151 = vsel %vm205, %v6148, 0
    %v6153 = vsel %vm205, %v6150, 0
    %6155 = vmatprep.subr.mxu0 0.0
    %6156 = vmatpush1.xpose.msra.mxu0 %v6153
    %6157 = vmatprep.subr.mxu0 0.0
    %6158 = vmatpush1.xpose.msra.mxu0 0.0
    %6159 = vmatprep.subr.mxu0 0.0
    %6160 = vmatpush1.xpose.msra.mxu0 0.0
    %6161 = vmatprep.subr.mxu0 0.0
    %6162 = vmatpush1.xpose.msra.mxu0 0.0
    %6163 = vmatprep.subr.mxu0 0.0
    %6164 = vmatpush1.xpose.msra.mxu0 0.0
    %6165 = vmatprep.subr.mxu0 0.0
    %6166 = vmatpush1.xpose.msra.mxu0 0.0
    %6167 = vmatprep.subr.mxu0 0.0
    %6168 = vmatpush1.xpose.msra.mxu0 0.0
    %6169 = vmatprep.subr.mxu0 0.0
    %6170 = vmatpush1.xpose.msra.mxu0 0.0
    %6171 = vmatprep.subr.mxu0 0.0
    %6172 = vmatpush1.xpose.msra.mxu0 0.0
    %6173 = vmatprep.subr.mxu0 0.0
    %6174 = vmatpush1.xpose.msra.mxu0 0.0
    %6175 = vmatprep.subr.mxu0 0.0
    %6176 = vmatpush1.xpose.msra.mxu0 0.0
    %6177 = vmatprep.subr.mxu0 0.0
    %6178 = vmatpush1.xpose.msra.mxu0 0.0
    %6179 = vmatprep.subr.mxu0 0.0
    %6180 = vmatpush1.xpose.msra.mxu0 0.0
    %6181 = vmatprep.subr.mxu0 0.0
    %6182 = vmatpush1.xpose.msra.mxu0 0.0
    %6183 = vmatprep.subr.mxu0 0.0
    %6184 = vmatpush1.xpose.msra.mxu0 0.0
    %6185 = vmatprep.subr.mxu0 0.0
    %6186 = vmatpush1.xpose.msra.mxu0 0.0
    %6187 = vmatprep.subr.mxu0 0.0
    %6188 = vmatpush1.xpose.msra.mxu0 0.0
    %6189 = vmatprep.subr.mxu0 0.0
    %6190 = vmatpush1.xpose.msra.mxu0 0.0
    %6191 = vmatprep.subr.mxu0 0.0
    %6192 = vmatpush1.xpose.msra.mxu0 0.0
    %6193 = vmatprep.subr.mxu0 0.0
    %6194 = vmatpush1.xpose.msra.mxu0 0.0
    %6195 = vmatprep.subr.mxu0 0.0
    %6196 = vmatpush1.xpose.msra.mxu0 0.0
    %6197 = vmatprep.subr.mxu0 0.0
    %6198 = vmatpush1.xpose.msra.mxu0 0.0
    %6199 = vmatprep.subr.mxu0 0.0
    %6200 = vmatpush1.xpose.msra.mxu0 0.0
    %6201 = vmatprep.subr.mxu0 0.0
    %6202 = vmatpush1.xpose.msra.mxu0 0.0
    %6203 = vmatprep.subr.mxu0 0.0
    %6204 = vmatpush1.xpose.msra.mxu0 0.0
    %6205 = vmatprep.subr.mxu0 0.0
    %6206 = vmatpush1.xpose.msra.mxu0 0.0
    %6207 = vmatprep.subr.mxu0 0.0
    %6208 = vmatpush1.xpose.msra.mxu0 0.0
    %6209 = vmatprep.subr.mxu0 0.0
    %6210 = vmatpush1.xpose.msra.mxu0 0.0
    %6211 = vmatprep.subr.mxu0 0.0
    %6212 = vmatpush1.xpose.msra.mxu0 0.0
    %6213 = vmatprep.subr.mxu0 0.0
    %6214 = vmatpush1.xpose.msra.mxu0 0.0
    %6215 = vmatprep.subr.mxu0 0.0
    %6216 = vmatpush1.xpose.msra.mxu0 0.0
    %6217 = vmatprep.subr.mxu0 0.0
    %6218 = vmatpush1.xpose.msra.mxu0 0.0
    %6219 = vmatprep.mubr.f32.mxu0 0.0
    %6220 = vmatmul.mubr.f32.gmra.mrb[0].mxu0 %v6151
    %v6221 = vpop.f32.mrb[0].mxu0
    %v6222 = vadd.f32 0.0, %v6221
    %v6223 = vpop.f32.mrb[0].mxu0
    %6224 = vdwg.mxu0
    %v6225 = vmul.f32 %v6222, 0.35355338
    %v6226 = vadd.f32 %v6225, %v5979
    %v6227 = vsel %vm205, %v6226, -inf
    %6228 = vmax.xlane.f32.xlu0 %v6227
    %v6229 = vpop.xlane.xlu0 %6228
    %v6230 = vsub.f32 %v6226, %v6229
    %v6231 = vmul.f32 %v6230, 1.442695
    %v6232 = vpow.pop %v6231
    %v6233 = vsel %vm205, %v6232, 0.0
    %6234 = vadd.xlane.f32.xlu0 %v6233
    %v6235 = vpop.xlane.xlu0 %6234
    %v6236 = vrcp.pop %v6235
    %v6237 = vmul.f32 %v6232, %v6236
    %6238 = vrot.lane.b32.xlu0 %v5292, 56
    %v6239 = vpop.permute.xlu0 %6238
    %v6242 = vsel %vm205, %v6237, 0
    %6244 = vmatprep.subr.mxu0 0.0
    %6245 = vmatpush1.msra.mxu0 %v6239
    %6246 = vmatprep.subr.mxu0 0.0
    %6247 = vmatpush1.msra.mxu0 0.0
    %6248 = vmatprep.subr.mxu0 0.0
    %6249 = vmatpush1.msra.mxu0 0.0
    %6250 = vmatprep.subr.mxu0 0.0
    %6251 = vmatpush1.msra.mxu0 0.0
    %6252 = vmatprep.subr.mxu0 0.0
    %6253 = vmatpush1.msra.mxu0 0.0
    %6254 = vmatprep.subr.mxu0 0.0
    %6255 = vmatpush1.msra.mxu0 0.0
    %6256 = vmatprep.subr.mxu0 0.0
    %6257 = vmatpush1.msra.mxu0 0.0
    %6258 = vmatprep.subr.mxu0 0.0
    %6259 = vmatpush1.msra.mxu0 0.0
    %6260 = vmatprep.subr.mxu0 0.0
    %6261 = vmatpush1.msra.mxu0 0.0
    %6262 = vmatprep.subr.mxu0 0.0
    %6263 = vmatpush1.msra.mxu0 0.0
    %6264 = vmatprep.subr.mxu0 0.0
    %6265 = vmatpush1.msra.mxu0 0.0
    %6266 = vmatprep.subr.mxu0 0.0
    %6267 = vmatpush1.msra.mxu0 0.0
    %6268 = vmatprep.subr.mxu0 0.0
    %6269 = vmatpush1.msra.mxu0 0.0
    %6270 = vmatprep.subr.mxu0 0.0
    %6271 = vmatpush1.msra.mxu0 0.0
    %6272 = vmatprep.subr.mxu0 0.0
    %6273 = vmatpush1.msra.mxu0 0.0
    %6274 = vmatprep.subr.mxu0 0.0
    %6275 = vmatpush1.msra.mxu0 0.0
    %6276 = vmatprep.subr.mxu0 0.0
    %6277 = vmatpush1.msra.mxu0 0.0
    %6278 = vmatprep.subr.mxu0 0.0
    %6279 = vmatpush1.msra.mxu0 0.0
    %6280 = vmatprep.subr.mxu0 0.0
    %6281 = vmatpush1.msra.mxu0 0.0
    %6282 = vmatprep.subr.mxu0 0.0
    %6283 = vmatpush1.msra.mxu0 0.0
    %6284 = vmatprep.subr.mxu0 0.0
    %6285 = vmatpush1.msra.mxu0 0.0
    %6286 = vmatprep.subr.mxu0 0.0
    %6287 = vmatpush1.msra.mxu0 0.0
    %6288 = vmatprep.subr.mxu0 0.0
    %6289 = vmatpush1.msra.mxu0 0.0
    %6290 = vmatprep.subr.mxu0 0.0
    %6291 = vmatpush1.msra.mxu0 0.0
    %6292 = vmatprep.subr.mxu0 0.0
    %6293 = vmatpush1.msra.mxu0 0.0
    %6294 = vmatprep.subr.mxu0 0.0
    %6295 = vmatpush1.msra.mxu0 0.0
    %6296 = vmatprep.subr.mxu0 0.0
    %6297 = vmatpush1.msra.mxu0 0.0
    %6298 = vmatprep.subr.mxu0 0.0
    %6299 = vmatpush1.msra.mxu0 0.0
    %6300 = vmatprep.subr.mxu0 0.0
    %6301 = vmatpush1.msra.mxu0 0.0
    %6302 = vmatprep.subr.mxu0 0.0
    %6303 = vmatpush1.msra.mxu0 0.0
    %6304 = vmatprep.subr.mxu0 0.0
    %6305 = vmatpush1.msra.mxu0 0.0
    %6306 = vmatprep.subr.mxu0 0.0
    %6307 = vmatpush1.msra.mxu0 0.0
    %6308 = vmatprep.mubr.f32.mxu0 0.0
    %6309 = vmatmul.mubr.f32.gmra.mrb[0].mxu0 %v6242
    %v6310 = vpop.f32.mrb[0].mxu0
    %v6311 = vadd.f32 0.0, %v6310
    %v6312 = vpop.f32.mrb[0].mxu0
    %6313 = vdwg.mxu0
    %6315 = vrot.lane.b32.xlu0 %v6311, 8
    %v6316 = vpop.permute.xlu0 %6315
    %6318 = vst.msk [vmem:[#allocation2 + $0x8] sm:$0xff] %vm541, %v6316
    %6319 = vrot.lane.b32.xlu0 %v5292, 112
    %v6320 = vpop.permute.xlu0 %6319
    %6321 = vrot.lane.b32.xlu0 %v5292, 80
    %v6322 = vpop.permute.xlu0 %6321
    %v6323 = vsel %vm205, %v6320, 0
    %v6325 = vsel %vm205, %v6322, 0
    %6327 = vmatprep.subr.mxu0 0.0
    %6328 = vmatpush1.xpose.msra.mxu0 %v6325
    %6329 = vmatprep.subr.mxu0 0.0
    %6330 = vmatpush1.xpose.msra.mxu0 0.0
    %6331 = vmatprep.subr.mxu0 0.0
    %6332 = vmatpush1.xpose.msra.mxu0 0.0
    %6333 = vmatprep.subr.mxu0 0.0
    %6334 = vmatpush1.xpose.msra.mxu0 0.0
    %6335 = vmatprep.subr.mxu0 0.0
    %6336 = vmatpush1.xpose.msra.mxu0 0.0
    %6337 = vmatprep.subr.mxu0 0.0
    %6338 = vmatpush1.xpose.msra.mxu0 0.0
    %6339 = vmatprep.subr.mxu0 0.0
    %6340 = vmatpush1.xpose.msra.mxu0 0.0
    %6341 = vmatprep.subr.mxu0 0.0
    %6342 = vmatpush1.xpose.msra.mxu0 0.0
    %6343 = vmatprep.subr.mxu0 0.0
    %6344 = vmatpush1.xpose.msra.mxu0 0.0
    %6345 = vmatprep.subr.mxu0 0.0
    %6346 = vmatpush1.xpose.msra.mxu0 0.0
    %6347 = vmatprep.subr.mxu0 0.0
    %6348 = vmatpush1.xpose.msra.mxu0 0.0
    %6349 = vmatprep.subr.mxu0 0.0
    %6350 = vmatpush1.xpose.msra.mxu0 0.0
    %6351 = vmatprep.subr.mxu0 0.0
    %6352 = vmatpush1.xpose.msra.mxu0 0.0
    %6353 = vmatprep.subr.mxu0 0.0
    %6354 = vmatpush1.xpose.msra.mxu0 0.0
    %6355 = vmatprep.subr.mxu0 0.0
    %6356 = vmatpush1.xpose.msra.mxu0 0.0
    %6357 = vmatprep.subr.mxu0 0.0
    %6358 = vmatpush1.xpose.msra.mxu0 0.0
    %6359 = vmatprep.subr.mxu0 0.0
    %6360 = vmatpush1.xpose.msra.mxu0 0.0
    %6361 = vmatprep.subr.mxu0 0.0
    %6362 = vmatpush1.xpose.msra.mxu0 0.0
    %6363 = vmatprep.subr.mxu0 0.0
    %6364 = vmatpush1.xpose.msra.mxu0 0.0
    %6365 = vmatprep.subr.mxu0 0.0
    %6366 = vmatpush1.xpose.msra.mxu0 0.0
    %6367 = vmatprep.subr.mxu0 0.0
    %6368 = vmatpush1.xpose.msra.mxu0 0.0
    %6369 = vmatprep.subr.mxu0 0.0
    %6370 = vmatpush1.xpose.msra.mxu0 0.0
    %6371 = vmatprep.subr.mxu0 0.0
    %6372 = vmatpush1.xpose.msra.mxu0 0.0
    %6373 = vmatprep.subr.mxu0 0.0
    %6374 = vmatpush1.xpose.msra.mxu0 0.0
    %6375 = vmatprep.subr.mxu0 0.0
    %6376 = vmatpush1.xpose.msra.mxu0 0.0
    %6377 = vmatprep.subr.mxu0 0.0
    %6378 = vmatpush1.xpose.msra.mxu0 0.0
    %6379 = vmatprep.subr.mxu0 0.0
    %6380 = vmatpush1.xpose.msra.mxu0 0.0
    %6381 = vmatprep.subr.mxu0 0.0
    %6382 = vmatpush1.xpose.msra.mxu0 0.0
    %6383 = vmatprep.subr.mxu0 0.0
    %6384 = vmatpush1.xpose.msra.mxu0 0.0
    %6385 = vmatprep.subr.mxu0 0.0
    %6386 = vmatpush1.xpose.msra.mxu0 0.0
    %6387 = vmatprep.subr.mxu0 0.0
    %6388 = vmatpush1.xpose.msra.mxu0 0.0
    %6389 = vmatprep.subr.mxu0 0.0
    %6390 = vmatpush1.xpose.msra.mxu0 0.0
    %6391 = vmatprep.mubr.f32.mxu0 0.0
    %6392 = vmatmul.mubr.f32.gmra.mrb[0].mxu0 %v6323
    %v6393 = vpop.f32.mrb[0].mxu0
    %v6394 = vadd.f32 0.0, %v6393
    %v6395 = vpop.f32.mrb[0].mxu0
    %6396 = vdwg.mxu0
    %v6397 = vmul.f32 %v6394, 0.35355338
    %v6398 = vadd.f32 %v6397, %v5979
    %v6399 = vsel %vm205, %v6398, -inf
    %6400 = vmax.xlane.f32.xlu0 %v6399
    %v6401 = vpop.xlane.xlu0 %6400
    %v6402 = vsub.f32 %v6398, %v6401
    %v6403 = vmul.f32 %v6402, 1.442695
    %v6404 = vpow.pop %v6403
    %v6405 = vsel %vm205, %v6404, 0.0
    %6406 = vadd.xlane.f32.xlu0 %v6405
    %v6407 = vpop.xlane.xlu0 %6406
    %v6408 = vrcp.pop %v6407
    %v6409 = vmul.f32 %v6404, %v6408
    %6410 = vrot.lane.b32.xlu0 %v5292, 48
    %v6411 = vpop.permute.xlu0 %6410
    %v6414 = vsel %vm205, %v6409, 0
    %6416 = vmatprep.subr.mxu0 0.0
    %6417 = vmatpush1.msra.mxu0 %v6411
    %6418 = vmatprep.subr.mxu0 0.0
    %6419 = vmatpush1.msra.mxu0 0.0
    %6420 = vmatprep.subr.mxu0 0.0
    %6421 = vmatpush1.msra.mxu0 0.0
    %6422 = vmatprep.subr.mxu0 0.0
    %6423 = vmatpush1.msra.mxu0 0.0
    %6424 = vmatprep.subr.mxu0 0.0
    %6425 = vmatpush1.msra.mxu0 0.0
    %6426 = vmatprep.subr.mxu0 0.0
    %6427 = vmatpush1.msra.mxu0 0.0
    %6428 = vmatprep.subr.mxu0 0.0
    %6429 = vmatpush1.msra.mxu0 0.0
    %6430 = vmatprep.subr.mxu0 0.0
    %6431 = vmatpush1.msra.mxu0 0.0
    %6432 = vmatprep.subr.mxu0 0.0
    %6433 = vmatpush1.msra.mxu0 0.0
    %6434 = vmatprep.subr.mxu0 0.0
    %6435 = vmatpush1.msra.mxu0 0.0
    %6436 = vmatprep.subr.mxu0 0.0
    %6437 = vmatpush1.msra.mxu0 0.0
    %6438 = vmatprep.subr.mxu0 0.0
    %6439 = vmatpush1.msra.mxu0 0.0
    %6440 = vmatprep.subr.mxu0 0.0
    %6441 = vmatpush1.msra.mxu0 0.0
    %6442 = vmatprep.subr.mxu0 0.0
    %6443 = vmatpush1.msra.mxu0 0.0
    %6444 = vmatprep.subr.mxu0 0.0
    %6445 = vmatpush1.msra.mxu0 0.0
    %6446 = vmatprep.subr.mxu0 0.0
    %6447 = vmatpush1.msra.mxu0 0.0
    %6448 = vmatprep.subr.mxu0 0.0
    %6449 = vmatpush1.msra.mxu0 0.0
    %6450 = vmatprep.subr.mxu0 0.0
    %6451 = vmatpush1.msra.mxu0 0.0
    %6452 = vmatprep.subr.mxu0 0.0
    %6453 = vmatpush1.msra.mxu0 0.0
    %6454 = vmatprep.subr.mxu0 0.0
    %6455 = vmatpush1.msra.mxu0 0.0
    %6456 = vmatprep.subr.mxu0 0.0
    %6457 = vmatpush1.msra.mxu0 0.0
    %6458 = vmatprep.subr.mxu0 0.0
    %6459 = vmatpush1.msra.mxu0 0.0
    %6460 = vmatprep.subr.mxu0 0.0
    %6461 = vmatpush1.msra.mxu0 0.0
    %6462 = vmatprep.subr.mxu0 0.0
    %6463 = vmatpush1.msra.mxu0 0.0
    %6464 = vmatprep.subr.mxu0 0.0
    %6465 = vmatpush1.msra.mxu0 0.0
    %6466 = vmatprep.subr.mxu0 0.0
    %6467 = vmatpush1.msra.mxu0 0.0
    %6468 = vmatprep.subr.mxu0 0.0
    %6469 = vmatpush1.msra.mxu0 0.0
    %6470 = vmatprep.subr.mxu0 0.0
    %6471 = vmatpush1.msra.mxu0 0.0
    %6472 = vmatprep.subr.mxu0 0.0
    %6473 = vmatpush1.msra.mxu0 0.0
    %6474 = vmatprep.subr.mxu0 0.0
    %6475 = vmatpush1.msra.mxu0 0.0
    %6476 = vmatprep.subr.mxu0 0.0
    %6477 = vmatpush1.msra.mxu0 0.0
    %6478 = vmatprep.subr.mxu0 0.0
    %6479 = vmatpush1.msra.mxu0 0.0
    %6480 = vmatprep.mubr.f32.mxu0 0.0
    %6481 = vmatmul.mubr.f32.gmra.mrb[0].mxu0 %v6414
    %v6482 = vpop.f32.mrb[0].mxu0
    %v6483 = vadd.f32 0.0, %v6482
    %v6484 = vpop.f32.mrb[0].mxu0
    %6485 = vdwg.mxu0
    %6487 = vrot.lane.b32.xlu0 %v6483, 16
    %v6488 = vpop.permute.xlu0 %6487
    %6490 = vst.msk [vmem:[#allocation2 + $0x8] sm:$0xff] %vm714, %v6488
    %6491 = vrot.lane.b32.xlu0 %v5292, 104
    %v6492 = vpop.permute.xlu0 %6491
    %6493 = vrot.lane.b32.xlu0 %v5292, 72
    %v6494 = vpop.permute.xlu0 %6493
    %v6495 = vsel %vm205, %v6492, 0
    %v6497 = vsel %vm205, %v6494, 0
    %6499 = vmatprep.subr.mxu0 0.0
    %6500 = vmatpush1.xpose.msra.mxu0 %v6497
    %6501 = vmatprep.subr.mxu0 0.0
    %6502 = vmatpush1.xpose.msra.mxu0 0.0
    %6503 = vmatprep.subr.mxu0 0.0
    %6504 = vmatpush1.xpose.msra.mxu0 0.0
    %6505 = vmatprep.subr.mxu0 0.0
    %6506 = vmatpush1.xpose.msra.mxu0 0.0
    %6507 = vmatprep.subr.mxu0 0.0
    %6508 = vmatpush1.xpose.msra.mxu0 0.0
    %6509 = vmatprep.subr.mxu0 0.0
    %6510 = vmatpush1.xpose.msra.mxu0 0.0
    %6511 = vmatprep.subr.mxu0 0.0
    %6512 = vmatpush1.xpose.msra.mxu0 0.0
    %6513 = vmatprep.subr.mxu0 0.0
    %6514 = vmatpush1.xpose.msra.mxu0 0.0
    %6515 = vmatprep.subr.mxu0 0.0
    %6516 = vmatpush1.xpose.msra.mxu0 0.0
    %6517 = vmatprep.subr.mxu0 0.0
    %6518 = vmatpush1.xpose.msra.mxu0 0.0
    %6519 = vmatprep.subr.mxu0 0.0
    %6520 = vmatpush1.xpose.msra.mxu0 0.0
    %6521 = vmatprep.subr.mxu0 0.0
    %6522 = vmatpush1.xpose.msra.mxu0 0.0
    %6523 = vmatprep.subr.mxu0 0.0
    %6524 = vmatpush1.xpose.msra.mxu0 0.0
    %6525 = vmatprep.subr.mxu0 0.0
    %6526 = vmatpush1.xpose.msra.mxu0 0.0
    %6527 = vmatprep.subr.mxu0 0.0
    %6528 = vmatpush1.xpose.msra.mxu0 0.0
    %6529 = vmatprep.subr.mxu0 0.0
    %6530 = vmatpush1.xpose.msra.mxu0 0.0
    %6531 = vmatprep.subr.mxu0 0.0
    %6532 = vmatpush1.xpose.msra.mxu0 0.0
    %6533 = vmatprep.subr.mxu0 0.0
    %6534 = vmatpush1.xpose.msra.mxu0 0.0
    %6535 = vmatprep.subr.mxu0 0.0
    %6536 = vmatpush1.xpose.msra.mxu0 0.0
    %6537 = vmatprep.subr.mxu0 0.0
    %6538 = vmatpush1.xpose.msra.mxu0 0.0
    %6539 = vmatprep.subr.mxu0 0.0
    %6540 = vmatpush1.xpose.msra.mxu0 0.0
    %6541 = vmatprep.subr.mxu0 0.0
    %6542 = vmatpush1.xpose.msra.mxu0 0.0
    %6543 = vmatprep.subr.mxu0 0.0
    %6544 = vmatpush1.xpose.msra.mxu0 0.0
    %6545 = vmatprep.subr.mxu0 0.0
    %6546 = vmatpush1.xpose.msra.mxu0 0.0
    %6547 = vmatprep.subr.mxu0 0.0
    %6548 = vmatpush1.xpose.msra.mxu0 0.0
    %6549 = vmatprep.subr.mxu0 0.0
    %6550 = vmatpush1.xpose.msra.mxu0 0.0
    %6551 = vmatprep.subr.mxu0 0.0
    %6552 = vmatpush1.xpose.msra.mxu0 0.0
    %6553 = vmatprep.subr.mxu0 0.0
    %6554 = vmatpush1.xpose.msra.mxu0 0.0
    %6555 = vmatprep.subr.mxu0 0.0
    %6556 = vmatpush1.xpose.msra.mxu0 0.0
    %6557 = vmatprep.subr.mxu0 0.0
    %6558 = vmatpush1.xpose.msra.mxu0 0.0
    %6559 = vmatprep.subr.mxu0 0.0
    %6560 = vmatpush1.xpose.msra.mxu0 0.0
    %6561 = vmatprep.subr.mxu0 0.0
    %6562 = vmatpush1.xpose.msra.mxu0 0.0
    %6563 = vmatprep.mubr.f32.mxu0 0.0
    %6564 = vmatmul.mubr.f32.gmra.mrb[0].mxu0 %v6495
    %v6565 = vpop.f32.mrb[0].mxu0
    %v6566 = vadd.f32 0.0, %v6565
    %v6567 = vpop.f32.mrb[0].mxu0
    %6568 = vdwg.mxu0
    %v6569 = vmul.f32 %v6566, 0.35355338
    %v6570 = vadd.f32 %v6569, %v5979
    %v6571 = vsel %vm205, %v6570, -inf
    %6572 = vmax.xlane.f32.xlu0 %v6571
    %v6573 = vpop.xlane.xlu0 %6572
    %v6574 = vsub.f32 %v6570, %v6573
    %v6575 = vmul.f32 %v6574, 1.442695
    %v6576 = vpow.pop %v6575
    %v6577 = vsel %vm205, %v6576, 0.0
    %6578 = vadd.xlane.f32.xlu0 %v6577
    %v6579 = vpop.xlane.xlu0 %6578
    %v6580 = vrcp.pop %v6579
    %v6581 = vmul.f32 %v6576, %v6580
    %6582 = vrot.lane.b32.xlu0 %v5292, 40
    %v6583 = vpop.permute.xlu0 %6582
    %v6586 = vsel %vm205, %v6581, 0
    %6588 = vmatprep.subr.mxu0 0.0
    %6589 = vmatpush1.msra.mxu0 %v6583
    %6590 = vmatprep.subr.mxu0 0.0
    %6591 = vmatpush1.msra.mxu0 0.0
    %6592 = vmatprep.subr.mxu0 0.0
    %6593 = vmatpush1.msra.mxu0 0.0
    %6594 = vmatprep.subr.mxu0 0.0
    %6595 = vmatpush1.msra.mxu0 0.0
    %6596 = vmatprep.subr.mxu0 0.0
    %6597 = vmatpush1.msra.mxu0 0.0
    %6598 = vmatprep.subr.mxu0 0.0
    %6599 = vmatpush1.msra.mxu0 0.0
    %6600 = vmatprep.subr.mxu0 0.0
    %6601 = vmatpush1.msra.mxu0 0.0
    %6602 = vmatprep.subr.mxu0 0.0
    %6603 = vmatpush1.msra.mxu0 0.0
    %6604 = vmatprep.subr.mxu0 0.0
    %6605 = vmatpush1.msra.mxu0 0.0
    %6606 = vmatprep.subr.mxu0 0.0
    %6607 = vmatpush1.msra.mxu0 0.0
    %6608 = vmatprep.subr.mxu0 0.0
    %6609 = vmatpush1.msra.mxu0 0.0
    %6610 = vmatprep.subr.mxu0 0.0
    %6611 = vmatpush1.msra.mxu0 0.0
    %6612 = vmatprep.subr.mxu0 0.0
    %6613 = vmatpush1.msra.mxu0 0.0
    %6614 = vmatprep.subr.mxu0 0.0
    %6615 = vmatpush1.msra.mxu0 0.0
    %6616 = vmatprep.subr.mxu0 0.0
    %6617 = vmatpush1.msra.mxu0 0.0
    %6618 = vmatprep.subr.mxu0 0.0
    %6619 = vmatpush1.msra.mxu0 0.0
    %6620 = vmatprep.subr.mxu0 0.0
    %6621 = vmatpush1.msra.mxu0 0.0
    %6622 = vmatprep.subr.mxu0 0.0
    %6623 = vmatpush1.msra.mxu0 0.0
    %6624 = vmatprep.subr.mxu0 0.0
    %6625 = vmatpush1.msra.mxu0 0.0
    %6626 = vmatprep.subr.mxu0 0.0
    %6627 = vmatpush1.msra.mxu0 0.0
    %6628 = vmatprep.subr.mxu0 0.0
    %6629 = vmatpush1.msra.mxu0 0.0
    %6630 = vmatprep.subr.mxu0 0.0
    %6631 = vmatpush1.msra.mxu0 0.0
    %6632 = vmatprep.subr.mxu0 0.0
    %6633 = vmatpush1.msra.mxu0 0.0
    %6634 = vmatprep.subr.mxu0 0.0
    %6635 = vmatpush1.msra.mxu0 0.0
    %6636 = vmatprep.subr.mxu0 0.0
    %6637 = vmatpush1.msra.mxu0 0.0
    %6638 = vmatprep.subr.mxu0 0.0
    %6639 = vmatpush1.msra.mxu0 0.0
    %6640 = vmatprep.subr.mxu0 0.0
    %6641 = vmatpush1.msra.mxu0 0.0
    %6642 = vmatprep.subr.mxu0 0.0
    %6643 = vmatpush1.msra.mxu0 0.0
    %6644 = vmatprep.subr.mxu0 0.0
    %6645 = vmatpush1.msra.mxu0 0.0
    %6646 = vmatprep.subr.mxu0 0.0
    %6647 = vmatpush1.msra.mxu0 0.0
    %6648 = vmatprep.subr.mxu0 0.0
    %6649 = vmatpush1.msra.mxu0 0.0
    %6650 = vmatprep.subr.mxu0 0.0
    %6651 = vmatpush1.msra.mxu0 0.0
    %6652 = vmatprep.mubr.f32.mxu0 0.0
    %6653 = vmatmul.mubr.f32.gmra.mrb[0].mxu0 %v6586
    %v6654 = vpop.f32.mrb[0].mxu0
    %v6655 = vadd.f32 0.0, %v6654
    %v6656 = vpop.f32.mrb[0].mxu0
    %6657 = vdwg.mxu0
    %6659 = vrot.lane.b32.xlu0 %v6655, 24
    %v6660 = vpop.permute.xlu0 %6659
    %6662 = vst.msk [vmem:[#allocation2 + $0x8] sm:$0xff] %vm887, %v6660
    %v6663 = vld [vmem:[#allocation2] sm:$0xff]
    %v6664 = vld [vmem:[#allocation2 + $0x8] sm:$0xff]
    %s6665 = scalar_lea.vmem %s7, 96
    %v6666 = vld [vmem:[%s6665] sm:$0xff]
    %v6667 = vld [vmem:[%s6665 + $0x8] sm:$0xff]
    %v6668 = vld [vmem:[%s6665 + $0x10] sm:$0xff]
    %v6669 = vld [vmem:[%s6665 + $0x18] sm:$0xff]
    %s6670 = scalar_lea.vmem %s8, 3
    %v6671 = vld [vmem:[%s6670] sm:$0x1]
    %v6673 = vlaneseq
    %v6674 = vshrl.u32 %v6673, 7
    %v6675 = vsub.s32 0, %v6674
    %v6676 = vrot.slane %v6671, %v6675
    %v6679 = vsel %vm55, %v6663, 0
    %v6682 = vsel %vm55, %v6664, 0
    %6684 = vmatprep.subr.mxu0 0.0
    %6685 = vmatpush1.msra.mxu0 %v6666
    %6686 = vmatprep.subr.mxu0 0.0
    %6687 = vmatpush1.msra.mxu0 %v6667
    %6688 = vmatprep.subr.mxu0 0.0
    %6689 = vmatpush1.msra.mxu0 %v6668
    %6690 = vmatprep.subr.mxu0 0.0
    %6691 = vmatpush1.msra.mxu0 %v6669
    %6692 = vmatprep.subr.mxu0 0.0
    %6693 = vmatpush1.msra.mxu0 0.0
    %6694 = vmatprep.subr.mxu0 0.0
    %6695 = vmatpush1.msra.mxu0 0.0
    %6696 = vmatprep.subr.mxu0 0.0
    %6697 = vmatpush1.msra.mxu0 0.0
    %6698 = vmatprep.subr.mxu0 0.0
    %6699 = vmatpush1.msra.mxu0 0.0
    %6700 = vmatprep.subr.mxu0 0.0
    %6701 = vmatpush1.msra.mxu0 0.0
    %6702 = vmatprep.subr.mxu0 0.0
    %6703 = vmatpush1.msra.mxu0 0.0
    %6704 = vmatprep.subr.mxu0 0.0
    %6705 = vmatpush1.msra.mxu0 0.0
    %6706 = vmatprep.subr.mxu0 0.0
    %6707 = vmatpush1.msra.mxu0 0.0
    %6708 = vmatprep.subr.mxu0 0.0
    %6709 = vmatpush1.msra.mxu0 0.0
    %6710 = vmatprep.subr.mxu0 0.0
    %6711 = vmatpush1.msra.mxu0 0.0
    %6712 = vmatprep.subr.mxu0 0.0
    %6713 = vmatpush1.msra.mxu0 0.0
    %6714 = vmatprep.subr.mxu0 0.0
    %6715 = vmatpush1.msra.mxu0 0.0
    %6716 = vmatprep.subr.mxu0 0.0
    %6717 = vmatpush1.msra.mxu0 0.0
    %6718 = vmatprep.subr.mxu0 0.0
    %6719 = vmatpush1.msra.mxu0 0.0
    %6720 = vmatprep.subr.mxu0 0.0
    %6721 = vmatpush1.msra.mxu0 0.0
    %6722 = vmatprep.subr.mxu0 0.0
    %6723 = vmatpush1.msra.mxu0 0.0
    %6724 = vmatprep.subr.mxu0 0.0
    %6725 = vmatpush1.msra.mxu0 0.0
    %6726 = vmatprep.subr.mxu0 0.0
    %6727 = vmatpush1.msra.mxu0 0.0
    %6728 = vmatprep.subr.mxu0 0.0
    %6729 = vmatpush1.msra.mxu0 0.0
    %6730 = vmatprep.subr.mxu0 0.0
    %6731 = vmatpush1.msra.mxu0 0.0
    %6732 = vmatprep.subr.mxu0 0.0
    %6733 = vmatpush1.msra.mxu0 0.0
    %6734 = vmatprep.subr.mxu0 0.0
    %6735 = vmatpush1.msra.mxu0 0.0
    %6736 = vmatprep.subr.mxu0 0.0
    %6737 = vmatpush1.msra.mxu0 0.0
    %6738 = vmatprep.subr.mxu0 0.0
    %6739 = vmatpush1.msra.mxu0 0.0
    %6740 = vmatprep.subr.mxu0 0.0
    %6741 = vmatpush1.msra.mxu0 0.0
    %6742 = vmatprep.subr.mxu0 0.0
    %6743 = vmatpush1.msra.mxu0 0.0
    %6744 = vmatprep.subr.mxu0 0.0
    %6745 = vmatpush1.msra.mxu0 0.0
    %6746 = vmatprep.subr.mxu0 0.0
    %6747 = vmatpush1.msra.mxu0 0.0
    %6748 = vmatprep.mubr.f32.mxu0 0.0
    %6749 = vmatmul.mubr.f32.gmra.mrb[0].mxu0 %v6679
    %v6750 = vpop.f32.mrb[0].mxu0
    %v6751 = vadd.f32 %v6676, %v6750
    %v6752 = vpop.f32.mrb[0].mxu0
    %6753 = vmatprep.mubr.f32.mxu0 0.0
    %6754 = vmatmul.mubr.f32.gmra.mrb[0].mxu0 %v6682
    %v6755 = vpop.f32.mrb[0].mxu0
    %v6756 = vadd.f32 %v6676, %v6755
    %v6757 = vpop.f32.mrb[0].mxu0
    %6758 = vdwg.mxu0
    %v6759 = vadd.f32 %v6751, %v5145
    %v6760 = vadd.f32 %v6756, %v5146
    %v6761 = vld [vmem:[%s3 + $0x5] sm:$0x1]
    %v6762 = vld [vmem:[%s4 + $0x5] sm:$0x1]
    %v6763 = vsel %vm55, %v6759, 0.0
    %6764 = vadd.xlane.f32.xlu0 %v6763
    %v6765 = vpop.xlane.xlu0 %6764
    %v6766 = vsel %vm55, %v6760, 0.0
    %6767 = vadd.xlane.f32.xlu0 %v6766
    %v6768 = vpop.xlane.xlu0 %6767
    %v6769 = vmul.f32 %v6765, %v62
    %v6770 = vmul.f32 %v6768, %v62
    %v6771 = vsub.f32 %v6759, %v6769
    %v6772 = vsub.f32 %v6760, %v6770
    %v6773 = vmul.f32 %v6771, %v6771
    %v6774 = vmul.f32 %v6772, %v6772
    %v6775 = vsel %vm55, %v6773, 0.0
    %6776 = vadd.xlane.f32.xlu0 %v6775
    %v6777 = vpop.xlane.xlu0 %6776
    %v6778 = vsel %vm55, %v6774, 0.0
    %6779 = vadd.xlane.f32.xlu0 %v6778
    %v6780 = vpop.xlane.xlu0 %6779
    %v6781 = vmul.f32 %v6777, 0.032258064
    %v6782 = vmul.f32 %v6780, 0.032258064
    %v6783 = vrsqrt.pop %v6781
    %v6784 = vmul.f32 %v6781, %v6783
    %vm6785 = vcmp.eq.f32.partialorder %v6781, inf
    %v6786 = vsel %vm6785, %v6781, %v6784
    %vm6787 = vcmp.eq.f32.partialorder %v6781, 0.0
    %v6788 = vand.u32 %v6781, 2147483648
    %v6789 = vsel %vm6787, %v6788, %v6786
    %v6790 = vrsqrt.pop %v6782
    %v6791 = vmul.f32 %v6782, %v6790
    %vm6792 = vcmp.eq.f32.partialorder %v6782, inf
    %v6793 = vsel %vm6792, %v6782, %v6791
    %vm6794 = vcmp.eq.f32.partialorder %v6782, 0.0
    %v6795 = vand.u32 %v6782, 2147483648
    %v6796 = vsel %vm6794, %v6795, %v6793
    %v6797 = vlaneseq
    %v6798 = vshrl.u32 %v6797, 7
    %v6799 = vsub.s32 0, %v6798
    %v6800 = vrot.slane %v6761, %v6799
    %v6801 = vmul.f32 %v6800, %v6771
    %v6802 = vmul.f32 %v6800, %v6772
    %v6803 = vadd.f32 %v6789, 1e-06
    %v6804 = vadd.f32 %v6796, 1e-06
    %v6805 = vrcp.pop %v6803
    %v6806 = vrcp.pop %v6804
    %v6807 = vmul.f32 %v6801, %v6805
    %v6808 = vmul.f32 %v6802, %v6806
    %v6809 = vlaneseq
    %v6810 = vshrl.u32 %v6809, 7
    %v6811 = vsub.s32 0, %v6810
    %v6812 = vrot.slane %v6762, %v6811
    %v6813 = vadd.f32 %v6807, %v6812
    %v6814 = vadd.f32 %v6808, %v6812
    %s6815 = scalar_lea.vmem %s9, 32
    %v6816 = vld [vmem:[%s6815] sm:$0xff]
    %v6817 = vld [vmem:[%s6815 + $0x8] sm:$0xff]
    %v6818 = vld [vmem:[%s6815 + $0x10] sm:$0xff]
    %v6819 = vld [vmem:[%s6815 + $0x18] sm:$0xff]
    %s6820 = scalar_lea.vmem %s10, 1
    %v6821 = vld [vmem:[%s6820] sm:$0x1]
    %v6823 = vlaneseq
    %v6824 = vshrl.u32 %v6823, 7
    %v6825 = vsub.s32 0, %v6824
    %v6826 = vrot.slane %v6821, %v6825
    %v6829 = vsel %vm55, %v6813, 0
    %v6832 = vsel %vm55, %v6814, 0
    %6834 = vmatprep.subr.mxu0 0.0
    %6835 = vmatpush1.msra.mxu0 %v6816
    %6836 = vmatprep.subr.mxu0 0.0
    %6837 = vmatpush1.msra.mxu0 %v6817
    %6838 = vmatprep.subr.mxu0 0.0
    %6839 = vmatpush1.msra.mxu0 %v6818
    %6840 = vmatprep.subr.mxu0 0.0
    %6841 = vmatpush1.msra.mxu0 %v6819
    %6842 = vmatprep.subr.mxu0 0.0
    %6843 = vmatpush1.msra.mxu0 0.0
    %6844 = vmatprep.subr.mxu0 0.0
    %6845 = vmatpush1.msra.mxu0 0.0
    %6846 = vmatprep.subr.mxu0 0.0
    %6847 = vmatpush1.msra.mxu0 0.0
    %6848 = vmatprep.subr.mxu0 0.0
    %6849 = vmatpush1.msra.mxu0 0.0
    %6850 = vmatprep.subr.mxu0 0.0
    %6851 = vmatpush1.msra.mxu0 0.0
    %6852 = vmatprep.subr.mxu0 0.0
    %6853 = vmatpush1.msra.mxu0 0.0
    %6854 = vmatprep.subr.mxu0 0.0
    %6855 = vmatpush1.msra.mxu0 0.0
    %6856 = vmatprep.subr.mxu0 0.0
    %6857 = vmatpush1.msra.mxu0 0.0
    %6858 = vmatprep.subr.mxu0 0.0
    %6859 = vmatpush1.msra.mxu0 0.0
    %6860 = vmatprep.subr.mxu0 0.0
    %6861 = vmatpush1.msra.mxu0 0.0
    %6862 = vmatprep.subr.mxu0 0.0
    %6863 = vmatpush1.msra.mxu0 0.0
    %6864 = vmatprep.subr.mxu0 0.0
    %6865 = vmatpush1.msra.mxu0 0.0
    %6866 = vmatprep.subr.mxu0 0.0
    %6867 = vmatpush1.msra.mxu0 0.0
    %6868 = vmatprep.subr.mxu0 0.0
    %6869 = vmatpush1.msra.mxu0 0.0
    %6870 = vmatprep.subr.mxu0 0.0
    %6871 = vmatpush1.msra.mxu0 0.0
    %6872 = vmatprep.subr.mxu0 0.0
    %6873 = vmatpush1.msra.mxu0 0.0
    %6874 = vmatprep.subr.mxu0 0.0
    %6875 = vmatpush1.msra.mxu0 0.0
    %6876 = vmatprep.subr.mxu0 0.0
    %6877 = vmatpush1.msra.mxu0 0.0
    %6878 = vmatprep.subr.mxu0 0.0
    %6879 = vmatpush1.msra.mxu0 0.0
    %6880 = vmatprep.subr.mxu0 0.0
    %6881 = vmatpush1.msra.mxu0 0.0
    %6882 = vmatprep.subr.mxu0 0.0
    %6883 = vmatpush1.msra.mxu0 0.0
    %6884 = vmatprep.subr.mxu0 0.0
    %6885 = vmatpush1.msra.mxu0 0.0
    %6886 = vmatprep.subr.mxu0 0.0
    %6887 = vmatpush1.msra.mxu0 0.0
    %6888 = vmatprep.subr.mxu0 0.0
    %6889 = vmatpush1.msra.mxu0 0.0
    %6890 = vmatprep.subr.mxu0 0.0
    %6891 = vmatpush1.msra.mxu0 0.0
    %6892 = vmatprep.subr.mxu0 0.0
    %6893 = vmatpush1.msra.mxu0 0.0
    %6894 = vmatprep.subr.mxu0 0.0
    %6895 = vmatpush1.msra.mxu0 0.0
    %6896 = vmatprep.subr.mxu0 0.0
    %6897 = vmatpush1.msra.mxu0 0.0
    %6898 = vmatprep.mubr.f32.mxu0 0.0
    %6899 = vmatmul.mubr.f32.gmra.mrb[0].mxu0 %v6829
    %v6900 = vpop.f32.mrb[0].mxu0
    %v6901 = vadd.f32 %v6826, %v6900
    %v6902 = vpop.f32.mrb[0].mxu0
    %6903 = vmatprep.mubr.f32.mxu0 0.0
    %6904 = vmatmul.mubr.f32.gmra.mrb[0].mxu0 %v6832
    %v6905 = vpop.f32.mrb[0].mxu0
    %v6906 = vadd.f32 %v6826, %v6905
    %v6907 = vpop.f32.mrb[0].mxu0
    %6908 = vdwg.mxu0
    %v6909 = vmax.f32 %v6901, 0.0
    %v6910 = vmax.f32 %v6906, 0.0
    %s6911 = scalar_lea.vmem %s11, 64
    %v6912 = vld [vmem:[%s6911] sm:$0xff]
    %v6913 = vld [vmem:[%s6911 + $0x8] sm:$0xff]
    %v6914 = vld [vmem:[%s6911 + $0x10] sm:$0xff]
    %v6915 = vld [vmem:[%s6911 + $0x18] sm:$0xff]
    %v6916 = vld [vmem:[%s6911 + $0x20] sm:$0xff]
    %v6917 = vld [vmem:[%s6911 + $0x28] sm:$0xff]
    %v6918 = vld [vmem:[%s6911 + $0x30] sm:$0xff]
    %v6919 = vld [vmem:[%s6911 + $0x38] sm:$0xff]
    %s6920 = scalar_lea.vmem %s12, 1
    %v6921 = vld [vmem:[%s6920] sm:$0x1]
    %v6923 = vlaneseq
    %v6924 = vshrl.u32 %v6923, 7
    %v6925 = vsub.s32 0, %v6924
    %v6926 = vrot.slane %v6921, %v6925
    %v6929 = vsel %vm3449, %v6909, 0
    %v6932 = vsel %vm3449, %v6910, 0
    %6934 = vmatprep.subr.mxu0 0.0
    %6935 = vmatpush1.msra.mxu0 %v6912
    %6936 = vmatprep.subr.mxu0 0.0
    %6937 = vmatpush1.msra.mxu0 %v6913
    %6938 = vmatprep.subr.mxu0 0.0
    %6939 = vmatpush1.msra.mxu0 %v6914
    %6940 = vmatprep.subr.mxu0 0.0
    %6941 = vmatpush1.msra.mxu0 %v6915
    %6942 = vmatprep.subr.mxu0 0.0
    %6943 = vmatpush1.msra.mxu0 %v6916
    %6944 = vmatprep.subr.mxu0 0.0
    %6945 = vmatpush1.msra.mxu0 %v6917
    %6946 = vmatprep.subr.mxu0 0.0
    %6947 = vmatpush1.msra.mxu0 %v6918
    %6948 = vmatprep.subr.mxu0 0.0
    %6949 = vmatpush1.msra.mxu0 %v6919
    %6950 = vmatprep.subr.mxu0 0.0
    %6951 = vmatpush1.msra.mxu0 0.0
    %6952 = vmatprep.subr.mxu0 0.0
    %6953 = vmatpush1.msra.mxu0 0.0
    %6954 = vmatprep.subr.mxu0 0.0
    %6955 = vmatpush1.msra.mxu0 0.0
    %6956 = vmatprep.subr.mxu0 0.0
    %6957 = vmatpush1.msra.mxu0 0.0
    %6958 = vmatprep.subr.mxu0 0.0
    %6959 = vmatpush1.msra.mxu0 0.0
    %6960 = vmatprep.subr.mxu0 0.0
    %6961 = vmatpush1.msra.mxu0 0.0
    %6962 = vmatprep.subr.mxu0 0.0
    %6963 = vmatpush1.msra.mxu0 0.0
    %6964 = vmatprep.subr.mxu0 0.0
    %6965 = vmatpush1.msra.mxu0 0.0
    %6966 = vmatprep.subr.mxu0 0.0
    %6967 = vmatpush1.msra.mxu0 0.0
    %6968 = vmatprep.subr.mxu0 0.0
    %6969 = vmatpush1.msra.mxu0 0.0
    %6970 = vmatprep.subr.mxu0 0.0
    %6971 = vmatpush1.msra.mxu0 0.0
    %6972 = vmatprep.subr.mxu0 0.0
    %6973 = vmatpush1.msra.mxu0 0.0
    %6974 = vmatprep.subr.mxu0 0.0
    %6975 = vmatpush1.msra.mxu0 0.0
    %6976 = vmatprep.subr.mxu0 0.0
    %6977 = vmatpush1.msra.mxu0 0.0
    %6978 = vmatprep.subr.mxu0 0.0
    %6979 = vmatpush1.msra.mxu0 0.0
    %6980 = vmatprep.subr.mxu0 0.0
    %6981 = vmatpush1.msra.mxu0 0.0
    %6982 = vmatprep.subr.mxu0 0.0
    %6983 = vmatpush1.msra.mxu0 0.0
    %6984 = vmatprep.subr.mxu0 0.0
    %6985 = vmatpush1.msra.mxu0 0.0
    %6986 = vmatprep.subr.mxu0 0.0
    %6987 = vmatpush1.msra.mxu0 0.0
    %6988 = vmatprep.subr.mxu0 0.0
    %6989 = vmatpush1.msra.mxu0 0.0
    %6990 = vmatprep.subr.mxu0 0.0
    %6991 = vmatpush1.msra.mxu0 0.0
    %6992 = vmatprep.subr.mxu0 0.0
    %6993 = vmatpush1.msra.mxu0 0.0
    %6994 = vmatprep.subr.mxu0 0.0
    %6995 = vmatpush1.msra.mxu0 0.0
    %6996 = vmatprep.subr.mxu0 0.0
    %6997 = vmatpush1.msra.mxu0 0.0
    %6998 = vmatprep.mubr.f32.mxu0 0.0
    %6999 = vmatmul.mubr.f32.gmra.mrb[0].mxu0 %v6929
    %v7000 = vpop.f32.mrb[0].mxu0
    %v7001 = vadd.f32 %v6926, %v7000
    %v7002 = vpop.f32.mrb[0].mxu0
    %7003 = vmatprep.mubr.f32.mxu0 0.0
    %7004 = vmatmul.mubr.f32.gmra.mrb[0].mxu0 %v6932
    %v7005 = vpop.f32.mrb[0].mxu0
    %v7006 = vadd.f32 %v6926, %v7005
    %v7007 = vpop.f32.mrb[0].mxu0
    %7008 = vdwg.mxu0
    %v7009 = vadd.f32 %v7001, %v6759
    %v7010 = vadd.f32 %v7006, %v6760
    %v7011 = vld [vmem:[%s3 + $0x6] sm:$0x1]
    %v7012 = vld [vmem:[%s4 + $0x6] sm:$0x1]
    %v7013 = vsel %vm55, %v7009, 0.0
    %7014 = vadd.xlane.f32.xlu0 %v7013
    %v7015 = vpop.xlane.xlu0 %7014
    %v7016 = vsel %vm55, %v7010, 0.0
    %7017 = vadd.xlane.f32.xlu0 %v7016
    %v7018 = vpop.xlane.xlu0 %7017
    %v7019 = vmul.f32 %v7015, %v62
    %v7020 = vmul.f32 %v7018, %v62
    %v7021 = vsub.f32 %v7009, %v7019
    %v7022 = vsub.f32 %v7010, %v7020
    %v7023 = vmul.f32 %v7021, %v7021
    %v7024 = vmul.f32 %v7022, %v7022
    %v7025 = vsel %vm55, %v7023, 0.0
    %7026 = vadd.xlane.f32.xlu0 %v7025
    %v7027 = vpop.xlane.xlu0 %7026
    %v7028 = vsel %vm55, %v7024, 0.0
    %7029 = vadd.xlane.f32.xlu0 %v7028
    %v7030 = vpop.xlane.xlu0 %7029
    %v7031 = vmul.f32 %v7027, 0.032258064
    %v7032 = vmul.f32 %v7030, 0.032258064
    %v7033 = vrsqrt.pop %v7031
    %v7034 = vmul.f32 %v7031, %v7033
    %vm7035 = vcmp.eq.f32.partialorder %v7031, inf
    %v7036 = vsel %vm7035, %v7031, %v7034
    %vm7037 = vcmp.eq.f32.partialorder %v7031, 0.0
    %v7038 = vand.u32 %v7031, 2147483648
    %v7039 = vsel %vm7037, %v7038, %v7036
    %v7040 = vrsqrt.pop %v7032
    %v7041 = vmul.f32 %v7032, %v7040
    %vm7042 = vcmp.eq.f32.partialorder %v7032, inf
    %v7043 = vsel %vm7042, %v7032, %v7041
    %vm7044 = vcmp.eq.f32.partialorder %v7032, 0.0
    %v7045 = vand.u32 %v7032, 2147483648
    %v7046 = vsel %vm7044, %v7045, %v7043
    %v7047 = vlaneseq
    %v7048 = vshrl.u32 %v7047, 7
    %v7049 = vsub.s32 0, %v7048
    %v7050 = vrot.slane %v7011, %v7049
    %v7051 = vmul.f32 %v7050, %v7021
    %v7052 = vmul.f32 %v7050, %v7022
    %v7053 = vadd.f32 %v7039, 1e-06
    %v7054 = vadd.f32 %v7046, 1e-06
    %v7055 = vrcp.pop %v7053
    %v7056 = vrcp.pop %v7054
    %v7057 = vmul.f32 %v7051, %v7055
    %v7058 = vmul.f32 %v7052, %v7056
    %v7059 = vlaneseq
    %v7060 = vshrl.u32 %v7059, 7
    %v7061 = vsub.s32 0, %v7060
    %v7062 = vrot.slane %v7012, %v7061
    %v7063 = vadd.f32 %v7057, %v7062
    %v7064 = vadd.f32 %v7058, %v7062
    %7065 = vst.msk [vmem:[#allocation3] sm:$0xff] %vm55, %v7063
    %7066 = vst.msk [vmem:[#allocation3 + $0x8] sm:$0xff] %vm55, %v7064
    // Predicated region
    $region54: #{decoders_forward.1} parent=1 // pred_check
      _
    $region55: #{decoders_forward.1} parent=1 // pred_check_branch
      %7068 = sbr.rel (0) target = $region57
    $region56: #{decoders_forward.1} parent=1 // pred_region
      %s7070 = ssub.s32 256, 256
      %7071 = vsyncadd [#allocation4], %s7070
      %s7072 = sshll.u32 [#allocation3], 4
      %s7073 = int_to_ptr.vmem [resolvable:$true] %s7072
      %7078 = dma.vmem_to_hbm [thread:$0]  %s7073, 256, %s13, [#allocation4], 128, 128, 8
    $region57: #{decoders_forward.1} parent=1 // pred_fallthru
      _
    // Predicated region
    $region58: #{decoders_forward.1} parent=1 // pred_check
      _
    $region59: #{decoders_forward.1} parent=1 // pred_check_branch
      %7080 = sbr.rel (0) target = $region61
    $region60: #{decoders_forward.1} parent=1 // pred_region
      %7081 = dma.done [#allocation4], 256
    $region61: #{decoders_forward.1} parent=1 // pred_fallthru
      _
    %7082 = vsyncpa [#allocation4], 1

</llo_original>
